<compile_context>
chip_gen: v6e
topology: v6e:2x2x1
jax: 0.10.0
libtpu: 0.0.40
codegen_flags: <defaults>
</compile_context>

<pallas_src>
import functools
import math

import jax
import jax.numpy as jnp
from jax.experimental import pallas as pl
from jax.experimental.pallas import tpu as pltpu

# --- small, self-consistent config -------------------------------------------
SRC_VOCAB = 50
EMBED_DIM = 32
NUM_HEADS = 4
NUM_LAYERS = 2
DIM_FF = 64
MAX_LEN_SRC = 16
SEQ_LEN = 16      # NS = SEQ_LEN * BATCH = 128 rows per call (amortizes overhead)
BATCH = 8
LN_EPS = 1e-5
SEG = 128         # lane stride for packed weight / bias segments


# --- positional embedding (same formula as the PyTorch helper) ---------------
def create_positional_embedding(max_len, embed_dim):
    position = jnp.arange(max_len, dtype=jnp.float32)[:, None]
    div_term = jnp.exp(
        jnp.arange(0, embed_dim, 2, dtype=jnp.float32) * (-math.log(10000.0) / embed_dim)
    )
    pe = jnp.zeros((max_len, 1, embed_dim), dtype=jnp.float32)
    pe = pe.at[:, 0, 0::2].set(jnp.sin(position * div_term))
    pe = pe.at[:, 0, 1::2].set(jnp.cos(position * div_term))
    return pe


# --- Pallas kernel: embedding + PE + mask + both encoder layers, whole batch --
def _fused_encoder_kernel(
    ids_ref,     # (NS, 3)        int32 : [token id, vocab + seq position, sequence id]
    table_ref,   # (V + S, E)     f32   : [embedding rows ; positional rows]
    wbig_ref,    # (L, E, 5*SEG)  f32   : [Wq | Wk | Wv | Wout | W1], 128-lane aligned
    w2_ref,      # (L, F, E)      f32
    pk_ref,      # (L, 16, SEG)   f32   : biases / LN params, one vector per sublane row
    o_ref,       # (NS, E)        f32
    *, num_heads, num_layers, batch,
):
    ns = ids_ref.shape[0]
    rows = table_ref.shape[0]
    e = table_ref.shape[1]
    f = w2_ref.shape[1]
    hd = e // num_heads
    seg = wbig_ref.shape[2] // 5
    scale = 1.0 / math.sqrt(hd)
    neg_inf = jnp.float32(-1e9)

    ids = ids_ref[...]
    tok = ids[:, 0:1]        # (NS, 1) token id        (0 == <pad>)
    posrow = ids[:, 1:2]     # (NS, 1) row of the positional entry in the table
    seqid = ids[:, 2:3]      # (NS, 1) which sequence this flat row belongs to

    # ---- fused embedding + positional lookup: one-hot (NS, V+S) @ table (MXU) --
    lane = jax.lax.broadcasted_iota(jnp.int32, (ns, rows), 1)
    onehot = jnp.logical_or(lane == tok, lane == posrow).astype(jnp.float32)
    x = jnp.dot(onehot, table_ref[...], preferred_element_type=jnp.float32)   # (NS, E)

    # ---- additive attention bias, built in-kernel (no (NS,NS) operand DMA) -----
    # ok[q,k] = 1 iff q and k belong to the same sequence AND key k is not <pad>.
    seq_oh = (jax.lax.broadcasted_iota(jnp.int32, (ns, batch), 1) == seqid
              ).astype(jnp.float32)                                   # (NS, N) one-hot
    key_ok = seq_oh * (tok != 0).astype(jnp.float32)                  # zero rows for pad keys
    ok = jnp.einsum("qn,kn->qk", seq_oh, key_ok,
                    preferred_element_type=jnp.float32)               # (NS, NS)
    bias = jnp.where(ok > 0.5, 0.0, neg_inf)

    lane_e = jax.lax.broadcasted_iota(jnp.int32, (1, e), 1)           # for per-head masks

    def layer_norm(v, w, b):
        mu = jnp.mean(v, axis=-1, keepdims=True)
        var = jnp.mean((v - mu) ** 2, axis=-1, keepdims=True)
        return (v - mu) * jax.lax.rsqrt(var + LN_EPS) * w + b

    for l in range(num_layers):          # static unroll: weights stay VMEM-resident
        wl = wbig_ref[l]                 # (E, 5*SEG), all slices 128-lane aligned
        wq = wl[:, 0 * seg:0 * seg + e]
        wk = wl[:, 1 * seg:1 * seg + e]
        wv = wl[:, 2 * seg:2 * seg + e]
        wo = wl[:, 3 * seg:3 * seg + e]
        w1 = wl[:, 4 * seg:4 * seg + f]
        w2 = w2_ref[l]                   # (F, E)

        pk = pk_ref[l]                   # (16, SEG); one vector per sublane row
        b_q, b_k, b_v, b_o = pk[0:1, :e], pk[1:2, :e], pk[2:3, :e], pk[3:4, :e]
        b_1, b_2 = pk[4:5, :f], pk[5:6, :e]
        n1w, n1b = pk[6:7, :e], pk[7:8, :e]
        n2w, n2b = pk[8:9, :e], pk[9:10, :e]

        # --- multi-head self-attention, everything kept 2-D ---
        q = (jnp.dot(x, wq, preferred_element_type=jnp.float32) + b_q) * scale
        k = jnp.dot(x, wk, preferred_element_type=jnp.float32) + b_k
        v = jnp.dot(x, wv, preferred_element_type=jnp.float32) + b_v

        ctx = jnp.zeros((ns, e), jnp.float32)
        for h in range(num_heads):
            # head-h column mask (compile-time pattern): selects lanes [h*hd, (h+1)*hd)
            hm = ((lane_e >= h * hd) & (lane_e < (h + 1) * hd)).astype(jnp.float32)
            # (q*hm) . k contracts only head-h columns  ==  Q_h @ K_h^T  (exact)
            s = jnp.einsum("qe,ke->qk", q * hm, k,
                           preferred_element_type=jnp.float32) + bias          # (NS, NS)
            s = s - jnp.max(s, axis=-1, keepdims=True)
            p = jnp.exp(s)
            p = p * pl.reciprocal(jnp.sum(p, axis=-1, keepdims=True), approx=False)
            # P_h @ (V*hm) lands in head-h columns; summing over h == head concat
            ctx = ctx + jnp.dot(p, v * hm, preferred_element_type=jnp.float32)  # (NS, E)

        attn = jnp.dot(ctx, wo, preferred_element_type=jnp.float32) + b_o
        y = layer_norm(x + attn, n1w, n1b)

        # --- feed-forward ---
        ff = jnp.maximum(jnp.dot(y, w1, preferred_element_type=jnp.float32) + b_1, 0.0)
        ff = jnp.dot(ff, w2, preferred_element_type=jnp.float32) + b_2
        x = layer_norm(y + ff, n2w, n2b)

    o_ref[...] = x


# --- wrapper: only cheap index/concat prep outside the kernel ----------------
@jax.jit
def transformer_encoder_forward(tokens, emb_table, pos_emb, params):
    """tokens: (S, N) int32 (PyTorch batch_first=False). Returns (S, N, E) f32."""
    S, N = tokens.shape
    NS = S * N
    V, E = emb_table.shape
    F = params["w_lin2"].shape[1]
    H, L = NUM_HEADS, NUM_LAYERS

    # augmented lookup table: rows [0,V) = embedding, rows [V, V+S) = positional
    table = jnp.concatenate([emb_table, pos_emb[:S, 0, :]], axis=0)

    # flat slab ordering p = s*N + n (row-major flatten of (S, N))
    flat_tok = tokens.reshape(NS).astype(jnp.int32)
    pos_idx = jnp.arange(NS, dtype=jnp.int32)
    ids = jnp.stack([flat_tok, V + pos_idx // N, pos_idx % N], axis=1)   # (NS, 3)

    # advisory cost estimate so XLA can schedule around the custom call
    flops = (2 * NS * (V + S) * E + 2 * NS * NS * N
             + L * (4 * 2 * NS * E * E + 2 * H * 2 * NS * NS * E + 2 * 2 * NS * E * F))
    bytes_accessed = 4 * (ids.size + table.size + params["w_big"].size
                          + params["w_lin2"].size + params["packed"].size + NS * E)
    transcendentals = L * H * NS * NS + 2 * L * NS

    vmem = pl.BlockSpec(memory_space=pltpu.MemorySpace.VMEM)
    kernel = functools.partial(_fused_encoder_kernel, num_heads=NUM_HEADS,
                               num_layers=NUM_LAYERS, batch=N)

    out = pl.pallas_call(
        kernel,
        out_shape=jax.ShapeDtypeStruct((NS, E), jnp.float32),
        in_specs=[vmem] * 5,
        out_specs=vmem,
        cost_estimate=pl.CostEstimate(flops=int(flops),
                                      transcendentals=int(transcendentals),
                                      bytes_accessed=int(bytes_accessed)),
    )(ids, table, params["w_big"], params["w_lin2"], params["packed"])

    return out.reshape(S, N, E)          # flat (S,N) order -> (S, N, E), free reshape


# --- deterministic parameter init (shapes match nn.TransformerEncoderLayer) --
def init_params(key):
    E, F, L = EMBED_DIM, DIM_FF, NUM_LAYERS
    assert E <= SEG and F <= SEG
    keys = jax.random.split(key, 1 + L)
    emb_table = jax.random.normal(keys[0], (SRC_VOCAB, E), jnp.float32) * 0.1

    def lane_pad(w):   # (rows, width) -> (rows, SEG): segment starts 128-lane aligned
        return jnp.pad(w, ((0, 0), (0, SEG - w.shape[1])))

    def row(v):        # (width,) -> (1, SEG): one bias / LN vector per sublane row
        return jnp.pad(v.astype(jnp.float32), (0, SEG - v.shape[0]))[None, :]

    w_big, w_lin2, packed = [], [], []
    for i in range(L):
        lk = jax.random.split(keys[1 + i], 6)
        wq = jax.random.normal(lk[0], (E, E), jnp.float32) * 0.05
        wk = jax.random.normal(lk[1], (E, E), jnp.float32) * 0.05
        wv = jax.random.normal(lk[2], (E, E), jnp.float32) * 0.05
        wo = jax.random.normal(lk[3], (E, E), jnp.float32) * 0.05
        w1 = jax.random.normal(lk[4], (E, F), jnp.float32) * 0.05
        w2 = jax.random.normal(lk[5], (F, E), jnp.float32) * 0.05
        w_big.append(jnp.concatenate(
            [lane_pad(wq), lane_pad(wk), lane_pad(wv), lane_pad(wo), lane_pad(w1)], axis=1))
        w_lin2.append(w2)
        packed.append(jnp.concatenate([
            row(jnp.zeros((E,))),   # 0: b_q
            row(jnp.zeros((E,))),   # 1: b_k
            row(jnp.zeros((E,))),   # 2: b_v
            row(jnp.zeros((E,))),   # 3: b_out
            row(jnp.zeros((F,))),   # 4: b_lin1
            row(jnp.zeros((E,))),   # 5: b_lin2
            row(jnp.ones((E,))),    # 6: norm1 weight
            row(jnp.zeros((E,))),   # 7: norm1 bias
            row(jnp.ones((E,))),    # 8: norm2 weight
            row(jnp.zeros((E,))),   # 9: norm2 bias
            jnp.zeros((6, SEG), jnp.float32),   # pad to 16 sublane rows
        ], axis=0))

    params = dict(w_big=jnp.stack(w_big), w_lin2=jnp.stack(w_lin2),
                  packed=jnp.stack(packed))
    return emb_table, params


if __name__ == "__main__":
    key = jax.random.PRNGKey(0)
    pkey, tkey = jax.random.split(key)

    emb_table, params = init_params(pkey)
    pos_emb = create_positional_embedding(MAX_LEN_SRC, EMBED_DIM)

    tokens = jax.random.randint(tkey, (SEQ_LEN, BATCH), 1, SRC_VOCAB, dtype=jnp.int32)
    tokens = tokens.at[-3:, 0].set(0)   # pad tail of sequence 0 to exercise the mask

    out = transformer_encoder_forward(tokens, emb_table, pos_emb, params)
    out = jax.block_until_ready(out)

    assert out.shape == (SEQ_LEN, BATCH, EMBED_DIM)
    assert bool(jnp.all(jnp.isfinite(out)))
    print("KERNEL_OK")
</pallas_src>

<mosaic_0001>
module attributes {stable_mosaic.version = 11 : i64} {
  func.func @_fused_encoder_kernel(%arg0: memref<128x3xi32, #tpu.memory_space<vmem>>, %arg1: memref<66x32xf32, #tpu.memory_space<vmem>>, %arg2: memref<2x32x640xf32, #tpu.memory_space<vmem>>, %arg3: memref<2x64x32xf32, #tpu.memory_space<vmem>>, %arg4: memref<2x16x128xf32, #tpu.memory_space<vmem>>, %arg5: memref<128x32xf32, #tpu.memory_space<vmem>>) attributes {dimension_semantics = [], scalar_prefetch = 0 : i64, scratch_operands = 0 : i64, tpu.core_type = #tpu.core_type<tc>} {
    %c0 = arith.constant 0 : index
    %c0_0 = arith.constant 0 : index
    %0 = vector.load %arg0[%c0, %c0_0] : memref<128x3xi32, #tpu.memory_space<vmem>>, vector<128x3xi32>
    %1 = vector.extract_strided_slice %0 {offsets = [0, 0], sizes = [128, 1], strides = [1, 1]} : vector<128x3xi32> to vector<128x1xi32>
    %2 = vector.extract_strided_slice %0 {offsets = [0, 1], sizes = [128, 1], strides = [1, 1]} : vector<128x3xi32> to vector<128x1xi32>
    %3 = vector.extract_strided_slice %0 {offsets = [0, 2], sizes = [128, 1], strides = [1, 1]} : vector<128x3xi32> to vector<128x1xi32>
    %4 = tpu.iota {dimensions = array<i32: 1>} : vector<128x66xi32>
    %5 = vector.broadcast %1 : vector<128x1xi32> to vector<128x66xi32>
    %6 = arith.cmpi eq, %4, %5 : vector<128x66xi32>
    %7 = vector.broadcast %2 : vector<128x1xi32> to vector<128x66xi32>
    %8 = arith.cmpi eq, %4, %7 : vector<128x66xi32>
    %9 = arith.ori %6, %8 : vector<128x66xi1>
    %10 = arith.extui %9 : vector<128x66xi1> to vector<128x66xi32>
    %11 = arith.sitofp %10 : vector<128x66xi32> to vector<128x66xf32>
    %c0_1 = arith.constant 0 : index
    %c0_2 = arith.constant 0 : index
    %12 = vector.load %arg1[%c0_1, %c0_2] : memref<66x32xf32, #tpu.memory_space<vmem>>, vector<66x32xf32>
    %cst = arith.constant dense<0.000000e+00> : vector<128x32xf32>
    %13 = tpu.matmul %11, %12, %cst {dimension_numbers = #tpu.dot_dimension_numbers<[1], [0], [0], [1], [0, 0, 1, 1], [], []>} : vector<128x66xf32>, vector<66x32xf32>, vector<128x32xf32> -> vector<128x32xf32>
    %14 = tpu.iota {dimensions = array<i32: 1>} : vector<128x8xi32>
    %15 = vector.broadcast %3 : vector<128x1xi32> to vector<128x8xi32>
    %16 = arith.cmpi eq, %14, %15 : vector<128x8xi32>
    %17 = arith.extui %16 : vector<128x8xi1> to vector<128x8xi32>
    %18 = arith.sitofp %17 : vector<128x8xi32> to vector<128x8xf32>
    %c0_i32 = arith.constant 0 : i32
    %19 = vector.broadcast %c0_i32 : i32 to vector<128x1xi32>
    %20 = arith.cmpi ne, %1, %19 : vector<128x1xi32>
    %21 = arith.extui %20 : vector<128x1xi1> to vector<128x1xi32>
    %22 = arith.sitofp %21 : vector<128x1xi32> to vector<128x1xf32>
    %23 = vector.broadcast %22 : vector<128x1xf32> to vector<128x8xf32>
    %24 = arith.mulf %18, %23 : vector<128x8xf32>
    "tpu.trace_start"() <{level = 10 : i32, message = "qn,kn->qk"}> : () -> ()
    %cst_3 = arith.constant dense<0.000000e+00> : vector<128x128xf32>
    %25 = tpu.matmul %18, %24, %cst_3 {dimension_numbers = #tpu.dot_dimension_numbers<[1], [1], [0], [0], [0, 0, 1, 0], [], []>} : vector<128x8xf32>, vector<128x8xf32>, vector<128x128xf32> -> vector<128x128xf32>
    %cst_4 = arith.constant 5.000000e-01 : f32
    "tpu.trace_stop"() : () -> ()
    %26 = vector.broadcast %cst_4 : f32 to vector<128x128xf32>
    %27 = arith.cmpf ogt, %25, %26 : vector<128x128xf32>
    %cst_5 = arith.constant 0.000000e+00 : f32
    %cst_6 = arith.constant -1.000000e+09 : f32
    %28 = vector.broadcast %cst_5 : f32 to vector<128x128xf32>
    %29 = vector.broadcast %cst_6 : f32 to vector<128x128xf32>
    %30 = arith.select %27, %28, %29 : vector<128x128xi1>, vector<128x128xf32>
    %31 = tpu.iota {dimensions = array<i32: 1>} : vector<1x32xi32>
    %c0_7 = arith.constant 0 : index
    %c0_8 = arith.constant 0 : index
    %c0_9 = arith.constant 0 : index
    %32 = vector.load %arg2[%c0_7, %c0_8, %c0_9] : memref<2x32x640xf32, #tpu.memory_space<vmem>>, vector<1x32x640xf32>
    %33 = vector.shape_cast %32 : vector<1x32x640xf32> to vector<32x640xf32>
    %34 = vector.extract_strided_slice %33 {offsets = [0, 0], sizes = [32, 32], strides = [1, 1]} : vector<32x640xf32> to vector<32x32xf32>
    %35 = vector.extract_strided_slice %33 {offsets = [0, 128], sizes = [32, 32], strides = [1, 1]} : vector<32x640xf32> to vector<32x32xf32>
    %36 = vector.extract_strided_slice %33 {offsets = [0, 256], sizes = [32, 32], strides = [1, 1]} : vector<32x640xf32> to vector<32x32xf32>
    %37 = vector.extract_strided_slice %33 {offsets = [0, 384], sizes = [32, 32], strides = [1, 1]} : vector<32x640xf32> to vector<32x32xf32>
    %38 = vector.extract_strided_slice %33 {offsets = [0, 512], sizes = [32, 64], strides = [1, 1]} : vector<32x640xf32> to vector<32x64xf32>
    %c0_10 = arith.constant 0 : index
    %c0_11 = arith.constant 0 : index
    %c0_12 = arith.constant 0 : index
    %39 = vector.load %arg3[%c0_10, %c0_11, %c0_12] : memref<2x64x32xf32, #tpu.memory_space<vmem>>, vector<1x64x32xf32>
    %40 = vector.shape_cast %39 : vector<1x64x32xf32> to vector<64x32xf32>
    %c0_13 = arith.constant 0 : index
    %c0_14 = arith.constant 0 : index
    %c0_15 = arith.constant 0 : index
    %41 = vector.load %arg4[%c0_13, %c0_14, %c0_15] : memref<2x16x128xf32, #tpu.memory_space<vmem>>, vector<1x16x128xf32>
    %42 = vector.shape_cast %41 : vector<1x16x128xf32> to vector<16x128xf32>
    %43 = vector.extract_strided_slice %42 {offsets = [0, 0], sizes = [1, 32], strides = [1, 1]} : vector<16x128xf32> to vector<1x32xf32>
    %44 = vector.extract_strided_slice %42 {offsets = [1, 0], sizes = [1, 32], strides = [1, 1]} : vector<16x128xf32> to vector<1x32xf32>
    %45 = vector.extract_strided_slice %42 {offsets = [2, 0], sizes = [1, 32], strides = [1, 1]} : vector<16x128xf32> to vector<1x32xf32>
    %46 = vector.extract_strided_slice %42 {offsets = [3, 0], sizes = [1, 32], strides = [1, 1]} : vector<16x128xf32> to vector<1x32xf32>
    %47 = vector.extract_strided_slice %42 {offsets = [4, 0], sizes = [1, 64], strides = [1, 1]} : vector<16x128xf32> to vector<1x64xf32>
    %48 = vector.extract_strided_slice %42 {offsets = [5, 0], sizes = [1, 32], strides = [1, 1]} : vector<16x128xf32> to vector<1x32xf32>
    %49 = vector.extract_strided_slice %42 {offsets = [6, 0], sizes = [1, 32], strides = [1, 1]} : vector<16x128xf32> to vector<1x32xf32>
    %50 = vector.extract_strided_slice %42 {offsets = [7, 0], sizes = [1, 32], strides = [1, 1]} : vector<16x128xf32> to vector<1x32xf32>
    %51 = vector.extract_strided_slice %42 {offsets = [8, 0], sizes = [1, 32], strides = [1, 1]} : vector<16x128xf32> to vector<1x32xf32>
    %52 = vector.extract_strided_slice %42 {offsets = [9, 0], sizes = [1, 32], strides = [1, 1]} : vector<16x128xf32> to vector<1x32xf32>
    %cst_16 = arith.constant dense<0.000000e+00> : vector<128x32xf32>
    %53 = tpu.matmul %13, %34, %cst_16 {dimension_numbers = #tpu.dot_dimension_numbers<[1], [0], [0], [1], [0, 0, 1, 1], [], []>} : vector<128x32xf32>, vector<32x32xf32>, vector<128x32xf32> -> vector<128x32xf32>
    %54 = vector.broadcast %43 : vector<1x32xf32> to vector<128x32xf32>
    %55 = arith.addf %53, %54 : vector<128x32xf32>
    %cst_17 = arith.constant 0.353553385 : f32
    %56 = vector.broadcast %cst_17 : f32 to vector<128x32xf32>
    %57 = arith.mulf %55, %56 : vector<128x32xf32>
    %cst_18 = arith.constant dense<0.000000e+00> : vector<128x32xf32>
    %58 = tpu.matmul %13, %35, %cst_18 {dimension_numbers = #tpu.dot_dimension_numbers<[1], [0], [0], [1], [0, 0, 1, 1], [], []>} : vector<128x32xf32>, vector<32x32xf32>, vector<128x32xf32> -> vector<128x32xf32>
    %59 = vector.broadcast %44 : vector<1x32xf32> to vector<128x32xf32>
    %60 = arith.addf %58, %59 : vector<128x32xf32>
    %cst_19 = arith.constant dense<0.000000e+00> : vector<128x32xf32>
    %61 = tpu.matmul %13, %36, %cst_19 {dimension_numbers = #tpu.dot_dimension_numbers<[1], [0], [0], [1], [0, 0, 1, 1], [], []>} : vector<128x32xf32>, vector<32x32xf32>, vector<128x32xf32> -> vector<128x32xf32>
    %62 = vector.broadcast %45 : vector<1x32xf32> to vector<128x32xf32>
    %63 = arith.addf %61, %62 : vector<128x32xf32>
    %cst_20 = arith.constant 0.000000e+00 : f32
    %64 = vector.broadcast %cst_20 : f32 to vector<128x32xf32>
    %c0_i32_21 = arith.constant 0 : i32
    %65 = vector.broadcast %c0_i32_21 : i32 to vector<1x32xi32>
    %66 = arith.cmpi sge, %31, %65 : vector<1x32xi32>
    %c8_i32 = arith.constant 8 : i32
    %67 = vector.broadcast %c8_i32 : i32 to vector<1x32xi32>
    %68 = arith.cmpi slt, %31, %67 : vector<1x32xi32>
    %69 = arith.andi %66, %68 : vector<1x32xi1>
    %70 = arith.extui %69 : vector<1x32xi1> to vector<1x32xi32>
    %71 = arith.sitofp %70 : vector<1x32xi32> to vector<1x32xf32>
    %72 = vector.broadcast %71 : vector<1x32xf32> to vector<128x32xf32>
    %73 = arith.mulf %57, %72 : vector<128x32xf32>
    "tpu.trace_start"() <{level = 10 : i32, message = "qe,ke->qk"}> : () -> ()
    %cst_22 = arith.constant dense<0.000000e+00> : vector<128x128xf32>
    %74 = tpu.matmul %73, %60, %cst_22 {dimension_numbers = #tpu.dot_dimension_numbers<[1], [1], [0], [0], [0, 0, 1, 0], [], []>} : vector<128x32xf32>, vector<128x32xf32>, vector<128x128xf32> -> vector<128x128xf32>
    "tpu.trace_stop"() : () -> ()
    %75 = arith.addf %74, %30 : vector<128x128xf32>
    %cst_23 = arith.constant dense<0xFF800000> : vector<128xf32>
    %76 = vector.multi_reduction <maximumf>, %75, %cst_23 [1] : vector<128x128xf32> to vector<128xf32>
    %77 = vector.shape_cast %76 : vector<128xf32> to vector<128x1xf32>
    %78 = vector.broadcast %77 : vector<128x1xf32> to vector<128x128xf32>
    %79 = arith.subf %75, %78 : vector<128x128xf32>
    %80 = math.exp %79 : vector<128x128xf32>
    %cst_24 = arith.constant dense<0.000000e+00> : vector<128xf32>
    %81 = vector.multi_reduction <add>, %80, %cst_24 [1] : vector<128x128xf32> to vector<128xf32>
    %82 = vector.shape_cast %81 : vector<128xf32> to vector<128x1xf32>
    %83 = tpu.reciprocal %82 : vector<128x1xf32> -> vector<128x1xf32>
    %84 = vector.broadcast %83 : vector<128x1xf32> to vector<128x128xf32>
    %85 = arith.mulf %80, %84 : vector<128x128xf32>
    %86 = vector.broadcast %71 : vector<1x32xf32> to vector<128x32xf32>
    %87 = arith.mulf %63, %86 : vector<128x32xf32>
    %cst_25 = arith.constant dense<0.000000e+00> : vector<128x32xf32>
    %88 = tpu.matmul %85, %87, %cst_25 {dimension_numbers = #tpu.dot_dimension_numbers<[1], [0], [0], [1], [0, 0, 1, 1], [], []>} : vector<128x128xf32>, vector<128x32xf32>, vector<128x32xf32> -> vector<128x32xf32>
    %89 = arith.addf %64, %88 : vector<128x32xf32>
    %c8_i32_26 = arith.constant 8 : i32
    %90 = vector.broadcast %c8_i32_26 : i32 to vector<1x32xi32>
    %91 = arith.cmpi sge, %31, %90 : vector<1x32xi32>
    %c16_i32 = arith.constant 16 : i32
    %92 = vector.broadcast %c16_i32 : i32 to vector<1x32xi32>
    %93 = arith.cmpi slt, %31, %92 : vector<1x32xi32>
    %94 = arith.andi %91, %93 : vector<1x32xi1>
    %95 = arith.extui %94 : vector<1x32xi1> to vector<1x32xi32>
    %96 = arith.sitofp %95 : vector<1x32xi32> to vector<1x32xf32>
    %97 = vector.broadcast %96 : vector<1x32xf32> to vector<128x32xf32>
    %98 = arith.mulf %57, %97 : vector<128x32xf32>
    "tpu.trace_start"() <{level = 10 : i32, message = "qe,ke->qk"}> : () -> ()
    %cst_27 = arith.constant dense<0.000000e+00> : vector<128x128xf32>
    %99 = tpu.matmul %98, %60, %cst_27 {dimension_numbers = #tpu.dot_dimension_numbers<[1], [1], [0], [0], [0, 0, 1, 0], [], []>} : vector<128x32xf32>, vector<128x32xf32>, vector<128x128xf32> -> vector<128x128xf32>
    "tpu.trace_stop"() : () -> ()
    %100 = arith.addf %99, %30 : vector<128x128xf32>
    %cst_28 = arith.constant dense<0xFF800000> : vector<128xf32>
    %101 = vector.multi_reduction <maximumf>, %100, %cst_28 [1] : vector<128x128xf32> to vector<128xf32>
    %102 = vector.shape_cast %101 : vector<128xf32> to vector<128x1xf32>
    %103 = vector.broadcast %102 : vector<128x1xf32> to vector<128x128xf32>
    %104 = arith.subf %100, %103 : vector<128x128xf32>
    %105 = math.exp %104 : vector<128x128xf32>
    %cst_29 = arith.constant dense<0.000000e+00> : vector<128xf32>
    %106 = vector.multi_reduction <add>, %105, %cst_29 [1] : vector<128x128xf32> to vector<128xf32>
    %107 = vector.shape_cast %106 : vector<128xf32> to vector<128x1xf32>
    %108 = tpu.reciprocal %107 : vector<128x1xf32> -> vector<128x1xf32>
    %109 = vector.broadcast %108 : vector<128x1xf32> to vector<128x128xf32>
    %110 = arith.mulf %105, %109 : vector<128x128xf32>
    %111 = vector.broadcast %96 : vector<1x32xf32> to vector<128x32xf32>
    %112 = arith.mulf %63, %111 : vector<128x32xf32>
    %cst_30 = arith.constant dense<0.000000e+00> : vector<128x32xf32>
    %113 = tpu.matmul %110, %112, %cst_30 {dimension_numbers = #tpu.dot_dimension_numbers<[1], [0], [0], [1], [0, 0, 1, 1], [], []>} : vector<128x128xf32>, vector<128x32xf32>, vector<128x32xf32> -> vector<128x32xf32>
    %114 = arith.addf %89, %113 : vector<128x32xf32>
    %c16_i32_31 = arith.constant 16 : i32
    %115 = vector.broadcast %c16_i32_31 : i32 to vector<1x32xi32>
    %116 = arith.cmpi sge, %31, %115 : vector<1x32xi32>
    %c24_i32 = arith.constant 24 : i32
    %117 = vector.broadcast %c24_i32 : i32 to vector<1x32xi32>
    %118 = arith.cmpi slt, %31, %117 : vector<1x32xi32>
    %119 = arith.andi %116, %118 : vector<1x32xi1>
    %120 = arith.extui %119 : vector<1x32xi1> to vector<1x32xi32>
    %121 = arith.sitofp %120 : vector<1x32xi32> to vector<1x32xf32>
    %122 = vector.broadcast %121 : vector<1x32xf32> to vector<128x32xf32>
    %123 = arith.mulf %57, %122 : vector<128x32xf32>
    "tpu.trace_start"() <{level = 10 : i32, message = "qe,ke->qk"}> : () -> ()
    %cst_32 = arith.constant dense<0.000000e+00> : vector<128x128xf32>
    %124 = tpu.matmul %123, %60, %cst_32 {dimension_numbers = #tpu.dot_dimension_numbers<[1], [1], [0], [0], [0, 0, 1, 0], [], []>} : vector<128x32xf32>, vector<128x32xf32>, vector<128x128xf32> -> vector<128x128xf32>
    "tpu.trace_stop"() : () -> ()
    %125 = arith.addf %124, %30 : vector<128x128xf32>
    %cst_33 = arith.constant dense<0xFF800000> : vector<128xf32>
    %126 = vector.multi_reduction <maximumf>, %125, %cst_33 [1] : vector<128x128xf32> to vector<128xf32>
    %127 = vector.shape_cast %126 : vector<128xf32> to vector<128x1xf32>
    %128 = vector.broadcast %127 : vector<128x1xf32> to vector<128x128xf32>
    %129 = arith.subf %125, %128 : vector<128x128xf32>
    %130 = math.exp %129 : vector<128x128xf32>
    %cst_34 = arith.constant dense<0.000000e+00> : vector<128xf32>
    %131 = vector.multi_reduction <add>, %130, %cst_34 [1] : vector<128x128xf32> to vector<128xf32>
    %132 = vector.shape_cast %131 : vector<128xf32> to vector<128x1xf32>
    %133 = tpu.reciprocal %132 : vector<128x1xf32> -> vector<128x1xf32>
    %134 = vector.broadcast %133 : vector<128x1xf32> to vector<128x128xf32>
    %135 = arith.mulf %130, %134 : vector<128x128xf32>
    %136 = vector.broadcast %121 : vector<1x32xf32> to vector<128x32xf32>
    %137 = arith.mulf %63, %136 : vector<128x32xf32>
    %cst_35 = arith.constant dense<0.000000e+00> : vector<128x32xf32>
    %138 = tpu.matmul %135, %137, %cst_35 {dimension_numbers = #tpu.dot_dimension_numbers<[1], [0], [0], [1], [0, 0, 1, 1], [], []>} : vector<128x128xf32>, vector<128x32xf32>, vector<128x32xf32> -> vector<128x32xf32>
    %139 = arith.addf %114, %138 : vector<128x32xf32>
    %c24_i32_36 = arith.constant 24 : i32
    %140 = vector.broadcast %c24_i32_36 : i32 to vector<1x32xi32>
    %141 = arith.cmpi sge, %31, %140 : vector<1x32xi32>
    %c32_i32 = arith.constant 32 : i32
    %142 = vector.broadcast %c32_i32 : i32 to vector<1x32xi32>
    %143 = arith.cmpi slt, %31, %142 : vector<1x32xi32>
    %144 = arith.andi %141, %143 : vector<1x32xi1>
    %145 = arith.extui %144 : vector<1x32xi1> to vector<1x32xi32>
    %146 = arith.sitofp %145 : vector<1x32xi32> to vector<1x32xf32>
    %147 = vector.broadcast %146 : vector<1x32xf32> to vector<128x32xf32>
    %148 = arith.mulf %57, %147 : vector<128x32xf32>
    "tpu.trace_start"() <{level = 10 : i32, message = "qe,ke->qk"}> : () -> ()
    %cst_37 = arith.constant dense<0.000000e+00> : vector<128x128xf32>
    %149 = tpu.matmul %148, %60, %cst_37 {dimension_numbers = #tpu.dot_dimension_numbers<[1], [1], [0], [0], [0, 0, 1, 0], [], []>} : vector<128x32xf32>, vector<128x32xf32>, vector<128x128xf32> -> vector<128x128xf32>
    "tpu.trace_stop"() : () -> ()
    %150 = arith.addf %149, %30 : vector<128x128xf32>
    %cst_38 = arith.constant dense<0xFF800000> : vector<128xf32>
    %151 = vector.multi_reduction <maximumf>, %150, %cst_38 [1] : vector<128x128xf32> to vector<128xf32>
    %152 = vector.shape_cast %151 : vector<128xf32> to vector<128x1xf32>
    %153 = vector.broadcast %152 : vector<128x1xf32> to vector<128x128xf32>
    %154 = arith.subf %150, %153 : vector<128x128xf32>
    %155 = math.exp %154 : vector<128x128xf32>
    %cst_39 = arith.constant dense<0.000000e+00> : vector<128xf32>
    %156 = vector.multi_reduction <add>, %155, %cst_39 [1] : vector<128x128xf32> to vector<128xf32>
    %157 = vector.shape_cast %156 : vector<128xf32> to vector<128x1xf32>
    %158 = tpu.reciprocal %157 : vector<128x1xf32> -> vector<128x1xf32>
    %159 = vector.broadcast %158 : vector<128x1xf32> to vector<128x128xf32>
    %160 = arith.mulf %155, %159 : vector<128x128xf32>
    %161 = vector.broadcast %146 : vector<1x32xf32> to vector<128x32xf32>
    %162 = arith.mulf %63, %161 : vector<128x32xf32>
    %cst_40 = arith.constant dense<0.000000e+00> : vector<128x32xf32>
    %163 = tpu.matmul %160, %162, %cst_40 {dimension_numbers = #tpu.dot_dimension_numbers<[1], [0], [0], [1], [0, 0, 1, 1], [], []>} : vector<128x128xf32>, vector<128x32xf32>, vector<128x32xf32> -> vector<128x32xf32>
    %164 = arith.addf %139, %163 : vector<128x32xf32>
    %cst_41 = arith.constant dense<0.000000e+00> : vector<128x32xf32>
    %165 = tpu.matmul %164, %37, %cst_41 {dimension_numbers = #tpu.dot_dimension_numbers<[1], [0], [0], [1], [0, 0, 1, 1], [], []>} : vector<128x32xf32>, vector<32x32xf32>, vector<128x32xf32> -> vector<128x32xf32>
    %166 = vector.broadcast %46 : vector<1x32xf32> to vector<128x32xf32>
    %167 = arith.addf %165, %166 : vector<128x32xf32>
    %168 = arith.addf %13, %167 : vector<128x32xf32>
    %cst_42 = arith.constant dense<0.000000e+00> : vector<128xf32>
    %169 = vector.multi_reduction <add>, %168, %cst_42 [1] : vector<128x32xf32> to vector<128xf32>
    %170 = vector.shape_cast %169 : vector<128xf32> to vector<128x1xf32>
    %cst_43 = arith.constant 3.200000e+01 : f32
    %171 = vector.broadcast %cst_43 : f32 to vector<128x1xf32>
    %172 = arith.divf %170, %171 : vector<128x1xf32>
    %173 = vector.broadcast %172 : vector<128x1xf32> to vector<128x32xf32>
    %174 = arith.subf %168, %173 : vector<128x32xf32>
    %175 = arith.mulf %174, %174 : vector<128x32xf32>
    %cst_44 = arith.constant dense<0.000000e+00> : vector<128xf32>
    %176 = vector.multi_reduction <add>, %175, %cst_44 [1] : vector<128x32xf32> to vector<128xf32>
    %177 = vector.shape_cast %176 : vector<128xf32> to vector<128x1xf32>
    %cst_45 = arith.constant 3.200000e+01 : f32
    %178 = vector.broadcast %cst_45 : f32 to vector<128x1xf32>
    %179 = arith.divf %177, %178 : vector<128x1xf32>
    %180 = vector.broadcast %172 : vector<128x1xf32> to vector<128x32xf32>
    %181 = arith.subf %168, %180 : vector<128x32xf32>
    %cst_46 = arith.constant 9.99999974E-6 : f32
    %182 = vector.broadcast %cst_46 : f32 to vector<128x1xf32>
    %183 = arith.addf %179, %182 : vector<128x1xf32>
    %184 = math.rsqrt %183 : vector<128x1xf32>
    %185 = vector.broadcast %184 : vector<128x1xf32> to vector<128x32xf32>
    %186 = arith.mulf %181, %185 : vector<128x32xf32>
    %187 = vector.broadcast %49 : vector<1x32xf32> to vector<128x32xf32>
    %188 = arith.mulf %186, %187 : vector<128x32xf32>
    %189 = vector.broadcast %50 : vector<1x32xf32> to vector<128x32xf32>
    %190 = arith.addf %188, %189 : vector<128x32xf32>
    %cst_47 = arith.constant dense<0.000000e+00> : vector<128x64xf32>
    %191 = tpu.matmul %190, %38, %cst_47 {dimension_numbers = #tpu.dot_dimension_numbers<[1], [0], [0], [1], [0, 0, 1, 1], [], []>} : vector<128x32xf32>, vector<32x64xf32>, vector<128x64xf32> -> vector<128x64xf32>
    %192 = vector.broadcast %47 : vector<1x64xf32> to vector<128x64xf32>
    %193 = arith.addf %191, %192 : vector<128x64xf32>
    %cst_48 = arith.constant 0.000000e+00 : f32
    %194 = vector.broadcast %cst_48 : f32 to vector<128x64xf32>
    %195 = arith.maximumf %193, %194 : vector<128x64xf32>
    %cst_49 = arith.constant dense<0.000000e+00> : vector<128x32xf32>
    %196 = tpu.matmul %195, %40, %cst_49 {dimension_numbers = #tpu.dot_dimension_numbers<[1], [0], [0], [1], [0, 0, 1, 1], [], []>} : vector<128x64xf32>, vector<64x32xf32>, vector<128x32xf32> -> vector<128x32xf32>
    %197 = vector.broadcast %48 : vector<1x32xf32> to vector<128x32xf32>
    %198 = arith.addf %196, %197 : vector<128x32xf32>
    %199 = arith.addf %190, %198 : vector<128x32xf32>
    %cst_50 = arith.constant dense<0.000000e+00> : vector<128xf32>
    %200 = vector.multi_reduction <add>, %199, %cst_50 [1] : vector<128x32xf32> to vector<128xf32>
    %201 = vector.shape_cast %200 : vector<128xf32> to vector<128x1xf32>
    %cst_51 = arith.constant 3.200000e+01 : f32
    %202 = vector.broadcast %cst_51 : f32 to vector<128x1xf32>
    %203 = arith.divf %201, %202 : vector<128x1xf32>
    %204 = vector.broadcast %203 : vector<128x1xf32> to vector<128x32xf32>
    %205 = arith.subf %199, %204 : vector<128x32xf32>
    %206 = arith.mulf %205, %205 : vector<128x32xf32>
    %cst_52 = arith.constant dense<0.000000e+00> : vector<128xf32>
    %207 = vector.multi_reduction <add>, %206, %cst_52 [1] : vector<128x32xf32> to vector<128xf32>
    %208 = vector.shape_cast %207 : vector<128xf32> to vector<128x1xf32>
    %cst_53 = arith.constant 3.200000e+01 : f32
    %209 = vector.broadcast %cst_53 : f32 to vector<128x1xf32>
    %210 = arith.divf %208, %209 : vector<128x1xf32>
    %211 = vector.broadcast %203 : vector<128x1xf32> to vector<128x32xf32>
    %212 = arith.subf %199, %211 : vector<128x32xf32>
    %cst_54 = arith.constant 9.99999974E-6 : f32
    %213 = vector.broadcast %cst_54 : f32 to vector<128x1xf32>
    %214 = arith.addf %210, %213 : vector<128x1xf32>
    %215 = math.rsqrt %214 : vector<128x1xf32>
    %216 = vector.broadcast %215 : vector<128x1xf32> to vector<128x32xf32>
    %217 = arith.mulf %212, %216 : vector<128x32xf32>
    %218 = vector.broadcast %51 : vector<1x32xf32> to vector<128x32xf32>
    %219 = arith.mulf %217, %218 : vector<128x32xf32>
    %220 = vector.broadcast %52 : vector<1x32xf32> to vector<128x32xf32>
    %221 = arith.addf %219, %220 : vector<128x32xf32>
    %c1 = arith.constant 1 : index
    %c0_55 = arith.constant 0 : index
    %c0_56 = arith.constant 0 : index
    %222 = vector.load %arg2[%c1, %c0_55, %c0_56] : memref<2x32x640xf32, #tpu.memory_space<vmem>>, vector<1x32x640xf32>
    %223 = vector.shape_cast %222 : vector<1x32x640xf32> to vector<32x640xf32>
    %224 = vector.extract_strided_slice %223 {offsets = [0, 0], sizes = [32, 32], strides = [1, 1]} : vector<32x640xf32> to vector<32x32xf32>
    %225 = vector.extract_strided_slice %223 {offsets = [0, 128], sizes = [32, 32], strides = [1, 1]} : vector<32x640xf32> to vector<32x32xf32>
    %226 = vector.extract_strided_slice %223 {offsets = [0, 256], sizes = [32, 32], strides = [1, 1]} : vector<32x640xf32> to vector<32x32xf32>
    %227 = vector.extract_strided_slice %223 {offsets = [0, 384], sizes = [32, 32], strides = [1, 1]} : vector<32x640xf32> to vector<32x32xf32>
    %228 = vector.extract_strided_slice %223 {offsets = [0, 512], sizes = [32, 64], strides = [1, 1]} : vector<32x640xf32> to vector<32x64xf32>
    %c1_57 = arith.constant 1 : index
    %c0_58 = arith.constant 0 : index
    %c0_59 = arith.constant 0 : index
    %229 = vector.load %arg3[%c1_57, %c0_58, %c0_59] : memref<2x64x32xf32, #tpu.memory_space<vmem>>, vector<1x64x32xf32>
    %230 = vector.shape_cast %229 : vector<1x64x32xf32> to vector<64x32xf32>
    %c1_60 = arith.constant 1 : index
    %c0_61 = arith.constant 0 : index
    %c0_62 = arith.constant 0 : index
    %231 = vector.load %arg4[%c1_60, %c0_61, %c0_62] : memref<2x16x128xf32, #tpu.memory_space<vmem>>, vector<1x16x128xf32>
    %232 = vector.shape_cast %231 : vector<1x16x128xf32> to vector<16x128xf32>
    %233 = vector.extract_strided_slice %232 {offsets = [0, 0], sizes = [1, 32], strides = [1, 1]} : vector<16x128xf32> to vector<1x32xf32>
    %234 = vector.extract_strided_slice %232 {offsets = [1, 0], sizes = [1, 32], strides = [1, 1]} : vector<16x128xf32> to vector<1x32xf32>
    %235 = vector.extract_strided_slice %232 {offsets = [2, 0], sizes = [1, 32], strides = [1, 1]} : vector<16x128xf32> to vector<1x32xf32>
    %236 = vector.extract_strided_slice %232 {offsets = [3, 0], sizes = [1, 32], strides = [1, 1]} : vector<16x128xf32> to vector<1x32xf32>
    %237 = vector.extract_strided_slice %232 {offsets = [4, 0], sizes = [1, 64], strides = [1, 1]} : vector<16x128xf32> to vector<1x64xf32>
    %238 = vector.extract_strided_slice %232 {offsets = [5, 0], sizes = [1, 32], strides = [1, 1]} : vector<16x128xf32> to vector<1x32xf32>
    %239 = vector.extract_strided_slice %232 {offsets = [6, 0], sizes = [1, 32], strides = [1, 1]} : vector<16x128xf32> to vector<1x32xf32>
    %240 = vector.extract_strided_slice %232 {offsets = [7, 0], sizes = [1, 32], strides = [1, 1]} : vector<16x128xf32> to vector<1x32xf32>
    %241 = vector.extract_strided_slice %232 {offsets = [8, 0], sizes = [1, 32], strides = [1, 1]} : vector<16x128xf32> to vector<1x32xf32>
    %242 = vector.extract_strided_slice %232 {offsets = [9, 0], sizes = [1, 32], strides = [1, 1]} : vector<16x128xf32> to vector<1x32xf32>
    %cst_63 = arith.constant dense<0.000000e+00> : vector<128x32xf32>
    %243 = tpu.matmul %221, %224, %cst_63 {dimension_numbers = #tpu.dot_dimension_numbers<[1], [0], [0], [1], [0, 0, 1, 1], [], []>} : vector<128x32xf32>, vector<32x32xf32>, vector<128x32xf32> -> vector<128x32xf32>
    %244 = vector.broadcast %233 : vector<1x32xf32> to vector<128x32xf32>
    %245 = arith.addf %243, %244 : vector<128x32xf32>
    %cst_64 = arith.constant 0.353553385 : f32
    %246 = vector.broadcast %cst_64 : f32 to vector<128x32xf32>
    %247 = arith.mulf %245, %246 : vector<128x32xf32>
    %cst_65 = arith.constant dense<0.000000e+00> : vector<128x32xf32>
    %248 = tpu.matmul %221, %225, %cst_65 {dimension_numbers = #tpu.dot_dimension_numbers<[1], [0], [0], [1], [0, 0, 1, 1], [], []>} : vector<128x32xf32>, vector<32x32xf32>, vector<128x32xf32> -> vector<128x32xf32>
    %249 = vector.broadcast %234 : vector<1x32xf32> to vector<128x32xf32>
    %250 = arith.addf %248, %249 : vector<128x32xf32>
    %cst_66 = arith.constant dense<0.000000e+00> : vector<128x32xf32>
    %251 = tpu.matmul %221, %226, %cst_66 {dimension_numbers = #tpu.dot_dimension_numbers<[1], [0], [0], [1], [0, 0, 1, 1], [], []>} : vector<128x32xf32>, vector<32x32xf32>, vector<128x32xf32> -> vector<128x32xf32>
    %252 = vector.broadcast %235 : vector<1x32xf32> to vector<128x32xf32>
    %253 = arith.addf %251, %252 : vector<128x32xf32>
    %cst_67 = arith.constant 0.000000e+00 : f32
    %254 = vector.broadcast %cst_67 : f32 to vector<128x32xf32>
    %c0_i32_68 = arith.constant 0 : i32
    %255 = vector.broadcast %c0_i32_68 : i32 to vector<1x32xi32>
    %256 = arith.cmpi sge, %31, %255 : vector<1x32xi32>
    %c8_i32_69 = arith.constant 8 : i32
    %257 = vector.broadcast %c8_i32_69 : i32 to vector<1x32xi32>
    %258 = arith.cmpi slt, %31, %257 : vector<1x32xi32>
    %259 = arith.andi %256, %258 : vector<1x32xi1>
    %260 = arith.extui %259 : vector<1x32xi1> to vector<1x32xi32>
    %261 = arith.sitofp %260 : vector<1x32xi32> to vector<1x32xf32>
    %262 = vector.broadcast %261 : vector<1x32xf32> to vector<128x32xf32>
    %263 = arith.mulf %247, %262 : vector<128x32xf32>
    "tpu.trace_start"() <{level = 10 : i32, message = "qe,ke->qk"}> : () -> ()
    %cst_70 = arith.constant dense<0.000000e+00> : vector<128x128xf32>
    %264 = tpu.matmul %263, %250, %cst_70 {dimension_numbers = #tpu.dot_dimension_numbers<[1], [1], [0], [0], [0, 0, 1, 0], [], []>} : vector<128x32xf32>, vector<128x32xf32>, vector<128x128xf32> -> vector<128x128xf32>
    "tpu.trace_stop"() : () -> ()
    %265 = arith.addf %264, %30 : vector<128x128xf32>
    %cst_71 = arith.constant dense<0xFF800000> : vector<128xf32>
    %266 = vector.multi_reduction <maximumf>, %265, %cst_71 [1] : vector<128x128xf32> to vector<128xf32>
    %267 = vector.shape_cast %266 : vector<128xf32> to vector<128x1xf32>
    %268 = vector.broadcast %267 : vector<128x1xf32> to vector<128x128xf32>
    %269 = arith.subf %265, %268 : vector<128x128xf32>
    %270 = math.exp %269 : vector<128x128xf32>
    %cst_72 = arith.constant dense<0.000000e+00> : vector<128xf32>
    %271 = vector.multi_reduction <add>, %270, %cst_72 [1] : vector<128x128xf32> to vector<128xf32>
    %272 = vector.shape_cast %271 : vector<128xf32> to vector<128x1xf32>
    %273 = tpu.reciprocal %272 : vector<128x1xf32> -> vector<128x1xf32>
    %274 = vector.broadcast %273 : vector<128x1xf32> to vector<128x128xf32>
    %275 = arith.mulf %270, %274 : vector<128x128xf32>
    %276 = vector.broadcast %261 : vector<1x32xf32> to vector<128x32xf32>
    %277 = arith.mulf %253, %276 : vector<128x32xf32>
    %cst_73 = arith.constant dense<0.000000e+00> : vector<128x32xf32>
    %278 = tpu.matmul %275, %277, %cst_73 {dimension_numbers = #tpu.dot_dimension_numbers<[1], [0], [0], [1], [0, 0, 1, 1], [], []>} : vector<128x128xf32>, vector<128x32xf32>, vector<128x32xf32> -> vector<128x32xf32>
    %279 = arith.addf %254, %278 : vector<128x32xf32>
    %c8_i32_74 = arith.constant 8 : i32
    %280 = vector.broadcast %c8_i32_74 : i32 to vector<1x32xi32>
    %281 = arith.cmpi sge, %31, %280 : vector<1x32xi32>
    %c16_i32_75 = arith.constant 16 : i32
    %282 = vector.broadcast %c16_i32_75 : i32 to vector<1x32xi32>
    %283 = arith.cmpi slt, %31, %282 : vector<1x32xi32>
    %284 = arith.andi %281, %283 : vector<1x32xi1>
    %285 = arith.extui %284 : vector<1x32xi1> to vector<1x32xi32>
    %286 = arith.sitofp %285 : vector<1x32xi32> to vector<1x32xf32>
    %287 = vector.broadcast %286 : vector<1x32xf32> to vector<128x32xf32>
    %288 = arith.mulf %247, %287 : vector<128x32xf32>
    "tpu.trace_start"() <{level = 10 : i32, message = "qe,ke->qk"}> : () -> ()
    %cst_76 = arith.constant dense<0.000000e+00> : vector<128x128xf32>
    %289 = tpu.matmul %288, %250, %cst_76 {dimension_numbers = #tpu.dot_dimension_numbers<[1], [1], [0], [0], [0, 0, 1, 0], [], []>} : vector<128x32xf32>, vector<128x32xf32>, vector<128x128xf32> -> vector<128x128xf32>
    "tpu.trace_stop"() : () -> ()
    %290 = arith.addf %289, %30 : vector<128x128xf32>
    %cst_77 = arith.constant dense<0xFF800000> : vector<128xf32>
    %291 = vector.multi_reduction <maximumf>, %290, %cst_77 [1] : vector<128x128xf32> to vector<128xf32>
    %292 = vector.shape_cast %291 : vector<128xf32> to vector<128x1xf32>
    %293 = vector.broadcast %292 : vector<128x1xf32> to vector<128x128xf32>
    %294 = arith.subf %290, %293 : vector<128x128xf32>
    %295 = math.exp %294 : vector<128x128xf32>
    %cst_78 = arith.constant dense<0.000000e+00> : vector<128xf32>
    %296 = vector.multi_reduction <add>, %295, %cst_78 [1] : vector<128x128xf32> to vector<128xf32>
    %297 = vector.shape_cast %296 : vector<128xf32> to vector<128x1xf32>
    %298 = tpu.reciprocal %297 : vector<128x1xf32> -> vector<128x1xf32>
    %299 = vector.broadcast %298 : vector<128x1xf32> to vector<128x128xf32>
    %300 = arith.mulf %295, %299 : vector<128x128xf32>
    %301 = vector.broadcast %286 : vector<1x32xf32> to vector<128x32xf32>
    %302 = arith.mulf %253, %301 : vector<128x32xf32>
    %cst_79 = arith.constant dense<0.000000e+00> : vector<128x32xf32>
    %303 = tpu.matmul %300, %302, %cst_79 {dimension_numbers = #tpu.dot_dimension_numbers<[1], [0], [0], [1], [0, 0, 1, 1], [], []>} : vector<128x128xf32>, vector<128x32xf32>, vector<128x32xf32> -> vector<128x32xf32>
    %304 = arith.addf %279, %303 : vector<128x32xf32>
    %c16_i32_80 = arith.constant 16 : i32
    %305 = vector.broadcast %c16_i32_80 : i32 to vector<1x32xi32>
    %306 = arith.cmpi sge, %31, %305 : vector<1x32xi32>
    %c24_i32_81 = arith.constant 24 : i32
    %307 = vector.broadcast %c24_i32_81 : i32 to vector<1x32xi32>
    %308 = arith.cmpi slt, %31, %307 : vector<1x32xi32>
    %309 = arith.andi %306, %308 : vector<1x32xi1>
    %310 = arith.extui %309 : vector<1x32xi1> to vector<1x32xi32>
    %311 = arith.sitofp %310 : vector<1x32xi32> to vector<1x32xf32>
    %312 = vector.broadcast %311 : vector<1x32xf32> to vector<128x32xf32>
    %313 = arith.mulf %247, %312 : vector<128x32xf32>
    "tpu.trace_start"() <{level = 10 : i32, message = "qe,ke->qk"}> : () -> ()
    %cst_82 = arith.constant dense<0.000000e+00> : vector<128x128xf32>
    %314 = tpu.matmul %313, %250, %cst_82 {dimension_numbers = #tpu.dot_dimension_numbers<[1], [1], [0], [0], [0, 0, 1, 0], [], []>} : vector<128x32xf32>, vector<128x32xf32>, vector<128x128xf32> -> vector<128x128xf32>
    "tpu.trace_stop"() : () -> ()
    %315 = arith.addf %314, %30 : vector<128x128xf32>
    %cst_83 = arith.constant dense<0xFF800000> : vector<128xf32>
    %316 = vector.multi_reduction <maximumf>, %315, %cst_83 [1] : vector<128x128xf32> to vector<128xf32>
    %317 = vector.shape_cast %316 : vector<128xf32> to vector<128x1xf32>
    %318 = vector.broadcast %317 : vector<128x1xf32> to vector<128x128xf32>
    %319 = arith.subf %315, %318 : vector<128x128xf32>
    %320 = math.exp %319 : vector<128x128xf32>
    %cst_84 = arith.constant dense<0.000000e+00> : vector<128xf32>
    %321 = vector.multi_reduction <add>, %320, %cst_84 [1] : vector<128x128xf32> to vector<128xf32>
    %322 = vector.shape_cast %321 : vector<128xf32> to vector<128x1xf32>
    %323 = tpu.reciprocal %322 : vector<128x1xf32> -> vector<128x1xf32>
    %324 = vector.broadcast %323 : vector<128x1xf32> to vector<128x128xf32>
    %325 = arith.mulf %320, %324 : vector<128x128xf32>
    %326 = vector.broadcast %311 : vector<1x32xf32> to vector<128x32xf32>
    %327 = arith.mulf %253, %326 : vector<128x32xf32>
    %cst_85 = arith.constant dense<0.000000e+00> : vector<128x32xf32>
    %328 = tpu.matmul %325, %327, %cst_85 {dimension_numbers = #tpu.dot_dimension_numbers<[1], [0], [0], [1], [0, 0, 1, 1], [], []>} : vector<128x128xf32>, vector<128x32xf32>, vector<128x32xf32> -> vector<128x32xf32>
    %329 = arith.addf %304, %328 : vector<128x32xf32>
    %c24_i32_86 = arith.constant 24 : i32
    %330 = vector.broadcast %c24_i32_86 : i32 to vector<1x32xi32>
    %331 = arith.cmpi sge, %31, %330 : vector<1x32xi32>
    %c32_i32_87 = arith.constant 32 : i32
    %332 = vector.broadcast %c32_i32_87 : i32 to vector<1x32xi32>
    %333 = arith.cmpi slt, %31, %332 : vector<1x32xi32>
    %334 = arith.andi %331, %333 : vector<1x32xi1>
    %335 = arith.extui %334 : vector<1x32xi1> to vector<1x32xi32>
    %336 = arith.sitofp %335 : vector<1x32xi32> to vector<1x32xf32>
    %337 = vector.broadcast %336 : vector<1x32xf32> to vector<128x32xf32>
    %338 = arith.mulf %247, %337 : vector<128x32xf32>
    "tpu.trace_start"() <{level = 10 : i32, message = "qe,ke->qk"}> : () -> ()
    %cst_88 = arith.constant dense<0.000000e+00> : vector<128x128xf32>
    %339 = tpu.matmul %338, %250, %cst_88 {dimension_numbers = #tpu.dot_dimension_numbers<[1], [1], [0], [0], [0, 0, 1, 0], [], []>} : vector<128x32xf32>, vector<128x32xf32>, vector<128x128xf32> -> vector<128x128xf32>
    "tpu.trace_stop"() : () -> ()
    %340 = arith.addf %339, %30 : vector<128x128xf32>
    %cst_89 = arith.constant dense<0xFF800000> : vector<128xf32>
    %341 = vector.multi_reduction <maximumf>, %340, %cst_89 [1] : vector<128x128xf32> to vector<128xf32>
    %342 = vector.shape_cast %341 : vector<128xf32> to vector<128x1xf32>
    %343 = vector.broadcast %342 : vector<128x1xf32> to vector<128x128xf32>
    %344 = arith.subf %340, %343 : vector<128x128xf32>
    %345 = math.exp %344 : vector<128x128xf32>
    %cst_90 = arith.constant dense<0.000000e+00> : vector<128xf32>
    %346 = vector.multi_reduction <add>, %345, %cst_90 [1] : vector<128x128xf32> to vector<128xf32>
    %347 = vector.shape_cast %346 : vector<128xf32> to vector<128x1xf32>
    %348 = tpu.reciprocal %347 : vector<128x1xf32> -> vector<128x1xf32>
    %349 = vector.broadcast %348 : vector<128x1xf32> to vector<128x128xf32>
    %350 = arith.mulf %345, %349 : vector<128x128xf32>
    %351 = vector.broadcast %336 : vector<1x32xf32> to vector<128x32xf32>
    %352 = arith.mulf %253, %351 : vector<128x32xf32>
    %cst_91 = arith.constant dense<0.000000e+00> : vector<128x32xf32>
    %353 = tpu.matmul %350, %352, %cst_91 {dimension_numbers = #tpu.dot_dimension_numbers<[1], [0], [0], [1], [0, 0, 1, 1], [], []>} : vector<128x128xf32>, vector<128x32xf32>, vector<128x32xf32> -> vector<128x32xf32>
    %354 = arith.addf %329, %353 : vector<128x32xf32>
    %cst_92 = arith.constant dense<0.000000e+00> : vector<128x32xf32>
    %355 = tpu.matmul %354, %227, %cst_92 {dimension_numbers = #tpu.dot_dimension_numbers<[1], [0], [0], [1], [0, 0, 1, 1], [], []>} : vector<128x32xf32>, vector<32x32xf32>, vector<128x32xf32> -> vector<128x32xf32>
    %356 = vector.broadcast %236 : vector<1x32xf32> to vector<128x32xf32>
    %357 = arith.addf %355, %356 : vector<128x32xf32>
    %358 = arith.addf %221, %357 : vector<128x32xf32>
    %cst_93 = arith.constant dense<0.000000e+00> : vector<128xf32>
    %359 = vector.multi_reduction <add>, %358, %cst_93 [1] : vector<128x32xf32> to vector<128xf32>
    %360 = vector.shape_cast %359 : vector<128xf32> to vector<128x1xf32>
    %cst_94 = arith.constant 3.200000e+01 : f32
    %361 = vector.broadcast %cst_94 : f32 to vector<128x1xf32>
    %362 = arith.divf %360, %361 : vector<128x1xf32>
    %363 = vector.broadcast %362 : vector<128x1xf32> to vector<128x32xf32>
    %364 = arith.subf %358, %363 : vector<128x32xf32>
    %365 = arith.mulf %364, %364 : vector<128x32xf32>
    %cst_95 = arith.constant dense<0.000000e+00> : vector<128xf32>
    %366 = vector.multi_reduction <add>, %365, %cst_95 [1] : vector<128x32xf32> to vector<128xf32>
    %367 = vector.shape_cast %366 : vector<128xf32> to vector<128x1xf32>
    %cst_96 = arith.constant 3.200000e+01 : f32
    %368 = vector.broadcast %cst_96 : f32 to vector<128x1xf32>
    %369 = arith.divf %367, %368 : vector<128x1xf32>
    %370 = vector.broadcast %362 : vector<128x1xf32> to vector<128x32xf32>
    %371 = arith.subf %358, %370 : vector<128x32xf32>
    %cst_97 = arith.constant 9.99999974E-6 : f32
    %372 = vector.broadcast %cst_97 : f32 to vector<128x1xf32>
    %373 = arith.addf %369, %372 : vector<128x1xf32>
    %374 = math.rsqrt %373 : vector<128x1xf32>
    %375 = vector.broadcast %374 : vector<128x1xf32> to vector<128x32xf32>
    %376 = arith.mulf %371, %375 : vector<128x32xf32>
    %377 = vector.broadcast %239 : vector<1x32xf32> to vector<128x32xf32>
    %378 = arith.mulf %376, %377 : vector<128x32xf32>
    %379 = vector.broadcast %240 : vector<1x32xf32> to vector<128x32xf32>
    %380 = arith.addf %378, %379 : vector<128x32xf32>
    %cst_98 = arith.constant dense<0.000000e+00> : vector<128x64xf32>
    %381 = tpu.matmul %380, %228, %cst_98 {dimension_numbers = #tpu.dot_dimension_numbers<[1], [0], [0], [1], [0, 0, 1, 1], [], []>} : vector<128x32xf32>, vector<32x64xf32>, vector<128x64xf32> -> vector<128x64xf32>
    %382 = vector.broadcast %237 : vector<1x64xf32> to vector<128x64xf32>
    %383 = arith.addf %381, %382 : vector<128x64xf32>
    %cst_99 = arith.constant 0.000000e+00 : f32
    %384 = vector.broadcast %cst_99 : f32 to vector<128x64xf32>
    %385 = arith.maximumf %383, %384 : vector<128x64xf32>
    %cst_100 = arith.constant dense<0.000000e+00> : vector<128x32xf32>
    %386 = tpu.matmul %385, %230, %cst_100 {dimension_numbers = #tpu.dot_dimension_numbers<[1], [0], [0], [1], [0, 0, 1, 1], [], []>} : vector<128x64xf32>, vector<64x32xf32>, vector<128x32xf32> -> vector<128x32xf32>
    %387 = vector.broadcast %238 : vector<1x32xf32> to vector<128x32xf32>
    %388 = arith.addf %386, %387 : vector<128x32xf32>
    %389 = arith.addf %380, %388 : vector<128x32xf32>
    %cst_101 = arith.constant dense<0.000000e+00> : vector<128xf32>
    %390 = vector.multi_reduction <add>, %389, %cst_101 [1] : vector<128x32xf32> to vector<128xf32>
    %391 = vector.shape_cast %390 : vector<128xf32> to vector<128x1xf32>
    %cst_102 = arith.constant 3.200000e+01 : f32
    %392 = vector.broadcast %cst_102 : f32 to vector<128x1xf32>
    %393 = arith.divf %391, %392 : vector<128x1xf32>
    %394 = vector.broadcast %393 : vector<128x1xf32> to vector<128x32xf32>
    %395 = arith.subf %389, %394 : vector<128x32xf32>
    %396 = arith.mulf %395, %395 : vector<128x32xf32>
    %cst_103 = arith.constant dense<0.000000e+00> : vector<128xf32>
    %397 = vector.multi_reduction <add>, %396, %cst_103 [1] : vector<128x32xf32> to vector<128xf32>
    %398 = vector.shape_cast %397 : vector<128xf32> to vector<128x1xf32>
    %cst_104 = arith.constant 3.200000e+01 : f32
    %399 = vector.broadcast %cst_104 : f32 to vector<128x1xf32>
    %400 = arith.divf %398, %399 : vector<128x1xf32>
    %401 = vector.broadcast %393 : vector<128x1xf32> to vector<128x32xf32>
    %402 = arith.subf %389, %401 : vector<128x32xf32>
    %cst_105 = arith.constant 9.99999974E-6 : f32
    %403 = vector.broadcast %cst_105 : f32 to vector<128x1xf32>
    %404 = arith.addf %400, %403 : vector<128x1xf32>
    %405 = math.rsqrt %404 : vector<128x1xf32>
    %406 = vector.broadcast %405 : vector<128x1xf32> to vector<128x32xf32>
    %407 = arith.mulf %402, %406 : vector<128x32xf32>
    %408 = vector.broadcast %241 : vector<1x32xf32> to vector<128x32xf32>
    %409 = arith.mulf %407, %408 : vector<128x32xf32>
    %410 = vector.broadcast %242 : vector<1x32xf32> to vector<128x32xf32>
    %411 = arith.addf %409, %410 : vector<128x32xf32>
    %c0_106 = arith.constant 0 : index
    %c0_107 = arith.constant 0 : index
    %412 = vector.load %arg5[%c0_106, %c0_107] : memref<128x32xf32, #tpu.memory_space<vmem>>, vector<128x32xf32>
    tpu.vector_store %arg5[%c0_106, %c0_107], %411 {strides = array<i32>} : memref<128x32xf32, #tpu.memory_space<vmem>>, vector<128x32xf32>,
    return
  }
}

</mosaic_0001>

<llo_original>
// kernel: transformer_encoder_forward.1
$region0: #{transformer_encoder_forward.1}
  #allocation0 [shape = 'u32[]', space=smem, size = 0x4, offset = 0x4, fixed_abs, tag = 'smem constant byte address 0x4 - core index']
  #allocation1 [shape = 'u32[144,128]{1,0:T(1,128)}', space=vmem, size = 0x12000, scoped, tag = 'internal scratch']
  %s0 = inlined_call_operand.vmem [shape: s32[128,3], index: 0, kind: input, shape index: {}]
  %s1 = inlined_call_operand.vmem [shape: f32[66,32], index: 1, kind: input, shape index: {}]
  %s2 = inlined_call_operand.vmem [shape: f32[2,32,640], index: 2, kind: input, shape index: {}]
  %s3 = inlined_call_operand.vmem [shape: f32[2,64,32], index: 3, kind: input, shape index: {}]
  %s4 = inlined_call_operand.vmem [shape: f32[2,16,128], index: 4, kind: input, shape index: {}]
  %s5 = inlined_call_operand.hbm [shape: f32[128,32], index: 5, kind: output, shape index: {}]
  %s6 = sld [smem:[#allocation0]]
  $region30: #{transformer_encoder_forward.1} parent=0
    _
  %s8 = ssub.s32 1, %s6
  %s9 = scalar_select 0, %s8, %s6
  $region1: #{transformer_encoder_forward.1} parent=0
    #allocation2 [shape = 'u8[65536]{0}', space=vmem, size = 0x10000, scoped, tag = 'output window, operand 0, single buffered']
    #allocation3 [shape = 's32[1]{0}', space=sflag, size = 0x4, scoped, tag = 'scoped memory for transformer_encoder_forward.1']
    %10 = vsyncpa [#allocation3], 0
    // Predicated region
    $region2: #{transformer_encoder_forward.1} parent=1 // pred_check
      _
    $region3: #{transformer_encoder_forward.1} parent=1 // pred_check_branch
      %12 = sbr.rel (0) target = $region5
    $region4: #{transformer_encoder_forward.1} parent=1 // pred_region
      _
    $region5: #{transformer_encoder_forward.1} parent=1 // pred_fallthru
      _
    // Predicated region
    $region6: #{transformer_encoder_forward.1} parent=1 // pred_check
      _
    $region7: #{transformer_encoder_forward.1} parent=1 // pred_check_branch
      %14 = sbr.rel (0) target = $region9
    $region8: #{transformer_encoder_forward.1} parent=1 // pred_region
      _
    $region9: #{transformer_encoder_forward.1} parent=1 // pred_fallthru
      _
    // Predicated region
    $region10: #{transformer_encoder_forward.1} parent=1 // pred_check
      _
    $region11: #{transformer_encoder_forward.1} parent=1 // pred_check_branch
      %16 = sbr.rel (0) target = $region13
    $region12: #{transformer_encoder_forward.1} parent=1 // pred_region
      _
    $region13: #{transformer_encoder_forward.1} parent=1 // pred_fallthru
      _
    // Predicated region
    $region14: #{transformer_encoder_forward.1} parent=1 // pred_check
      _
    $region15: #{transformer_encoder_forward.1} parent=1 // pred_check_branch
      %18 = sbr.rel (0) target = $region17
    $region16: #{transformer_encoder_forward.1} parent=1 // pred_region
      _
    $region17: #{transformer_encoder_forward.1} parent=1 // pred_fallthru
      _
    // Predicated region
    $region18: #{transformer_encoder_forward.1} parent=1 // pred_check
      _
    $region19: #{transformer_encoder_forward.1} parent=1 // pred_check_branch
      %20 = sbr.rel (0) target = $region21
    $region20: #{transformer_encoder_forward.1} parent=1 // pred_region
      _
    $region21: #{transformer_encoder_forward.1} parent=1 // pred_fallthru
      _
    %v21 = vld [vmem:[%s0] sm:$0xff]
    %v22 = vld [vmem:[%s0 + $0x8] sm:$0xff]
    %v23 = vld [vmem:[%s0 + $0x10] sm:$0xff]
    %v24 = vld [vmem:[%s0 + $0x18] sm:$0xff]
    %v25 = vld [vmem:[%s0 + $0x20] sm:$0xff]
    %v26 = vld [vmem:[%s0 + $0x28] sm:$0xff]
    %v27 = vld [vmem:[%s0 + $0x30] sm:$0xff]
    %v28 = vld [vmem:[%s0 + $0x38] sm:$0xff]
    %v29 = vld [vmem:[%s0 + $0x40] sm:$0xff]
    %v30 = vld [vmem:[%s0 + $0x48] sm:$0xff]
    %v31 = vld [vmem:[%s0 + $0x50] sm:$0xff]
    %v32 = vld [vmem:[%s0 + $0x58] sm:$0xff]
    %v33 = vld [vmem:[%s0 + $0x60] sm:$0xff]
    %v34 = vld [vmem:[%s0 + $0x68] sm:$0xff]
    %v35 = vld [vmem:[%s0 + $0x70] sm:$0xff]
    %v36 = vld [vmem:[%s0 + $0x78] sm:$0xff]
    %v37 = vlaneseq
    %v38 = vand.u32 %v37, 127
    %39 = vset.pattern.permute.xlu0 0
    %40 = vperm.xlu0 %39, %v21
    %v41 = vpop.permute.xlu0 %40
    %42 = vset.pattern.permute.xlu0 0
    %43 = vperm.xlu0 %42, %v22
    %v44 = vpop.permute.xlu0 %43
    %45 = vset.pattern.permute.xlu0 0
    %46 = vperm.xlu0 %45, %v23
    %v47 = vpop.permute.xlu0 %46
    %48 = vset.pattern.permute.xlu0 0
    %49 = vperm.xlu0 %48, %v24
    %v50 = vpop.permute.xlu0 %49
    %51 = vset.pattern.permute.xlu0 0
    %52 = vperm.xlu0 %51, %v25
    %v53 = vpop.permute.xlu0 %52
    %54 = vset.pattern.permute.xlu0 0
    %55 = vperm.xlu0 %54, %v26
    %v56 = vpop.permute.xlu0 %55
    %57 = vset.pattern.permute.xlu0 0
    %58 = vperm.xlu0 %57, %v27
    %v59 = vpop.permute.xlu0 %58
    %60 = vset.pattern.permute.xlu0 0
    %61 = vperm.xlu0 %60, %v28
    %v62 = vpop.permute.xlu0 %61
    %63 = vset.pattern.permute.xlu0 0
    %64 = vperm.xlu0 %63, %v29
    %v65 = vpop.permute.xlu0 %64
    %66 = vset.pattern.permute.xlu0 0
    %67 = vperm.xlu0 %66, %v30
    %v68 = vpop.permute.xlu0 %67
    %69 = vset.pattern.permute.xlu0 0
    %70 = vperm.xlu0 %69, %v31
    %v71 = vpop.permute.xlu0 %70
    %72 = vset.pattern.permute.xlu0 0
    %73 = vperm.xlu0 %72, %v32
    %v74 = vpop.permute.xlu0 %73
    %75 = vset.pattern.permute.xlu0 0
    %76 = vperm.xlu0 %75, %v33
    %v77 = vpop.permute.xlu0 %76
    %78 = vset.pattern.permute.xlu0 0
    %79 = vperm.xlu0 %78, %v34
    %v80 = vpop.permute.xlu0 %79
    %81 = vset.pattern.permute.xlu0 0
    %82 = vperm.xlu0 %81, %v35
    %v83 = vpop.permute.xlu0 %82
    %84 = vset.pattern.permute.xlu0 0
    %85 = vperm.xlu0 %84, %v36
    %v86 = vpop.permute.xlu0 %85
    %vm87 = vcmp.eq.s32.totalorder %v38, %v41
    %vm88 = vcmp.eq.s32.totalorder %v38, %v44
    %vm89 = vcmp.eq.s32.totalorder %v38, %v47
    %vm90 = vcmp.eq.s32.totalorder %v38, %v50
    %vm91 = vcmp.eq.s32.totalorder %v38, %v53
    %vm92 = vcmp.eq.s32.totalorder %v38, %v56
    %vm93 = vcmp.eq.s32.totalorder %v38, %v59
    %vm94 = vcmp.eq.s32.totalorder %v38, %v62
    %vm95 = vcmp.eq.s32.totalorder %v38, %v65
    %vm96 = vcmp.eq.s32.totalorder %v38, %v68
    %vm97 = vcmp.eq.s32.totalorder %v38, %v71
    %vm98 = vcmp.eq.s32.totalorder %v38, %v74
    %vm99 = vcmp.eq.s32.totalorder %v38, %v77
    %vm100 = vcmp.eq.s32.totalorder %v38, %v80
    %vm101 = vcmp.eq.s32.totalorder %v38, %v83
    %vm102 = vcmp.eq.s32.totalorder %v38, %v86
    %103 = vset.pattern.permute.xlu0 1
    %104 = vperm.xlu0 %103, %v21
    %v105 = vpop.permute.xlu0 %104
    %106 = vset.pattern.permute.xlu0 1
    %107 = vperm.xlu0 %106, %v22
    %v108 = vpop.permute.xlu0 %107
    %109 = vset.pattern.permute.xlu0 1
    %110 = vperm.xlu0 %109, %v23
    %v111 = vpop.permute.xlu0 %110
    %112 = vset.pattern.permute.xlu0 1
    %113 = vperm.xlu0 %112, %v24
    %v114 = vpop.permute.xlu0 %113
    %115 = vset.pattern.permute.xlu0 1
    %116 = vperm.xlu0 %115, %v25
    %v117 = vpop.permute.xlu0 %116
    %118 = vset.pattern.permute.xlu0 1
    %119 = vperm.xlu0 %118, %v26
    %v120 = vpop.permute.xlu0 %119
    %121 = vset.pattern.permute.xlu0 1
    %122 = vperm.xlu0 %121, %v27
    %v123 = vpop.permute.xlu0 %122
    %124 = vset.pattern.permute.xlu0 1
    %125 = vperm.xlu0 %124, %v28
    %v126 = vpop.permute.xlu0 %125
    %127 = vset.pattern.permute.xlu0 1
    %128 = vperm.xlu0 %127, %v29
    %v129 = vpop.permute.xlu0 %128
    %130 = vset.pattern.permute.xlu0 1
    %131 = vperm.xlu0 %130, %v30
    %v132 = vpop.permute.xlu0 %131
    %133 = vset.pattern.permute.xlu0 1
    %134 = vperm.xlu0 %133, %v31
    %v135 = vpop.permute.xlu0 %134
    %136 = vset.pattern.permute.xlu0 1
    %137 = vperm.xlu0 %136, %v32
    %v138 = vpop.permute.xlu0 %137
    %139 = vset.pattern.permute.xlu0 1
    %140 = vperm.xlu0 %139, %v33
    %v141 = vpop.permute.xlu0 %140
    %142 = vset.pattern.permute.xlu0 1
    %143 = vperm.xlu0 %142, %v34
    %v144 = vpop.permute.xlu0 %143
    %145 = vset.pattern.permute.xlu0 1
    %146 = vperm.xlu0 %145, %v35
    %v147 = vpop.permute.xlu0 %146
    %148 = vset.pattern.permute.xlu0 1
    %149 = vperm.xlu0 %148, %v36
    %v150 = vpop.permute.xlu0 %149
    %vm151 = vcmp.eq.s32.totalorder %v38, %v105
    %vm152 = vcmp.eq.s32.totalorder %v38, %v108
    %vm153 = vcmp.eq.s32.totalorder %v38, %v111
    %vm154 = vcmp.eq.s32.totalorder %v38, %v114
    %vm155 = vcmp.eq.s32.totalorder %v38, %v117
    %vm156 = vcmp.eq.s32.totalorder %v38, %v120
    %vm157 = vcmp.eq.s32.totalorder %v38, %v123
    %vm158 = vcmp.eq.s32.totalorder %v38, %v126
    %vm159 = vcmp.eq.s32.totalorder %v38, %v129
    %vm160 = vcmp.eq.s32.totalorder %v38, %v132
    %vm161 = vcmp.eq.s32.totalorder %v38, %v135
    %vm162 = vcmp.eq.s32.totalorder %v38, %v138
    %vm163 = vcmp.eq.s32.totalorder %v38, %v141
    %vm164 = vcmp.eq.s32.totalorder %v38, %v144
    %vm165 = vcmp.eq.s32.totalorder %v38, %v147
    %vm166 = vcmp.eq.s32.totalorder %v38, %v150
    %vm167 = vmor %vm87, %vm151
    %vm168 = vmor %vm88, %vm152
    %vm169 = vmor %vm89, %vm153
    %vm170 = vmor %vm90, %vm154
    %vm171 = vmor %vm91, %vm155
    %vm172 = vmor %vm92, %vm156
    %vm173 = vmor %vm93, %vm157
    %vm174 = vmor %vm94, %vm158
    %vm175 = vmor %vm95, %vm159
    %vm176 = vmor %vm96, %vm160
    %vm177 = vmor %vm97, %vm161
    %vm178 = vmor %vm98, %vm162
    %vm179 = vmor %vm99, %vm163
    %vm180 = vmor %vm100, %vm164
    %vm181 = vmor %vm101, %vm165
    %vm182 = vmor %vm102, %vm166
    %v183 = vsel %vm167, 1, 0
    %v184 = vsel %vm168, 1, 0
    %v185 = vsel %vm169, 1, 0
    %v186 = vsel %vm170, 1, 0
    %v187 = vsel %vm171, 1, 0
    %v188 = vsel %vm172, 1, 0
    %v189 = vsel %vm173, 1, 0
    %v190 = vsel %vm174, 1, 0
    %v191 = vsel %vm175, 1, 0
    %v192 = vsel %vm176, 1, 0
    %v193 = vsel %vm177, 1, 0
    %v194 = vsel %vm178, 1, 0
    %v195 = vsel %vm179, 1, 0
    %v196 = vsel %vm180, 1, 0
    %v197 = vsel %vm181, 1, 0
    %v198 = vsel %vm182, 1, 0
    %v199 = vcvt.s32.f32 %v183
    %v200 = vcvt.s32.f32 %v184
    %v201 = vcvt.s32.f32 %v185
    %v202 = vcvt.s32.f32 %v186
    %v203 = vcvt.s32.f32 %v187
    %v204 = vcvt.s32.f32 %v188
    %v205 = vcvt.s32.f32 %v189
    %v206 = vcvt.s32.f32 %v190
    %v207 = vcvt.s32.f32 %v191
    %v208 = vcvt.s32.f32 %v192
    %v209 = vcvt.s32.f32 %v193
    %v210 = vcvt.s32.f32 %v194
    %v211 = vcvt.s32.f32 %v195
    %v212 = vcvt.s32.f32 %v196
    %v213 = vcvt.s32.f32 %v197
    %v214 = vcvt.s32.f32 %v198
    %v215 = vld [vmem:[%s1] sm:$0xff]
    %v216 = vld [vmem:[%s1 + $0x8] sm:$0xff]
    %v217 = vld [vmem:[%s1 + $0x10] sm:$0xff]
    %v218 = vld [vmem:[%s1 + $0x18] sm:$0xff]
    %v219 = vld [vmem:[%s1 + $0x20] sm:$0xff]
    %v220 = vld [vmem:[%s1 + $0x28] sm:$0xff]
    %v221 = vld [vmem:[%s1 + $0x30] sm:$0xff]
    %v222 = vld [vmem:[%s1 + $0x38] sm:$0xff]
    %v223 = vld [vmem:[%s1 + $0x40] sm:$0x3]
    %vm224 = vcmask 539648
    %v226 = vsel %vm224, %v199, 0
    %v229 = vsel %vm224, %v200, 0
    %v232 = vsel %vm224, %v201, 0
    %v235 = vsel %vm224, %v202, 0
    %v238 = vsel %vm224, %v203, 0
    %v241 = vsel %vm224, %v204, 0
    %v244 = vsel %vm224, %v205, 0
    %v247 = vsel %vm224, %v206, 0
    %v250 = vsel %vm224, %v207, 0
    %v253 = vsel %vm224, %v208, 0
    %v256 = vsel %vm224, %v209, 0
    %v259 = vsel %vm224, %v210, 0
    %v262 = vsel %vm224, %v211, 0
    %v265 = vsel %vm224, %v212, 0
    %v268 = vsel %vm224, %v213, 0
    %v271 = vsel %vm224, %v214, 0
    %vm273 = vcmask 1041408
    %v275 = vsel %vm273, %v223, 0
    %277 = vmatprep.subr.mxu0 0.0
    %278 = vmatpush1.msra.mxu0 0.0
    %279 = vmatprep.subr.mxu0 0.0
    %280 = vmatpush1.msra.mxu0 0.0
    %281 = vmatprep.subr.mxu0 0.0
    %282 = vmatpush1.msra.mxu0 0.0
    %283 = vmatprep.subr.mxu0 0.0
    %284 = vmatpush1.msra.mxu0 0.0
    %285 = vmatprep.subr.mxu0 0.0
    %286 = vmatpush1.msra.mxu0 0.0
    %287 = vmatprep.subr.mxu0 0.0
    %288 = vmatpush1.msra.mxu0 0.0
    %289 = vmatprep.subr.mxu0 0.0
    %290 = vmatpush1.msra.mxu0 0.0
    %291 = vmatprep.subr.mxu0 0.0
    %292 = vmatpush1.msra.mxu0 %v275
    %293 = vmatprep.subr.mxu0 0.0
    %294 = vmatpush1.msra.mxu0 %v222
    %295 = vmatprep.subr.mxu0 0.0
    %296 = vmatpush1.msra.mxu0 %v221
    %297 = vmatprep.subr.mxu0 0.0
    %298 = vmatpush1.msra.mxu0 %v220
    %299 = vmatprep.subr.mxu0 0.0
    %300 = vmatpush1.msra.mxu0 %v219
    %301 = vmatprep.subr.mxu0 0.0
    %302 = vmatpush1.msra.mxu0 %v218
    %303 = vmatprep.subr.mxu0 0.0
    %304 = vmatpush1.msra.mxu0 %v217
    %305 = vmatprep.subr.mxu0 0.0
    %306 = vmatpush1.msra.mxu0 %v216
    %307 = vmatprep.subr.mxu0 0.0
    %308 = vmatpush1.msra.mxu0 %v215
    %309 = vmatprep.subr.mxu0 0.0
    %310 = vmatpush2.msra.mxu0 0.0
    %311 = vmatprep.subr.mxu0 0.0
    %312 = vmatpush2.msra.mxu0 0.0
    %313 = vmatprep.subr.mxu0 0.0
    %314 = vmatpush2.msra.mxu0 0.0
    %315 = vmatprep.subr.mxu0 0.0
    %316 = vmatpush2.msra.mxu0 0.0
    %317 = vmatprep.subr.mxu0 0.0
    %318 = vmatpush2.msra.mxu0 0.0
    %319 = vmatprep.subr.mxu0 0.0
    %320 = vmatpush2.msra.mxu0 0.0
    %321 = vmatprep.subr.mxu0 0.0
    %322 = vmatpush2.msra.mxu0 0.0
    %323 = vmatprep.subr.mxu0 0.0
    %324 = vmatpush2.msra.mxu0 0.0
    %325 = vmatprep.subr.mxu0 0.0
    %326 = vmatpush2.msra.mxu0 0.0
    %327 = vmatprep.subr.mxu0 0.0
    %328 = vmatpush2.msra.mxu0 0.0
    %329 = vmatprep.subr.mxu0 0.0
    %330 = vmatpush2.msra.mxu0 0.0
    %331 = vmatprep.subr.mxu0 0.0
    %332 = vmatpush2.msra.mxu0 0.0
    %333 = vmatprep.subr.mxu0 0.0
    %334 = vmatpush2.msra.mxu0 0.0
    %335 = vmatprep.subr.mxu0 0.0
    %336 = vmatpush2.msra.mxu0 0.0
    %337 = vmatprep.subr.mxu0 0.0
    %338 = vmatpush2.msra.mxu0 0.0
    %339 = vmatprep.subr.mxu0 0.0
    %340 = vmatpush2.msra.mxu0 0.0
    %341 = vmatprep.mubr.f32.mxu0 0.0
    %342 = vmatmul.mubr.f32.gmra.mxu0 %v226
    %v343 = vpop.f32.mrf.mxu0
    %v344 = vadd.f32 0.0, %v343
    %v345 = vpop.f32.mrf.mxu0
    %346 = vmatprep.mubr.f32.mxu0 0.0
    %347 = vmatmul.mubr.f32.gmra.mxu0 %v229
    %v348 = vpop.f32.mrf.mxu0
    %v349 = vadd.f32 0.0, %v348
    %v350 = vpop.f32.mrf.mxu0
    %351 = vmatprep.mubr.f32.mxu0 0.0
    %352 = vmatmul.mubr.f32.gmra.mxu0 %v232
    %v353 = vpop.f32.mrf.mxu0
    %v354 = vadd.f32 0.0, %v353
    %v355 = vpop.f32.mrf.mxu0
    %356 = vmatprep.mubr.f32.mxu0 0.0
    %357 = vmatmul.mubr.f32.gmra.mxu0 %v235
    %v358 = vpop.f32.mrf.mxu0
    %v359 = vadd.f32 0.0, %v358
    %v360 = vpop.f32.mrf.mxu0
    %361 = vmatprep.mubr.f32.mxu0 0.0
    %362 = vmatmul.mubr.f32.gmra.mxu0 %v238
    %v363 = vpop.f32.mrf.mxu0
    %v364 = vadd.f32 0.0, %v363
    %v365 = vpop.f32.mrf.mxu0
    %366 = vmatprep.mubr.f32.mxu0 0.0
    %367 = vmatmul.mubr.f32.gmra.mxu0 %v241
    %v368 = vpop.f32.mrf.mxu0
    %v369 = vadd.f32 0.0, %v368
    %v370 = vpop.f32.mrf.mxu0
    %371 = vmatprep.mubr.f32.mxu0 0.0
    %372 = vmatmul.mubr.f32.gmra.mxu0 %v244
    %v373 = vpop.f32.mrf.mxu0
    %v374 = vadd.f32 0.0, %v373
    %v375 = vpop.f32.mrf.mxu0
    %376 = vmatprep.mubr.f32.mxu0 0.0
    %377 = vmatmul.mubr.f32.gmra.mxu0 %v247
    %v378 = vpop.f32.mrf.mxu0
    %v379 = vadd.f32 0.0, %v378
    %v380 = vpop.f32.mrf.mxu0
    %381 = vmatprep.mubr.f32.mxu0 0.0
    %382 = vmatmul.mubr.f32.gmra.mxu0 %v250
    %v383 = vpop.f32.mrf.mxu0
    %v384 = vadd.f32 0.0, %v383
    %v385 = vpop.f32.mrf.mxu0
    %386 = vmatprep.mubr.f32.mxu0 0.0
    %387 = vmatmul.mubr.f32.gmra.mxu0 %v253
    %v388 = vpop.f32.mrf.mxu0
    %v389 = vadd.f32 0.0, %v388
    %v390 = vpop.f32.mrf.mxu0
    %391 = vmatprep.mubr.f32.mxu0 0.0
    %392 = vmatmul.mubr.f32.gmra.mxu0 %v256
    %v393 = vpop.f32.mrf.mxu0
    %v394 = vadd.f32 0.0, %v393
    %v395 = vpop.f32.mrf.mxu0
    %396 = vmatprep.mubr.f32.mxu0 0.0
    %397 = vmatmul.mubr.f32.gmra.mxu0 %v259
    %v398 = vpop.f32.mrf.mxu0
    %v399 = vadd.f32 0.0, %v398
    %v400 = vpop.f32.mrf.mxu0
    %401 = vmatprep.mubr.f32.mxu0 0.0
    %402 = vmatmul.mubr.f32.gmra.mxu0 %v262
    %v403 = vpop.f32.mrf.mxu0
    %v404 = vadd.f32 0.0, %v403
    %v405 = vpop.f32.mrf.mxu0
    %406 = vmatprep.mubr.f32.mxu0 0.0
    %407 = vmatmul.mubr.f32.gmra.mxu0 %v265
    %v408 = vpop.f32.mrf.mxu0
    %v409 = vadd.f32 0.0, %v408
    %v410 = vpop.f32.mrf.mxu0
    %411 = vmatprep.mubr.f32.mxu0 0.0
    %412 = vmatmul.mubr.f32.gmra.mxu0 %v268
    %v413 = vpop.f32.mrf.mxu0
    %v414 = vadd.f32 0.0, %v413
    %v415 = vpop.f32.mrf.mxu0
    %416 = vmatprep.mubr.f32.mxu0 0.0
    %417 = vmatmul.mubr.f32.gmra.mxu0 %v271
    %v418 = vpop.f32.mrf.mxu0
    %v419 = vadd.f32 0.0, %v418
    %v420 = vpop.f32.mrf.mxu0
    %421 = vdwg.mxu0
    %422 = vset.pattern.permute.xlu0 2
    %423 = vperm.xlu0 %422, %v21
    %v424 = vpop.permute.xlu0 %423
    %425 = vset.pattern.permute.xlu0 2
    %426 = vperm.xlu0 %425, %v22
    %v427 = vpop.permute.xlu0 %426
    %428 = vset.pattern.permute.xlu0 2
    %429 = vperm.xlu0 %428, %v23
    %v430 = vpop.permute.xlu0 %429
    %431 = vset.pattern.permute.xlu0 2
    %432 = vperm.xlu0 %431, %v24
    %v433 = vpop.permute.xlu0 %432
    %434 = vset.pattern.permute.xlu0 2
    %435 = vperm.xlu0 %434, %v25
    %v436 = vpop.permute.xlu0 %435
    %437 = vset.pattern.permute.xlu0 2
    %438 = vperm.xlu0 %437, %v26
    %v439 = vpop.permute.xlu0 %438
    %440 = vset.pattern.permute.xlu0 2
    %441 = vperm.xlu0 %440, %v27
    %v442 = vpop.permute.xlu0 %441
    %443 = vset.pattern.permute.xlu0 2
    %444 = vperm.xlu0 %443, %v28
    %v445 = vpop.permute.xlu0 %444
    %446 = vset.pattern.permute.xlu0 2
    %447 = vperm.xlu0 %446, %v29
    %v448 = vpop.permute.xlu0 %447
    %449 = vset.pattern.permute.xlu0 2
    %450 = vperm.xlu0 %449, %v30
    %v451 = vpop.permute.xlu0 %450
    %452 = vset.pattern.permute.xlu0 2
    %453 = vperm.xlu0 %452, %v31
    %v454 = vpop.permute.xlu0 %453
    %455 = vset.pattern.permute.xlu0 2
    %456 = vperm.xlu0 %455, %v32
    %v457 = vpop.permute.xlu0 %456
    %458 = vset.pattern.permute.xlu0 2
    %459 = vperm.xlu0 %458, %v33
    %v460 = vpop.permute.xlu0 %459
    %461 = vset.pattern.permute.xlu0 2
    %462 = vperm.xlu0 %461, %v34
    %v463 = vpop.permute.xlu0 %462
    %464 = vset.pattern.permute.xlu0 2
    %465 = vperm.xlu0 %464, %v35
    %v466 = vpop.permute.xlu0 %465
    %467 = vset.pattern.permute.xlu0 2
    %468 = vperm.xlu0 %467, %v36
    %v469 = vpop.permute.xlu0 %468
    %vm470 = vcmp.eq.s32.totalorder %v38, %v424
    %vm471 = vcmp.eq.s32.totalorder %v38, %v427
    %vm472 = vcmp.eq.s32.totalorder %v38, %v430
    %vm473 = vcmp.eq.s32.totalorder %v38, %v433
    %vm474 = vcmp.eq.s32.totalorder %v38, %v436
    %vm475 = vcmp.eq.s32.totalorder %v38, %v439
    %vm476 = vcmp.eq.s32.totalorder %v38, %v442
    %vm477 = vcmp.eq.s32.totalorder %v38, %v445
    %vm478 = vcmp.eq.s32.totalorder %v38, %v448
    %vm479 = vcmp.eq.s32.totalorder %v38, %v451
    %vm480 = vcmp.eq.s32.totalorder %v38, %v454
    %vm481 = vcmp.eq.s32.totalorder %v38, %v457
    %vm482 = vcmp.eq.s32.totalorder %v38, %v460
    %vm483 = vcmp.eq.s32.totalorder %v38, %v463
    %vm484 = vcmp.eq.s32.totalorder %v38, %v466
    %vm485 = vcmp.eq.s32.totalorder %v38, %v469
    %v486 = vsel %vm470, 1, 0
    %v487 = vsel %vm471, 1, 0
    %v488 = vsel %vm472, 1, 0
    %v489 = vsel %vm473, 1, 0
    %v490 = vsel %vm474, 1, 0
    %v491 = vsel %vm475, 1, 0
    %v492 = vsel %vm476, 1, 0
    %v493 = vsel %vm477, 1, 0
    %v494 = vsel %vm478, 1, 0
    %v495 = vsel %vm479, 1, 0
    %v496 = vsel %vm480, 1, 0
    %v497 = vsel %vm481, 1, 0
    %v498 = vsel %vm482, 1, 0
    %v499 = vsel %vm483, 1, 0
    %v500 = vsel %vm484, 1, 0
    %v501 = vsel %vm485, 1, 0
    %v502 = vcvt.s32.f32 %v486
    %v503 = vcvt.s32.f32 %v487
    %v504 = vcvt.s32.f32 %v488
    %v505 = vcvt.s32.f32 %v489
    %v506 = vcvt.s32.f32 %v490
    %v507 = vcvt.s32.f32 %v491
    %v508 = vcvt.s32.f32 %v492
    %v509 = vcvt.s32.f32 %v493
    %v510 = vcvt.s32.f32 %v494
    %v511 = vcvt.s32.f32 %v495
    %v512 = vcvt.s32.f32 %v496
    %v513 = vcvt.s32.f32 %v497
    %v514 = vcvt.s32.f32 %v498
    %v515 = vcvt.s32.f32 %v499
    %v516 = vcvt.s32.f32 %v500
    %v517 = vcvt.s32.f32 %v501
    %vm518 = vcmp.ne.s32.totalorder %v21, 0
    %vm519 = vcmp.ne.s32.totalorder %v22, 0
    %vm520 = vcmp.ne.s32.totalorder %v23, 0
    %vm521 = vcmp.ne.s32.totalorder %v24, 0
    %vm522 = vcmp.ne.s32.totalorder %v25, 0
    %vm523 = vcmp.ne.s32.totalorder %v26, 0
    %vm524 = vcmp.ne.s32.totalorder %v27, 0
    %vm525 = vcmp.ne.s32.totalorder %v28, 0
    %vm526 = vcmp.ne.s32.totalorder %v29, 0
    %vm527 = vcmp.ne.s32.totalorder %v30, 0
    %vm528 = vcmp.ne.s32.totalorder %v31, 0
    %vm529 = vcmp.ne.s32.totalorder %v32, 0
    %vm530 = vcmp.ne.s32.totalorder %v33, 0
    %vm531 = vcmp.ne.s32.totalorder %v34, 0
    %vm532 = vcmp.ne.s32.totalorder %v35, 0
    %vm533 = vcmp.ne.s32.totalorder %v36, 0
    %v534 = vsel %vm518, 1, 0
    %v535 = vsel %vm519, 1, 0
    %v536 = vsel %vm520, 1, 0
    %v537 = vsel %vm521, 1, 0
    %v538 = vsel %vm522, 1, 0
    %v539 = vsel %vm523, 1, 0
    %v540 = vsel %vm524, 1, 0
    %v541 = vsel %vm525, 1, 0
    %v542 = vsel %vm526, 1, 0
    %v543 = vsel %vm527, 1, 0
    %v544 = vsel %vm528, 1, 0
    %v545 = vsel %vm529, 1, 0
    %v546 = vsel %vm530, 1, 0
    %v547 = vsel %vm531, 1, 0
    %v548 = vsel %vm532, 1, 0
    %v549 = vsel %vm533, 1, 0
    %v550 = vcvt.s32.f32 %v534
    %v551 = vcvt.s32.f32 %v535
    %v552 = vcvt.s32.f32 %v536
    %v553 = vcvt.s32.f32 %v537
    %v554 = vcvt.s32.f32 %v538
    %v555 = vcvt.s32.f32 %v539
    %v556 = vcvt.s32.f32 %v540
    %v557 = vcvt.s32.f32 %v541
    %v558 = vcvt.s32.f32 %v542
    %v559 = vcvt.s32.f32 %v543
    %v560 = vcvt.s32.f32 %v544
    %v561 = vcvt.s32.f32 %v545
    %v562 = vcvt.s32.f32 %v546
    %v563 = vcvt.s32.f32 %v547
    %v564 = vcvt.s32.f32 %v548
    %v565 = vcvt.s32.f32 %v549
    %567 = vset.pattern.permute.xlu0 0
    %568 = vperm.xlu0 %567, %v550
    %v569 = vpop.permute.xlu0 %568
    %572 = vset.pattern.permute.xlu0 0
    %573 = vperm.xlu0 %572, %v551
    %v574 = vpop.permute.xlu0 %573
    %577 = vset.pattern.permute.xlu0 0
    %578 = vperm.xlu0 %577, %v552
    %v579 = vpop.permute.xlu0 %578
    %582 = vset.pattern.permute.xlu0 0
    %583 = vperm.xlu0 %582, %v553
    %v584 = vpop.permute.xlu0 %583
    %587 = vset.pattern.permute.xlu0 0
    %588 = vperm.xlu0 %587, %v554
    %v589 = vpop.permute.xlu0 %588
    %592 = vset.pattern.permute.xlu0 0
    %593 = vperm.xlu0 %592, %v555
    %v594 = vpop.permute.xlu0 %593
    %597 = vset.pattern.permute.xlu0 0
    %598 = vperm.xlu0 %597, %v556
    %v599 = vpop.permute.xlu0 %598
    %602 = vset.pattern.permute.xlu0 0
    %603 = vperm.xlu0 %602, %v557
    %v604 = vpop.permute.xlu0 %603
    %607 = vset.pattern.permute.xlu0 0
    %608 = vperm.xlu0 %607, %v558
    %v609 = vpop.permute.xlu0 %608
    %612 = vset.pattern.permute.xlu0 0
    %613 = vperm.xlu0 %612, %v559
    %v614 = vpop.permute.xlu0 %613
    %617 = vset.pattern.permute.xlu0 0
    %618 = vperm.xlu0 %617, %v560
    %v619 = vpop.permute.xlu0 %618
    %622 = vset.pattern.permute.xlu0 0
    %623 = vperm.xlu0 %622, %v561
    %v624 = vpop.permute.xlu0 %623
    %627 = vset.pattern.permute.xlu0 0
    %628 = vperm.xlu0 %627, %v562
    %v629 = vpop.permute.xlu0 %628
    %632 = vset.pattern.permute.xlu0 0
    %633 = vperm.xlu0 %632, %v563
    %v634 = vpop.permute.xlu0 %633
    %637 = vset.pattern.permute.xlu0 0
    %638 = vperm.xlu0 %637, %v564
    %v639 = vpop.permute.xlu0 %638
    %642 = vset.pattern.permute.xlu0 0
    %643 = vperm.xlu0 %642, %v565
    %v644 = vpop.permute.xlu0 %643
    %v646 = vmul.f32 %v502, %v569
    %v647 = vmul.f32 %v503, %v574
    %v648 = vmul.f32 %v504, %v579
    %v649 = vmul.f32 %v505, %v584
    %v650 = vmul.f32 %v506, %v589
    %v651 = vmul.f32 %v507, %v594
    %v652 = vmul.f32 %v508, %v599
    %v653 = vmul.f32 %v509, %v604
    %v654 = vmul.f32 %v510, %v609
    %v655 = vmul.f32 %v511, %v614
    %v656 = vmul.f32 %v512, %v619
    %v657 = vmul.f32 %v513, %v624
    %v658 = vmul.f32 %v514, %v629
    %v659 = vmul.f32 %v515, %v634
    %v660 = vmul.f32 %v516, %v639
    %v661 = vmul.f32 %v517, %v644
    %vm662 = vcmask 64512
    %v664 = vsel %vm662, %v502, 0
    %v667 = vsel %vm662, %v503, 0
    %v670 = vsel %vm662, %v504, 0
    %v673 = vsel %vm662, %v505, 0
    %v676 = vsel %vm662, %v506, 0
    %v679 = vsel %vm662, %v507, 0
    %v682 = vsel %vm662, %v508, 0
    %v685 = vsel %vm662, %v509, 0
    %v688 = vsel %vm662, %v510, 0
    %v691 = vsel %vm662, %v511, 0
    %v694 = vsel %vm662, %v512, 0
    %v697 = vsel %vm662, %v513, 0
    %v700 = vsel %vm662, %v514, 0
    %v703 = vsel %vm662, %v515, 0
    %v706 = vsel %vm662, %v516, 0
    %v709 = vsel %vm662, %v517, 0
    %v712 = vsel %vm662, %v646, 0
    %v715 = vsel %vm662, %v647, 0
    %v718 = vsel %vm662, %v648, 0
    %v721 = vsel %vm662, %v649, 0
    %v724 = vsel %vm662, %v650, 0
    %v727 = vsel %vm662, %v651, 0
    %v730 = vsel %vm662, %v652, 0
    %v733 = vsel %vm662, %v653, 0
    %v736 = vsel %vm662, %v654, 0
    %v739 = vsel %vm662, %v655, 0
    %v742 = vsel %vm662, %v656, 0
    %v745 = vsel %vm662, %v657, 0
    %v748 = vsel %vm662, %v658, 0
    %v751 = vsel %vm662, %v659, 0
    %v754 = vsel %vm662, %v660, 0
    %v757 = vsel %vm662, %v661, 0
    %759 = vmatprep.subr.mxu0 0.0
    %760 = vmatpush1.xpose.msra.mxu0 %v757
    %761 = vmatprep.subr.mxu0 0.0
    %762 = vmatpush1.xpose.msra.mxu0 %v754
    %763 = vmatprep.subr.mxu0 0.0
    %764 = vmatpush1.xpose.msra.mxu0 %v751
    %765 = vmatprep.subr.mxu0 0.0
    %766 = vmatpush1.xpose.msra.mxu0 %v748
    %767 = vmatprep.subr.mxu0 0.0
    %768 = vmatpush1.xpose.msra.mxu0 %v745
    %769 = vmatprep.subr.mxu0 0.0
    %770 = vmatpush1.xpose.msra.mxu0 %v742
    %771 = vmatprep.subr.mxu0 0.0
    %772 = vmatpush1.xpose.msra.mxu0 %v739
    %773 = vmatprep.subr.mxu0 0.0
    %774 = vmatpush1.xpose.msra.mxu0 %v736
    %775 = vmatprep.subr.mxu0 0.0
    %776 = vmatpush1.xpose.msra.mxu0 %v733
    %777 = vmatprep.subr.mxu0 0.0
    %778 = vmatpush1.xpose.msra.mxu0 %v730
    %779 = vmatprep.subr.mxu0 0.0
    %780 = vmatpush1.xpose.msra.mxu0 %v727
    %781 = vmatprep.subr.mxu0 0.0
    %782 = vmatpush1.xpose.msra.mxu0 %v724
    %783 = vmatprep.subr.mxu0 0.0
    %784 = vmatpush1.xpose.msra.mxu0 %v721
    %785 = vmatprep.subr.mxu0 0.0
    %786 = vmatpush1.xpose.msra.mxu0 %v718
    %787 = vmatprep.subr.mxu0 0.0
    %788 = vmatpush1.xpose.msra.mxu0 %v715
    %789 = vmatprep.subr.mxu0 0.0
    %790 = vmatpush1.xpose.msra.mxu0 %v712
    %791 = vmatprep.subr.mxu0 0.0
    %792 = vmatpush2.xpose.msra.mxu0 0.0
    %793 = vmatprep.subr.mxu0 0.0
    %794 = vmatpush2.xpose.msra.mxu0 0.0
    %795 = vmatprep.subr.mxu0 0.0
    %796 = vmatpush2.xpose.msra.mxu0 0.0
    %797 = vmatprep.subr.mxu0 0.0
    %798 = vmatpush2.xpose.msra.mxu0 0.0
    %799 = vmatprep.subr.mxu0 0.0
    %800 = vmatpush2.xpose.msra.mxu0 0.0
    %801 = vmatprep.subr.mxu0 0.0
    %802 = vmatpush2.xpose.msra.mxu0 0.0
    %803 = vmatprep.subr.mxu0 0.0
    %804 = vmatpush2.xpose.msra.mxu0 0.0
    %805 = vmatprep.subr.mxu0 0.0
    %806 = vmatpush2.xpose.msra.mxu0 0.0
    %807 = vmatprep.subr.mxu0 0.0
    %808 = vmatpush2.xpose.msra.mxu0 0.0
    %809 = vmatprep.subr.mxu0 0.0
    %810 = vmatpush2.xpose.msra.mxu0 0.0
    %811 = vmatprep.subr.mxu0 0.0
    %812 = vmatpush2.xpose.msra.mxu0 0.0
    %813 = vmatprep.subr.mxu0 0.0
    %814 = vmatpush2.xpose.msra.mxu0 0.0
    %815 = vmatprep.subr.mxu0 0.0
    %816 = vmatpush2.xpose.msra.mxu0 0.0
    %817 = vmatprep.subr.mxu0 0.0
    %818 = vmatpush2.xpose.msra.mxu0 0.0
    %819 = vmatprep.subr.mxu0 0.0
    %820 = vmatpush2.xpose.msra.mxu0 0.0
    %821 = vmatprep.subr.mxu0 0.0
    %822 = vmatpush2.xpose.msra.mxu0 0.0
    %823 = vmatprep.mubr.f32.mxu0 0.0
    %824 = vmatmul.mubr.f32.gmra.mxu0 %v664
    %v825 = vpop.f32.mrf.mxu0
    %v826 = vadd.f32 0.0, %v825
    %v827 = vpop.f32.mrf.mxu0
    %828 = vmatprep.mubr.f32.mxu0 0.0
    %829 = vmatmul.mubr.f32.gmra.mxu0 %v667
    %v830 = vpop.f32.mrf.mxu0
    %v831 = vadd.f32 0.0, %v830
    %v832 = vpop.f32.mrf.mxu0
    %833 = vmatprep.mubr.f32.mxu0 0.0
    %834 = vmatmul.mubr.f32.gmra.mxu0 %v670
    %v835 = vpop.f32.mrf.mxu0
    %v836 = vadd.f32 0.0, %v835
    %v837 = vpop.f32.mrf.mxu0
    %838 = vmatprep.mubr.f32.mxu0 0.0
    %839 = vmatmul.mubr.f32.gmra.mxu0 %v673
    %v840 = vpop.f32.mrf.mxu0
    %v841 = vadd.f32 0.0, %v840
    %v842 = vpop.f32.mrf.mxu0
    %843 = vmatprep.mubr.f32.mxu0 0.0
    %844 = vmatmul.mubr.f32.gmra.mxu0 %v676
    %v845 = vpop.f32.mrf.mxu0
    %v846 = vadd.f32 0.0, %v845
    %v847 = vpop.f32.mrf.mxu0
    %848 = vmatprep.mubr.f32.mxu0 0.0
    %849 = vmatmul.mubr.f32.gmra.mxu0 %v679
    %v850 = vpop.f32.mrf.mxu0
    %v851 = vadd.f32 0.0, %v850
    %v852 = vpop.f32.mrf.mxu0
    %853 = vmatprep.mubr.f32.mxu0 0.0
    %854 = vmatmul.mubr.f32.gmra.mxu0 %v682
    %v855 = vpop.f32.mrf.mxu0
    %v856 = vadd.f32 0.0, %v855
    %v857 = vpop.f32.mrf.mxu0
    %858 = vmatprep.mubr.f32.mxu0 0.0
    %859 = vmatmul.mubr.f32.gmra.mxu0 %v685
    %v860 = vpop.f32.mrf.mxu0
    %v861 = vadd.f32 0.0, %v860
    %v862 = vpop.f32.mrf.mxu0
    %863 = vmatprep.mubr.f32.mxu0 0.0
    %864 = vmatmul.mubr.f32.gmra.mxu0 %v688
    %v865 = vpop.f32.mrf.mxu0
    %v866 = vadd.f32 0.0, %v865
    %v867 = vpop.f32.mrf.mxu0
    %868 = vmatprep.mubr.f32.mxu0 0.0
    %869 = vmatmul.mubr.f32.gmra.mxu0 %v691
    %v870 = vpop.f32.mrf.mxu0
    %v871 = vadd.f32 0.0, %v870
    %v872 = vpop.f32.mrf.mxu0
    %873 = vmatprep.mubr.f32.mxu0 0.0
    %874 = vmatmul.mubr.f32.gmra.mxu0 %v694
    %v875 = vpop.f32.mrf.mxu0
    %v876 = vadd.f32 0.0, %v875
    %v877 = vpop.f32.mrf.mxu0
    %878 = vmatprep.mubr.f32.mxu0 0.0
    %879 = vmatmul.mubr.f32.gmra.mxu0 %v697
    %v880 = vpop.f32.mrf.mxu0
    %v881 = vadd.f32 0.0, %v880
    %v882 = vpop.f32.mrf.mxu0
    %883 = vmatprep.mubr.f32.mxu0 0.0
    %884 = vmatmul.mubr.f32.gmra.mxu0 %v700
    %v885 = vpop.f32.mrf.mxu0
    %v886 = vadd.f32 0.0, %v885
    %v887 = vpop.f32.mrf.mxu0
    %888 = vmatprep.mubr.f32.mxu0 0.0
    %889 = vmatmul.mubr.f32.gmra.mxu0 %v703
    %v890 = vpop.f32.mrf.mxu0
    %v891 = vadd.f32 0.0, %v890
    %v892 = vpop.f32.mrf.mxu0
    %893 = vmatprep.mubr.f32.mxu0 0.0
    %894 = vmatmul.mubr.f32.gmra.mxu0 %v706
    %v895 = vpop.f32.mrf.mxu0
    %v896 = vadd.f32 0.0, %v895
    %v897 = vpop.f32.mrf.mxu0
    %898 = vmatprep.mubr.f32.mxu0 0.0
    %899 = vmatmul.mubr.f32.gmra.mxu0 %v709
    %v900 = vpop.f32.mrf.mxu0
    %v901 = vadd.f32 0.0, %v900
    %v902 = vpop.f32.mrf.mxu0
    %903 = vdwg.mxu0
    %vm904 = vcmp.gt.f32.partialorder %v826, 0.5
    %vm905 = vcmp.gt.f32.partialorder %v831, 0.5
    %vm906 = vcmp.gt.f32.partialorder %v836, 0.5
    %vm907 = vcmp.gt.f32.partialorder %v841, 0.5
    %vm908 = vcmp.gt.f32.partialorder %v846, 0.5
    %vm909 = vcmp.gt.f32.partialorder %v851, 0.5
    %vm910 = vcmp.gt.f32.partialorder %v856, 0.5
    %vm911 = vcmp.gt.f32.partialorder %v861, 0.5
    %vm912 = vcmp.gt.f32.partialorder %v866, 0.5
    %vm913 = vcmp.gt.f32.partialorder %v871, 0.5
    %vm914 = vcmp.gt.f32.partialorder %v876, 0.5
    %vm915 = vcmp.gt.f32.partialorder %v881, 0.5
    %vm916 = vcmp.gt.f32.partialorder %v886, 0.5
    %vm917 = vcmp.gt.f32.partialorder %v891, 0.5
    %vm918 = vcmp.gt.f32.partialorder %v896, 0.5
    %vm919 = vcmp.gt.f32.partialorder %v901, 0.5
    %v920 = vsel %vm904, 0.0, -1e+09
    %v921 = vsel %vm905, 0.0, -1e+09
    %v922 = vsel %vm906, 0.0, -1e+09
    %v923 = vsel %vm907, 0.0, -1e+09
    %v924 = vsel %vm908, 0.0, -1e+09
    %v925 = vsel %vm909, 0.0, -1e+09
    %v926 = vsel %vm910, 0.0, -1e+09
    %v927 = vsel %vm911, 0.0, -1e+09
    %v928 = vsel %vm912, 0.0, -1e+09
    %v929 = vsel %vm913, 0.0, -1e+09
    %v930 = vsel %vm914, 0.0, -1e+09
    %v931 = vsel %vm915, 0.0, -1e+09
    %v932 = vsel %vm916, 0.0, -1e+09
    %v933 = vsel %vm917, 0.0, -1e+09
    %v934 = vsel %vm918, 0.0, -1e+09
    %v935 = vsel %vm919, 0.0, -1e+09
    %v936 = vld [vmem:[%s2] sm:$0xff]
    %v937 = vld [vmem:[%s2 + $0x8] sm:$0xff]
    %v938 = vld [vmem:[%s2 + $0x10] sm:$0xff]
    %v939 = vld [vmem:[%s2 + $0x18] sm:$0xff]
    %v940 = vld [vmem:[%s2 + $0x20] sm:$0xff]
    %v941 = vld [vmem:[%s2 + $0x28] sm:$0xff]
    %v942 = vld [vmem:[%s2 + $0x30] sm:$0xff]
    %v943 = vld [vmem:[%s2 + $0x38] sm:$0xff]
    %v944 = vld [vmem:[%s2 + $0x40] sm:$0xff]
    %v945 = vld [vmem:[%s2 + $0x48] sm:$0xff]
    %v946 = vld [vmem:[%s2 + $0x50] sm:$0xff]
    %v947 = vld [vmem:[%s2 + $0x58] sm:$0xff]
    %v948 = vld [vmem:[%s2 + $0x60] sm:$0xff]
    %v949 = vld [vmem:[%s2 + $0x68] sm:$0xff]
    %v950 = vld [vmem:[%s2 + $0x70] sm:$0xff]
    %v951 = vld [vmem:[%s2 + $0x78] sm:$0xff]
    %v952 = vld [vmem:[%s2 + $0x80] sm:$0xff]
    %v953 = vld [vmem:[%s2 + $0x88] sm:$0xff]
    %v954 = vld [vmem:[%s2 + $0x90] sm:$0xff]
    %v955 = vld [vmem:[%s2 + $0x98] sm:$0xff]
    %v956 = vld [vmem:[%s3] sm:$0xff]
    %v957 = vld [vmem:[%s3 + $0x8] sm:$0xff]
    %v958 = vld [vmem:[%s3 + $0x10] sm:$0xff]
    %v959 = vld [vmem:[%s3 + $0x18] sm:$0xff]
    %v960 = vld [vmem:[%s3 + $0x20] sm:$0xff]
    %v961 = vld [vmem:[%s3 + $0x28] sm:$0xff]
    %v962 = vld [vmem:[%s3 + $0x30] sm:$0xff]
    %v963 = vld [vmem:[%s3 + $0x38] sm:$0xff]
    %v964 = vld [vmem:[%s4] sm:$0xff]
    %v965 = vld [vmem:[%s4 + $0x8] sm:$0xff]
    %v966 = vlaneseq
    %v967 = vshrl.u32 %v966, 7
    %v968 = vsub.s32 0, %v967
    %v969 = vrot.slane %v964, %v968
    %vm970 = vcmask 261120
    %v972 = vsel %vm970, %v344, 0
    %v975 = vsel %vm970, %v349, 0
    %v978 = vsel %vm970, %v354, 0
    %v981 = vsel %vm970, %v359, 0
    %v984 = vsel %vm970, %v364, 0
    %v987 = vsel %vm970, %v369, 0
    %v990 = vsel %vm970, %v374, 0
    %v993 = vsel %vm970, %v379, 0
    %v996 = vsel %vm970, %v384, 0
    %v999 = vsel %vm970, %v389, 0
    %v1002 = vsel %vm970, %v394, 0
    %v1005 = vsel %vm970, %v399, 0
    %v1008 = vsel %vm970, %v404, 0
    %v1011 = vsel %vm970, %v409, 0
    %v1014 = vsel %vm970, %v414, 0
    %v1017 = vsel %vm970, %v419, 0
    %1019 = vmatprep.subr.mxu0 0.0
    %1020 = vmatpush1.msra.mxu0 0.0
    %1021 = vmatprep.subr.mxu0 0.0
    %1022 = vmatpush1.msra.mxu0 0.0
    %1023 = vmatprep.subr.mxu0 0.0
    %1024 = vmatpush1.msra.mxu0 0.0
    %1025 = vmatprep.subr.mxu0 0.0
    %1026 = vmatpush1.msra.mxu0 0.0
    %1027 = vmatprep.subr.mxu0 0.0
    %1028 = vmatpush1.msra.mxu0 0.0
    %1029 = vmatprep.subr.mxu0 0.0
    %1030 = vmatpush1.msra.mxu0 0.0
    %1031 = vmatprep.subr.mxu0 0.0
    %1032 = vmatpush1.msra.mxu0 0.0
    %1033 = vmatprep.subr.mxu0 0.0
    %1034 = vmatpush1.msra.mxu0 0.0
    %1035 = vmatprep.subr.mxu0 0.0
    %1036 = vmatpush1.msra.mxu0 0.0
    %1037 = vmatprep.subr.mxu0 0.0
    %1038 = vmatpush1.msra.mxu0 0.0
    %1039 = vmatprep.subr.mxu0 0.0
    %1040 = vmatpush1.msra.mxu0 0.0
    %1041 = vmatprep.subr.mxu0 0.0
    %1042 = vmatpush1.msra.mxu0 0.0
    %1043 = vmatprep.subr.mxu0 0.0
    %1044 = vmatpush1.msra.mxu0 %v951
    %1045 = vmatprep.subr.mxu0 0.0
    %1046 = vmatpush1.msra.mxu0 %v946
    %1047 = vmatprep.subr.mxu0 0.0
    %1048 = vmatpush1.msra.mxu0 %v941
    %1049 = vmatprep.subr.mxu0 0.0
    %1050 = vmatpush1.msra.mxu0 %v936
    %1051 = vmatprep.subr.mxu0 0.0
    %1052 = vmatpush2.msra.mxu0 0.0
    %1053 = vmatprep.subr.mxu0 0.0
    %1054 = vmatpush2.msra.mxu0 0.0
    %1055 = vmatprep.subr.mxu0 0.0
    %1056 = vmatpush2.msra.mxu0 0.0
    %1057 = vmatprep.subr.mxu0 0.0
    %1058 = vmatpush2.msra.mxu0 0.0
    %1059 = vmatprep.subr.mxu0 0.0
    %1060 = vmatpush2.msra.mxu0 0.0
    %1061 = vmatprep.subr.mxu0 0.0
    %1062 = vmatpush2.msra.mxu0 0.0
    %1063 = vmatprep.subr.mxu0 0.0
    %1064 = vmatpush2.msra.mxu0 0.0
    %1065 = vmatprep.subr.mxu0 0.0
    %1066 = vmatpush2.msra.mxu0 0.0
    %1067 = vmatprep.subr.mxu0 0.0
    %1068 = vmatpush2.msra.mxu0 0.0
    %1069 = vmatprep.subr.mxu0 0.0
    %1070 = vmatpush2.msra.mxu0 0.0
    %1071 = vmatprep.subr.mxu0 0.0
    %1072 = vmatpush2.msra.mxu0 0.0
    %1073 = vmatprep.subr.mxu0 0.0
    %1074 = vmatpush2.msra.mxu0 0.0
    %1075 = vmatprep.subr.mxu0 0.0
    %1076 = vmatpush2.msra.mxu0 0.0
    %1077 = vmatprep.subr.mxu0 0.0
    %1078 = vmatpush2.msra.mxu0 0.0
    %1079 = vmatprep.subr.mxu0 0.0
    %1080 = vmatpush2.msra.mxu0 0.0
    %1081 = vmatprep.subr.mxu0 0.0
    %1082 = vmatpush2.msra.mxu0 0.0
    %1083 = vmatprep.mubr.f32.mxu0 0.0
    %1084 = vmatmul.mubr.f32.gmra.mxu0 %v972
    %v1085 = vpop.f32.mrf.mxu0
    %v1086 = vadd.f32 %v969, %v1085
    %v1087 = vpop.f32.mrf.mxu0
    %1088 = vmatprep.mubr.f32.mxu0 0.0
    %1089 = vmatmul.mubr.f32.gmra.mxu0 %v975
    %v1090 = vpop.f32.mrf.mxu0
    %v1091 = vadd.f32 %v969, %v1090
    %v1092 = vpop.f32.mrf.mxu0
    %1093 = vmatprep.mubr.f32.mxu0 0.0
    %1094 = vmatmul.mubr.f32.gmra.mxu0 %v978
    %v1095 = vpop.f32.mrf.mxu0
    %v1096 = vadd.f32 %v969, %v1095
    %v1097 = vpop.f32.mrf.mxu0
    %1098 = vmatprep.mubr.f32.mxu0 0.0
    %1099 = vmatmul.mubr.f32.gmra.mxu0 %v981
    %v1100 = vpop.f32.mrf.mxu0
    %v1101 = vadd.f32 %v969, %v1100
    %v1102 = vpop.f32.mrf.mxu0
    %1103 = vmatprep.mubr.f32.mxu0 0.0
    %1104 = vmatmul.mubr.f32.gmra.mxu0 %v984
    %v1105 = vpop.f32.mrf.mxu0
    %v1106 = vadd.f32 %v969, %v1105
    %v1107 = vpop.f32.mrf.mxu0
    %1108 = vmatprep.mubr.f32.mxu0 0.0
    %1109 = vmatmul.mubr.f32.gmra.mxu0 %v987
    %v1110 = vpop.f32.mrf.mxu0
    %v1111 = vadd.f32 %v969, %v1110
    %v1112 = vpop.f32.mrf.mxu0
    %1113 = vmatprep.mubr.f32.mxu0 0.0
    %1114 = vmatmul.mubr.f32.gmra.mxu0 %v990
    %v1115 = vpop.f32.mrf.mxu0
    %v1116 = vadd.f32 %v969, %v1115
    %v1117 = vpop.f32.mrf.mxu0
    %1118 = vmatprep.mubr.f32.mxu0 0.0
    %1119 = vmatmul.mubr.f32.gmra.mxu0 %v993
    %v1120 = vpop.f32.mrf.mxu0
    %v1121 = vadd.f32 %v969, %v1120
    %v1122 = vpop.f32.mrf.mxu0
    %1123 = vmatprep.mubr.f32.mxu0 0.0
    %1124 = vmatmul.mubr.f32.gmra.mxu0 %v996
    %v1125 = vpop.f32.mrf.mxu0
    %v1126 = vadd.f32 %v969, %v1125
    %v1127 = vpop.f32.mrf.mxu0
    %1128 = vmatprep.mubr.f32.mxu0 0.0
    %1129 = vmatmul.mubr.f32.gmra.mxu0 %v999
    %v1130 = vpop.f32.mrf.mxu0
    %v1131 = vadd.f32 %v969, %v1130
    %v1132 = vpop.f32.mrf.mxu0
    %1133 = vmatprep.mubr.f32.mxu0 0.0
    %1134 = vmatmul.mubr.f32.gmra.mxu0 %v1002
    %v1135 = vpop.f32.mrf.mxu0
    %v1136 = vadd.f32 %v969, %v1135
    %v1137 = vpop.f32.mrf.mxu0
    %1138 = vmatprep.mubr.f32.mxu0 0.0
    %1139 = vmatmul.mubr.f32.gmra.mxu0 %v1005
    %v1140 = vpop.f32.mrf.mxu0
    %v1141 = vadd.f32 %v969, %v1140
    %v1142 = vpop.f32.mrf.mxu0
    %1143 = vmatprep.mubr.f32.mxu0 0.0
    %1144 = vmatmul.mubr.f32.gmra.mxu0 %v1008
    %v1145 = vpop.f32.mrf.mxu0
    %v1146 = vadd.f32 %v969, %v1145
    %v1147 = vpop.f32.mrf.mxu0
    %1148 = vmatprep.mubr.f32.mxu0 0.0
    %1149 = vmatmul.mubr.f32.gmra.mxu0 %v1011
    %v1150 = vpop.f32.mrf.mxu0
    %v1151 = vadd.f32 %v969, %v1150
    %v1152 = vpop.f32.mrf.mxu0
    %1153 = vmatprep.mubr.f32.mxu0 0.0
    %1154 = vmatmul.mubr.f32.gmra.mxu0 %v1014
    %v1155 = vpop.f32.mrf.mxu0
    %v1156 = vadd.f32 %v969, %v1155
    %v1157 = vpop.f32.mrf.mxu0
    %1158 = vmatprep.mubr.f32.mxu0 0.0
    %1159 = vmatmul.mubr.f32.gmra.mxu0 %v1017
    %v1160 = vpop.f32.mrf.mxu0
    %v1161 = vadd.f32 %v969, %v1160
    %v1162 = vpop.f32.mrf.mxu0
    %1163 = vdwg.mxu0
    %v1164 = vmul.f32 %v1086, 0.35355338
    %v1165 = vmul.f32 %v1091, 0.35355338
    %v1166 = vmul.f32 %v1096, 0.35355338
    %v1167 = vmul.f32 %v1101, 0.35355338
    %v1168 = vmul.f32 %v1106, 0.35355338
    %v1169 = vmul.f32 %v1111, 0.35355338
    %v1170 = vmul.f32 %v1116, 0.35355338
    %v1171 = vmul.f32 %v1121, 0.35355338
    %v1172 = vmul.f32 %v1126, 0.35355338
    %v1173 = vmul.f32 %v1131, 0.35355338
    %v1174 = vmul.f32 %v1136, 0.35355338
    %v1175 = vmul.f32 %v1141, 0.35355338
    %v1176 = vmul.f32 %v1146, 0.35355338
    %v1177 = vmul.f32 %v1151, 0.35355338
    %v1178 = vmul.f32 %v1156, 0.35355338
    %v1179 = vmul.f32 %v1161, 0.35355338
    %v1180 = vlaneseq
    %v1181 = vshrl.u32 %v1180, 7
    %v1182 = vsub.s32 1, %v1181
    %v1183 = vrot.slane %v964, %v1182
    %1184 = vmatprep.subr.mxu0 0.0
    %1185 = vmatpush1.msra.mxu0 0.0
    %1186 = vmatprep.subr.mxu0 0.0
    %1187 = vmatpush1.msra.mxu0 0.0
    %1188 = vmatprep.subr.mxu0 0.0
    %1189 = vmatpush1.msra.mxu0 0.0
    %1190 = vmatprep.subr.mxu0 0.0
    %1191 = vmatpush1.msra.mxu0 0.0
    %1192 = vmatprep.subr.mxu0 0.0
    %1193 = vmatpush1.msra.mxu0 0.0
    %1194 = vmatprep.subr.mxu0 0.0
    %1195 = vmatpush1.msra.mxu0 0.0
    %1196 = vmatprep.subr.mxu0 0.0
    %1197 = vmatpush1.msra.mxu0 0.0
    %1198 = vmatprep.subr.mxu0 0.0
    %1199 = vmatpush1.msra.mxu0 0.0
    %1200 = vmatprep.subr.mxu0 0.0
    %1201 = vmatpush1.msra.mxu0 0.0
    %1202 = vmatprep.subr.mxu0 0.0
    %1203 = vmatpush1.msra.mxu0 0.0
    %1204 = vmatprep.subr.mxu0 0.0
    %1205 = vmatpush1.msra.mxu0 0.0
    %1206 = vmatprep.subr.mxu0 0.0
    %1207 = vmatpush1.msra.mxu0 0.0
    %1208 = vmatprep.subr.mxu0 0.0
    %1209 = vmatpush1.msra.mxu0 %v952
    %1210 = vmatprep.subr.mxu0 0.0
    %1211 = vmatpush1.msra.mxu0 %v947
    %1212 = vmatprep.subr.mxu0 0.0
    %1213 = vmatpush1.msra.mxu0 %v942
    %1214 = vmatprep.subr.mxu0 0.0
    %1215 = vmatpush1.msra.mxu0 %v937
    %1216 = vmatprep.subr.mxu0 0.0
    %1217 = vmatpush2.msra.mxu0 0.0
    %1218 = vmatprep.subr.mxu0 0.0
    %1219 = vmatpush2.msra.mxu0 0.0
    %1220 = vmatprep.subr.mxu0 0.0
    %1221 = vmatpush2.msra.mxu0 0.0
    %1222 = vmatprep.subr.mxu0 0.0
    %1223 = vmatpush2.msra.mxu0 0.0
    %1224 = vmatprep.subr.mxu0 0.0
    %1225 = vmatpush2.msra.mxu0 0.0
    %1226 = vmatprep.subr.mxu0 0.0
    %1227 = vmatpush2.msra.mxu0 0.0
    %1228 = vmatprep.subr.mxu0 0.0
    %1229 = vmatpush2.msra.mxu0 0.0
    %1230 = vmatprep.subr.mxu0 0.0
    %1231 = vmatpush2.msra.mxu0 0.0
    %1232 = vmatprep.subr.mxu0 0.0
    %1233 = vmatpush2.msra.mxu0 0.0
    %1234 = vmatprep.subr.mxu0 0.0
    %1235 = vmatpush2.msra.mxu0 0.0
    %1236 = vmatprep.subr.mxu0 0.0
    %1237 = vmatpush2.msra.mxu0 0.0
    %1238 = vmatprep.subr.mxu0 0.0
    %1239 = vmatpush2.msra.mxu0 0.0
    %1240 = vmatprep.subr.mxu0 0.0
    %1241 = vmatpush2.msra.mxu0 0.0
    %1242 = vmatprep.subr.mxu0 0.0
    %1243 = vmatpush2.msra.mxu0 0.0
    %1244 = vmatprep.subr.mxu0 0.0
    %1245 = vmatpush2.msra.mxu0 0.0
    %1246 = vmatprep.subr.mxu0 0.0
    %1247 = vmatpush2.msra.mxu0 0.0
    %1248 = vmatprep.mubr.f32.mxu0 0.0
    %1249 = vmatmul.mubr.f32.gmra.mxu0 %v972
    %v1250 = vpop.f32.mrf.mxu0
    %v1251 = vadd.f32 %v1183, %v1250
    %v1252 = vpop.f32.mrf.mxu0
    %1253 = vmatprep.mubr.f32.mxu0 0.0
    %1254 = vmatmul.mubr.f32.gmra.mxu0 %v975
    %v1255 = vpop.f32.mrf.mxu0
    %v1256 = vadd.f32 %v1183, %v1255
    %v1257 = vpop.f32.mrf.mxu0
    %1258 = vmatprep.mubr.f32.mxu0 0.0
    %1259 = vmatmul.mubr.f32.gmra.mxu0 %v978
    %v1260 = vpop.f32.mrf.mxu0
    %v1261 = vadd.f32 %v1183, %v1260
    %v1262 = vpop.f32.mrf.mxu0
    %1263 = vmatprep.mubr.f32.mxu0 0.0
    %1264 = vmatmul.mubr.f32.gmra.mxu0 %v981
    %v1265 = vpop.f32.mrf.mxu0
    %v1266 = vadd.f32 %v1183, %v1265
    %v1267 = vpop.f32.mrf.mxu0
    %1268 = vmatprep.mubr.f32.mxu0 0.0
    %1269 = vmatmul.mubr.f32.gmra.mxu0 %v984
    %v1270 = vpop.f32.mrf.mxu0
    %v1271 = vadd.f32 %v1183, %v1270
    %v1272 = vpop.f32.mrf.mxu0
    %1273 = vmatprep.mubr.f32.mxu0 0.0
    %1274 = vmatmul.mubr.f32.gmra.mxu0 %v987
    %v1275 = vpop.f32.mrf.mxu0
    %v1276 = vadd.f32 %v1183, %v1275
    %v1277 = vpop.f32.mrf.mxu0
    %1278 = vmatprep.mubr.f32.mxu0 0.0
    %1279 = vmatmul.mubr.f32.gmra.mxu0 %v990
    %v1280 = vpop.f32.mrf.mxu0
    %v1281 = vadd.f32 %v1183, %v1280
    %v1282 = vpop.f32.mrf.mxu0
    %1283 = vmatprep.mubr.f32.mxu0 0.0
    %1284 = vmatmul.mubr.f32.gmra.mxu0 %v993
    %v1285 = vpop.f32.mrf.mxu0
    %v1286 = vadd.f32 %v1183, %v1285
    %v1287 = vpop.f32.mrf.mxu0
    %1288 = vmatprep.mubr.f32.mxu0 0.0
    %1289 = vmatmul.mubr.f32.gmra.mxu0 %v996
    %v1290 = vpop.f32.mrf.mxu0
    %v1291 = vadd.f32 %v1183, %v1290
    %v1292 = vpop.f32.mrf.mxu0
    %1293 = vmatprep.mubr.f32.mxu0 0.0
    %1294 = vmatmul.mubr.f32.gmra.mxu0 %v999
    %v1295 = vpop.f32.mrf.mxu0
    %v1296 = vadd.f32 %v1183, %v1295
    %v1297 = vpop.f32.mrf.mxu0
    %1298 = vmatprep.mubr.f32.mxu0 0.0
    %1299 = vmatmul.mubr.f32.gmra.mxu0 %v1002
    %v1300 = vpop.f32.mrf.mxu0
    %v1301 = vadd.f32 %v1183, %v1300
    %v1302 = vpop.f32.mrf.mxu0
    %1303 = vmatprep.mubr.f32.mxu0 0.0
    %1304 = vmatmul.mubr.f32.gmra.mxu0 %v1005
    %v1305 = vpop.f32.mrf.mxu0
    %v1306 = vadd.f32 %v1183, %v1305
    %v1307 = vpop.f32.mrf.mxu0
    %1308 = vmatprep.mubr.f32.mxu0 0.0
    %1309 = vmatmul.mubr.f32.gmra.mxu0 %v1008
    %v1310 = vpop.f32.mrf.mxu0
    %v1311 = vadd.f32 %v1183, %v1310
    %v1312 = vpop.f32.mrf.mxu0
    %1313 = vmatprep.mubr.f32.mxu0 0.0
    %1314 = vmatmul.mubr.f32.gmra.mxu0 %v1011
    %v1315 = vpop.f32.mrf.mxu0
    %v1316 = vadd.f32 %v1183, %v1315
    %v1317 = vpop.f32.mrf.mxu0
    %1318 = vmatprep.mubr.f32.mxu0 0.0
    %1319 = vmatmul.mubr.f32.gmra.mxu0 %v1014
    %v1320 = vpop.f32.mrf.mxu0
    %v1321 = vadd.f32 %v1183, %v1320
    %v1322 = vpop.f32.mrf.mxu0
    %1323 = vmatprep.mubr.f32.mxu0 0.0
    %1324 = vmatmul.mubr.f32.gmra.mxu0 %v1017
    %v1325 = vpop.f32.mrf.mxu0
    %v1326 = vadd.f32 %v1183, %v1325
    %v1327 = vpop.f32.mrf.mxu0
    %1328 = vdwg.mxu0
    %v1329 = vlaneseq
    %v1330 = vshrl.u32 %v1329, 7
    %v1331 = vsub.s32 2, %v1330
    %v1332 = vrot.slane %v964, %v1331
    %1333 = vmatprep.subr.mxu0 0.0
    %1334 = vmatpush1.msra.mxu0 0.0
    %1335 = vmatprep.subr.mxu0 0.0
    %1336 = vmatpush1.msra.mxu0 0.0
    %1337 = vmatprep.subr.mxu0 0.0
    %1338 = vmatpush1.msra.mxu0 0.0
    %1339 = vmatprep.subr.mxu0 0.0
    %1340 = vmatpush1.msra.mxu0 0.0
    %1341 = vmatprep.subr.mxu0 0.0
    %1342 = vmatpush1.msra.mxu0 0.0
    %1343 = vmatprep.subr.mxu0 0.0
    %1344 = vmatpush1.msra.mxu0 0.0
    %1345 = vmatprep.subr.mxu0 0.0
    %1346 = vmatpush1.msra.mxu0 0.0
    %1347 = vmatprep.subr.mxu0 0.0
    %1348 = vmatpush1.msra.mxu0 0.0
    %1349 = vmatprep.subr.mxu0 0.0
    %1350 = vmatpush1.msra.mxu0 0.0
    %1351 = vmatprep.subr.mxu0 0.0
    %1352 = vmatpush1.msra.mxu0 0.0
    %1353 = vmatprep.subr.mxu0 0.0
    %1354 = vmatpush1.msra.mxu0 0.0
    %1355 = vmatprep.subr.mxu0 0.0
    %1356 = vmatpush1.msra.mxu0 0.0
    %1357 = vmatprep.subr.mxu0 0.0
    %1358 = vmatpush1.msra.mxu0 %v953
    %1359 = vmatprep.subr.mxu0 0.0
    %1360 = vmatpush1.msra.mxu0 %v948
    %1361 = vmatprep.subr.mxu0 0.0
    %1362 = vmatpush1.msra.mxu0 %v943
    %1363 = vmatprep.subr.mxu0 0.0
    %1364 = vmatpush1.msra.mxu0 %v938
    %1365 = vmatprep.subr.mxu0 0.0
    %1366 = vmatpush2.msra.mxu0 0.0
    %1367 = vmatprep.subr.mxu0 0.0
    %1368 = vmatpush2.msra.mxu0 0.0
    %1369 = vmatprep.subr.mxu0 0.0
    %1370 = vmatpush2.msra.mxu0 0.0
    %1371 = vmatprep.subr.mxu0 0.0
    %1372 = vmatpush2.msra.mxu0 0.0
    %1373 = vmatprep.subr.mxu0 0.0
    %1374 = vmatpush2.msra.mxu0 0.0
    %1375 = vmatprep.subr.mxu0 0.0
    %1376 = vmatpush2.msra.mxu0 0.0
    %1377 = vmatprep.subr.mxu0 0.0
    %1378 = vmatpush2.msra.mxu0 0.0
    %1379 = vmatprep.subr.mxu0 0.0
    %1380 = vmatpush2.msra.mxu0 0.0
    %1381 = vmatprep.subr.mxu0 0.0
    %1382 = vmatpush2.msra.mxu0 0.0
    %1383 = vmatprep.subr.mxu0 0.0
    %1384 = vmatpush2.msra.mxu0 0.0
    %1385 = vmatprep.subr.mxu0 0.0
    %1386 = vmatpush2.msra.mxu0 0.0
    %1387 = vmatprep.subr.mxu0 0.0
    %1388 = vmatpush2.msra.mxu0 0.0
    %1389 = vmatprep.subr.mxu0 0.0
    %1390 = vmatpush2.msra.mxu0 0.0
    %1391 = vmatprep.subr.mxu0 0.0
    %1392 = vmatpush2.msra.mxu0 0.0
    %1393 = vmatprep.subr.mxu0 0.0
    %1394 = vmatpush2.msra.mxu0 0.0
    %1395 = vmatprep.subr.mxu0 0.0
    %1396 = vmatpush2.msra.mxu0 0.0
    %1397 = vmatprep.mubr.f32.mxu0 0.0
    %1398 = vmatmul.mubr.f32.gmra.mxu0 %v972
    %v1399 = vpop.f32.mrf.mxu0
    %v1400 = vadd.f32 %v1332, %v1399
    %v1401 = vpop.f32.mrf.mxu0
    %1402 = vmatprep.mubr.f32.mxu0 0.0
    %1403 = vmatmul.mubr.f32.gmra.mxu0 %v975
    %v1404 = vpop.f32.mrf.mxu0
    %v1405 = vadd.f32 %v1332, %v1404
    %v1406 = vpop.f32.mrf.mxu0
    %1407 = vmatprep.mubr.f32.mxu0 0.0
    %1408 = vmatmul.mubr.f32.gmra.mxu0 %v978
    %v1409 = vpop.f32.mrf.mxu0
    %v1410 = vadd.f32 %v1332, %v1409
    %v1411 = vpop.f32.mrf.mxu0
    %1412 = vmatprep.mubr.f32.mxu0 0.0
    %1413 = vmatmul.mubr.f32.gmra.mxu0 %v981
    %v1414 = vpop.f32.mrf.mxu0
    %v1415 = vadd.f32 %v1332, %v1414
    %v1416 = vpop.f32.mrf.mxu0
    %1417 = vmatprep.mubr.f32.mxu0 0.0
    %1418 = vmatmul.mubr.f32.gmra.mxu0 %v984
    %v1419 = vpop.f32.mrf.mxu0
    %v1420 = vadd.f32 %v1332, %v1419
    %v1421 = vpop.f32.mrf.mxu0
    %1422 = vmatprep.mubr.f32.mxu0 0.0
    %1423 = vmatmul.mubr.f32.gmra.mxu0 %v987
    %v1424 = vpop.f32.mrf.mxu0
    %v1425 = vadd.f32 %v1332, %v1424
    %v1426 = vpop.f32.mrf.mxu0
    %1427 = vmatprep.mubr.f32.mxu0 0.0
    %1428 = vmatmul.mubr.f32.gmra.mxu0 %v990
    %v1429 = vpop.f32.mrf.mxu0
    %v1430 = vadd.f32 %v1332, %v1429
    %v1431 = vpop.f32.mrf.mxu0
    %1432 = vmatprep.mubr.f32.mxu0 0.0
    %1433 = vmatmul.mubr.f32.gmra.mxu0 %v993
    %v1434 = vpop.f32.mrf.mxu0
    %v1435 = vadd.f32 %v1332, %v1434
    %v1436 = vpop.f32.mrf.mxu0
    %1437 = vmatprep.mubr.f32.mxu0 0.0
    %1438 = vmatmul.mubr.f32.gmra.mxu0 %v996
    %v1439 = vpop.f32.mrf.mxu0
    %v1440 = vadd.f32 %v1332, %v1439
    %v1441 = vpop.f32.mrf.mxu0
    %1442 = vmatprep.mubr.f32.mxu0 0.0
    %1443 = vmatmul.mubr.f32.gmra.mxu0 %v999
    %v1444 = vpop.f32.mrf.mxu0
    %v1445 = vadd.f32 %v1332, %v1444
    %v1446 = vpop.f32.mrf.mxu0
    %1447 = vmatprep.mubr.f32.mxu0 0.0
    %1448 = vmatmul.mubr.f32.gmra.mxu0 %v1002
    %v1449 = vpop.f32.mrf.mxu0
    %v1450 = vadd.f32 %v1332, %v1449
    %v1451 = vpop.f32.mrf.mxu0
    %1452 = vmatprep.mubr.f32.mxu0 0.0
    %1453 = vmatmul.mubr.f32.gmra.mxu0 %v1005
    %v1454 = vpop.f32.mrf.mxu0
    %v1455 = vadd.f32 %v1332, %v1454
    %v1456 = vpop.f32.mrf.mxu0
    %1457 = vmatprep.mubr.f32.mxu0 0.0
    %1458 = vmatmul.mubr.f32.gmra.mxu0 %v1008
    %v1459 = vpop.f32.mrf.mxu0
    %v1460 = vadd.f32 %v1332, %v1459
    %v1461 = vpop.f32.mrf.mxu0
    %1462 = vmatprep.mubr.f32.mxu0 0.0
    %1463 = vmatmul.mubr.f32.gmra.mxu0 %v1011
    %v1464 = vpop.f32.mrf.mxu0
    %v1465 = vadd.f32 %v1332, %v1464
    %v1466 = vpop.f32.mrf.mxu0
    %1467 = vmatprep.mubr.f32.mxu0 0.0
    %1468 = vmatmul.mubr.f32.gmra.mxu0 %v1014
    %v1469 = vpop.f32.mrf.mxu0
    %v1470 = vadd.f32 %v1332, %v1469
    %v1471 = vpop.f32.mrf.mxu0
    %1472 = vmatprep.mubr.f32.mxu0 0.0
    %1473 = vmatmul.mubr.f32.gmra.mxu0 %v1017
    %v1474 = vpop.f32.mrf.mxu0
    %v1475 = vadd.f32 %v1332, %v1474
    %v1476 = vpop.f32.mrf.mxu0
    %1477 = vdwg.mxu0
    %vm1478 = vcmp.ge.s32.totalorder %v38, 0
    %vm1479 = vcmp.lt.s32.totalorder %v38, 8
    %vm1480 = vmand %vm1478, %vm1479
    %v1481 = vsel %vm1480, 1, 0
    %v1482 = vcvt.s32.f32 %v1481
    %v1483 = vmul.f32 %v1164, %v1482
    %v1484 = vmul.f32 %v1165, %v1482
    %v1485 = vmul.f32 %v1166, %v1482
    %v1486 = vmul.f32 %v1167, %v1482
    %v1487 = vmul.f32 %v1168, %v1482
    %v1488 = vmul.f32 %v1169, %v1482
    %v1489 = vmul.f32 %v1170, %v1482
    %v1490 = vmul.f32 %v1171, %v1482
    %v1491 = vmul.f32 %v1172, %v1482
    %v1492 = vmul.f32 %v1173, %v1482
    %v1493 = vmul.f32 %v1174, %v1482
    %v1494 = vmul.f32 %v1175, %v1482
    %v1495 = vmul.f32 %v1176, %v1482
    %v1496 = vmul.f32 %v1177, %v1482
    %v1497 = vmul.f32 %v1178, %v1482
    %v1498 = vmul.f32 %v1179, %v1482
    %v1500 = vsel %vm970, %v1483, 0
    %v1503 = vsel %vm970, %v1484, 0
    %v1506 = vsel %vm970, %v1485, 0
    %v1509 = vsel %vm970, %v1486, 0
    %v1512 = vsel %vm970, %v1487, 0
    %v1515 = vsel %vm970, %v1488, 0
    %v1518 = vsel %vm970, %v1489, 0
    %v1521 = vsel %vm970, %v1490, 0
    %v1524 = vsel %vm970, %v1491, 0
    %v1527 = vsel %vm970, %v1492, 0
    %v1530 = vsel %vm970, %v1493, 0
    %v1533 = vsel %vm970, %v1494, 0
    %v1536 = vsel %vm970, %v1495, 0
    %v1539 = vsel %vm970, %v1496, 0
    %v1542 = vsel %vm970, %v1497, 0
    %v1545 = vsel %vm970, %v1498, 0
    %v1548 = vsel %vm970, %v1251, 0
    %v1551 = vsel %vm970, %v1256, 0
    %v1554 = vsel %vm970, %v1261, 0
    %v1557 = vsel %vm970, %v1266, 0
    %v1560 = vsel %vm970, %v1271, 0
    %v1563 = vsel %vm970, %v1276, 0
    %v1566 = vsel %vm970, %v1281, 0
    %v1569 = vsel %vm970, %v1286, 0
    %v1572 = vsel %vm970, %v1291, 0
    %v1575 = vsel %vm970, %v1296, 0
    %v1578 = vsel %vm970, %v1301, 0
    %v1581 = vsel %vm970, %v1306, 0
    %v1584 = vsel %vm970, %v1311, 0
    %v1587 = vsel %vm970, %v1316, 0
    %v1590 = vsel %vm970, %v1321, 0
    %v1593 = vsel %vm970, %v1326, 0
    %1595 = vmatprep.subr.mxu0 0.0
    %1596 = vmatpush1.xpose.msra.mxu0 %v1593
    %1597 = vmatprep.subr.mxu0 0.0
    %1598 = vmatpush1.xpose.msra.mxu0 %v1590
    %1599 = vmatprep.subr.mxu0 0.0
    %1600 = vmatpush1.xpose.msra.mxu0 %v1587
    %1601 = vmatprep.subr.mxu0 0.0
    %1602 = vmatpush1.xpose.msra.mxu0 %v1584
    %1603 = vmatprep.subr.mxu0 0.0
    %1604 = vmatpush1.xpose.msra.mxu0 %v1581
    %1605 = vmatprep.subr.mxu0 0.0
    %1606 = vmatpush1.xpose.msra.mxu0 %v1578
    %1607 = vmatprep.subr.mxu0 0.0
    %1608 = vmatpush1.xpose.msra.mxu0 %v1575
    %1609 = vmatprep.subr.mxu0 0.0
    %1610 = vmatpush1.xpose.msra.mxu0 %v1572
    %1611 = vmatprep.subr.mxu0 0.0
    %1612 = vmatpush1.xpose.msra.mxu0 %v1569
    %1613 = vmatprep.subr.mxu0 0.0
    %1614 = vmatpush1.xpose.msra.mxu0 %v1566
    %1615 = vmatprep.subr.mxu0 0.0
    %1616 = vmatpush1.xpose.msra.mxu0 %v1563
    %1617 = vmatprep.subr.mxu0 0.0
    %1618 = vmatpush1.xpose.msra.mxu0 %v1560
    %1619 = vmatprep.subr.mxu0 0.0
    %1620 = vmatpush1.xpose.msra.mxu0 %v1557
    %1621 = vmatprep.subr.mxu0 0.0
    %1622 = vmatpush1.xpose.msra.mxu0 %v1554
    %1623 = vmatprep.subr.mxu0 0.0
    %1624 = vmatpush1.xpose.msra.mxu0 %v1551
    %1625 = vmatprep.subr.mxu0 0.0
    %1626 = vmatpush1.xpose.msra.mxu0 %v1548
    %1627 = vmatprep.subr.mxu0 0.0
    %1628 = vmatpush2.xpose.msra.mxu0 0.0
    %1629 = vmatprep.subr.mxu0 0.0
    %1630 = vmatpush2.xpose.msra.mxu0 0.0
    %1631 = vmatprep.subr.mxu0 0.0
    %1632 = vmatpush2.xpose.msra.mxu0 0.0
    %1633 = vmatprep.subr.mxu0 0.0
    %1634 = vmatpush2.xpose.msra.mxu0 0.0
    %1635 = vmatprep.subr.mxu0 0.0
    %1636 = vmatpush2.xpose.msra.mxu0 0.0
    %1637 = vmatprep.subr.mxu0 0.0
    %1638 = vmatpush2.xpose.msra.mxu0 0.0
    %1639 = vmatprep.subr.mxu0 0.0
    %1640 = vmatpush2.xpose.msra.mxu0 0.0
    %1641 = vmatprep.subr.mxu0 0.0
    %1642 = vmatpush2.xpose.msra.mxu0 0.0
    %1643 = vmatprep.subr.mxu0 0.0
    %1644 = vmatpush2.xpose.msra.mxu0 0.0
    %1645 = vmatprep.subr.mxu0 0.0
    %1646 = vmatpush2.xpose.msra.mxu0 0.0
    %1647 = vmatprep.subr.mxu0 0.0
    %1648 = vmatpush2.xpose.msra.mxu0 0.0
    %1649 = vmatprep.subr.mxu0 0.0
    %1650 = vmatpush2.xpose.msra.mxu0 0.0
    %1651 = vmatprep.subr.mxu0 0.0
    %1652 = vmatpush2.xpose.msra.mxu0 0.0
    %1653 = vmatprep.subr.mxu0 0.0
    %1654 = vmatpush2.xpose.msra.mxu0 0.0
    %1655 = vmatprep.subr.mxu0 0.0
    %1656 = vmatpush2.xpose.msra.mxu0 0.0
    %1657 = vmatprep.subr.mxu0 0.0
    %1658 = vmatpush2.xpose.msra.mxu0 0.0
    %1659 = vmatprep.mubr.f32.mxu0 0.0
    %1660 = vmatmul.mubr.f32.gmra.mxu0 %v1500
    %v1661 = vpop.f32.mrf.mxu0
    %v1662 = vadd.f32 %v920, %v1661
    %v1663 = vpop.f32.mrf.mxu0
    %1664 = vmatprep.mubr.f32.mxu0 0.0
    %1665 = vmatmul.mubr.f32.gmra.mxu0 %v1503
    %v1666 = vpop.f32.mrf.mxu0
    %v1667 = vadd.f32 %v921, %v1666
    %v1668 = vpop.f32.mrf.mxu0
    %1669 = vmatprep.mubr.f32.mxu0 0.0
    %1670 = vmatmul.mubr.f32.gmra.mxu0 %v1506
    %v1671 = vpop.f32.mrf.mxu0
    %v1672 = vadd.f32 %v922, %v1671
    %v1673 = vpop.f32.mrf.mxu0
    %1674 = vmatprep.mubr.f32.mxu0 0.0
    %1675 = vmatmul.mubr.f32.gmra.mxu0 %v1509
    %v1676 = vpop.f32.mrf.mxu0
    %v1677 = vadd.f32 %v923, %v1676
    %v1678 = vpop.f32.mrf.mxu0
    %1679 = vmatprep.mubr.f32.mxu0 0.0
    %1680 = vmatmul.mubr.f32.gmra.mxu0 %v1512
    %v1681 = vpop.f32.mrf.mxu0
    %v1682 = vadd.f32 %v924, %v1681
    %v1683 = vpop.f32.mrf.mxu0
    %1684 = vmatprep.mubr.f32.mxu0 0.0
    %1685 = vmatmul.mubr.f32.gmra.mxu0 %v1515
    %v1686 = vpop.f32.mrf.mxu0
    %v1687 = vadd.f32 %v925, %v1686
    %v1688 = vpop.f32.mrf.mxu0
    %1689 = vmatprep.mubr.f32.mxu0 0.0
    %1690 = vmatmul.mubr.f32.gmra.mxu0 %v1518
    %v1691 = vpop.f32.mrf.mxu0
    %v1692 = vadd.f32 %v926, %v1691
    %v1693 = vpop.f32.mrf.mxu0
    %1694 = vmatprep.mubr.f32.mxu0 0.0
    %1695 = vmatmul.mubr.f32.gmra.mxu0 %v1521
    %v1696 = vpop.f32.mrf.mxu0
    %v1697 = vadd.f32 %v927, %v1696
    %v1698 = vpop.f32.mrf.mxu0
    %1699 = vmatprep.mubr.f32.mxu0 0.0
    %1700 = vmatmul.mubr.f32.gmra.mxu0 %v1524
    %v1701 = vpop.f32.mrf.mxu0
    %v1702 = vadd.f32 %v928, %v1701
    %v1703 = vpop.f32.mrf.mxu0
    %1704 = vmatprep.mubr.f32.mxu0 0.0
    %1705 = vmatmul.mubr.f32.gmra.mxu0 %v1527
    %v1706 = vpop.f32.mrf.mxu0
    %v1707 = vadd.f32 %v929, %v1706
    %v1708 = vpop.f32.mrf.mxu0
    %1709 = vmatprep.mubr.f32.mxu0 0.0
    %1710 = vmatmul.mubr.f32.gmra.mxu0 %v1530
    %v1711 = vpop.f32.mrf.mxu0
    %v1712 = vadd.f32 %v930, %v1711
    %v1713 = vpop.f32.mrf.mxu0
    %1714 = vmatprep.mubr.f32.mxu0 0.0
    %1715 = vmatmul.mubr.f32.gmra.mxu0 %v1533
    %v1716 = vpop.f32.mrf.mxu0
    %v1717 = vadd.f32 %v931, %v1716
    %v1718 = vpop.f32.mrf.mxu0
    %1719 = vmatprep.mubr.f32.mxu0 0.0
    %1720 = vmatmul.mubr.f32.gmra.mxu0 %v1536
    %v1721 = vpop.f32.mrf.mxu0
    %v1722 = vadd.f32 %v932, %v1721
    %v1723 = vpop.f32.mrf.mxu0
    %1724 = vmatprep.mubr.f32.mxu0 0.0
    %1725 = vmatmul.mubr.f32.gmra.mxu0 %v1539
    %v1726 = vpop.f32.mrf.mxu0
    %v1727 = vadd.f32 %v933, %v1726
    %v1728 = vpop.f32.mrf.mxu0
    %1729 = vmatprep.mubr.f32.mxu0 0.0
    %1730 = vmatmul.mubr.f32.gmra.mxu0 %v1542
    %v1731 = vpop.f32.mrf.mxu0
    %v1732 = vadd.f32 %v934, %v1731
    %v1733 = vpop.f32.mrf.mxu0
    %1734 = vmatprep.mubr.f32.mxu0 0.0
    %1735 = vmatmul.mubr.f32.gmra.mxu0 %v1545
    %v1736 = vpop.f32.mrf.mxu0
    %v1737 = vadd.f32 %v935, %v1736
    %v1738 = vpop.f32.mrf.mxu0
    %1739 = vdwg.mxu0
    %1740 = vmax.xlane.f32.xlu0 %v1662
    %v1741 = vpop.xlane.xlu0 %1740
    %1742 = vmax.xlane.f32.xlu0 %v1667
    %v1743 = vpop.xlane.xlu0 %1742
    %1744 = vmax.xlane.f32.xlu0 %v1672
    %v1745 = vpop.xlane.xlu0 %1744
    %1746 = vmax.xlane.f32.xlu0 %v1677
    %v1747 = vpop.xlane.xlu0 %1746
    %1748 = vmax.xlane.f32.xlu0 %v1682
    %v1749 = vpop.xlane.xlu0 %1748
    %1750 = vmax.xlane.f32.xlu0 %v1687
    %v1751 = vpop.xlane.xlu0 %1750
    %1752 = vmax.xlane.f32.xlu0 %v1692
    %v1753 = vpop.xlane.xlu0 %1752
    %1754 = vmax.xlane.f32.xlu0 %v1697
    %v1755 = vpop.xlane.xlu0 %1754
    %1756 = vmax.xlane.f32.xlu0 %v1702
    %v1757 = vpop.xlane.xlu0 %1756
    %1758 = vmax.xlane.f32.xlu0 %v1707
    %v1759 = vpop.xlane.xlu0 %1758
    %1760 = vmax.xlane.f32.xlu0 %v1712
    %v1761 = vpop.xlane.xlu0 %1760
    %1762 = vmax.xlane.f32.xlu0 %v1717
    %v1763 = vpop.xlane.xlu0 %1762
    %1764 = vmax.xlane.f32.xlu0 %v1722
    %v1765 = vpop.xlane.xlu0 %1764
    %1766 = vmax.xlane.f32.xlu0 %v1727
    %v1767 = vpop.xlane.xlu0 %1766
    %1768 = vmax.xlane.f32.xlu0 %v1732
    %v1769 = vpop.xlane.xlu0 %1768
    %1770 = vmax.xlane.f32.xlu0 %v1737
    %v1771 = vpop.xlane.xlu0 %1770
    %v1772 = vsub.f32 %v1662, %v1741
    %v1773 = vsub.f32 %v1667, %v1743
    %v1774 = vsub.f32 %v1672, %v1745
    %v1775 = vsub.f32 %v1677, %v1747
    %v1776 = vsub.f32 %v1682, %v1749
    %v1777 = vsub.f32 %v1687, %v1751
    %v1778 = vsub.f32 %v1692, %v1753
    %v1779 = vsub.f32 %v1697, %v1755
    %v1780 = vsub.f32 %v1702, %v1757
    %v1781 = vsub.f32 %v1707, %v1759
    %v1782 = vsub.f32 %v1712, %v1761
    %v1783 = vsub.f32 %v1717, %v1763
    %v1784 = vsub.f32 %v1722, %v1765
    %v1785 = vsub.f32 %v1727, %v1767
    %v1786 = vsub.f32 %v1732, %v1769
    %v1787 = vsub.f32 %v1737, %v1771
    %v1788 = vmul.f32 %v1772, 1.442695
    %v1789 = vpow.pop %v1788
    %v1790 = vmul.f32 %v1773, 1.442695
    %v1791 = vpow.pop %v1790
    %v1792 = vmul.f32 %v1774, 1.442695
    %v1793 = vpow.pop %v1792
    %v1794 = vmul.f32 %v1775, 1.442695
    %v1795 = vpow.pop %v1794
    %v1796 = vmul.f32 %v1776, 1.442695
    %v1797 = vpow.pop %v1796
    %v1798 = vmul.f32 %v1777, 1.442695
    %v1799 = vpow.pop %v1798
    %v1800 = vmul.f32 %v1778, 1.442695
    %v1801 = vpow.pop %v1800
    %v1802 = vmul.f32 %v1779, 1.442695
    %v1803 = vpow.pop %v1802
    %v1804 = vmul.f32 %v1780, 1.442695
    %v1805 = vpow.pop %v1804
    %v1806 = vmul.f32 %v1781, 1.442695
    %v1807 = vpow.pop %v1806
    %v1808 = vmul.f32 %v1782, 1.442695
    %v1809 = vpow.pop %v1808
    %v1810 = vmul.f32 %v1783, 1.442695
    %v1811 = vpow.pop %v1810
    %v1812 = vmul.f32 %v1784, 1.442695
    %v1813 = vpow.pop %v1812
    %v1814 = vmul.f32 %v1785, 1.442695
    %v1815 = vpow.pop %v1814
    %v1816 = vmul.f32 %v1786, 1.442695
    %v1817 = vpow.pop %v1816
    %v1818 = vmul.f32 %v1787, 1.442695
    %v1819 = vpow.pop %v1818
    %1820 = vadd.xlane.f32.xlu0 %v1789
    %v1821 = vpop.xlane.xlu0 %1820
    %1822 = vadd.xlane.f32.xlu0 %v1791
    %v1823 = vpop.xlane.xlu0 %1822
    %1824 = vadd.xlane.f32.xlu0 %v1793
    %v1825 = vpop.xlane.xlu0 %1824
    %1826 = vadd.xlane.f32.xlu0 %v1795
    %v1827 = vpop.xlane.xlu0 %1826
    %1828 = vadd.xlane.f32.xlu0 %v1797
    %v1829 = vpop.xlane.xlu0 %1828
    %1830 = vadd.xlane.f32.xlu0 %v1799
    %v1831 = vpop.xlane.xlu0 %1830
    %1832 = vadd.xlane.f32.xlu0 %v1801
    %v1833 = vpop.xlane.xlu0 %1832
    %1834 = vadd.xlane.f32.xlu0 %v1803
    %v1835 = vpop.xlane.xlu0 %1834
    %1836 = vadd.xlane.f32.xlu0 %v1805
    %v1837 = vpop.xlane.xlu0 %1836
    %1838 = vadd.xlane.f32.xlu0 %v1807
    %v1839 = vpop.xlane.xlu0 %1838
    %1840 = vadd.xlane.f32.xlu0 %v1809
    %v1841 = vpop.xlane.xlu0 %1840
    %1842 = vadd.xlane.f32.xlu0 %v1811
    %v1843 = vpop.xlane.xlu0 %1842
    %1844 = vadd.xlane.f32.xlu0 %v1813
    %v1845 = vpop.xlane.xlu0 %1844
    %1846 = vadd.xlane.f32.xlu0 %v1815
    %v1847 = vpop.xlane.xlu0 %1846
    %1848 = vadd.xlane.f32.xlu0 %v1817
    %v1849 = vpop.xlane.xlu0 %1848
    %1850 = vadd.xlane.f32.xlu0 %v1819
    %v1851 = vpop.xlane.xlu0 %1850
    %v1852 = vrcp.pop %v1821
    %v1853 = vrcp.pop %v1823
    %v1854 = vrcp.pop %v1825
    %v1855 = vrcp.pop %v1827
    %v1856 = vrcp.pop %v1829
    %v1857 = vrcp.pop %v1831
    %v1858 = vrcp.pop %v1833
    %v1859 = vrcp.pop %v1835
    %v1860 = vrcp.pop %v1837
    %v1861 = vrcp.pop %v1839
    %v1862 = vrcp.pop %v1841
    %v1863 = vrcp.pop %v1843
    %v1864 = vrcp.pop %v1845
    %v1865 = vrcp.pop %v1847
    %v1866 = vrcp.pop %v1849
    %v1867 = vrcp.pop %v1851
    %v1868 = vmul.f32 %v1789, %v1852
    %v1869 = vmul.f32 %v1791, %v1853
    %v1870 = vmul.f32 %v1793, %v1854
    %v1871 = vmul.f32 %v1795, %v1855
    %v1872 = vmul.f32 %v1797, %v1856
    %v1873 = vmul.f32 %v1799, %v1857
    %v1874 = vmul.f32 %v1801, %v1858
    %v1875 = vmul.f32 %v1803, %v1859
    %v1876 = vmul.f32 %v1805, %v1860
    %v1877 = vmul.f32 %v1807, %v1861
    %v1878 = vmul.f32 %v1809, %v1862
    %v1879 = vmul.f32 %v1811, %v1863
    %v1880 = vmul.f32 %v1813, %v1864
    %v1881 = vmul.f32 %v1815, %v1865
    %v1882 = vmul.f32 %v1817, %v1866
    %v1883 = vmul.f32 %v1819, %v1867
    %v1884 = vmul.f32 %v1400, %v1482
    %v1885 = vmul.f32 %v1405, %v1482
    %v1886 = vmul.f32 %v1410, %v1482
    %v1887 = vmul.f32 %v1415, %v1482
    %v1888 = vmul.f32 %v1420, %v1482
    %v1889 = vmul.f32 %v1425, %v1482
    %v1890 = vmul.f32 %v1430, %v1482
    %v1891 = vmul.f32 %v1435, %v1482
    %v1892 = vmul.f32 %v1440, %v1482
    %v1893 = vmul.f32 %v1445, %v1482
    %v1894 = vmul.f32 %v1450, %v1482
    %v1895 = vmul.f32 %v1455, %v1482
    %v1896 = vmul.f32 %v1460, %v1482
    %v1897 = vmul.f32 %v1465, %v1482
    %v1898 = vmul.f32 %v1470, %v1482
    %v1899 = vmul.f32 %v1475, %v1482
    %vm1900 = vcmp.ge.s32.totalorder %v38, 8
    %vm1901 = vcmp.lt.s32.totalorder %v38, 16
    %vm1902 = vmand %vm1900, %vm1901
    %v1903 = vsel %vm1902, 1, 0
    %v1904 = vcvt.s32.f32 %v1903
    %v1905 = vmul.f32 %v1164, %v1904
    %v1906 = vmul.f32 %v1165, %v1904
    %v1907 = vmul.f32 %v1166, %v1904
    %v1908 = vmul.f32 %v1167, %v1904
    %v1909 = vmul.f32 %v1168, %v1904
    %v1910 = vmul.f32 %v1169, %v1904
    %v1911 = vmul.f32 %v1170, %v1904
    %v1912 = vmul.f32 %v1171, %v1904
    %v1913 = vmul.f32 %v1172, %v1904
    %v1914 = vmul.f32 %v1173, %v1904
    %v1915 = vmul.f32 %v1174, %v1904
    %v1916 = vmul.f32 %v1175, %v1904
    %v1917 = vmul.f32 %v1176, %v1904
    %v1918 = vmul.f32 %v1177, %v1904
    %v1919 = vmul.f32 %v1178, %v1904
    %v1920 = vmul.f32 %v1179, %v1904
    %v1922 = vsel %vm970, %v1905, 0
    %v1925 = vsel %vm970, %v1906, 0
    %v1928 = vsel %vm970, %v1907, 0
    %v1931 = vsel %vm970, %v1908, 0
    %v1934 = vsel %vm970, %v1909, 0
    %v1937 = vsel %vm970, %v1910, 0
    %v1940 = vsel %vm970, %v1911, 0
    %v1943 = vsel %vm970, %v1912, 0
    %v1946 = vsel %vm970, %v1913, 0
    %v1949 = vsel %vm970, %v1914, 0
    %v1952 = vsel %vm970, %v1915, 0
    %v1955 = vsel %vm970, %v1916, 0
    %v1958 = vsel %vm970, %v1917, 0
    %v1961 = vsel %vm970, %v1918, 0
    %v1964 = vsel %vm970, %v1919, 0
    %v1967 = vsel %vm970, %v1920, 0
    %1969 = vmatprep.subr.mxu0 0.0
    %1970 = vmatpush1.xpose.msra.mxu0 %v1593
    %1971 = vmatprep.subr.mxu0 0.0
    %1972 = vmatpush1.xpose.msra.mxu0 %v1590
    %1973 = vmatprep.subr.mxu0 0.0
    %1974 = vmatpush1.xpose.msra.mxu0 %v1587
    %1975 = vmatprep.subr.mxu0 0.0
    %1976 = vmatpush1.xpose.msra.mxu0 %v1584
    %1977 = vmatprep.subr.mxu0 0.0
    %1978 = vmatpush1.xpose.msra.mxu0 %v1581
    %1979 = vmatprep.subr.mxu0 0.0
    %1980 = vmatpush1.xpose.msra.mxu0 %v1578
    %1981 = vmatprep.subr.mxu0 0.0
    %1982 = vmatpush1.xpose.msra.mxu0 %v1575
    %1983 = vmatprep.subr.mxu0 0.0
    %1984 = vmatpush1.xpose.msra.mxu0 %v1572
    %1985 = vmatprep.subr.mxu0 0.0
    %1986 = vmatpush1.xpose.msra.mxu0 %v1569
    %1987 = vmatprep.subr.mxu0 0.0
    %1988 = vmatpush1.xpose.msra.mxu0 %v1566
    %1989 = vmatprep.subr.mxu0 0.0
    %1990 = vmatpush1.xpose.msra.mxu0 %v1563
    %1991 = vmatprep.subr.mxu0 0.0
    %1992 = vmatpush1.xpose.msra.mxu0 %v1560
    %1993 = vmatprep.subr.mxu0 0.0
    %1994 = vmatpush1.xpose.msra.mxu0 %v1557
    %1995 = vmatprep.subr.mxu0 0.0
    %1996 = vmatpush1.xpose.msra.mxu0 %v1554
    %1997 = vmatprep.subr.mxu0 0.0
    %1998 = vmatpush1.xpose.msra.mxu0 %v1551
    %1999 = vmatprep.subr.mxu0 0.0
    %2000 = vmatpush1.xpose.msra.mxu0 %v1548
    %2001 = vmatprep.subr.mxu0 0.0
    %2002 = vmatpush2.xpose.msra.mxu0 0.0
    %2003 = vmatprep.subr.mxu0 0.0
    %2004 = vmatpush2.xpose.msra.mxu0 0.0
    %2005 = vmatprep.subr.mxu0 0.0
    %2006 = vmatpush2.xpose.msra.mxu0 0.0
    %2007 = vmatprep.subr.mxu0 0.0
    %2008 = vmatpush2.xpose.msra.mxu0 0.0
    %2009 = vmatprep.subr.mxu0 0.0
    %2010 = vmatpush2.xpose.msra.mxu0 0.0
    %2011 = vmatprep.subr.mxu0 0.0
    %2012 = vmatpush2.xpose.msra.mxu0 0.0
    %2013 = vmatprep.subr.mxu0 0.0
    %2014 = vmatpush2.xpose.msra.mxu0 0.0
    %2015 = vmatprep.subr.mxu0 0.0
    %2016 = vmatpush2.xpose.msra.mxu0 0.0
    %2017 = vmatprep.subr.mxu0 0.0
    %2018 = vmatpush2.xpose.msra.mxu0 0.0
    %2019 = vmatprep.subr.mxu0 0.0
    %2020 = vmatpush2.xpose.msra.mxu0 0.0
    %2021 = vmatprep.subr.mxu0 0.0
    %2022 = vmatpush2.xpose.msra.mxu0 0.0
    %2023 = vmatprep.subr.mxu0 0.0
    %2024 = vmatpush2.xpose.msra.mxu0 0.0
    %2025 = vmatprep.subr.mxu0 0.0
    %2026 = vmatpush2.xpose.msra.mxu0 0.0
    %2027 = vmatprep.subr.mxu0 0.0
    %2028 = vmatpush2.xpose.msra.mxu0 0.0
    %2029 = vmatprep.subr.mxu0 0.0
    %2030 = vmatpush2.xpose.msra.mxu0 0.0
    %2031 = vmatprep.subr.mxu0 0.0
    %2032 = vmatpush2.xpose.msra.mxu0 0.0
    %2033 = vmatprep.mubr.f32.mxu0 0.0
    %2034 = vmatmul.mubr.f32.gmra.mxu0 %v1922
    %v2035 = vpop.f32.mrf.mxu0
    %v2036 = vadd.f32 %v920, %v2035
    %v2037 = vpop.f32.mrf.mxu0
    %2038 = vmatprep.mubr.f32.mxu0 0.0
    %2039 = vmatmul.mubr.f32.gmra.mxu0 %v1925
    %v2040 = vpop.f32.mrf.mxu0
    %v2041 = vadd.f32 %v921, %v2040
    %v2042 = vpop.f32.mrf.mxu0
    %2043 = vmatprep.mubr.f32.mxu0 0.0
    %2044 = vmatmul.mubr.f32.gmra.mxu0 %v1928
    %v2045 = vpop.f32.mrf.mxu0
    %v2046 = vadd.f32 %v922, %v2045
    %v2047 = vpop.f32.mrf.mxu0
    %2048 = vmatprep.mubr.f32.mxu0 0.0
    %2049 = vmatmul.mubr.f32.gmra.mxu0 %v1931
    %v2050 = vpop.f32.mrf.mxu0
    %v2051 = vadd.f32 %v923, %v2050
    %v2052 = vpop.f32.mrf.mxu0
    %2053 = vmatprep.mubr.f32.mxu0 0.0
    %2054 = vmatmul.mubr.f32.gmra.mxu0 %v1934
    %v2055 = vpop.f32.mrf.mxu0
    %v2056 = vadd.f32 %v924, %v2055
    %v2057 = vpop.f32.mrf.mxu0
    %2058 = vmatprep.mubr.f32.mxu0 0.0
    %2059 = vmatmul.mubr.f32.gmra.mxu0 %v1937
    %v2060 = vpop.f32.mrf.mxu0
    %v2061 = vadd.f32 %v925, %v2060
    %v2062 = vpop.f32.mrf.mxu0
    %2063 = vmatprep.mubr.f32.mxu0 0.0
    %2064 = vmatmul.mubr.f32.gmra.mxu0 %v1940
    %v2065 = vpop.f32.mrf.mxu0
    %v2066 = vadd.f32 %v926, %v2065
    %v2067 = vpop.f32.mrf.mxu0
    %2068 = vmatprep.mubr.f32.mxu0 0.0
    %2069 = vmatmul.mubr.f32.gmra.mxu0 %v1943
    %v2070 = vpop.f32.mrf.mxu0
    %v2071 = vadd.f32 %v927, %v2070
    %v2072 = vpop.f32.mrf.mxu0
    %2073 = vmatprep.mubr.f32.mxu0 0.0
    %2074 = vmatmul.mubr.f32.gmra.mxu0 %v1946
    %v2075 = vpop.f32.mrf.mxu0
    %v2076 = vadd.f32 %v928, %v2075
    %v2077 = vpop.f32.mrf.mxu0
    %2078 = vmatprep.mubr.f32.mxu0 0.0
    %2079 = vmatmul.mubr.f32.gmra.mxu0 %v1949
    %v2080 = vpop.f32.mrf.mxu0
    %v2081 = vadd.f32 %v929, %v2080
    %v2082 = vpop.f32.mrf.mxu0
    %2083 = vmatprep.mubr.f32.mxu0 0.0
    %2084 = vmatmul.mubr.f32.gmra.mxu0 %v1952
    %v2085 = vpop.f32.mrf.mxu0
    %v2086 = vadd.f32 %v930, %v2085
    %v2087 = vpop.f32.mrf.mxu0
    %2088 = vmatprep.mubr.f32.mxu0 0.0
    %2089 = vmatmul.mubr.f32.gmra.mxu0 %v1955
    %v2090 = vpop.f32.mrf.mxu0
    %v2091 = vadd.f32 %v931, %v2090
    %v2092 = vpop.f32.mrf.mxu0
    %2093 = vmatprep.mubr.f32.mxu0 0.0
    %2094 = vmatmul.mubr.f32.gmra.mxu0 %v1958
    %v2095 = vpop.f32.mrf.mxu0
    %v2096 = vadd.f32 %v932, %v2095
    %v2097 = vpop.f32.mrf.mxu0
    %2098 = vmatprep.mubr.f32.mxu0 0.0
    %2099 = vmatmul.mubr.f32.gmra.mxu0 %v1961
    %v2100 = vpop.f32.mrf.mxu0
    %v2101 = vadd.f32 %v933, %v2100
    %v2102 = vpop.f32.mrf.mxu0
    %2103 = vmatprep.mubr.f32.mxu0 0.0
    %2104 = vmatmul.mubr.f32.gmra.mxu0 %v1964
    %v2105 = vpop.f32.mrf.mxu0
    %v2106 = vadd.f32 %v934, %v2105
    %v2107 = vpop.f32.mrf.mxu0
    %2108 = vmatprep.mubr.f32.mxu0 0.0
    %2109 = vmatmul.mubr.f32.gmra.mxu0 %v1967
    %v2110 = vpop.f32.mrf.mxu0
    %v2111 = vadd.f32 %v935, %v2110
    %v2112 = vpop.f32.mrf.mxu0
    %2113 = vdwg.mxu0
    %2114 = vmax.xlane.f32.xlu0 %v2036
    %v2115 = vpop.xlane.xlu0 %2114
    %2116 = vmax.xlane.f32.xlu0 %v2041
    %v2117 = vpop.xlane.xlu0 %2116
    %2118 = vmax.xlane.f32.xlu0 %v2046
    %v2119 = vpop.xlane.xlu0 %2118
    %2120 = vmax.xlane.f32.xlu0 %v2051
    %v2121 = vpop.xlane.xlu0 %2120
    %2122 = vmax.xlane.f32.xlu0 %v2056
    %v2123 = vpop.xlane.xlu0 %2122
    %2124 = vmax.xlane.f32.xlu0 %v2061
    %v2125 = vpop.xlane.xlu0 %2124
    %2126 = vmax.xlane.f32.xlu0 %v2066
    %v2127 = vpop.xlane.xlu0 %2126
    %2128 = vmax.xlane.f32.xlu0 %v2071
    %v2129 = vpop.xlane.xlu0 %2128
    %2130 = vmax.xlane.f32.xlu0 %v2076
    %v2131 = vpop.xlane.xlu0 %2130
    %2132 = vmax.xlane.f32.xlu0 %v2081
    %v2133 = vpop.xlane.xlu0 %2132
    %2134 = vmax.xlane.f32.xlu0 %v2086
    %v2135 = vpop.xlane.xlu0 %2134
    %2136 = vmax.xlane.f32.xlu0 %v2091
    %v2137 = vpop.xlane.xlu0 %2136
    %2138 = vmax.xlane.f32.xlu0 %v2096
    %v2139 = vpop.xlane.xlu0 %2138
    %2140 = vmax.xlane.f32.xlu0 %v2101
    %v2141 = vpop.xlane.xlu0 %2140
    %2142 = vmax.xlane.f32.xlu0 %v2106
    %v2143 = vpop.xlane.xlu0 %2142
    %2144 = vmax.xlane.f32.xlu0 %v2111
    %v2145 = vpop.xlane.xlu0 %2144
    %v2146 = vsub.f32 %v2036, %v2115
    %v2147 = vsub.f32 %v2041, %v2117
    %v2148 = vsub.f32 %v2046, %v2119
    %v2149 = vsub.f32 %v2051, %v2121
    %v2150 = vsub.f32 %v2056, %v2123
    %v2151 = vsub.f32 %v2061, %v2125
    %v2152 = vsub.f32 %v2066, %v2127
    %v2153 = vsub.f32 %v2071, %v2129
    %v2154 = vsub.f32 %v2076, %v2131
    %v2155 = vsub.f32 %v2081, %v2133
    %v2156 = vsub.f32 %v2086, %v2135
    %v2157 = vsub.f32 %v2091, %v2137
    %v2158 = vsub.f32 %v2096, %v2139
    %v2159 = vsub.f32 %v2101, %v2141
    %v2160 = vsub.f32 %v2106, %v2143
    %v2161 = vsub.f32 %v2111, %v2145
    %v2162 = vmul.f32 %v2146, 1.442695
    %v2163 = vpow.pop %v2162
    %v2164 = vmul.f32 %v2147, 1.442695
    %v2165 = vpow.pop %v2164
    %v2166 = vmul.f32 %v2148, 1.442695
    %v2167 = vpow.pop %v2166
    %v2168 = vmul.f32 %v2149, 1.442695
    %v2169 = vpow.pop %v2168
    %v2170 = vmul.f32 %v2150, 1.442695
    %v2171 = vpow.pop %v2170
    %v2172 = vmul.f32 %v2151, 1.442695
    %v2173 = vpow.pop %v2172
    %v2174 = vmul.f32 %v2152, 1.442695
    %v2175 = vpow.pop %v2174
    %v2176 = vmul.f32 %v2153, 1.442695
    %v2177 = vpow.pop %v2176
    %v2178 = vmul.f32 %v2154, 1.442695
    %v2179 = vpow.pop %v2178
    %v2180 = vmul.f32 %v2155, 1.442695
    %v2181 = vpow.pop %v2180
    %v2182 = vmul.f32 %v2156, 1.442695
    %v2183 = vpow.pop %v2182
    %v2184 = vmul.f32 %v2157, 1.442695
    %v2185 = vpow.pop %v2184
    %v2186 = vmul.f32 %v2158, 1.442695
    %v2187 = vpow.pop %v2186
    %v2188 = vmul.f32 %v2159, 1.442695
    %v2189 = vpow.pop %v2188
    %v2190 = vmul.f32 %v2160, 1.442695
    %v2191 = vpow.pop %v2190
    %v2192 = vmul.f32 %v2161, 1.442695
    %v2193 = vpow.pop %v2192
    %2194 = vadd.xlane.f32.xlu0 %v2163
    %v2195 = vpop.xlane.xlu0 %2194
    %2196 = vadd.xlane.f32.xlu0 %v2165
    %v2197 = vpop.xlane.xlu0 %2196
    %2198 = vadd.xlane.f32.xlu0 %v2167
    %v2199 = vpop.xlane.xlu0 %2198
    %2200 = vadd.xlane.f32.xlu0 %v2169
    %v2201 = vpop.xlane.xlu0 %2200
    %2202 = vadd.xlane.f32.xlu0 %v2171
    %v2203 = vpop.xlane.xlu0 %2202
    %2204 = vadd.xlane.f32.xlu0 %v2173
    %v2205 = vpop.xlane.xlu0 %2204
    %2206 = vadd.xlane.f32.xlu0 %v2175
    %v2207 = vpop.xlane.xlu0 %2206
    %2208 = vadd.xlane.f32.xlu0 %v2177
    %v2209 = vpop.xlane.xlu0 %2208
    %2210 = vadd.xlane.f32.xlu0 %v2179
    %v2211 = vpop.xlane.xlu0 %2210
    %2212 = vadd.xlane.f32.xlu0 %v2181
    %v2213 = vpop.xlane.xlu0 %2212
    %2214 = vadd.xlane.f32.xlu0 %v2183
    %v2215 = vpop.xlane.xlu0 %2214
    %2216 = vadd.xlane.f32.xlu0 %v2185
    %v2217 = vpop.xlane.xlu0 %2216
    %2218 = vadd.xlane.f32.xlu0 %v2187
    %v2219 = vpop.xlane.xlu0 %2218
    %2220 = vadd.xlane.f32.xlu0 %v2189
    %v2221 = vpop.xlane.xlu0 %2220
    %2222 = vadd.xlane.f32.xlu0 %v2191
    %v2223 = vpop.xlane.xlu0 %2222
    %2224 = vadd.xlane.f32.xlu0 %v2193
    %v2225 = vpop.xlane.xlu0 %2224
    %v2226 = vrcp.pop %v2195
    %v2227 = vrcp.pop %v2197
    %v2228 = vrcp.pop %v2199
    %v2229 = vrcp.pop %v2201
    %v2230 = vrcp.pop %v2203
    %v2231 = vrcp.pop %v2205
    %v2232 = vrcp.pop %v2207
    %v2233 = vrcp.pop %v2209
    %v2234 = vrcp.pop %v2211
    %v2235 = vrcp.pop %v2213
    %v2236 = vrcp.pop %v2215
    %v2237 = vrcp.pop %v2217
    %v2238 = vrcp.pop %v2219
    %v2239 = vrcp.pop %v2221
    %v2240 = vrcp.pop %v2223
    %v2241 = vrcp.pop %v2225
    %v2242 = vmul.f32 %v2163, %v2226
    %v2243 = vmul.f32 %v2165, %v2227
    %v2244 = vmul.f32 %v2167, %v2228
    %v2245 = vmul.f32 %v2169, %v2229
    %v2246 = vmul.f32 %v2171, %v2230
    %v2247 = vmul.f32 %v2173, %v2231
    %v2248 = vmul.f32 %v2175, %v2232
    %v2249 = vmul.f32 %v2177, %v2233
    %v2250 = vmul.f32 %v2179, %v2234
    %v2251 = vmul.f32 %v2181, %v2235
    %v2252 = vmul.f32 %v2183, %v2236
    %v2253 = vmul.f32 %v2185, %v2237
    %v2254 = vmul.f32 %v2187, %v2238
    %v2255 = vmul.f32 %v2189, %v2239
    %v2256 = vmul.f32 %v2191, %v2240
    %v2257 = vmul.f32 %v2193, %v2241
    %v2258 = vmul.f32 %v1400, %v1904
    %v2259 = vmul.f32 %v1405, %v1904
    %v2260 = vmul.f32 %v1410, %v1904
    %v2261 = vmul.f32 %v1415, %v1904
    %v2262 = vmul.f32 %v1420, %v1904
    %v2263 = vmul.f32 %v1425, %v1904
    %v2264 = vmul.f32 %v1430, %v1904
    %v2265 = vmul.f32 %v1435, %v1904
    %v2266 = vmul.f32 %v1440, %v1904
    %v2267 = vmul.f32 %v1445, %v1904
    %v2268 = vmul.f32 %v1450, %v1904
    %v2269 = vmul.f32 %v1455, %v1904
    %v2270 = vmul.f32 %v1460, %v1904
    %v2271 = vmul.f32 %v1465, %v1904
    %v2272 = vmul.f32 %v1470, %v1904
    %v2273 = vmul.f32 %v1475, %v1904
    %2274 = vmatprep.subr.mxu0 0.0
    %2275 = vmatpush1.msra.mxu0 %v2273
    %2276 = vmatprep.subr.mxu0 0.0
    %2277 = vmatpush1.msra.mxu0 %v2272
    %2278 = vmatprep.subr.mxu0 0.0
    %2279 = vmatpush1.msra.mxu0 %v2271
    %2280 = vmatprep.subr.mxu0 0.0
    %2281 = vmatpush1.msra.mxu0 %v2270
    %2282 = vmatprep.subr.mxu0 0.0
    %2283 = vmatpush1.msra.mxu0 %v2269
    %2284 = vmatprep.subr.mxu0 0.0
    %2285 = vmatpush1.msra.mxu0 %v2268
    %2286 = vmatprep.subr.mxu0 0.0
    %2287 = vmatpush1.msra.mxu0 %v2267
    %2288 = vmatprep.subr.mxu0 0.0
    %2289 = vmatpush1.msra.mxu0 %v2266
    %2290 = vmatprep.subr.mxu0 0.0
    %2291 = vmatpush1.msra.mxu0 %v2265
    %2292 = vmatprep.subr.mxu0 0.0
    %2293 = vmatpush1.msra.mxu0 %v2264
    %2294 = vmatprep.subr.mxu0 0.0
    %2295 = vmatpush1.msra.mxu0 %v2263
    %2296 = vmatprep.subr.mxu0 0.0
    %2297 = vmatpush1.msra.mxu0 %v2262
    %2298 = vmatprep.subr.mxu0 0.0
    %2299 = vmatpush1.msra.mxu0 %v2261
    %2300 = vmatprep.subr.mxu0 0.0
    %2301 = vmatpush1.msra.mxu0 %v2260
    %2302 = vmatprep.subr.mxu0 0.0
    %2303 = vmatpush1.msra.mxu0 %v2259
    %2304 = vmatprep.subr.mxu0 0.0
    %2305 = vmatpush1.msra.mxu0 %v2258
    %2306 = vmatprep.subr.mxu0 0.0
    %2307 = vmatpush2.msra.mxu0 0.0
    %2308 = vmatprep.subr.mxu0 0.0
    %2309 = vmatpush2.msra.mxu0 0.0
    %2310 = vmatprep.subr.mxu0 0.0
    %2311 = vmatpush2.msra.mxu0 0.0
    %2312 = vmatprep.subr.mxu0 0.0
    %2313 = vmatpush2.msra.mxu0 0.0
    %2314 = vmatprep.subr.mxu0 0.0
    %2315 = vmatpush2.msra.mxu0 0.0
    %2316 = vmatprep.subr.mxu0 0.0
    %2317 = vmatpush2.msra.mxu0 0.0
    %2318 = vmatprep.subr.mxu0 0.0
    %2319 = vmatpush2.msra.mxu0 0.0
    %2320 = vmatprep.subr.mxu0 0.0
    %2321 = vmatpush2.msra.mxu0 0.0
    %2322 = vmatprep.subr.mxu0 0.0
    %2323 = vmatpush2.msra.mxu0 0.0
    %2324 = vmatprep.subr.mxu0 0.0
    %2325 = vmatpush2.msra.mxu0 0.0
    %2326 = vmatprep.subr.mxu0 0.0
    %2327 = vmatpush2.msra.mxu0 0.0
    %2328 = vmatprep.subr.mxu0 0.0
    %2329 = vmatpush2.msra.mxu0 0.0
    %2330 = vmatprep.subr.mxu0 0.0
    %2331 = vmatpush2.msra.mxu0 0.0
    %2332 = vmatprep.subr.mxu0 0.0
    %2333 = vmatpush2.msra.mxu0 0.0
    %2334 = vmatprep.subr.mxu0 0.0
    %2335 = vmatpush2.msra.mxu0 0.0
    %2336 = vmatprep.subr.mxu0 0.0
    %2337 = vmatpush2.msra.mxu0 0.0
    %2338 = vmatprep.mubr.f32.mxu0 0.0
    %2339 = vmatmul.mubr.f32.gmra.mxu0 %v2242
    %v2340 = vpop.f32.mrf.mxu0
    %v2341 = vadd.f32 0.0, %v2340
    %v2342 = vpop.f32.mrf.mxu0
    %2343 = vmatprep.mubr.f32.mxu0 0.0
    %2344 = vmatmul.mubr.f32.gmra.mxu0 %v2243
    %v2345 = vpop.f32.mrf.mxu0
    %v2346 = vadd.f32 0.0, %v2345
    %v2347 = vpop.f32.mrf.mxu0
    %2348 = vmatprep.mubr.f32.mxu0 0.0
    %2349 = vmatmul.mubr.f32.gmra.mxu0 %v2244
    %v2350 = vpop.f32.mrf.mxu0
    %v2351 = vadd.f32 0.0, %v2350
    %v2352 = vpop.f32.mrf.mxu0
    %2353 = vmatprep.mubr.f32.mxu0 0.0
    %2354 = vmatmul.mubr.f32.gmra.mxu0 %v2245
    %v2355 = vpop.f32.mrf.mxu0
    %v2356 = vadd.f32 0.0, %v2355
    %v2357 = vpop.f32.mrf.mxu0
    %2358 = vmatprep.mubr.f32.mxu0 0.0
    %2359 = vmatmul.mubr.f32.gmra.mxu0 %v2246
    %v2360 = vpop.f32.mrf.mxu0
    %v2361 = vadd.f32 0.0, %v2360
    %v2362 = vpop.f32.mrf.mxu0
    %2363 = vmatprep.mubr.f32.mxu0 0.0
    %2364 = vmatmul.mubr.f32.gmra.mxu0 %v2247
    %v2365 = vpop.f32.mrf.mxu0
    %v2366 = vadd.f32 0.0, %v2365
    %v2367 = vpop.f32.mrf.mxu0
    %2368 = vmatprep.mubr.f32.mxu0 0.0
    %2369 = vmatmul.mubr.f32.gmra.mxu0 %v2248
    %v2370 = vpop.f32.mrf.mxu0
    %v2371 = vadd.f32 0.0, %v2370
    %v2372 = vpop.f32.mrf.mxu0
    %2373 = vmatprep.mubr.f32.mxu0 0.0
    %2374 = vmatmul.mubr.f32.gmra.mxu0 %v2249
    %v2375 = vpop.f32.mrf.mxu0
    %v2376 = vadd.f32 0.0, %v2375
    %v2377 = vpop.f32.mrf.mxu0
    %2378 = vmatprep.mubr.f32.mxu0 0.0
    %2379 = vmatmul.mubr.f32.gmra.mxu0 %v2250
    %v2380 = vpop.f32.mrf.mxu0
    %v2381 = vadd.f32 0.0, %v2380
    %v2382 = vpop.f32.mrf.mxu0
    %2383 = vmatprep.mubr.f32.mxu0 0.0
    %2384 = vmatmul.mubr.f32.gmra.mxu0 %v2251
    %v2385 = vpop.f32.mrf.mxu0
    %v2386 = vadd.f32 0.0, %v2385
    %v2387 = vpop.f32.mrf.mxu0
    %2388 = vmatprep.mubr.f32.mxu0 0.0
    %2389 = vmatmul.mubr.f32.gmra.mxu0 %v2252
    %v2390 = vpop.f32.mrf.mxu0
    %v2391 = vadd.f32 0.0, %v2390
    %v2392 = vpop.f32.mrf.mxu0
    %2393 = vmatprep.mubr.f32.mxu0 0.0
    %2394 = vmatmul.mubr.f32.gmra.mxu0 %v2253
    %v2395 = vpop.f32.mrf.mxu0
    %v2396 = vadd.f32 0.0, %v2395
    %v2397 = vpop.f32.mrf.mxu0
    %2398 = vmatprep.mubr.f32.mxu0 0.0
    %2399 = vmatmul.mubr.f32.gmra.mxu0 %v2254
    %v2400 = vpop.f32.mrf.mxu0
    %v2401 = vadd.f32 0.0, %v2400
    %v2402 = vpop.f32.mrf.mxu0
    %2403 = vmatprep.mubr.f32.mxu0 0.0
    %2404 = vmatmul.mubr.f32.gmra.mxu0 %v2255
    %v2405 = vpop.f32.mrf.mxu0
    %v2406 = vadd.f32 0.0, %v2405
    %v2407 = vpop.f32.mrf.mxu0
    %2408 = vmatprep.mubr.f32.mxu0 0.0
    %2409 = vmatmul.mubr.f32.gmra.mxu0 %v2256
    %v2410 = vpop.f32.mrf.mxu0
    %v2411 = vadd.f32 0.0, %v2410
    %v2412 = vpop.f32.mrf.mxu0
    %2413 = vmatprep.mubr.f32.mxu0 0.0
    %2414 = vmatmul.mubr.f32.gmra.mxu0 %v2257
    %v2415 = vpop.f32.mrf.mxu0
    %v2416 = vadd.f32 0.0, %v2415
    %v2417 = vpop.f32.mrf.mxu0
    %2418 = vdwg.mxu0
    %2419 = vmatprep.subr.mxu0 0.0
    %2420 = vmatpush1.msra.mxu0 %v1899
    %2421 = vmatprep.subr.mxu0 0.0
    %2422 = vmatpush1.msra.mxu0 %v1898
    %2423 = vmatprep.subr.mxu0 0.0
    %2424 = vmatpush1.msra.mxu0 %v1897
    %2425 = vmatprep.subr.mxu0 0.0
    %2426 = vmatpush1.msra.mxu0 %v1896
    %2427 = vmatprep.subr.mxu0 0.0
    %2428 = vmatpush1.msra.mxu0 %v1895
    %2429 = vmatprep.subr.mxu0 0.0
    %2430 = vmatpush1.msra.mxu0 %v1894
    %2431 = vmatprep.subr.mxu0 0.0
    %2432 = vmatpush1.msra.mxu0 %v1893
    %2433 = vmatprep.subr.mxu0 0.0
    %2434 = vmatpush1.msra.mxu0 %v1892
    %2435 = vmatprep.subr.mxu0 0.0
    %2436 = vmatpush1.msra.mxu0 %v1891
    %2437 = vmatprep.subr.mxu0 0.0
    %2438 = vmatpush1.msra.mxu0 %v1890
    %2439 = vmatprep.subr.mxu0 0.0
    %2440 = vmatpush1.msra.mxu0 %v1889
    %2441 = vmatprep.subr.mxu0 0.0
    %2442 = vmatpush1.msra.mxu0 %v1888
    %2443 = vmatprep.subr.mxu0 0.0
    %2444 = vmatpush1.msra.mxu0 %v1887
    %2445 = vmatprep.subr.mxu0 0.0
    %2446 = vmatpush1.msra.mxu0 %v1886
    %2447 = vmatprep.subr.mxu0 0.0
    %2448 = vmatpush1.msra.mxu0 %v1885
    %2449 = vmatprep.subr.mxu0 0.0
    %2450 = vmatpush1.msra.mxu0 %v1884
    %2451 = vmatprep.subr.mxu0 0.0
    %2452 = vmatpush2.msra.mxu0 0.0
    %2453 = vmatprep.subr.mxu0 0.0
    %2454 = vmatpush2.msra.mxu0 0.0
    %2455 = vmatprep.subr.mxu0 0.0
    %2456 = vmatpush2.msra.mxu0 0.0
    %2457 = vmatprep.subr.mxu0 0.0
    %2458 = vmatpush2.msra.mxu0 0.0
    %2459 = vmatprep.subr.mxu0 0.0
    %2460 = vmatpush2.msra.mxu0 0.0
    %2461 = vmatprep.subr.mxu0 0.0
    %2462 = vmatpush2.msra.mxu0 0.0
    %2463 = vmatprep.subr.mxu0 0.0
    %2464 = vmatpush2.msra.mxu0 0.0
    %2465 = vmatprep.subr.mxu0 0.0
    %2466 = vmatpush2.msra.mxu0 0.0
    %2467 = vmatprep.subr.mxu0 0.0
    %2468 = vmatpush2.msra.mxu0 0.0
    %2469 = vmatprep.subr.mxu0 0.0
    %2470 = vmatpush2.msra.mxu0 0.0
    %2471 = vmatprep.subr.mxu0 0.0
    %2472 = vmatpush2.msra.mxu0 0.0
    %2473 = vmatprep.subr.mxu0 0.0
    %2474 = vmatpush2.msra.mxu0 0.0
    %2475 = vmatprep.subr.mxu0 0.0
    %2476 = vmatpush2.msra.mxu0 0.0
    %2477 = vmatprep.subr.mxu0 0.0
    %2478 = vmatpush2.msra.mxu0 0.0
    %2479 = vmatprep.subr.mxu0 0.0
    %2480 = vmatpush2.msra.mxu0 0.0
    %2481 = vmatprep.subr.mxu0 0.0
    %2482 = vmatpush2.msra.mxu0 0.0
    %2483 = vmatprep.mubr.f32.mxu0 0.0
    %2484 = vmatmul.mubr.f32.gmra.mxu0 %v1868
    %v2485 = vpop.f32.mrf.mxu0
    %v2486 = vadd.f32 %v2341, %v2485
    %v2487 = vpop.f32.mrf.mxu0
    %2488 = vmatprep.mubr.f32.mxu0 0.0
    %2489 = vmatmul.mubr.f32.gmra.mxu0 %v1869
    %v2490 = vpop.f32.mrf.mxu0
    %v2491 = vadd.f32 %v2346, %v2490
    %v2492 = vpop.f32.mrf.mxu0
    %2493 = vmatprep.mubr.f32.mxu0 0.0
    %2494 = vmatmul.mubr.f32.gmra.mxu0 %v1870
    %v2495 = vpop.f32.mrf.mxu0
    %v2496 = vadd.f32 %v2351, %v2495
    %v2497 = vpop.f32.mrf.mxu0
    %2498 = vmatprep.mubr.f32.mxu0 0.0
    %2499 = vmatmul.mubr.f32.gmra.mxu0 %v1871
    %v2500 = vpop.f32.mrf.mxu0
    %v2501 = vadd.f32 %v2356, %v2500
    %v2502 = vpop.f32.mrf.mxu0
    %2503 = vmatprep.mubr.f32.mxu0 0.0
    %2504 = vmatmul.mubr.f32.gmra.mxu0 %v1872
    %v2505 = vpop.f32.mrf.mxu0
    %v2506 = vadd.f32 %v2361, %v2505
    %v2507 = vpop.f32.mrf.mxu0
    %2508 = vmatprep.mubr.f32.mxu0 0.0
    %2509 = vmatmul.mubr.f32.gmra.mxu0 %v1873
    %v2510 = vpop.f32.mrf.mxu0
    %v2511 = vadd.f32 %v2366, %v2510
    %v2512 = vpop.f32.mrf.mxu0
    %2513 = vmatprep.mubr.f32.mxu0 0.0
    %2514 = vmatmul.mubr.f32.gmra.mxu0 %v1874
    %v2515 = vpop.f32.mrf.mxu0
    %v2516 = vadd.f32 %v2371, %v2515
    %v2517 = vpop.f32.mrf.mxu0
    %2518 = vmatprep.mubr.f32.mxu0 0.0
    %2519 = vmatmul.mubr.f32.gmra.mxu0 %v1875
    %v2520 = vpop.f32.mrf.mxu0
    %v2521 = vadd.f32 %v2376, %v2520
    %v2522 = vpop.f32.mrf.mxu0
    %2523 = vmatprep.mubr.f32.mxu0 0.0
    %2524 = vmatmul.mubr.f32.gmra.mxu0 %v1876
    %v2525 = vpop.f32.mrf.mxu0
    %v2526 = vadd.f32 %v2381, %v2525
    %v2527 = vpop.f32.mrf.mxu0
    %2528 = vmatprep.mubr.f32.mxu0 0.0
    %2529 = vmatmul.mubr.f32.gmra.mxu0 %v1877
    %v2530 = vpop.f32.mrf.mxu0
    %v2531 = vadd.f32 %v2386, %v2530
    %v2532 = vpop.f32.mrf.mxu0
    %2533 = vmatprep.mubr.f32.mxu0 0.0
    %2534 = vmatmul.mubr.f32.gmra.mxu0 %v1878
    %v2535 = vpop.f32.mrf.mxu0
    %v2536 = vadd.f32 %v2391, %v2535
    %v2537 = vpop.f32.mrf.mxu0
    %2538 = vmatprep.mubr.f32.mxu0 0.0
    %2539 = vmatmul.mubr.f32.gmra.mxu0 %v1879
    %v2540 = vpop.f32.mrf.mxu0
    %v2541 = vadd.f32 %v2396, %v2540
    %v2542 = vpop.f32.mrf.mxu0
    %2543 = vmatprep.mubr.f32.mxu0 0.0
    %2544 = vmatmul.mubr.f32.gmra.mxu0 %v1880
    %v2545 = vpop.f32.mrf.mxu0
    %v2546 = vadd.f32 %v2401, %v2545
    %v2547 = vpop.f32.mrf.mxu0
    %2548 = vmatprep.mubr.f32.mxu0 0.0
    %2549 = vmatmul.mubr.f32.gmra.mxu0 %v1881
    %v2550 = vpop.f32.mrf.mxu0
    %v2551 = vadd.f32 %v2406, %v2550
    %v2552 = vpop.f32.mrf.mxu0
    %2553 = vmatprep.mubr.f32.mxu0 0.0
    %2554 = vmatmul.mubr.f32.gmra.mxu0 %v1882
    %v2555 = vpop.f32.mrf.mxu0
    %v2556 = vadd.f32 %v2411, %v2555
    %v2557 = vpop.f32.mrf.mxu0
    %2558 = vmatprep.mubr.f32.mxu0 0.0
    %2559 = vmatmul.mubr.f32.gmra.mxu0 %v1883
    %v2560 = vpop.f32.mrf.mxu0
    %v2561 = vadd.f32 %v2416, %v2560
    %v2562 = vpop.f32.mrf.mxu0
    %2563 = vdwg.mxu0
    %vm2564 = vcmp.ge.s32.totalorder %v38, 16
    %vm2565 = vcmp.lt.s32.totalorder %v38, 24
    %vm2566 = vmand %vm2564, %vm2565
    %v2567 = vsel %vm2566, 1, 0
    %v2568 = vcvt.s32.f32 %v2567
    %v2569 = vmul.f32 %v1164, %v2568
    %v2570 = vmul.f32 %v1165, %v2568
    %v2571 = vmul.f32 %v1166, %v2568
    %v2572 = vmul.f32 %v1167, %v2568
    %v2573 = vmul.f32 %v1168, %v2568
    %v2574 = vmul.f32 %v1169, %v2568
    %v2575 = vmul.f32 %v1170, %v2568
    %v2576 = vmul.f32 %v1171, %v2568
    %v2577 = vmul.f32 %v1172, %v2568
    %v2578 = vmul.f32 %v1173, %v2568
    %v2579 = vmul.f32 %v1174, %v2568
    %v2580 = vmul.f32 %v1175, %v2568
    %v2581 = vmul.f32 %v1176, %v2568
    %v2582 = vmul.f32 %v1177, %v2568
    %v2583 = vmul.f32 %v1178, %v2568
    %v2584 = vmul.f32 %v1179, %v2568
    %v2586 = vsel %vm970, %v2569, 0
    %v2589 = vsel %vm970, %v2570, 0
    %v2592 = vsel %vm970, %v2571, 0
    %v2595 = vsel %vm970, %v2572, 0
    %v2598 = vsel %vm970, %v2573, 0
    %v2601 = vsel %vm970, %v2574, 0
    %v2604 = vsel %vm970, %v2575, 0
    %v2607 = vsel %vm970, %v2576, 0
    %v2610 = vsel %vm970, %v2577, 0
    %v2613 = vsel %vm970, %v2578, 0
    %v2616 = vsel %vm970, %v2579, 0
    %v2619 = vsel %vm970, %v2580, 0
    %v2622 = vsel %vm970, %v2581, 0
    %v2625 = vsel %vm970, %v2582, 0
    %v2628 = vsel %vm970, %v2583, 0
    %v2631 = vsel %vm970, %v2584, 0
    %2633 = vmatprep.subr.mxu0 0.0
    %2634 = vmatpush1.xpose.msra.mxu0 %v1593
    %2635 = vmatprep.subr.mxu0 0.0
    %2636 = vmatpush1.xpose.msra.mxu0 %v1590
    %2637 = vmatprep.subr.mxu0 0.0
    %2638 = vmatpush1.xpose.msra.mxu0 %v1587
    %2639 = vmatprep.subr.mxu0 0.0
    %2640 = vmatpush1.xpose.msra.mxu0 %v1584
    %2641 = vmatprep.subr.mxu0 0.0
    %2642 = vmatpush1.xpose.msra.mxu0 %v1581
    %2643 = vmatprep.subr.mxu0 0.0
    %2644 = vmatpush1.xpose.msra.mxu0 %v1578
    %2645 = vmatprep.subr.mxu0 0.0
    %2646 = vmatpush1.xpose.msra.mxu0 %v1575
    %2647 = vmatprep.subr.mxu0 0.0
    %2648 = vmatpush1.xpose.msra.mxu0 %v1572
    %2649 = vmatprep.subr.mxu0 0.0
    %2650 = vmatpush1.xpose.msra.mxu0 %v1569
    %2651 = vmatprep.subr.mxu0 0.0
    %2652 = vmatpush1.xpose.msra.mxu0 %v1566
    %2653 = vmatprep.subr.mxu0 0.0
    %2654 = vmatpush1.xpose.msra.mxu0 %v1563
    %2655 = vmatprep.subr.mxu0 0.0
    %2656 = vmatpush1.xpose.msra.mxu0 %v1560
    %2657 = vmatprep.subr.mxu0 0.0
    %2658 = vmatpush1.xpose.msra.mxu0 %v1557
    %2659 = vmatprep.subr.mxu0 0.0
    %2660 = vmatpush1.xpose.msra.mxu0 %v1554
    %2661 = vmatprep.subr.mxu0 0.0
    %2662 = vmatpush1.xpose.msra.mxu0 %v1551
    %2663 = vmatprep.subr.mxu0 0.0
    %2664 = vmatpush1.xpose.msra.mxu0 %v1548
    %2665 = vmatprep.subr.mxu0 0.0
    %2666 = vmatpush2.xpose.msra.mxu0 0.0
    %2667 = vmatprep.subr.mxu0 0.0
    %2668 = vmatpush2.xpose.msra.mxu0 0.0
    %2669 = vmatprep.subr.mxu0 0.0
    %2670 = vmatpush2.xpose.msra.mxu0 0.0
    %2671 = vmatprep.subr.mxu0 0.0
    %2672 = vmatpush2.xpose.msra.mxu0 0.0
    %2673 = vmatprep.subr.mxu0 0.0
    %2674 = vmatpush2.xpose.msra.mxu0 0.0
    %2675 = vmatprep.subr.mxu0 0.0
    %2676 = vmatpush2.xpose.msra.mxu0 0.0
    %2677 = vmatprep.subr.mxu0 0.0
    %2678 = vmatpush2.xpose.msra.mxu0 0.0
    %2679 = vmatprep.subr.mxu0 0.0
    %2680 = vmatpush2.xpose.msra.mxu0 0.0
    %2681 = vmatprep.subr.mxu0 0.0
    %2682 = vmatpush2.xpose.msra.mxu0 0.0
    %2683 = vmatprep.subr.mxu0 0.0
    %2684 = vmatpush2.xpose.msra.mxu0 0.0
    %2685 = vmatprep.subr.mxu0 0.0
    %2686 = vmatpush2.xpose.msra.mxu0 0.0
    %2687 = vmatprep.subr.mxu0 0.0
    %2688 = vmatpush2.xpose.msra.mxu0 0.0
    %2689 = vmatprep.subr.mxu0 0.0
    %2690 = vmatpush2.xpose.msra.mxu0 0.0
    %2691 = vmatprep.subr.mxu0 0.0
    %2692 = vmatpush2.xpose.msra.mxu0 0.0
    %2693 = vmatprep.subr.mxu0 0.0
    %2694 = vmatpush2.xpose.msra.mxu0 0.0
    %2695 = vmatprep.subr.mxu0 0.0
    %2696 = vmatpush2.xpose.msra.mxu0 0.0
    %2697 = vmatprep.mubr.f32.mxu0 0.0
    %2698 = vmatmul.mubr.f32.gmra.mxu0 %v2586
    %v2699 = vpop.f32.mrf.mxu0
    %v2700 = vadd.f32 %v920, %v2699
    %v2701 = vpop.f32.mrf.mxu0
    %2702 = vmatprep.mubr.f32.mxu0 0.0
    %2703 = vmatmul.mubr.f32.gmra.mxu0 %v2589
    %v2704 = vpop.f32.mrf.mxu0
    %v2705 = vadd.f32 %v921, %v2704
    %v2706 = vpop.f32.mrf.mxu0
    %2707 = vmatprep.mubr.f32.mxu0 0.0
    %2708 = vmatmul.mubr.f32.gmra.mxu0 %v2592
    %v2709 = vpop.f32.mrf.mxu0
    %v2710 = vadd.f32 %v922, %v2709
    %v2711 = vpop.f32.mrf.mxu0
    %2712 = vmatprep.mubr.f32.mxu0 0.0
    %2713 = vmatmul.mubr.f32.gmra.mxu0 %v2595
    %v2714 = vpop.f32.mrf.mxu0
    %v2715 = vadd.f32 %v923, %v2714
    %v2716 = vpop.f32.mrf.mxu0
    %2717 = vmatprep.mubr.f32.mxu0 0.0
    %2718 = vmatmul.mubr.f32.gmra.mxu0 %v2598
    %v2719 = vpop.f32.mrf.mxu0
    %v2720 = vadd.f32 %v924, %v2719
    %v2721 = vpop.f32.mrf.mxu0
    %2722 = vmatprep.mubr.f32.mxu0 0.0
    %2723 = vmatmul.mubr.f32.gmra.mxu0 %v2601
    %v2724 = vpop.f32.mrf.mxu0
    %v2725 = vadd.f32 %v925, %v2724
    %v2726 = vpop.f32.mrf.mxu0
    %2727 = vmatprep.mubr.f32.mxu0 0.0
    %2728 = vmatmul.mubr.f32.gmra.mxu0 %v2604
    %v2729 = vpop.f32.mrf.mxu0
    %v2730 = vadd.f32 %v926, %v2729
    %v2731 = vpop.f32.mrf.mxu0
    %2732 = vmatprep.mubr.f32.mxu0 0.0
    %2733 = vmatmul.mubr.f32.gmra.mxu0 %v2607
    %v2734 = vpop.f32.mrf.mxu0
    %v2735 = vadd.f32 %v927, %v2734
    %v2736 = vpop.f32.mrf.mxu0
    %2737 = vmatprep.mubr.f32.mxu0 0.0
    %2738 = vmatmul.mubr.f32.gmra.mxu0 %v2610
    %v2739 = vpop.f32.mrf.mxu0
    %v2740 = vadd.f32 %v928, %v2739
    %v2741 = vpop.f32.mrf.mxu0
    %2742 = vmatprep.mubr.f32.mxu0 0.0
    %2743 = vmatmul.mubr.f32.gmra.mxu0 %v2613
    %v2744 = vpop.f32.mrf.mxu0
    %v2745 = vadd.f32 %v929, %v2744
    %v2746 = vpop.f32.mrf.mxu0
    %2747 = vmatprep.mubr.f32.mxu0 0.0
    %2748 = vmatmul.mubr.f32.gmra.mxu0 %v2616
    %v2749 = vpop.f32.mrf.mxu0
    %v2750 = vadd.f32 %v930, %v2749
    %v2751 = vpop.f32.mrf.mxu0
    %2752 = vmatprep.mubr.f32.mxu0 0.0
    %2753 = vmatmul.mubr.f32.gmra.mxu0 %v2619
    %v2754 = vpop.f32.mrf.mxu0
    %v2755 = vadd.f32 %v931, %v2754
    %v2756 = vpop.f32.mrf.mxu0
    %2757 = vmatprep.mubr.f32.mxu0 0.0
    %2758 = vmatmul.mubr.f32.gmra.mxu0 %v2622
    %v2759 = vpop.f32.mrf.mxu0
    %v2760 = vadd.f32 %v932, %v2759
    %v2761 = vpop.f32.mrf.mxu0
    %2762 = vmatprep.mubr.f32.mxu0 0.0
    %2763 = vmatmul.mubr.f32.gmra.mxu0 %v2625
    %v2764 = vpop.f32.mrf.mxu0
    %v2765 = vadd.f32 %v933, %v2764
    %v2766 = vpop.f32.mrf.mxu0
    %2767 = vmatprep.mubr.f32.mxu0 0.0
    %2768 = vmatmul.mubr.f32.gmra.mxu0 %v2628
    %v2769 = vpop.f32.mrf.mxu0
    %v2770 = vadd.f32 %v934, %v2769
    %v2771 = vpop.f32.mrf.mxu0
    %2772 = vmatprep.mubr.f32.mxu0 0.0
    %2773 = vmatmul.mubr.f32.gmra.mxu0 %v2631
    %v2774 = vpop.f32.mrf.mxu0
    %v2775 = vadd.f32 %v935, %v2774
    %v2776 = vpop.f32.mrf.mxu0
    %2777 = vdwg.mxu0
    %2778 = vmax.xlane.f32.xlu0 %v2700
    %v2779 = vpop.xlane.xlu0 %2778
    %2780 = vmax.xlane.f32.xlu0 %v2705
    %v2781 = vpop.xlane.xlu0 %2780
    %2782 = vmax.xlane.f32.xlu0 %v2710
    %v2783 = vpop.xlane.xlu0 %2782
    %2784 = vmax.xlane.f32.xlu0 %v2715
    %v2785 = vpop.xlane.xlu0 %2784
    %2786 = vmax.xlane.f32.xlu0 %v2720
    %v2787 = vpop.xlane.xlu0 %2786
    %2788 = vmax.xlane.f32.xlu0 %v2725
    %v2789 = vpop.xlane.xlu0 %2788
    %2790 = vmax.xlane.f32.xlu0 %v2730
    %v2791 = vpop.xlane.xlu0 %2790
    %2792 = vmax.xlane.f32.xlu0 %v2735
    %v2793 = vpop.xlane.xlu0 %2792
    %2794 = vmax.xlane.f32.xlu0 %v2740
    %v2795 = vpop.xlane.xlu0 %2794
    %2796 = vmax.xlane.f32.xlu0 %v2745
    %v2797 = vpop.xlane.xlu0 %2796
    %2798 = vmax.xlane.f32.xlu0 %v2750
    %v2799 = vpop.xlane.xlu0 %2798
    %2800 = vmax.xlane.f32.xlu0 %v2755
    %v2801 = vpop.xlane.xlu0 %2800
    %2802 = vmax.xlane.f32.xlu0 %v2760
    %v2803 = vpop.xlane.xlu0 %2802
    %2804 = vmax.xlane.f32.xlu0 %v2765
    %v2805 = vpop.xlane.xlu0 %2804
    %2806 = vmax.xlane.f32.xlu0 %v2770
    %v2807 = vpop.xlane.xlu0 %2806
    %2808 = vmax.xlane.f32.xlu0 %v2775
    %v2809 = vpop.xlane.xlu0 %2808
    %v2810 = vsub.f32 %v2700, %v2779
    %v2811 = vsub.f32 %v2705, %v2781
    %v2812 = vsub.f32 %v2710, %v2783
    %v2813 = vsub.f32 %v2715, %v2785
    %v2814 = vsub.f32 %v2720, %v2787
    %v2815 = vsub.f32 %v2725, %v2789
    %v2816 = vsub.f32 %v2730, %v2791
    %v2817 = vsub.f32 %v2735, %v2793
    %v2818 = vsub.f32 %v2740, %v2795
    %v2819 = vsub.f32 %v2745, %v2797
    %v2820 = vsub.f32 %v2750, %v2799
    %v2821 = vsub.f32 %v2755, %v2801
    %v2822 = vsub.f32 %v2760, %v2803
    %v2823 = vsub.f32 %v2765, %v2805
    %v2824 = vsub.f32 %v2770, %v2807
    %v2825 = vsub.f32 %v2775, %v2809
    %v2826 = vmul.f32 %v2810, 1.442695
    %v2827 = vpow.pop %v2826
    %v2828 = vmul.f32 %v2811, 1.442695
    %v2829 = vpow.pop %v2828
    %v2830 = vmul.f32 %v2812, 1.442695
    %v2831 = vpow.pop %v2830
    %v2832 = vmul.f32 %v2813, 1.442695
    %v2833 = vpow.pop %v2832
    %v2834 = vmul.f32 %v2814, 1.442695
    %v2835 = vpow.pop %v2834
    %v2836 = vmul.f32 %v2815, 1.442695
    %v2837 = vpow.pop %v2836
    %v2838 = vmul.f32 %v2816, 1.442695
    %v2839 = vpow.pop %v2838
    %v2840 = vmul.f32 %v2817, 1.442695
    %v2841 = vpow.pop %v2840
    %v2842 = vmul.f32 %v2818, 1.442695
    %v2843 = vpow.pop %v2842
    %v2844 = vmul.f32 %v2819, 1.442695
    %v2845 = vpow.pop %v2844
    %v2846 = vmul.f32 %v2820, 1.442695
    %v2847 = vpow.pop %v2846
    %v2848 = vmul.f32 %v2821, 1.442695
    %v2849 = vpow.pop %v2848
    %v2850 = vmul.f32 %v2822, 1.442695
    %v2851 = vpow.pop %v2850
    %v2852 = vmul.f32 %v2823, 1.442695
    %v2853 = vpow.pop %v2852
    %v2854 = vmul.f32 %v2824, 1.442695
    %v2855 = vpow.pop %v2854
    %v2856 = vmul.f32 %v2825, 1.442695
    %v2857 = vpow.pop %v2856
    %2858 = vadd.xlane.f32.xlu0 %v2827
    %v2859 = vpop.xlane.xlu0 %2858
    %2860 = vadd.xlane.f32.xlu0 %v2829
    %v2861 = vpop.xlane.xlu0 %2860
    %2862 = vadd.xlane.f32.xlu0 %v2831
    %v2863 = vpop.xlane.xlu0 %2862
    %2864 = vadd.xlane.f32.xlu0 %v2833
    %v2865 = vpop.xlane.xlu0 %2864
    %2866 = vadd.xlane.f32.xlu0 %v2835
    %v2867 = vpop.xlane.xlu0 %2866
    %2868 = vadd.xlane.f32.xlu0 %v2837
    %v2869 = vpop.xlane.xlu0 %2868
    %2870 = vadd.xlane.f32.xlu0 %v2839
    %v2871 = vpop.xlane.xlu0 %2870
    %2872 = vadd.xlane.f32.xlu0 %v2841
    %v2873 = vpop.xlane.xlu0 %2872
    %2874 = vadd.xlane.f32.xlu0 %v2843
    %v2875 = vpop.xlane.xlu0 %2874
    %2876 = vadd.xlane.f32.xlu0 %v2845
    %v2877 = vpop.xlane.xlu0 %2876
    %2878 = vadd.xlane.f32.xlu0 %v2847
    %v2879 = vpop.xlane.xlu0 %2878
    %2880 = vadd.xlane.f32.xlu0 %v2849
    %v2881 = vpop.xlane.xlu0 %2880
    %2882 = vadd.xlane.f32.xlu0 %v2851
    %v2883 = vpop.xlane.xlu0 %2882
    %2884 = vadd.xlane.f32.xlu0 %v2853
    %v2885 = vpop.xlane.xlu0 %2884
    %2886 = vadd.xlane.f32.xlu0 %v2855
    %v2887 = vpop.xlane.xlu0 %2886
    %2888 = vadd.xlane.f32.xlu0 %v2857
    %v2889 = vpop.xlane.xlu0 %2888
    %v2890 = vrcp.pop %v2859
    %v2891 = vrcp.pop %v2861
    %v2892 = vrcp.pop %v2863
    %v2893 = vrcp.pop %v2865
    %v2894 = vrcp.pop %v2867
    %v2895 = vrcp.pop %v2869
    %v2896 = vrcp.pop %v2871
    %v2897 = vrcp.pop %v2873
    %v2898 = vrcp.pop %v2875
    %v2899 = vrcp.pop %v2877
    %v2900 = vrcp.pop %v2879
    %v2901 = vrcp.pop %v2881
    %v2902 = vrcp.pop %v2883
    %v2903 = vrcp.pop %v2885
    %v2904 = vrcp.pop %v2887
    %v2905 = vrcp.pop %v2889
    %v2906 = vmul.f32 %v2827, %v2890
    %v2907 = vmul.f32 %v2829, %v2891
    %v2908 = vmul.f32 %v2831, %v2892
    %v2909 = vmul.f32 %v2833, %v2893
    %v2910 = vmul.f32 %v2835, %v2894
    %v2911 = vmul.f32 %v2837, %v2895
    %v2912 = vmul.f32 %v2839, %v2896
    %v2913 = vmul.f32 %v2841, %v2897
    %v2914 = vmul.f32 %v2843, %v2898
    %v2915 = vmul.f32 %v2845, %v2899
    %v2916 = vmul.f32 %v2847, %v2900
    %v2917 = vmul.f32 %v2849, %v2901
    %v2918 = vmul.f32 %v2851, %v2902
    %v2919 = vmul.f32 %v2853, %v2903
    %v2920 = vmul.f32 %v2855, %v2904
    %v2921 = vmul.f32 %v2857, %v2905
    %v2922 = vmul.f32 %v1400, %v2568
    %v2923 = vmul.f32 %v1405, %v2568
    %v2924 = vmul.f32 %v1410, %v2568
    %v2925 = vmul.f32 %v1415, %v2568
    %v2926 = vmul.f32 %v1420, %v2568
    %v2927 = vmul.f32 %v1425, %v2568
    %v2928 = vmul.f32 %v1430, %v2568
    %v2929 = vmul.f32 %v1435, %v2568
    %v2930 = vmul.f32 %v1440, %v2568
    %v2931 = vmul.f32 %v1445, %v2568
    %v2932 = vmul.f32 %v1450, %v2568
    %v2933 = vmul.f32 %v1455, %v2568
    %v2934 = vmul.f32 %v1460, %v2568
    %v2935 = vmul.f32 %v1465, %v2568
    %v2936 = vmul.f32 %v1470, %v2568
    %v2937 = vmul.f32 %v1475, %v2568
    %2938 = vmatprep.subr.mxu0 0.0
    %2939 = vmatpush1.msra.mxu0 %v2937
    %2940 = vmatprep.subr.mxu0 0.0
    %2941 = vmatpush1.msra.mxu0 %v2936
    %2942 = vmatprep.subr.mxu0 0.0
    %2943 = vmatpush1.msra.mxu0 %v2935
    %2944 = vmatprep.subr.mxu0 0.0
    %2945 = vmatpush1.msra.mxu0 %v2934
    %2946 = vmatprep.subr.mxu0 0.0
    %2947 = vmatpush1.msra.mxu0 %v2933
    %2948 = vmatprep.subr.mxu0 0.0
    %2949 = vmatpush1.msra.mxu0 %v2932
    %2950 = vmatprep.subr.mxu0 0.0
    %2951 = vmatpush1.msra.mxu0 %v2931
    %2952 = vmatprep.subr.mxu0 0.0
    %2953 = vmatpush1.msra.mxu0 %v2930
    %2954 = vmatprep.subr.mxu0 0.0
    %2955 = vmatpush1.msra.mxu0 %v2929
    %2956 = vmatprep.subr.mxu0 0.0
    %2957 = vmatpush1.msra.mxu0 %v2928
    %2958 = vmatprep.subr.mxu0 0.0
    %2959 = vmatpush1.msra.mxu0 %v2927
    %2960 = vmatprep.subr.mxu0 0.0
    %2961 = vmatpush1.msra.mxu0 %v2926
    %2962 = vmatprep.subr.mxu0 0.0
    %2963 = vmatpush1.msra.mxu0 %v2925
    %2964 = vmatprep.subr.mxu0 0.0
    %2965 = vmatpush1.msra.mxu0 %v2924
    %2966 = vmatprep.subr.mxu0 0.0
    %2967 = vmatpush1.msra.mxu0 %v2923
    %2968 = vmatprep.subr.mxu0 0.0
    %2969 = vmatpush1.msra.mxu0 %v2922
    %2970 = vmatprep.subr.mxu0 0.0
    %2971 = vmatpush2.msra.mxu0 0.0
    %2972 = vmatprep.subr.mxu0 0.0
    %2973 = vmatpush2.msra.mxu0 0.0
    %2974 = vmatprep.subr.mxu0 0.0
    %2975 = vmatpush2.msra.mxu0 0.0
    %2976 = vmatprep.subr.mxu0 0.0
    %2977 = vmatpush2.msra.mxu0 0.0
    %2978 = vmatprep.subr.mxu0 0.0
    %2979 = vmatpush2.msra.mxu0 0.0
    %2980 = vmatprep.subr.mxu0 0.0
    %2981 = vmatpush2.msra.mxu0 0.0
    %2982 = vmatprep.subr.mxu0 0.0
    %2983 = vmatpush2.msra.mxu0 0.0
    %2984 = vmatprep.subr.mxu0 0.0
    %2985 = vmatpush2.msra.mxu0 0.0
    %2986 = vmatprep.subr.mxu0 0.0
    %2987 = vmatpush2.msra.mxu0 0.0
    %2988 = vmatprep.subr.mxu0 0.0
    %2989 = vmatpush2.msra.mxu0 0.0
    %2990 = vmatprep.subr.mxu0 0.0
    %2991 = vmatpush2.msra.mxu0 0.0
    %2992 = vmatprep.subr.mxu0 0.0
    %2993 = vmatpush2.msra.mxu0 0.0
    %2994 = vmatprep.subr.mxu0 0.0
    %2995 = vmatpush2.msra.mxu0 0.0
    %2996 = vmatprep.subr.mxu0 0.0
    %2997 = vmatpush2.msra.mxu0 0.0
    %2998 = vmatprep.subr.mxu0 0.0
    %2999 = vmatpush2.msra.mxu0 0.0
    %3000 = vmatprep.subr.mxu0 0.0
    %3001 = vmatpush2.msra.mxu0 0.0
    %3002 = vmatprep.mubr.f32.mxu0 0.0
    %3003 = vmatmul.mubr.f32.gmra.mxu0 %v2906
    %v3004 = vpop.f32.mrf.mxu0
    %v3005 = vadd.f32 0.0, %v3004
    %v3006 = vpop.f32.mrf.mxu0
    %3007 = vmatprep.mubr.f32.mxu0 0.0
    %3008 = vmatmul.mubr.f32.gmra.mxu0 %v2907
    %v3009 = vpop.f32.mrf.mxu0
    %v3010 = vadd.f32 0.0, %v3009
    %v3011 = vpop.f32.mrf.mxu0
    %3012 = vmatprep.mubr.f32.mxu0 0.0
    %3013 = vmatmul.mubr.f32.gmra.mxu0 %v2908
    %v3014 = vpop.f32.mrf.mxu0
    %v3015 = vadd.f32 0.0, %v3014
    %v3016 = vpop.f32.mrf.mxu0
    %3017 = vmatprep.mubr.f32.mxu0 0.0
    %3018 = vmatmul.mubr.f32.gmra.mxu0 %v2909
    %v3019 = vpop.f32.mrf.mxu0
    %v3020 = vadd.f32 0.0, %v3019
    %v3021 = vpop.f32.mrf.mxu0
    %3022 = vmatprep.mubr.f32.mxu0 0.0
    %3023 = vmatmul.mubr.f32.gmra.mxu0 %v2910
    %v3024 = vpop.f32.mrf.mxu0
    %v3025 = vadd.f32 0.0, %v3024
    %v3026 = vpop.f32.mrf.mxu0
    %3027 = vmatprep.mubr.f32.mxu0 0.0
    %3028 = vmatmul.mubr.f32.gmra.mxu0 %v2911
    %v3029 = vpop.f32.mrf.mxu0
    %v3030 = vadd.f32 0.0, %v3029
    %v3031 = vpop.f32.mrf.mxu0
    %3032 = vmatprep.mubr.f32.mxu0 0.0
    %3033 = vmatmul.mubr.f32.gmra.mxu0 %v2912
    %v3034 = vpop.f32.mrf.mxu0
    %v3035 = vadd.f32 0.0, %v3034
    %v3036 = vpop.f32.mrf.mxu0
    %3037 = vmatprep.mubr.f32.mxu0 0.0
    %3038 = vmatmul.mubr.f32.gmra.mxu0 %v2913
    %v3039 = vpop.f32.mrf.mxu0
    %v3040 = vadd.f32 0.0, %v3039
    %v3041 = vpop.f32.mrf.mxu0
    %3042 = vmatprep.mubr.f32.mxu0 0.0
    %3043 = vmatmul.mubr.f32.gmra.mxu0 %v2914
    %v3044 = vpop.f32.mrf.mxu0
    %v3045 = vadd.f32 0.0, %v3044
    %v3046 = vpop.f32.mrf.mxu0
    %3047 = vmatprep.mubr.f32.mxu0 0.0
    %3048 = vmatmul.mubr.f32.gmra.mxu0 %v2915
    %v3049 = vpop.f32.mrf.mxu0
    %v3050 = vadd.f32 0.0, %v3049
    %v3051 = vpop.f32.mrf.mxu0
    %3052 = vmatprep.mubr.f32.mxu0 0.0
    %3053 = vmatmul.mubr.f32.gmra.mxu0 %v2916
    %v3054 = vpop.f32.mrf.mxu0
    %v3055 = vadd.f32 0.0, %v3054
    %v3056 = vpop.f32.mrf.mxu0
    %3057 = vmatprep.mubr.f32.mxu0 0.0
    %3058 = vmatmul.mubr.f32.gmra.mxu0 %v2917
    %v3059 = vpop.f32.mrf.mxu0
    %v3060 = vadd.f32 0.0, %v3059
    %v3061 = vpop.f32.mrf.mxu0
    %3062 = vmatprep.mubr.f32.mxu0 0.0
    %3063 = vmatmul.mubr.f32.gmra.mxu0 %v2918
    %v3064 = vpop.f32.mrf.mxu0
    %v3065 = vadd.f32 0.0, %v3064
    %v3066 = vpop.f32.mrf.mxu0
    %3067 = vmatprep.mubr.f32.mxu0 0.0
    %3068 = vmatmul.mubr.f32.gmra.mxu0 %v2919
    %v3069 = vpop.f32.mrf.mxu0
    %v3070 = vadd.f32 0.0, %v3069
    %v3071 = vpop.f32.mrf.mxu0
    %3072 = vmatprep.mubr.f32.mxu0 0.0
    %3073 = vmatmul.mubr.f32.gmra.mxu0 %v2920
    %v3074 = vpop.f32.mrf.mxu0
    %v3075 = vadd.f32 0.0, %v3074
    %v3076 = vpop.f32.mrf.mxu0
    %3077 = vmatprep.mubr.f32.mxu0 0.0
    %3078 = vmatmul.mubr.f32.gmra.mxu0 %v2921
    %v3079 = vpop.f32.mrf.mxu0
    %v3080 = vadd.f32 0.0, %v3079
    %v3081 = vpop.f32.mrf.mxu0
    %3082 = vdwg.mxu0
    %v3083 = vadd.f32 %v2486, %v3005
    %v3084 = vadd.f32 %v2491, %v3010
    %v3085 = vadd.f32 %v2496, %v3015
    %v3086 = vadd.f32 %v2501, %v3020
    %v3087 = vadd.f32 %v2506, %v3025
    %v3088 = vadd.f32 %v2511, %v3030
    %v3089 = vadd.f32 %v2516, %v3035
    %v3090 = vadd.f32 %v2521, %v3040
    %v3091 = vadd.f32 %v2526, %v3045
    %v3092 = vadd.f32 %v2531, %v3050
    %v3093 = vadd.f32 %v2536, %v3055
    %v3094 = vadd.f32 %v2541, %v3060
    %v3095 = vadd.f32 %v2546, %v3065
    %v3096 = vadd.f32 %v2551, %v3070
    %v3097 = vadd.f32 %v2556, %v3075
    %v3098 = vadd.f32 %v2561, %v3080
    %vm3099 = vcmp.ge.s32.totalorder %v38, 24
    %vm3100 = vcmp.lt.s32.totalorder %v38, 32
    %vm3101 = vmand %vm3099, %vm3100
    %v3102 = vsel %vm3101, 1, 0
    %v3103 = vcvt.s32.f32 %v3102
    %v3104 = vmul.f32 %v1164, %v3103
    %v3105 = vmul.f32 %v1165, %v3103
    %v3106 = vmul.f32 %v1166, %v3103
    %v3107 = vmul.f32 %v1167, %v3103
    %v3108 = vmul.f32 %v1168, %v3103
    %v3109 = vmul.f32 %v1169, %v3103
    %v3110 = vmul.f32 %v1170, %v3103
    %v3111 = vmul.f32 %v1171, %v3103
    %v3112 = vmul.f32 %v1172, %v3103
    %v3113 = vmul.f32 %v1173, %v3103
    %v3114 = vmul.f32 %v1174, %v3103
    %v3115 = vmul.f32 %v1175, %v3103
    %v3116 = vmul.f32 %v1176, %v3103
    %v3117 = vmul.f32 %v1177, %v3103
    %v3118 = vmul.f32 %v1178, %v3103
    %v3119 = vmul.f32 %v1179, %v3103
    %v3121 = vsel %vm970, %v3104, 0
    %v3124 = vsel %vm970, %v3105, 0
    %v3127 = vsel %vm970, %v3106, 0
    %v3130 = vsel %vm970, %v3107, 0
    %v3133 = vsel %vm970, %v3108, 0
    %v3136 = vsel %vm970, %v3109, 0
    %v3139 = vsel %vm970, %v3110, 0
    %v3142 = vsel %vm970, %v3111, 0
    %v3145 = vsel %vm970, %v3112, 0
    %v3148 = vsel %vm970, %v3113, 0
    %v3151 = vsel %vm970, %v3114, 0
    %v3154 = vsel %vm970, %v3115, 0
    %v3157 = vsel %vm970, %v3116, 0
    %v3160 = vsel %vm970, %v3117, 0
    %v3163 = vsel %vm970, %v3118, 0
    %v3166 = vsel %vm970, %v3119, 0
    %3168 = vmatprep.subr.mxu0 0.0
    %3169 = vmatpush1.xpose.msra.mxu0 %v1593
    %3170 = vmatprep.subr.mxu0 0.0
    %3171 = vmatpush1.xpose.msra.mxu0 %v1590
    %3172 = vmatprep.subr.mxu0 0.0
    %3173 = vmatpush1.xpose.msra.mxu0 %v1587
    %3174 = vmatprep.subr.mxu0 0.0
    %3175 = vmatpush1.xpose.msra.mxu0 %v1584
    %3176 = vmatprep.subr.mxu0 0.0
    %3177 = vmatpush1.xpose.msra.mxu0 %v1581
    %3178 = vmatprep.subr.mxu0 0.0
    %3179 = vmatpush1.xpose.msra.mxu0 %v1578
    %3180 = vmatprep.subr.mxu0 0.0
    %3181 = vmatpush1.xpose.msra.mxu0 %v1575
    %3182 = vmatprep.subr.mxu0 0.0
    %3183 = vmatpush1.xpose.msra.mxu0 %v1572
    %3184 = vmatprep.subr.mxu0 0.0
    %3185 = vmatpush1.xpose.msra.mxu0 %v1569
    %3186 = vmatprep.subr.mxu0 0.0
    %3187 = vmatpush1.xpose.msra.mxu0 %v1566
    %3188 = vmatprep.subr.mxu0 0.0
    %3189 = vmatpush1.xpose.msra.mxu0 %v1563
    %3190 = vmatprep.subr.mxu0 0.0
    %3191 = vmatpush1.xpose.msra.mxu0 %v1560
    %3192 = vmatprep.subr.mxu0 0.0
    %3193 = vmatpush1.xpose.msra.mxu0 %v1557
    %3194 = vmatprep.subr.mxu0 0.0
    %3195 = vmatpush1.xpose.msra.mxu0 %v1554
    %3196 = vmatprep.subr.mxu0 0.0
    %3197 = vmatpush1.xpose.msra.mxu0 %v1551
    %3198 = vmatprep.subr.mxu0 0.0
    %3199 = vmatpush1.xpose.msra.mxu0 %v1548
    %3200 = vmatprep.subr.mxu0 0.0
    %3201 = vmatpush2.xpose.msra.mxu0 0.0
    %3202 = vmatprep.subr.mxu0 0.0
    %3203 = vmatpush2.xpose.msra.mxu0 0.0
    %3204 = vmatprep.subr.mxu0 0.0
    %3205 = vmatpush2.xpose.msra.mxu0 0.0
    %3206 = vmatprep.subr.mxu0 0.0
    %3207 = vmatpush2.xpose.msra.mxu0 0.0
    %3208 = vmatprep.subr.mxu0 0.0
    %3209 = vmatpush2.xpose.msra.mxu0 0.0
    %3210 = vmatprep.subr.mxu0 0.0
    %3211 = vmatpush2.xpose.msra.mxu0 0.0
    %3212 = vmatprep.subr.mxu0 0.0
    %3213 = vmatpush2.xpose.msra.mxu0 0.0
    %3214 = vmatprep.subr.mxu0 0.0
    %3215 = vmatpush2.xpose.msra.mxu0 0.0
    %3216 = vmatprep.subr.mxu0 0.0
    %3217 = vmatpush2.xpose.msra.mxu0 0.0
    %3218 = vmatprep.subr.mxu0 0.0
    %3219 = vmatpush2.xpose.msra.mxu0 0.0
    %3220 = vmatprep.subr.mxu0 0.0
    %3221 = vmatpush2.xpose.msra.mxu0 0.0
    %3222 = vmatprep.subr.mxu0 0.0
    %3223 = vmatpush2.xpose.msra.mxu0 0.0
    %3224 = vmatprep.subr.mxu0 0.0
    %3225 = vmatpush2.xpose.msra.mxu0 0.0
    %3226 = vmatprep.subr.mxu0 0.0
    %3227 = vmatpush2.xpose.msra.mxu0 0.0
    %3228 = vmatprep.subr.mxu0 0.0
    %3229 = vmatpush2.xpose.msra.mxu0 0.0
    %3230 = vmatprep.subr.mxu0 0.0
    %3231 = vmatpush2.xpose.msra.mxu0 0.0
    %3232 = vmatprep.mubr.f32.mxu0 0.0
    %3233 = vmatmul.mubr.f32.gmra.mxu0 %v3121
    %v3234 = vpop.f32.mrf.mxu0
    %v3235 = vadd.f32 %v920, %v3234
    %v3236 = vpop.f32.mrf.mxu0
    %3237 = vmatprep.mubr.f32.mxu0 0.0
    %3238 = vmatmul.mubr.f32.gmra.mxu0 %v3124
    %v3239 = vpop.f32.mrf.mxu0
    %v3240 = vadd.f32 %v921, %v3239
    %v3241 = vpop.f32.mrf.mxu0
    %3242 = vmatprep.mubr.f32.mxu0 0.0
    %3243 = vmatmul.mubr.f32.gmra.mxu0 %v3127
    %v3244 = vpop.f32.mrf.mxu0
    %v3245 = vadd.f32 %v922, %v3244
    %v3246 = vpop.f32.mrf.mxu0
    %3247 = vmatprep.mubr.f32.mxu0 0.0
    %3248 = vmatmul.mubr.f32.gmra.mxu0 %v3130
    %v3249 = vpop.f32.mrf.mxu0
    %v3250 = vadd.f32 %v923, %v3249
    %v3251 = vpop.f32.mrf.mxu0
    %3252 = vmatprep.mubr.f32.mxu0 0.0
    %3253 = vmatmul.mubr.f32.gmra.mxu0 %v3133
    %v3254 = vpop.f32.mrf.mxu0
    %v3255 = vadd.f32 %v924, %v3254
    %v3256 = vpop.f32.mrf.mxu0
    %3257 = vmatprep.mubr.f32.mxu0 0.0
    %3258 = vmatmul.mubr.f32.gmra.mxu0 %v3136
    %v3259 = vpop.f32.mrf.mxu0
    %v3260 = vadd.f32 %v925, %v3259
    %v3261 = vpop.f32.mrf.mxu0
    %3262 = vmatprep.mubr.f32.mxu0 0.0
    %3263 = vmatmul.mubr.f32.gmra.mxu0 %v3139
    %v3264 = vpop.f32.mrf.mxu0
    %v3265 = vadd.f32 %v926, %v3264
    %v3266 = vpop.f32.mrf.mxu0
    %3267 = vmatprep.mubr.f32.mxu0 0.0
    %3268 = vmatmul.mubr.f32.gmra.mxu0 %v3142
    %v3269 = vpop.f32.mrf.mxu0
    %v3270 = vadd.f32 %v927, %v3269
    %v3271 = vpop.f32.mrf.mxu0
    %3272 = vmatprep.mubr.f32.mxu0 0.0
    %3273 = vmatmul.mubr.f32.gmra.mxu0 %v3145
    %v3274 = vpop.f32.mrf.mxu0
    %v3275 = vadd.f32 %v928, %v3274
    %v3276 = vpop.f32.mrf.mxu0
    %3277 = vmatprep.mubr.f32.mxu0 0.0
    %3278 = vmatmul.mubr.f32.gmra.mxu0 %v3148
    %v3279 = vpop.f32.mrf.mxu0
    %v3280 = vadd.f32 %v929, %v3279
    %v3281 = vpop.f32.mrf.mxu0
    %3282 = vmatprep.mubr.f32.mxu0 0.0
    %3283 = vmatmul.mubr.f32.gmra.mxu0 %v3151
    %v3284 = vpop.f32.mrf.mxu0
    %v3285 = vadd.f32 %v930, %v3284
    %v3286 = vpop.f32.mrf.mxu0
    %3287 = vmatprep.mubr.f32.mxu0 0.0
    %3288 = vmatmul.mubr.f32.gmra.mxu0 %v3154
    %v3289 = vpop.f32.mrf.mxu0
    %v3290 = vadd.f32 %v931, %v3289
    %v3291 = vpop.f32.mrf.mxu0
    %3292 = vmatprep.mubr.f32.mxu0 0.0
    %3293 = vmatmul.mubr.f32.gmra.mxu0 %v3157
    %v3294 = vpop.f32.mrf.mxu0
    %v3295 = vadd.f32 %v932, %v3294
    %v3296 = vpop.f32.mrf.mxu0
    %3297 = vmatprep.mubr.f32.mxu0 0.0
    %3298 = vmatmul.mubr.f32.gmra.mxu0 %v3160
    %v3299 = vpop.f32.mrf.mxu0
    %v3300 = vadd.f32 %v933, %v3299
    %v3301 = vpop.f32.mrf.mxu0
    %3302 = vmatprep.mubr.f32.mxu0 0.0
    %3303 = vmatmul.mubr.f32.gmra.mxu0 %v3163
    %v3304 = vpop.f32.mrf.mxu0
    %v3305 = vadd.f32 %v934, %v3304
    %v3306 = vpop.f32.mrf.mxu0
    %3307 = vmatprep.mubr.f32.mxu0 0.0
    %3308 = vmatmul.mubr.f32.gmra.mxu0 %v3166
    %v3309 = vpop.f32.mrf.mxu0
    %v3310 = vadd.f32 %v935, %v3309
    %v3311 = vpop.f32.mrf.mxu0
    %3312 = vdwg.mxu0
    %3313 = vmax.xlane.f32.xlu0 %v3235
    %v3314 = vpop.xlane.xlu0 %3313
    %3315 = vmax.xlane.f32.xlu0 %v3240
    %v3316 = vpop.xlane.xlu0 %3315
    %3317 = vmax.xlane.f32.xlu0 %v3245
    %v3318 = vpop.xlane.xlu0 %3317
    %3319 = vmax.xlane.f32.xlu0 %v3250
    %v3320 = vpop.xlane.xlu0 %3319
    %3321 = vmax.xlane.f32.xlu0 %v3255
    %v3322 = vpop.xlane.xlu0 %3321
    %3323 = vmax.xlane.f32.xlu0 %v3260
    %v3324 = vpop.xlane.xlu0 %3323
    %3325 = vmax.xlane.f32.xlu0 %v3265
    %v3326 = vpop.xlane.xlu0 %3325
    %3327 = vmax.xlane.f32.xlu0 %v3270
    %v3328 = vpop.xlane.xlu0 %3327
    %3329 = vmax.xlane.f32.xlu0 %v3275
    %v3330 = vpop.xlane.xlu0 %3329
    %3331 = vmax.xlane.f32.xlu0 %v3280
    %v3332 = vpop.xlane.xlu0 %3331
    %3333 = vmax.xlane.f32.xlu0 %v3285
    %v3334 = vpop.xlane.xlu0 %3333
    %3335 = vmax.xlane.f32.xlu0 %v3290
    %v3336 = vpop.xlane.xlu0 %3335
    %3337 = vmax.xlane.f32.xlu0 %v3295
    %v3338 = vpop.xlane.xlu0 %3337
    %3339 = vmax.xlane.f32.xlu0 %v3300
    %v3340 = vpop.xlane.xlu0 %3339
    %3341 = vmax.xlane.f32.xlu0 %v3305
    %v3342 = vpop.xlane.xlu0 %3341
    %3343 = vmax.xlane.f32.xlu0 %v3310
    %v3344 = vpop.xlane.xlu0 %3343
    %v3345 = vsub.f32 %v3235, %v3314
    %v3346 = vsub.f32 %v3240, %v3316
    %v3347 = vsub.f32 %v3245, %v3318
    %v3348 = vsub.f32 %v3250, %v3320
    %v3349 = vsub.f32 %v3255, %v3322
    %v3350 = vsub.f32 %v3260, %v3324
    %v3351 = vsub.f32 %v3265, %v3326
    %v3352 = vsub.f32 %v3270, %v3328
    %v3353 = vsub.f32 %v3275, %v3330
    %v3354 = vsub.f32 %v3280, %v3332
    %v3355 = vsub.f32 %v3285, %v3334
    %v3356 = vsub.f32 %v3290, %v3336
    %v3357 = vsub.f32 %v3295, %v3338
    %v3358 = vsub.f32 %v3300, %v3340
    %v3359 = vsub.f32 %v3305, %v3342
    %v3360 = vsub.f32 %v3310, %v3344
    %v3361 = vmul.f32 %v3345, 1.442695
    %v3362 = vpow.pop %v3361
    %v3363 = vmul.f32 %v3346, 1.442695
    %v3364 = vpow.pop %v3363
    %v3365 = vmul.f32 %v3347, 1.442695
    %v3366 = vpow.pop %v3365
    %v3367 = vmul.f32 %v3348, 1.442695
    %v3368 = vpow.pop %v3367
    %v3369 = vmul.f32 %v3349, 1.442695
    %v3370 = vpow.pop %v3369
    %v3371 = vmul.f32 %v3350, 1.442695
    %v3372 = vpow.pop %v3371
    %v3373 = vmul.f32 %v3351, 1.442695
    %v3374 = vpow.pop %v3373
    %v3375 = vmul.f32 %v3352, 1.442695
    %v3376 = vpow.pop %v3375
    %v3377 = vmul.f32 %v3353, 1.442695
    %v3378 = vpow.pop %v3377
    %v3379 = vmul.f32 %v3354, 1.442695
    %v3380 = vpow.pop %v3379
    %v3381 = vmul.f32 %v3355, 1.442695
    %v3382 = vpow.pop %v3381
    %v3383 = vmul.f32 %v3356, 1.442695
    %v3384 = vpow.pop %v3383
    %v3385 = vmul.f32 %v3357, 1.442695
    %v3386 = vpow.pop %v3385
    %v3387 = vmul.f32 %v3358, 1.442695
    %v3388 = vpow.pop %v3387
    %v3389 = vmul.f32 %v3359, 1.442695
    %v3390 = vpow.pop %v3389
    %v3391 = vmul.f32 %v3360, 1.442695
    %v3392 = vpow.pop %v3391
    %3393 = vadd.xlane.f32.xlu0 %v3362
    %v3394 = vpop.xlane.xlu0 %3393
    %3395 = vadd.xlane.f32.xlu0 %v3364
    %v3396 = vpop.xlane.xlu0 %3395
    %3397 = vadd.xlane.f32.xlu0 %v3366
    %v3398 = vpop.xlane.xlu0 %3397
    %3399 = vadd.xlane.f32.xlu0 %v3368
    %v3400 = vpop.xlane.xlu0 %3399
    %3401 = vadd.xlane.f32.xlu0 %v3370
    %v3402 = vpop.xlane.xlu0 %3401
    %3403 = vadd.xlane.f32.xlu0 %v3372
    %v3404 = vpop.xlane.xlu0 %3403
    %3405 = vadd.xlane.f32.xlu0 %v3374
    %v3406 = vpop.xlane.xlu0 %3405
    %3407 = vadd.xlane.f32.xlu0 %v3376
    %v3408 = vpop.xlane.xlu0 %3407
    %3409 = vadd.xlane.f32.xlu0 %v3378
    %v3410 = vpop.xlane.xlu0 %3409
    %3411 = vadd.xlane.f32.xlu0 %v3380
    %v3412 = vpop.xlane.xlu0 %3411
    %3413 = vadd.xlane.f32.xlu0 %v3382
    %v3414 = vpop.xlane.xlu0 %3413
    %3415 = vadd.xlane.f32.xlu0 %v3384
    %v3416 = vpop.xlane.xlu0 %3415
    %3417 = vadd.xlane.f32.xlu0 %v3386
    %v3418 = vpop.xlane.xlu0 %3417
    %3419 = vadd.xlane.f32.xlu0 %v3388
    %v3420 = vpop.xlane.xlu0 %3419
    %3421 = vadd.xlane.f32.xlu0 %v3390
    %v3422 = vpop.xlane.xlu0 %3421
    %3423 = vadd.xlane.f32.xlu0 %v3392
    %v3424 = vpop.xlane.xlu0 %3423
    %v3425 = vrcp.pop %v3394
    %v3426 = vrcp.pop %v3396
    %v3427 = vrcp.pop %v3398
    %v3428 = vrcp.pop %v3400
    %v3429 = vrcp.pop %v3402
    %v3430 = vrcp.pop %v3404
    %v3431 = vrcp.pop %v3406
    %v3432 = vrcp.pop %v3408
    %v3433 = vrcp.pop %v3410
    %v3434 = vrcp.pop %v3412
    %v3435 = vrcp.pop %v3414
    %v3436 = vrcp.pop %v3416
    %v3437 = vrcp.pop %v3418
    %v3438 = vrcp.pop %v3420
    %v3439 = vrcp.pop %v3422
    %v3440 = vrcp.pop %v3424
    %v3441 = vmul.f32 %v3362, %v3425
    %v3442 = vmul.f32 %v3364, %v3426
    %v3443 = vmul.f32 %v3366, %v3427
    %v3444 = vmul.f32 %v3368, %v3428
    %v3445 = vmul.f32 %v3370, %v3429
    %v3446 = vmul.f32 %v3372, %v3430
    %v3447 = vmul.f32 %v3374, %v3431
    %v3448 = vmul.f32 %v3376, %v3432
    %v3449 = vmul.f32 %v3378, %v3433
    %v3450 = vmul.f32 %v3380, %v3434
    %v3451 = vmul.f32 %v3382, %v3435
    %v3452 = vmul.f32 %v3384, %v3436
    %v3453 = vmul.f32 %v3386, %v3437
    %v3454 = vmul.f32 %v3388, %v3438
    %v3455 = vmul.f32 %v3390, %v3439
    %v3456 = vmul.f32 %v3392, %v3440
    %v3457 = vmul.f32 %v1400, %v3103
    %v3458 = vmul.f32 %v1405, %v3103
    %v3459 = vmul.f32 %v1410, %v3103
    %v3460 = vmul.f32 %v1415, %v3103
    %v3461 = vmul.f32 %v1420, %v3103
    %v3462 = vmul.f32 %v1425, %v3103
    %v3463 = vmul.f32 %v1430, %v3103
    %v3464 = vmul.f32 %v1435, %v3103
    %v3465 = vmul.f32 %v1440, %v3103
    %v3466 = vmul.f32 %v1445, %v3103
    %v3467 = vmul.f32 %v1450, %v3103
    %v3468 = vmul.f32 %v1455, %v3103
    %v3469 = vmul.f32 %v1460, %v3103
    %v3470 = vmul.f32 %v1465, %v3103
    %v3471 = vmul.f32 %v1470, %v3103
    %v3472 = vmul.f32 %v1475, %v3103
    %3473 = vmatprep.subr.mxu0 0.0
    %3474 = vmatpush1.msra.mxu0 %v3472
    %3475 = vmatprep.subr.mxu0 0.0
    %3476 = vmatpush1.msra.mxu0 %v3471
    %3477 = vmatprep.subr.mxu0 0.0
    %3478 = vmatpush1.msra.mxu0 %v3470
    %3479 = vmatprep.subr.mxu0 0.0
    %3480 = vmatpush1.msra.mxu0 %v3469
    %3481 = vmatprep.subr.mxu0 0.0
    %3482 = vmatpush1.msra.mxu0 %v3468
    %3483 = vmatprep.subr.mxu0 0.0
    %3484 = vmatpush1.msra.mxu0 %v3467
    %3485 = vmatprep.subr.mxu0 0.0
    %3486 = vmatpush1.msra.mxu0 %v3466
    %3487 = vmatprep.subr.mxu0 0.0
    %3488 = vmatpush1.msra.mxu0 %v3465
    %3489 = vmatprep.subr.mxu0 0.0
    %3490 = vmatpush1.msra.mxu0 %v3464
    %3491 = vmatprep.subr.mxu0 0.0
    %3492 = vmatpush1.msra.mxu0 %v3463
    %3493 = vmatprep.subr.mxu0 0.0
    %3494 = vmatpush1.msra.mxu0 %v3462
    %3495 = vmatprep.subr.mxu0 0.0
    %3496 = vmatpush1.msra.mxu0 %v3461
    %3497 = vmatprep.subr.mxu0 0.0
    %3498 = vmatpush1.msra.mxu0 %v3460
    %3499 = vmatprep.subr.mxu0 0.0
    %3500 = vmatpush1.msra.mxu0 %v3459
    %3501 = vmatprep.subr.mxu0 0.0
    %3502 = vmatpush1.msra.mxu0 %v3458
    %3503 = vmatprep.subr.mxu0 0.0
    %3504 = vmatpush1.msra.mxu0 %v3457
    %3505 = vmatprep.subr.mxu0 0.0
    %3506 = vmatpush2.msra.mxu0 0.0
    %3507 = vmatprep.subr.mxu0 0.0
    %3508 = vmatpush2.msra.mxu0 0.0
    %3509 = vmatprep.subr.mxu0 0.0
    %3510 = vmatpush2.msra.mxu0 0.0
    %3511 = vmatprep.subr.mxu0 0.0
    %3512 = vmatpush2.msra.mxu0 0.0
    %3513 = vmatprep.subr.mxu0 0.0
    %3514 = vmatpush2.msra.mxu0 0.0
    %3515 = vmatprep.subr.mxu0 0.0
    %3516 = vmatpush2.msra.mxu0 0.0
    %3517 = vmatprep.subr.mxu0 0.0
    %3518 = vmatpush2.msra.mxu0 0.0
    %3519 = vmatprep.subr.mxu0 0.0
    %3520 = vmatpush2.msra.mxu0 0.0
    %3521 = vmatprep.subr.mxu0 0.0
    %3522 = vmatpush2.msra.mxu0 0.0
    %3523 = vmatprep.subr.mxu0 0.0
    %3524 = vmatpush2.msra.mxu0 0.0
    %3525 = vmatprep.subr.mxu0 0.0
    %3526 = vmatpush2.msra.mxu0 0.0
    %3527 = vmatprep.subr.mxu0 0.0
    %3528 = vmatpush2.msra.mxu0 0.0
    %3529 = vmatprep.subr.mxu0 0.0
    %3530 = vmatpush2.msra.mxu0 0.0
    %3531 = vmatprep.subr.mxu0 0.0
    %3532 = vmatpush2.msra.mxu0 0.0
    %3533 = vmatprep.subr.mxu0 0.0
    %3534 = vmatpush2.msra.mxu0 0.0
    %3535 = vmatprep.subr.mxu0 0.0
    %3536 = vmatpush2.msra.mxu0 0.0
    %3537 = vmatprep.mubr.f32.mxu0 0.0
    %3538 = vmatmul.mubr.f32.gmra.mxu0 %v3441
    %v3539 = vpop.f32.mrf.mxu0
    %v3540 = vadd.f32 0.0, %v3539
    %v3541 = vpop.f32.mrf.mxu0
    %3542 = vmatprep.mubr.f32.mxu0 0.0
    %3543 = vmatmul.mubr.f32.gmra.mxu0 %v3442
    %v3544 = vpop.f32.mrf.mxu0
    %v3545 = vadd.f32 0.0, %v3544
    %v3546 = vpop.f32.mrf.mxu0
    %3547 = vmatprep.mubr.f32.mxu0 0.0
    %3548 = vmatmul.mubr.f32.gmra.mxu0 %v3443
    %v3549 = vpop.f32.mrf.mxu0
    %v3550 = vadd.f32 0.0, %v3549
    %v3551 = vpop.f32.mrf.mxu0
    %3552 = vmatprep.mubr.f32.mxu0 0.0
    %3553 = vmatmul.mubr.f32.gmra.mxu0 %v3444
    %v3554 = vpop.f32.mrf.mxu0
    %v3555 = vadd.f32 0.0, %v3554
    %v3556 = vpop.f32.mrf.mxu0
    %3557 = vmatprep.mubr.f32.mxu0 0.0
    %3558 = vmatmul.mubr.f32.gmra.mxu0 %v3445
    %v3559 = vpop.f32.mrf.mxu0
    %v3560 = vadd.f32 0.0, %v3559
    %v3561 = vpop.f32.mrf.mxu0
    %3562 = vmatprep.mubr.f32.mxu0 0.0
    %3563 = vmatmul.mubr.f32.gmra.mxu0 %v3446
    %v3564 = vpop.f32.mrf.mxu0
    %v3565 = vadd.f32 0.0, %v3564
    %v3566 = vpop.f32.mrf.mxu0
    %3567 = vmatprep.mubr.f32.mxu0 0.0
    %3568 = vmatmul.mubr.f32.gmra.mxu0 %v3447
    %v3569 = vpop.f32.mrf.mxu0
    %v3570 = vadd.f32 0.0, %v3569
    %v3571 = vpop.f32.mrf.mxu0
    %3572 = vmatprep.mubr.f32.mxu0 0.0
    %3573 = vmatmul.mubr.f32.gmra.mxu0 %v3448
    %v3574 = vpop.f32.mrf.mxu0
    %v3575 = vadd.f32 0.0, %v3574
    %v3576 = vpop.f32.mrf.mxu0
    %3577 = vmatprep.mubr.f32.mxu0 0.0
    %3578 = vmatmul.mubr.f32.gmra.mxu0 %v3449
    %v3579 = vpop.f32.mrf.mxu0
    %v3580 = vadd.f32 0.0, %v3579
    %v3581 = vpop.f32.mrf.mxu0
    %3582 = vmatprep.mubr.f32.mxu0 0.0
    %3583 = vmatmul.mubr.f32.gmra.mxu0 %v3450
    %v3584 = vpop.f32.mrf.mxu0
    %v3585 = vadd.f32 0.0, %v3584
    %v3586 = vpop.f32.mrf.mxu0
    %3587 = vmatprep.mubr.f32.mxu0 0.0
    %3588 = vmatmul.mubr.f32.gmra.mxu0 %v3451
    %v3589 = vpop.f32.mrf.mxu0
    %v3590 = vadd.f32 0.0, %v3589
    %v3591 = vpop.f32.mrf.mxu0
    %3592 = vmatprep.mubr.f32.mxu0 0.0
    %3593 = vmatmul.mubr.f32.gmra.mxu0 %v3452
    %v3594 = vpop.f32.mrf.mxu0
    %v3595 = vadd.f32 0.0, %v3594
    %v3596 = vpop.f32.mrf.mxu0
    %3597 = vmatprep.mubr.f32.mxu0 0.0
    %3598 = vmatmul.mubr.f32.gmra.mxu0 %v3453
    %v3599 = vpop.f32.mrf.mxu0
    %v3600 = vadd.f32 0.0, %v3599
    %v3601 = vpop.f32.mrf.mxu0
    %3602 = vmatprep.mubr.f32.mxu0 0.0
    %3603 = vmatmul.mubr.f32.gmra.mxu0 %v3454
    %v3604 = vpop.f32.mrf.mxu0
    %v3605 = vadd.f32 0.0, %v3604
    %v3606 = vpop.f32.mrf.mxu0
    %3607 = vmatprep.mubr.f32.mxu0 0.0
    %3608 = vmatmul.mubr.f32.gmra.mxu0 %v3455
    %v3609 = vpop.f32.mrf.mxu0
    %v3610 = vadd.f32 0.0, %v3609
    %v3611 = vpop.f32.mrf.mxu0
    %3612 = vmatprep.mubr.f32.mxu0 0.0
    %3613 = vmatmul.mubr.f32.gmra.mxu0 %v3456
    %v3614 = vpop.f32.mrf.mxu0
    %v3615 = vadd.f32 0.0, %v3614
    %v3616 = vpop.f32.mrf.mxu0
    %3617 = vdwg.mxu0
    %v3618 = vadd.f32 %v3083, %v3540
    %v3619 = vadd.f32 %v3084, %v3545
    %v3620 = vadd.f32 %v3085, %v3550
    %v3621 = vadd.f32 %v3086, %v3555
    %v3622 = vadd.f32 %v3087, %v3560
    %v3623 = vadd.f32 %v3088, %v3565
    %v3624 = vadd.f32 %v3089, %v3570
    %v3625 = vadd.f32 %v3090, %v3575
    %v3626 = vadd.f32 %v3091, %v3580
    %v3627 = vadd.f32 %v3092, %v3585
    %v3628 = vadd.f32 %v3093, %v3590
    %v3629 = vadd.f32 %v3094, %v3595
    %v3630 = vadd.f32 %v3095, %v3600
    %v3631 = vadd.f32 %v3096, %v3605
    %v3632 = vadd.f32 %v3097, %v3610
    %v3633 = vadd.f32 %v3098, %v3615
    %v3634 = vlaneseq
    %v3635 = vshrl.u32 %v3634, 7
    %v3636 = vsub.s32 3, %v3635
    %v3637 = vrot.slane %v964, %v3636
    %v3639 = vsel %vm970, %v3618, 0
    %v3642 = vsel %vm970, %v3619, 0
    %v3645 = vsel %vm970, %v3620, 0
    %v3648 = vsel %vm970, %v3621, 0
    %v3651 = vsel %vm970, %v3622, 0
    %v3654 = vsel %vm970, %v3623, 0
    %v3657 = vsel %vm970, %v3624, 0
    %v3660 = vsel %vm970, %v3625, 0
    %v3663 = vsel %vm970, %v3626, 0
    %v3666 = vsel %vm970, %v3627, 0
    %v3669 = vsel %vm970, %v3628, 0
    %v3672 = vsel %vm970, %v3629, 0
    %v3675 = vsel %vm970, %v3630, 0
    %v3678 = vsel %vm970, %v3631, 0
    %v3681 = vsel %vm970, %v3632, 0
    %v3684 = vsel %vm970, %v3633, 0
    %3686 = vmatprep.subr.mxu0 0.0
    %3687 = vmatpush1.msra.mxu0 0.0
    %3688 = vmatprep.subr.mxu0 0.0
    %3689 = vmatpush1.msra.mxu0 0.0
    %3690 = vmatprep.subr.mxu0 0.0
    %3691 = vmatpush1.msra.mxu0 0.0
    %3692 = vmatprep.subr.mxu0 0.0
    %3693 = vmatpush1.msra.mxu0 0.0
    %3694 = vmatprep.subr.mxu0 0.0
    %3695 = vmatpush1.msra.mxu0 0.0
    %3696 = vmatprep.subr.mxu0 0.0
    %3697 = vmatpush1.msra.mxu0 0.0
    %3698 = vmatprep.subr.mxu0 0.0
    %3699 = vmatpush1.msra.mxu0 0.0
    %3700 = vmatprep.subr.mxu0 0.0
    %3701 = vmatpush1.msra.mxu0 0.0
    %3702 = vmatprep.subr.mxu0 0.0
    %3703 = vmatpush1.msra.mxu0 0.0
    %3704 = vmatprep.subr.mxu0 0.0
    %3705 = vmatpush1.msra.mxu0 0.0
    %3706 = vmatprep.subr.mxu0 0.0
    %3707 = vmatpush1.msra.mxu0 0.0
    %3708 = vmatprep.subr.mxu0 0.0
    %3709 = vmatpush1.msra.mxu0 0.0
    %3710 = vmatprep.subr.mxu0 0.0
    %3711 = vmatpush1.msra.mxu0 %v954
    %3712 = vmatprep.subr.mxu0 0.0
    %3713 = vmatpush1.msra.mxu0 %v949
    %3714 = vmatprep.subr.mxu0 0.0
    %3715 = vmatpush1.msra.mxu0 %v944
    %3716 = vmatprep.subr.mxu0 0.0
    %3717 = vmatpush1.msra.mxu0 %v939
    %3718 = vmatprep.subr.mxu0 0.0
    %3719 = vmatpush2.msra.mxu0 0.0
    %3720 = vmatprep.subr.mxu0 0.0
    %3721 = vmatpush2.msra.mxu0 0.0
    %3722 = vmatprep.subr.mxu0 0.0
    %3723 = vmatpush2.msra.mxu0 0.0
    %3724 = vmatprep.subr.mxu0 0.0
    %3725 = vmatpush2.msra.mxu0 0.0
    %3726 = vmatprep.subr.mxu0 0.0
    %3727 = vmatpush2.msra.mxu0 0.0
    %3728 = vmatprep.subr.mxu0 0.0
    %3729 = vmatpush2.msra.mxu0 0.0
    %3730 = vmatprep.subr.mxu0 0.0
    %3731 = vmatpush2.msra.mxu0 0.0
    %3732 = vmatprep.subr.mxu0 0.0
    %3733 = vmatpush2.msra.mxu0 0.0
    %3734 = vmatprep.subr.mxu0 0.0
    %3735 = vmatpush2.msra.mxu0 0.0
    %3736 = vmatprep.subr.mxu0 0.0
    %3737 = vmatpush2.msra.mxu0 0.0
    %3738 = vmatprep.subr.mxu0 0.0
    %3739 = vmatpush2.msra.mxu0 0.0
    %3740 = vmatprep.subr.mxu0 0.0
    %3741 = vmatpush2.msra.mxu0 0.0
    %3742 = vmatprep.subr.mxu0 0.0
    %3743 = vmatpush2.msra.mxu0 0.0
    %3744 = vmatprep.subr.mxu0 0.0
    %3745 = vmatpush2.msra.mxu0 0.0
    %3746 = vmatprep.subr.mxu0 0.0
    %3747 = vmatpush2.msra.mxu0 0.0
    %3748 = vmatprep.subr.mxu0 0.0
    %3749 = vmatpush2.msra.mxu0 0.0
    %3750 = vmatprep.mubr.f32.mxu0 0.0
    %3751 = vmatmul.mubr.f32.gmra.mxu0 %v3639
    %v3752 = vpop.f32.mrf.mxu0
    %v3753 = vadd.f32 %v3637, %v3752
    %v3754 = vpop.f32.mrf.mxu0
    %3755 = vmatprep.mubr.f32.mxu0 0.0
    %3756 = vmatmul.mubr.f32.gmra.mxu0 %v3642
    %v3757 = vpop.f32.mrf.mxu0
    %v3758 = vadd.f32 %v3637, %v3757
    %v3759 = vpop.f32.mrf.mxu0
    %3760 = vmatprep.mubr.f32.mxu0 0.0
    %3761 = vmatmul.mubr.f32.gmra.mxu0 %v3645
    %v3762 = vpop.f32.mrf.mxu0
    %v3763 = vadd.f32 %v3637, %v3762
    %v3764 = vpop.f32.mrf.mxu0
    %3765 = vmatprep.mubr.f32.mxu0 0.0
    %3766 = vmatmul.mubr.f32.gmra.mxu0 %v3648
    %v3767 = vpop.f32.mrf.mxu0
    %v3768 = vadd.f32 %v3637, %v3767
    %v3769 = vpop.f32.mrf.mxu0
    %3770 = vmatprep.mubr.f32.mxu0 0.0
    %3771 = vmatmul.mubr.f32.gmra.mxu0 %v3651
    %v3772 = vpop.f32.mrf.mxu0
    %v3773 = vadd.f32 %v3637, %v3772
    %v3774 = vpop.f32.mrf.mxu0
    %3775 = vmatprep.mubr.f32.mxu0 0.0
    %3776 = vmatmul.mubr.f32.gmra.mxu0 %v3654
    %v3777 = vpop.f32.mrf.mxu0
    %v3778 = vadd.f32 %v3637, %v3777
    %v3779 = vpop.f32.mrf.mxu0
    %3780 = vmatprep.mubr.f32.mxu0 0.0
    %3781 = vmatmul.mubr.f32.gmra.mxu0 %v3657
    %v3782 = vpop.f32.mrf.mxu0
    %v3783 = vadd.f32 %v3637, %v3782
    %v3784 = vpop.f32.mrf.mxu0
    %3785 = vmatprep.mubr.f32.mxu0 0.0
    %3786 = vmatmul.mubr.f32.gmra.mxu0 %v3660
    %v3787 = vpop.f32.mrf.mxu0
    %v3788 = vadd.f32 %v3637, %v3787
    %v3789 = vpop.f32.mrf.mxu0
    %3790 = vmatprep.mubr.f32.mxu0 0.0
    %3791 = vmatmul.mubr.f32.gmra.mxu0 %v3663
    %v3792 = vpop.f32.mrf.mxu0
    %v3793 = vadd.f32 %v3637, %v3792
    %v3794 = vpop.f32.mrf.mxu0
    %3795 = vmatprep.mubr.f32.mxu0 0.0
    %3796 = vmatmul.mubr.f32.gmra.mxu0 %v3666
    %v3797 = vpop.f32.mrf.mxu0
    %v3798 = vadd.f32 %v3637, %v3797
    %v3799 = vpop.f32.mrf.mxu0
    %3800 = vmatprep.mubr.f32.mxu0 0.0
    %3801 = vmatmul.mubr.f32.gmra.mxu0 %v3669
    %v3802 = vpop.f32.mrf.mxu0
    %v3803 = vadd.f32 %v3637, %v3802
    %v3804 = vpop.f32.mrf.mxu0
    %3805 = vmatprep.mubr.f32.mxu0 0.0
    %3806 = vmatmul.mubr.f32.gmra.mxu0 %v3672
    %v3807 = vpop.f32.mrf.mxu0
    %v3808 = vadd.f32 %v3637, %v3807
    %v3809 = vpop.f32.mrf.mxu0
    %3810 = vmatprep.mubr.f32.mxu0 0.0
    %3811 = vmatmul.mubr.f32.gmra.mxu0 %v3675
    %v3812 = vpop.f32.mrf.mxu0
    %v3813 = vadd.f32 %v3637, %v3812
    %v3814 = vpop.f32.mrf.mxu0
    %3815 = vmatprep.mubr.f32.mxu0 0.0
    %3816 = vmatmul.mubr.f32.gmra.mxu0 %v3678
    %v3817 = vpop.f32.mrf.mxu0
    %v3818 = vadd.f32 %v3637, %v3817
    %v3819 = vpop.f32.mrf.mxu0
    %3820 = vmatprep.mubr.f32.mxu0 0.0
    %3821 = vmatmul.mubr.f32.gmra.mxu0 %v3681
    %v3822 = vpop.f32.mrf.mxu0
    %v3823 = vadd.f32 %v3637, %v3822
    %v3824 = vpop.f32.mrf.mxu0
    %3825 = vmatprep.mubr.f32.mxu0 0.0
    %3826 = vmatmul.mubr.f32.gmra.mxu0 %v3684
    %v3827 = vpop.f32.mrf.mxu0
    %v3828 = vadd.f32 %v3637, %v3827
    %v3829 = vpop.f32.mrf.mxu0
    %3830 = vdwg.mxu0
    %v3831 = vadd.f32 %v344, %v3753
    %v3832 = vadd.f32 %v349, %v3758
    %v3833 = vadd.f32 %v354, %v3763
    %v3834 = vadd.f32 %v359, %v3768
    %v3835 = vadd.f32 %v364, %v3773
    %v3836 = vadd.f32 %v369, %v3778
    %v3837 = vadd.f32 %v374, %v3783
    %v3838 = vadd.f32 %v379, %v3788
    %v3839 = vadd.f32 %v384, %v3793
    %v3840 = vadd.f32 %v389, %v3798
    %v3841 = vadd.f32 %v394, %v3803
    %v3842 = vadd.f32 %v399, %v3808
    %v3843 = vadd.f32 %v404, %v3813
    %v3844 = vadd.f32 %v409, %v3818
    %v3845 = vadd.f32 %v414, %v3823
    %v3846 = vadd.f32 %v419, %v3828
    %v3847 = vsel %vm970, %v3831, 0.0
    %3848 = vadd.xlane.f32.xlu0 %v3847
    %v3849 = vpop.xlane.xlu0 %3848
    %v3850 = vsel %vm970, %v3832, 0.0
    %3851 = vadd.xlane.f32.xlu0 %v3850
    %v3852 = vpop.xlane.xlu0 %3851
    %v3853 = vsel %vm970, %v3833, 0.0
    %3854 = vadd.xlane.f32.xlu0 %v3853
    %v3855 = vpop.xlane.xlu0 %3854
    %v3856 = vsel %vm970, %v3834, 0.0
    %3857 = vadd.xlane.f32.xlu0 %v3856
    %v3858 = vpop.xlane.xlu0 %3857
    %v3859 = vsel %vm970, %v3835, 0.0
    %3860 = vadd.xlane.f32.xlu0 %v3859
    %v3861 = vpop.xlane.xlu0 %3860
    %v3862 = vsel %vm970, %v3836, 0.0
    %3863 = vadd.xlane.f32.xlu0 %v3862
    %v3864 = vpop.xlane.xlu0 %3863
    %v3865 = vsel %vm970, %v3837, 0.0
    %3866 = vadd.xlane.f32.xlu0 %v3865
    %v3867 = vpop.xlane.xlu0 %3866
    %v3868 = vsel %vm970, %v3838, 0.0
    %3869 = vadd.xlane.f32.xlu0 %v3868
    %v3870 = vpop.xlane.xlu0 %3869
    %v3871 = vsel %vm970, %v3839, 0.0
    %3872 = vadd.xlane.f32.xlu0 %v3871
    %v3873 = vpop.xlane.xlu0 %3872
    %v3874 = vsel %vm970, %v3840, 0.0
    %3875 = vadd.xlane.f32.xlu0 %v3874
    %v3876 = vpop.xlane.xlu0 %3875
    %v3877 = vsel %vm970, %v3841, 0.0
    %3878 = vadd.xlane.f32.xlu0 %v3877
    %v3879 = vpop.xlane.xlu0 %3878
    %v3880 = vsel %vm970, %v3842, 0.0
    %3881 = vadd.xlane.f32.xlu0 %v3880
    %v3882 = vpop.xlane.xlu0 %3881
    %v3883 = vsel %vm970, %v3843, 0.0
    %3884 = vadd.xlane.f32.xlu0 %v3883
    %v3885 = vpop.xlane.xlu0 %3884
    %v3886 = vsel %vm970, %v3844, 0.0
    %3887 = vadd.xlane.f32.xlu0 %v3886
    %v3888 = vpop.xlane.xlu0 %3887
    %v3889 = vsel %vm970, %v3845, 0.0
    %3890 = vadd.xlane.f32.xlu0 %v3889
    %v3891 = vpop.xlane.xlu0 %3890
    %v3892 = vsel %vm970, %v3846, 0.0
    %3893 = vadd.xlane.f32.xlu0 %v3892
    %v3894 = vpop.xlane.xlu0 %3893
    %v3895 = vrcp.pop 32.0
    %v3896 = vmul.f32 %v3849, %v3895
    %v3897 = vmul.f32 %v3852, %v3895
    %v3898 = vmul.f32 %v3855, %v3895
    %v3899 = vmul.f32 %v3858, %v3895
    %v3900 = vmul.f32 %v3861, %v3895
    %v3901 = vmul.f32 %v3864, %v3895
    %v3902 = vmul.f32 %v3867, %v3895
    %v3903 = vmul.f32 %v3870, %v3895
    %v3904 = vmul.f32 %v3873, %v3895
    %v3905 = vmul.f32 %v3876, %v3895
    %v3906 = vmul.f32 %v3879, %v3895
    %v3907 = vmul.f32 %v3882, %v3895
    %v3908 = vmul.f32 %v3885, %v3895
    %v3909 = vmul.f32 %v3888, %v3895
    %v3910 = vmul.f32 %v3891, %v3895
    %v3911 = vmul.f32 %v3894, %v3895
    %v3912 = vsub.f32 %v3831, %v3896
    %v3913 = vsub.f32 %v3832, %v3897
    %v3914 = vsub.f32 %v3833, %v3898
    %v3915 = vsub.f32 %v3834, %v3899
    %v3916 = vsub.f32 %v3835, %v3900
    %v3917 = vsub.f32 %v3836, %v3901
    %v3918 = vsub.f32 %v3837, %v3902
    %v3919 = vsub.f32 %v3838, %v3903
    %v3920 = vsub.f32 %v3839, %v3904
    %v3921 = vsub.f32 %v3840, %v3905
    %v3922 = vsub.f32 %v3841, %v3906
    %v3923 = vsub.f32 %v3842, %v3907
    %v3924 = vsub.f32 %v3843, %v3908
    %v3925 = vsub.f32 %v3844, %v3909
    %v3926 = vsub.f32 %v3845, %v3910
    %v3927 = vsub.f32 %v3846, %v3911
    %v3928 = vmul.f32 %v3912, %v3912
    %v3929 = vmul.f32 %v3913, %v3913
    %v3930 = vmul.f32 %v3914, %v3914
    %v3931 = vmul.f32 %v3915, %v3915
    %v3932 = vmul.f32 %v3916, %v3916
    %v3933 = vmul.f32 %v3917, %v3917
    %v3934 = vmul.f32 %v3918, %v3918
    %v3935 = vmul.f32 %v3919, %v3919
    %v3936 = vmul.f32 %v3920, %v3920
    %v3937 = vmul.f32 %v3921, %v3921
    %v3938 = vmul.f32 %v3922, %v3922
    %v3939 = vmul.f32 %v3923, %v3923
    %v3940 = vmul.f32 %v3924, %v3924
    %v3941 = vmul.f32 %v3925, %v3925
    %v3942 = vmul.f32 %v3926, %v3926
    %v3943 = vmul.f32 %v3927, %v3927
    %v3944 = vsel %vm970, %v3928, 0.0
    %3945 = vadd.xlane.f32.xlu0 %v3944
    %v3946 = vpop.xlane.xlu0 %3945
    %v3947 = vsel %vm970, %v3929, 0.0
    %3948 = vadd.xlane.f32.xlu0 %v3947
    %v3949 = vpop.xlane.xlu0 %3948
    %v3950 = vsel %vm970, %v3930, 0.0
    %3951 = vadd.xlane.f32.xlu0 %v3950
    %v3952 = vpop.xlane.xlu0 %3951
    %v3953 = vsel %vm970, %v3931, 0.0
    %3954 = vadd.xlane.f32.xlu0 %v3953
    %v3955 = vpop.xlane.xlu0 %3954
    %v3956 = vsel %vm970, %v3932, 0.0
    %3957 = vadd.xlane.f32.xlu0 %v3956
    %v3958 = vpop.xlane.xlu0 %3957
    %v3959 = vsel %vm970, %v3933, 0.0
    %3960 = vadd.xlane.f32.xlu0 %v3959
    %v3961 = vpop.xlane.xlu0 %3960
    %v3962 = vsel %vm970, %v3934, 0.0
    %3963 = vadd.xlane.f32.xlu0 %v3962
    %v3964 = vpop.xlane.xlu0 %3963
    %v3965 = vsel %vm970, %v3935, 0.0
    %3966 = vadd.xlane.f32.xlu0 %v3965
    %v3967 = vpop.xlane.xlu0 %3966
    %v3968 = vsel %vm970, %v3936, 0.0
    %3969 = vadd.xlane.f32.xlu0 %v3968
    %v3970 = vpop.xlane.xlu0 %3969
    %v3971 = vsel %vm970, %v3937, 0.0
    %3972 = vadd.xlane.f32.xlu0 %v3971
    %v3973 = vpop.xlane.xlu0 %3972
    %v3974 = vsel %vm970, %v3938, 0.0
    %3975 = vadd.xlane.f32.xlu0 %v3974
    %v3976 = vpop.xlane.xlu0 %3975
    %v3977 = vsel %vm970, %v3939, 0.0
    %3978 = vadd.xlane.f32.xlu0 %v3977
    %v3979 = vpop.xlane.xlu0 %3978
    %v3980 = vsel %vm970, %v3940, 0.0
    %3981 = vadd.xlane.f32.xlu0 %v3980
    %v3982 = vpop.xlane.xlu0 %3981
    %v3983 = vsel %vm970, %v3941, 0.0
    %3984 = vadd.xlane.f32.xlu0 %v3983
    %v3985 = vpop.xlane.xlu0 %3984
    %v3986 = vsel %vm970, %v3942, 0.0
    %3987 = vadd.xlane.f32.xlu0 %v3986
    %v3988 = vpop.xlane.xlu0 %3987
    %v3989 = vsel %vm970, %v3943, 0.0
    %3990 = vadd.xlane.f32.xlu0 %v3989
    %v3991 = vpop.xlane.xlu0 %3990
    %v3992 = vmul.f32 %v3946, %v3895
    %v3993 = vmul.f32 %v3949, %v3895
    %v3994 = vmul.f32 %v3952, %v3895
    %v3995 = vmul.f32 %v3955, %v3895
    %v3996 = vmul.f32 %v3958, %v3895
    %v3997 = vmul.f32 %v3961, %v3895
    %v3998 = vmul.f32 %v3964, %v3895
    %v3999 = vmul.f32 %v3967, %v3895
    %v4000 = vmul.f32 %v3970, %v3895
    %v4001 = vmul.f32 %v3973, %v3895
    %v4002 = vmul.f32 %v3976, %v3895
    %v4003 = vmul.f32 %v3979, %v3895
    %v4004 = vmul.f32 %v3982, %v3895
    %v4005 = vmul.f32 %v3985, %v3895
    %v4006 = vmul.f32 %v3988, %v3895
    %v4007 = vmul.f32 %v3991, %v3895
    %v4008 = vadd.f32 %v3992, 1e-05
    %v4009 = vadd.f32 %v3993, 1e-05
    %v4010 = vadd.f32 %v3994, 1e-05
    %v4011 = vadd.f32 %v3995, 1e-05
    %v4012 = vadd.f32 %v3996, 1e-05
    %v4013 = vadd.f32 %v3997, 1e-05
    %v4014 = vadd.f32 %v3998, 1e-05
    %v4015 = vadd.f32 %v3999, 1e-05
    %v4016 = vadd.f32 %v4000, 1e-05
    %v4017 = vadd.f32 %v4001, 1e-05
    %v4018 = vadd.f32 %v4002, 1e-05
    %v4019 = vadd.f32 %v4003, 1e-05
    %v4020 = vadd.f32 %v4004, 1e-05
    %v4021 = vadd.f32 %v4005, 1e-05
    %v4022 = vadd.f32 %v4006, 1e-05
    %v4023 = vadd.f32 %v4007, 1e-05
    %v4024 = vrsqrt.pop %v4008
    %v4025 = vrsqrt.pop %v4009
    %v4026 = vrsqrt.pop %v4010
    %v4027 = vrsqrt.pop %v4011
    %v4028 = vrsqrt.pop %v4012
    %v4029 = vrsqrt.pop %v4013
    %v4030 = vrsqrt.pop %v4014
    %v4031 = vrsqrt.pop %v4015
    %v4032 = vrsqrt.pop %v4016
    %v4033 = vrsqrt.pop %v4017
    %v4034 = vrsqrt.pop %v4018
    %v4035 = vrsqrt.pop %v4019
    %v4036 = vrsqrt.pop %v4020
    %v4037 = vrsqrt.pop %v4021
    %v4038 = vrsqrt.pop %v4022
    %v4039 = vrsqrt.pop %v4023
    %v4040 = vmul.f32 %v3912, %v4024
    %v4041 = vmul.f32 %v3913, %v4025
    %v4042 = vmul.f32 %v3914, %v4026
    %v4043 = vmul.f32 %v3915, %v4027
    %v4044 = vmul.f32 %v3916, %v4028
    %v4045 = vmul.f32 %v3917, %v4029
    %v4046 = vmul.f32 %v3918, %v4030
    %v4047 = vmul.f32 %v3919, %v4031
    %v4048 = vmul.f32 %v3920, %v4032
    %v4049 = vmul.f32 %v3921, %v4033
    %v4050 = vmul.f32 %v3922, %v4034
    %v4051 = vmul.f32 %v3923, %v4035
    %v4052 = vmul.f32 %v3924, %v4036
    %v4053 = vmul.f32 %v3925, %v4037
    %v4054 = vmul.f32 %v3926, %v4038
    %v4055 = vmul.f32 %v3927, %v4039
    %v4056 = vlaneseq
    %v4057 = vshrl.u32 %v4056, 7
    %v4058 = vsub.s32 6, %v4057
    %v4059 = vrot.slane %v964, %v4058
    %v4060 = vmul.f32 %v4040, %v4059
    %v4061 = vmul.f32 %v4041, %v4059
    %v4062 = vmul.f32 %v4042, %v4059
    %v4063 = vmul.f32 %v4043, %v4059
    %v4064 = vmul.f32 %v4044, %v4059
    %v4065 = vmul.f32 %v4045, %v4059
    %v4066 = vmul.f32 %v4046, %v4059
    %v4067 = vmul.f32 %v4047, %v4059
    %v4068 = vmul.f32 %v4048, %v4059
    %v4069 = vmul.f32 %v4049, %v4059
    %v4070 = vmul.f32 %v4050, %v4059
    %v4071 = vmul.f32 %v4051, %v4059
    %v4072 = vmul.f32 %v4052, %v4059
    %v4073 = vmul.f32 %v4053, %v4059
    %v4074 = vmul.f32 %v4054, %v4059
    %v4075 = vmul.f32 %v4055, %v4059
    %v4076 = vlaneseq
    %v4077 = vshrl.u32 %v4076, 7
    %v4078 = vsub.s32 7, %v4077
    %v4079 = vrot.slane %v964, %v4078
    %v4080 = vadd.f32 %v4060, %v4079
    %v4081 = vadd.f32 %v4061, %v4079
    %v4082 = vadd.f32 %v4062, %v4079
    %v4083 = vadd.f32 %v4063, %v4079
    %v4084 = vadd.f32 %v4064, %v4079
    %v4085 = vadd.f32 %v4065, %v4079
    %v4086 = vadd.f32 %v4066, %v4079
    %v4087 = vadd.f32 %v4067, %v4079
    %v4088 = vadd.f32 %v4068, %v4079
    %v4089 = vadd.f32 %v4069, %v4079
    %v4090 = vadd.f32 %v4070, %v4079
    %v4091 = vadd.f32 %v4071, %v4079
    %v4092 = vadd.f32 %v4072, %v4079
    %v4093 = vadd.f32 %v4073, %v4079
    %v4094 = vadd.f32 %v4074, %v4079
    %v4095 = vadd.f32 %v4075, %v4079
    %v4096 = vlaneseq
    %v4097 = vshrl.u32 %v4096, 7
    %v4098 = vsub.s32 4, %v4097
    %v4099 = vrot.slane %v964, %v4098
    %v4101 = vsel %vm970, %v4080, 0
    %v4104 = vsel %vm970, %v4081, 0
    %v4107 = vsel %vm970, %v4082, 0
    %v4110 = vsel %vm970, %v4083, 0
    %v4113 = vsel %vm970, %v4084, 0
    %v4116 = vsel %vm970, %v4085, 0
    %v4119 = vsel %vm970, %v4086, 0
    %v4122 = vsel %vm970, %v4087, 0
    %v4125 = vsel %vm970, %v4088, 0
    %v4128 = vsel %vm970, %v4089, 0
    %v4131 = vsel %vm970, %v4090, 0
    %v4134 = vsel %vm970, %v4091, 0
    %v4137 = vsel %vm970, %v4092, 0
    %v4140 = vsel %vm970, %v4093, 0
    %v4143 = vsel %vm970, %v4094, 0
    %v4146 = vsel %vm970, %v4095, 0
    %4148 = vmatprep.subr.mxu0 0.0
    %4149 = vmatpush1.msra.mxu0 0.0
    %4150 = vmatprep.subr.mxu0 0.0
    %4151 = vmatpush1.msra.mxu0 0.0
    %4152 = vmatprep.subr.mxu0 0.0
    %4153 = vmatpush1.msra.mxu0 0.0
    %4154 = vmatprep.subr.mxu0 0.0
    %4155 = vmatpush1.msra.mxu0 0.0
    %4156 = vmatprep.subr.mxu0 0.0
    %4157 = vmatpush1.msra.mxu0 0.0
    %4158 = vmatprep.subr.mxu0 0.0
    %4159 = vmatpush1.msra.mxu0 0.0
    %4160 = vmatprep.subr.mxu0 0.0
    %4161 = vmatpush1.msra.mxu0 0.0
    %4162 = vmatprep.subr.mxu0 0.0
    %4163 = vmatpush1.msra.mxu0 0.0
    %4164 = vmatprep.subr.mxu0 0.0
    %4165 = vmatpush1.msra.mxu0 0.0
    %4166 = vmatprep.subr.mxu0 0.0
    %4167 = vmatpush1.msra.mxu0 0.0
    %4168 = vmatprep.subr.mxu0 0.0
    %4169 = vmatpush1.msra.mxu0 0.0
    %4170 = vmatprep.subr.mxu0 0.0
    %4171 = vmatpush1.msra.mxu0 0.0
    %4172 = vmatprep.subr.mxu0 0.0
    %4173 = vmatpush1.msra.mxu0 %v955
    %4174 = vmatprep.subr.mxu0 0.0
    %4175 = vmatpush1.msra.mxu0 %v950
    %4176 = vmatprep.subr.mxu0 0.0
    %4177 = vmatpush1.msra.mxu0 %v945
    %4178 = vmatprep.subr.mxu0 0.0
    %4179 = vmatpush1.msra.mxu0 %v940
    %4180 = vmatprep.subr.mxu0 0.0
    %4181 = vmatpush2.msra.mxu0 0.0
    %4182 = vmatprep.subr.mxu0 0.0
    %4183 = vmatpush2.msra.mxu0 0.0
    %4184 = vmatprep.subr.mxu0 0.0
    %4185 = vmatpush2.msra.mxu0 0.0
    %4186 = vmatprep.subr.mxu0 0.0
    %4187 = vmatpush2.msra.mxu0 0.0
    %4188 = vmatprep.subr.mxu0 0.0
    %4189 = vmatpush2.msra.mxu0 0.0
    %4190 = vmatprep.subr.mxu0 0.0
    %4191 = vmatpush2.msra.mxu0 0.0
    %4192 = vmatprep.subr.mxu0 0.0
    %4193 = vmatpush2.msra.mxu0 0.0
    %4194 = vmatprep.subr.mxu0 0.0
    %4195 = vmatpush2.msra.mxu0 0.0
    %4196 = vmatprep.subr.mxu0 0.0
    %4197 = vmatpush2.msra.mxu0 0.0
    %4198 = vmatprep.subr.mxu0 0.0
    %4199 = vmatpush2.msra.mxu0 0.0
    %4200 = vmatprep.subr.mxu0 0.0
    %4201 = vmatpush2.msra.mxu0 0.0
    %4202 = vmatprep.subr.mxu0 0.0
    %4203 = vmatpush2.msra.mxu0 0.0
    %4204 = vmatprep.subr.mxu0 0.0
    %4205 = vmatpush2.msra.mxu0 0.0
    %4206 = vmatprep.subr.mxu0 0.0
    %4207 = vmatpush2.msra.mxu0 0.0
    %4208 = vmatprep.subr.mxu0 0.0
    %4209 = vmatpush2.msra.mxu0 0.0
    %4210 = vmatprep.subr.mxu0 0.0
    %4211 = vmatpush2.msra.mxu0 0.0
    %4212 = vmatprep.mubr.f32.mxu0 0.0
    %4213 = vmatmul.mubr.f32.gmra.mxu0 %v4101
    %v4214 = vpop.f32.mrf.mxu0
    %v4215 = vadd.f32 %v4099, %v4214
    %v4216 = vpop.f32.mrf.mxu0
    %4217 = vmatprep.mubr.f32.mxu0 0.0
    %4218 = vmatmul.mubr.f32.gmra.mxu0 %v4104
    %v4219 = vpop.f32.mrf.mxu0
    %v4220 = vadd.f32 %v4099, %v4219
    %v4221 = vpop.f32.mrf.mxu0
    %4222 = vmatprep.mubr.f32.mxu0 0.0
    %4223 = vmatmul.mubr.f32.gmra.mxu0 %v4107
    %v4224 = vpop.f32.mrf.mxu0
    %v4225 = vadd.f32 %v4099, %v4224
    %v4226 = vpop.f32.mrf.mxu0
    %4227 = vmatprep.mubr.f32.mxu0 0.0
    %4228 = vmatmul.mubr.f32.gmra.mxu0 %v4110
    %v4229 = vpop.f32.mrf.mxu0
    %v4230 = vadd.f32 %v4099, %v4229
    %v4231 = vpop.f32.mrf.mxu0
    %4232 = vmatprep.mubr.f32.mxu0 0.0
    %4233 = vmatmul.mubr.f32.gmra.mxu0 %v4113
    %v4234 = vpop.f32.mrf.mxu0
    %v4235 = vadd.f32 %v4099, %v4234
    %v4236 = vpop.f32.mrf.mxu0
    %4237 = vmatprep.mubr.f32.mxu0 0.0
    %4238 = vmatmul.mubr.f32.gmra.mxu0 %v4116
    %v4239 = vpop.f32.mrf.mxu0
    %v4240 = vadd.f32 %v4099, %v4239
    %v4241 = vpop.f32.mrf.mxu0
    %4242 = vmatprep.mubr.f32.mxu0 0.0
    %4243 = vmatmul.mubr.f32.gmra.mxu0 %v4119
    %v4244 = vpop.f32.mrf.mxu0
    %v4245 = vadd.f32 %v4099, %v4244
    %v4246 = vpop.f32.mrf.mxu0
    %4247 = vmatprep.mubr.f32.mxu0 0.0
    %4248 = vmatmul.mubr.f32.gmra.mxu0 %v4122
    %v4249 = vpop.f32.mrf.mxu0
    %v4250 = vadd.f32 %v4099, %v4249
    %v4251 = vpop.f32.mrf.mxu0
    %4252 = vmatprep.mubr.f32.mxu0 0.0
    %4253 = vmatmul.mubr.f32.gmra.mxu0 %v4125
    %v4254 = vpop.f32.mrf.mxu0
    %v4255 = vadd.f32 %v4099, %v4254
    %v4256 = vpop.f32.mrf.mxu0
    %4257 = vmatprep.mubr.f32.mxu0 0.0
    %4258 = vmatmul.mubr.f32.gmra.mxu0 %v4128
    %v4259 = vpop.f32.mrf.mxu0
    %v4260 = vadd.f32 %v4099, %v4259
    %v4261 = vpop.f32.mrf.mxu0
    %4262 = vmatprep.mubr.f32.mxu0 0.0
    %4263 = vmatmul.mubr.f32.gmra.mxu0 %v4131
    %v4264 = vpop.f32.mrf.mxu0
    %v4265 = vadd.f32 %v4099, %v4264
    %v4266 = vpop.f32.mrf.mxu0
    %4267 = vmatprep.mubr.f32.mxu0 0.0
    %4268 = vmatmul.mubr.f32.gmra.mxu0 %v4134
    %v4269 = vpop.f32.mrf.mxu0
    %v4270 = vadd.f32 %v4099, %v4269
    %v4271 = vpop.f32.mrf.mxu0
    %4272 = vmatprep.mubr.f32.mxu0 0.0
    %4273 = vmatmul.mubr.f32.gmra.mxu0 %v4137
    %v4274 = vpop.f32.mrf.mxu0
    %v4275 = vadd.f32 %v4099, %v4274
    %v4276 = vpop.f32.mrf.mxu0
    %4277 = vmatprep.mubr.f32.mxu0 0.0
    %4278 = vmatmul.mubr.f32.gmra.mxu0 %v4140
    %v4279 = vpop.f32.mrf.mxu0
    %v4280 = vadd.f32 %v4099, %v4279
    %v4281 = vpop.f32.mrf.mxu0
    %4282 = vmatprep.mubr.f32.mxu0 0.0
    %4283 = vmatmul.mubr.f32.gmra.mxu0 %v4143
    %v4284 = vpop.f32.mrf.mxu0
    %v4285 = vadd.f32 %v4099, %v4284
    %v4286 = vpop.f32.mrf.mxu0
    %4287 = vmatprep.mubr.f32.mxu0 0.0
    %4288 = vmatmul.mubr.f32.gmra.mxu0 %v4146
    %v4289 = vpop.f32.mrf.mxu0
    %v4290 = vadd.f32 %v4099, %v4289
    %v4291 = vpop.f32.mrf.mxu0
    %4292 = vdwg.mxu0
    %v4293 = vmax.f32 %v4215, 0.0
    %v4294 = vmax.f32 %v4220, 0.0
    %v4295 = vmax.f32 %v4225, 0.0
    %v4296 = vmax.f32 %v4230, 0.0
    %v4297 = vmax.f32 %v4235, 0.0
    %v4298 = vmax.f32 %v4240, 0.0
    %v4299 = vmax.f32 %v4245, 0.0
    %v4300 = vmax.f32 %v4250, 0.0
    %v4301 = vmax.f32 %v4255, 0.0
    %v4302 = vmax.f32 %v4260, 0.0
    %v4303 = vmax.f32 %v4265, 0.0
    %v4304 = vmax.f32 %v4270, 0.0
    %v4305 = vmax.f32 %v4275, 0.0
    %v4306 = vmax.f32 %v4280, 0.0
    %v4307 = vmax.f32 %v4285, 0.0
    %v4308 = vmax.f32 %v4290, 0.0
    %v4309 = vlaneseq
    %v4310 = vshrl.u32 %v4309, 7
    %v4311 = vsub.s32 5, %v4310
    %v4312 = vrot.slane %v964, %v4311
    %vm4313 = vcmask 523264
    %v4315 = vsel %vm4313, %v4293, 0
    %v4318 = vsel %vm4313, %v4294, 0
    %v4321 = vsel %vm4313, %v4295, 0
    %v4324 = vsel %vm4313, %v4296, 0
    %v4327 = vsel %vm4313, %v4297, 0
    %v4330 = vsel %vm4313, %v4298, 0
    %v4333 = vsel %vm4313, %v4299, 0
    %v4336 = vsel %vm4313, %v4300, 0
    %v4339 = vsel %vm4313, %v4301, 0
    %v4342 = vsel %vm4313, %v4302, 0
    %v4345 = vsel %vm4313, %v4303, 0
    %v4348 = vsel %vm4313, %v4304, 0
    %v4351 = vsel %vm4313, %v4305, 0
    %v4354 = vsel %vm4313, %v4306, 0
    %v4357 = vsel %vm4313, %v4307, 0
    %v4360 = vsel %vm4313, %v4308, 0
    %4362 = vmatprep.subr.mxu0 0.0
    %4363 = vmatpush1.msra.mxu0 0.0
    %4364 = vmatprep.subr.mxu0 0.0
    %4365 = vmatpush1.msra.mxu0 0.0
    %4366 = vmatprep.subr.mxu0 0.0
    %4367 = vmatpush1.msra.mxu0 0.0
    %4368 = vmatprep.subr.mxu0 0.0
    %4369 = vmatpush1.msra.mxu0 0.0
    %4370 = vmatprep.subr.mxu0 0.0
    %4371 = vmatpush1.msra.mxu0 0.0
    %4372 = vmatprep.subr.mxu0 0.0
    %4373 = vmatpush1.msra.mxu0 0.0
    %4374 = vmatprep.subr.mxu0 0.0
    %4375 = vmatpush1.msra.mxu0 0.0
    %4376 = vmatprep.subr.mxu0 0.0
    %4377 = vmatpush1.msra.mxu0 0.0
    %4378 = vmatprep.subr.mxu0 0.0
    %4379 = vmatpush1.msra.mxu0 %v963
    %4380 = vmatprep.subr.mxu0 0.0
    %4381 = vmatpush1.msra.mxu0 %v962
    %4382 = vmatprep.subr.mxu0 0.0
    %4383 = vmatpush1.msra.mxu0 %v961
    %4384 = vmatprep.subr.mxu0 0.0
    %4385 = vmatpush1.msra.mxu0 %v960
    %4386 = vmatprep.subr.mxu0 0.0
    %4387 = vmatpush1.msra.mxu0 %v959
    %4388 = vmatprep.subr.mxu0 0.0
    %4389 = vmatpush1.msra.mxu0 %v958
    %4390 = vmatprep.subr.mxu0 0.0
    %4391 = vmatpush1.msra.mxu0 %v957
    %4392 = vmatprep.subr.mxu0 0.0
    %4393 = vmatpush1.msra.mxu0 %v956
    %4394 = vmatprep.subr.mxu0 0.0
    %4395 = vmatpush2.msra.mxu0 0.0
    %4396 = vmatprep.subr.mxu0 0.0
    %4397 = vmatpush2.msra.mxu0 0.0
    %4398 = vmatprep.subr.mxu0 0.0
    %4399 = vmatpush2.msra.mxu0 0.0
    %4400 = vmatprep.subr.mxu0 0.0
    %4401 = vmatpush2.msra.mxu0 0.0
    %4402 = vmatprep.subr.mxu0 0.0
    %4403 = vmatpush2.msra.mxu0 0.0
    %4404 = vmatprep.subr.mxu0 0.0
    %4405 = vmatpush2.msra.mxu0 0.0
    %4406 = vmatprep.subr.mxu0 0.0
    %4407 = vmatpush2.msra.mxu0 0.0
    %4408 = vmatprep.subr.mxu0 0.0
    %4409 = vmatpush2.msra.mxu0 0.0
    %4410 = vmatprep.subr.mxu0 0.0
    %4411 = vmatpush2.msra.mxu0 0.0
    %4412 = vmatprep.subr.mxu0 0.0
    %4413 = vmatpush2.msra.mxu0 0.0
    %4414 = vmatprep.subr.mxu0 0.0
    %4415 = vmatpush2.msra.mxu0 0.0
    %4416 = vmatprep.subr.mxu0 0.0
    %4417 = vmatpush2.msra.mxu0 0.0
    %4418 = vmatprep.subr.mxu0 0.0
    %4419 = vmatpush2.msra.mxu0 0.0
    %4420 = vmatprep.subr.mxu0 0.0
    %4421 = vmatpush2.msra.mxu0 0.0
    %4422 = vmatprep.subr.mxu0 0.0
    %4423 = vmatpush2.msra.mxu0 0.0
    %4424 = vmatprep.subr.mxu0 0.0
    %4425 = vmatpush2.msra.mxu0 0.0
    %4426 = vmatprep.mubr.f32.mxu0 0.0
    %4427 = vmatmul.mubr.f32.gmra.mxu0 %v4315
    %v4428 = vpop.f32.mrf.mxu0
    %v4429 = vadd.f32 %v4312, %v4428
    %v4430 = vpop.f32.mrf.mxu0
    %4431 = vmatprep.mubr.f32.mxu0 0.0
    %4432 = vmatmul.mubr.f32.gmra.mxu0 %v4318
    %v4433 = vpop.f32.mrf.mxu0
    %v4434 = vadd.f32 %v4312, %v4433
    %v4435 = vpop.f32.mrf.mxu0
    %4436 = vmatprep.mubr.f32.mxu0 0.0
    %4437 = vmatmul.mubr.f32.gmra.mxu0 %v4321
    %v4438 = vpop.f32.mrf.mxu0
    %v4439 = vadd.f32 %v4312, %v4438
    %v4440 = vpop.f32.mrf.mxu0
    %4441 = vmatprep.mubr.f32.mxu0 0.0
    %4442 = vmatmul.mubr.f32.gmra.mxu0 %v4324
    %v4443 = vpop.f32.mrf.mxu0
    %v4444 = vadd.f32 %v4312, %v4443
    %v4445 = vpop.f32.mrf.mxu0
    %4446 = vmatprep.mubr.f32.mxu0 0.0
    %4447 = vmatmul.mubr.f32.gmra.mxu0 %v4327
    %v4448 = vpop.f32.mrf.mxu0
    %v4449 = vadd.f32 %v4312, %v4448
    %v4450 = vpop.f32.mrf.mxu0
    %4451 = vmatprep.mubr.f32.mxu0 0.0
    %4452 = vmatmul.mubr.f32.gmra.mxu0 %v4330
    %v4453 = vpop.f32.mrf.mxu0
    %v4454 = vadd.f32 %v4312, %v4453
    %v4455 = vpop.f32.mrf.mxu0
    %4456 = vmatprep.mubr.f32.mxu0 0.0
    %4457 = vmatmul.mubr.f32.gmra.mxu0 %v4333
    %v4458 = vpop.f32.mrf.mxu0
    %v4459 = vadd.f32 %v4312, %v4458
    %v4460 = vpop.f32.mrf.mxu0
    %4461 = vmatprep.mubr.f32.mxu0 0.0
    %4462 = vmatmul.mubr.f32.gmra.mxu0 %v4336
    %v4463 = vpop.f32.mrf.mxu0
    %v4464 = vadd.f32 %v4312, %v4463
    %v4465 = vpop.f32.mrf.mxu0
    %4466 = vmatprep.mubr.f32.mxu0 0.0
    %4467 = vmatmul.mubr.f32.gmra.mxu0 %v4339
    %v4468 = vpop.f32.mrf.mxu0
    %v4469 = vadd.f32 %v4312, %v4468
    %v4470 = vpop.f32.mrf.mxu0
    %4471 = vmatprep.mubr.f32.mxu0 0.0
    %4472 = vmatmul.mubr.f32.gmra.mxu0 %v4342
    %v4473 = vpop.f32.mrf.mxu0
    %v4474 = vadd.f32 %v4312, %v4473
    %v4475 = vpop.f32.mrf.mxu0
    %4476 = vmatprep.mubr.f32.mxu0 0.0
    %4477 = vmatmul.mubr.f32.gmra.mxu0 %v4345
    %v4478 = vpop.f32.mrf.mxu0
    %v4479 = vadd.f32 %v4312, %v4478
    %v4480 = vpop.f32.mrf.mxu0
    %4481 = vmatprep.mubr.f32.mxu0 0.0
    %4482 = vmatmul.mubr.f32.gmra.mxu0 %v4348
    %v4483 = vpop.f32.mrf.mxu0
    %v4484 = vadd.f32 %v4312, %v4483
    %v4485 = vpop.f32.mrf.mxu0
    %4486 = vmatprep.mubr.f32.mxu0 0.0
    %4487 = vmatmul.mubr.f32.gmra.mxu0 %v4351
    %v4488 = vpop.f32.mrf.mxu0
    %v4489 = vadd.f32 %v4312, %v4488
    %v4490 = vpop.f32.mrf.mxu0
    %4491 = vmatprep.mubr.f32.mxu0 0.0
    %4492 = vmatmul.mubr.f32.gmra.mxu0 %v4354
    %v4493 = vpop.f32.mrf.mxu0
    %v4494 = vadd.f32 %v4312, %v4493
    %v4495 = vpop.f32.mrf.mxu0
    %4496 = vmatprep.mubr.f32.mxu0 0.0
    %4497 = vmatmul.mubr.f32.gmra.mxu0 %v4357
    %v4498 = vpop.f32.mrf.mxu0
    %v4499 = vadd.f32 %v4312, %v4498
    %v4500 = vpop.f32.mrf.mxu0
    %4501 = vmatprep.mubr.f32.mxu0 0.0
    %4502 = vmatmul.mubr.f32.gmra.mxu0 %v4360
    %v4503 = vpop.f32.mrf.mxu0
    %v4504 = vadd.f32 %v4312, %v4503
    %v4505 = vpop.f32.mrf.mxu0
    %4506 = vdwg.mxu0
    %v4507 = vadd.f32 %v4080, %v4429
    %v4508 = vadd.f32 %v4081, %v4434
    %v4509 = vadd.f32 %v4082, %v4439
    %v4510 = vadd.f32 %v4083, %v4444
    %v4511 = vadd.f32 %v4084, %v4449
    %v4512 = vadd.f32 %v4085, %v4454
    %v4513 = vadd.f32 %v4086, %v4459
    %v4514 = vadd.f32 %v4087, %v4464
    %v4515 = vadd.f32 %v4088, %v4469
    %v4516 = vadd.f32 %v4089, %v4474
    %v4517 = vadd.f32 %v4090, %v4479
    %v4518 = vadd.f32 %v4091, %v4484
    %v4519 = vadd.f32 %v4092, %v4489
    %v4520 = vadd.f32 %v4093, %v4494
    %v4521 = vadd.f32 %v4094, %v4499
    %v4522 = vadd.f32 %v4095, %v4504
    %v4523 = vsel %vm970, %v4507, 0.0
    %4524 = vadd.xlane.f32.xlu0 %v4523
    %v4525 = vpop.xlane.xlu0 %4524
    %v4526 = vsel %vm970, %v4508, 0.0
    %4527 = vadd.xlane.f32.xlu0 %v4526
    %v4528 = vpop.xlane.xlu0 %4527
    %v4529 = vsel %vm970, %v4509, 0.0
    %4530 = vadd.xlane.f32.xlu0 %v4529
    %v4531 = vpop.xlane.xlu0 %4530
    %v4532 = vsel %vm970, %v4510, 0.0
    %4533 = vadd.xlane.f32.xlu0 %v4532
    %v4534 = vpop.xlane.xlu0 %4533
    %v4535 = vsel %vm970, %v4511, 0.0
    %4536 = vadd.xlane.f32.xlu0 %v4535
    %v4537 = vpop.xlane.xlu0 %4536
    %v4538 = vsel %vm970, %v4512, 0.0
    %4539 = vadd.xlane.f32.xlu0 %v4538
    %v4540 = vpop.xlane.xlu0 %4539
    %v4541 = vsel %vm970, %v4513, 0.0
    %4542 = vadd.xlane.f32.xlu0 %v4541
    %v4543 = vpop.xlane.xlu0 %4542
    %v4544 = vsel %vm970, %v4514, 0.0
    %4545 = vadd.xlane.f32.xlu0 %v4544
    %v4546 = vpop.xlane.xlu0 %4545
    %v4547 = vsel %vm970, %v4515, 0.0
    %4548 = vadd.xlane.f32.xlu0 %v4547
    %v4549 = vpop.xlane.xlu0 %4548
    %v4550 = vsel %vm970, %v4516, 0.0
    %4551 = vadd.xlane.f32.xlu0 %v4550
    %v4552 = vpop.xlane.xlu0 %4551
    %v4553 = vsel %vm970, %v4517, 0.0
    %4554 = vadd.xlane.f32.xlu0 %v4553
    %v4555 = vpop.xlane.xlu0 %4554
    %v4556 = vsel %vm970, %v4518, 0.0
    %4557 = vadd.xlane.f32.xlu0 %v4556
    %v4558 = vpop.xlane.xlu0 %4557
    %v4559 = vsel %vm970, %v4519, 0.0
    %4560 = vadd.xlane.f32.xlu0 %v4559
    %v4561 = vpop.xlane.xlu0 %4560
    %v4562 = vsel %vm970, %v4520, 0.0
    %4563 = vadd.xlane.f32.xlu0 %v4562
    %v4564 = vpop.xlane.xlu0 %4563
    %v4565 = vsel %vm970, %v4521, 0.0
    %4566 = vadd.xlane.f32.xlu0 %v4565
    %v4567 = vpop.xlane.xlu0 %4566
    %v4568 = vsel %vm970, %v4522, 0.0
    %4569 = vadd.xlane.f32.xlu0 %v4568
    %v4570 = vpop.xlane.xlu0 %4569
    %v4571 = vmul.f32 %v4525, %v3895
    %v4572 = vmul.f32 %v4528, %v3895
    %v4573 = vmul.f32 %v4531, %v3895
    %v4574 = vmul.f32 %v4534, %v3895
    %v4575 = vmul.f32 %v4537, %v3895
    %v4576 = vmul.f32 %v4540, %v3895
    %v4577 = vmul.f32 %v4543, %v3895
    %v4578 = vmul.f32 %v4546, %v3895
    %v4579 = vmul.f32 %v4549, %v3895
    %v4580 = vmul.f32 %v4552, %v3895
    %v4581 = vmul.f32 %v4555, %v3895
    %v4582 = vmul.f32 %v4558, %v3895
    %v4583 = vmul.f32 %v4561, %v3895
    %v4584 = vmul.f32 %v4564, %v3895
    %v4585 = vmul.f32 %v4567, %v3895
    %v4586 = vmul.f32 %v4570, %v3895
    %v4587 = vsub.f32 %v4507, %v4571
    %v4588 = vsub.f32 %v4508, %v4572
    %v4589 = vsub.f32 %v4509, %v4573
    %v4590 = vsub.f32 %v4510, %v4574
    %v4591 = vsub.f32 %v4511, %v4575
    %v4592 = vsub.f32 %v4512, %v4576
    %v4593 = vsub.f32 %v4513, %v4577
    %v4594 = vsub.f32 %v4514, %v4578
    %v4595 = vsub.f32 %v4515, %v4579
    %v4596 = vsub.f32 %v4516, %v4580
    %v4597 = vsub.f32 %v4517, %v4581
    %v4598 = vsub.f32 %v4518, %v4582
    %v4599 = vsub.f32 %v4519, %v4583
    %v4600 = vsub.f32 %v4520, %v4584
    %v4601 = vsub.f32 %v4521, %v4585
    %v4602 = vsub.f32 %v4522, %v4586
    %v4603 = vmul.f32 %v4587, %v4587
    %v4604 = vmul.f32 %v4588, %v4588
    %v4605 = vmul.f32 %v4589, %v4589
    %v4606 = vmul.f32 %v4590, %v4590
    %v4607 = vmul.f32 %v4591, %v4591
    %v4608 = vmul.f32 %v4592, %v4592
    %v4609 = vmul.f32 %v4593, %v4593
    %v4610 = vmul.f32 %v4594, %v4594
    %v4611 = vmul.f32 %v4595, %v4595
    %v4612 = vmul.f32 %v4596, %v4596
    %v4613 = vmul.f32 %v4597, %v4597
    %v4614 = vmul.f32 %v4598, %v4598
    %v4615 = vmul.f32 %v4599, %v4599
    %v4616 = vmul.f32 %v4600, %v4600
    %v4617 = vmul.f32 %v4601, %v4601
    %v4618 = vmul.f32 %v4602, %v4602
    %v4619 = vsel %vm970, %v4603, 0.0
    %4620 = vadd.xlane.f32.xlu0 %v4619
    %v4621 = vpop.xlane.xlu0 %4620
    %v4622 = vsel %vm970, %v4604, 0.0
    %4623 = vadd.xlane.f32.xlu0 %v4622
    %v4624 = vpop.xlane.xlu0 %4623
    %v4625 = vsel %vm970, %v4605, 0.0
    %4626 = vadd.xlane.f32.xlu0 %v4625
    %v4627 = vpop.xlane.xlu0 %4626
    %v4628 = vsel %vm970, %v4606, 0.0
    %4629 = vadd.xlane.f32.xlu0 %v4628
    %v4630 = vpop.xlane.xlu0 %4629
    %v4631 = vsel %vm970, %v4607, 0.0
    %4632 = vadd.xlane.f32.xlu0 %v4631
    %v4633 = vpop.xlane.xlu0 %4632
    %v4634 = vsel %vm970, %v4608, 0.0
    %4635 = vadd.xlane.f32.xlu0 %v4634
    %v4636 = vpop.xlane.xlu0 %4635
    %v4637 = vsel %vm970, %v4609, 0.0
    %4638 = vadd.xlane.f32.xlu0 %v4637
    %v4639 = vpop.xlane.xlu0 %4638
    %v4640 = vsel %vm970, %v4610, 0.0
    %4641 = vadd.xlane.f32.xlu0 %v4640
    %v4642 = vpop.xlane.xlu0 %4641
    %v4643 = vsel %vm970, %v4611, 0.0
    %4644 = vadd.xlane.f32.xlu0 %v4643
    %v4645 = vpop.xlane.xlu0 %4644
    %v4646 = vsel %vm970, %v4612, 0.0
    %4647 = vadd.xlane.f32.xlu0 %v4646
    %v4648 = vpop.xlane.xlu0 %4647
    %v4649 = vsel %vm970, %v4613, 0.0
    %4650 = vadd.xlane.f32.xlu0 %v4649
    %v4651 = vpop.xlane.xlu0 %4650
    %v4652 = vsel %vm970, %v4614, 0.0
    %4653 = vadd.xlane.f32.xlu0 %v4652
    %v4654 = vpop.xlane.xlu0 %4653
    %v4655 = vsel %vm970, %v4615, 0.0
    %4656 = vadd.xlane.f32.xlu0 %v4655
    %v4657 = vpop.xlane.xlu0 %4656
    %v4658 = vsel %vm970, %v4616, 0.0
    %4659 = vadd.xlane.f32.xlu0 %v4658
    %v4660 = vpop.xlane.xlu0 %4659
    %v4661 = vsel %vm970, %v4617, 0.0
    %4662 = vadd.xlane.f32.xlu0 %v4661
    %v4663 = vpop.xlane.xlu0 %4662
    %v4664 = vsel %vm970, %v4618, 0.0
    %4665 = vadd.xlane.f32.xlu0 %v4664
    %v4666 = vpop.xlane.xlu0 %4665
    %v4667 = vmul.f32 %v4621, %v3895
    %v4668 = vmul.f32 %v4624, %v3895
    %v4669 = vmul.f32 %v4627, %v3895
    %v4670 = vmul.f32 %v4630, %v3895
    %v4671 = vmul.f32 %v4633, %v3895
    %v4672 = vmul.f32 %v4636, %v3895
    %v4673 = vmul.f32 %v4639, %v3895
    %v4674 = vmul.f32 %v4642, %v3895
    %v4675 = vmul.f32 %v4645, %v3895
    %v4676 = vmul.f32 %v4648, %v3895
    %v4677 = vmul.f32 %v4651, %v3895
    %v4678 = vmul.f32 %v4654, %v3895
    %v4679 = vmul.f32 %v4657, %v3895
    %v4680 = vmul.f32 %v4660, %v3895
    %v4681 = vmul.f32 %v4663, %v3895
    %v4682 = vmul.f32 %v4666, %v3895
    %v4683 = vadd.f32 %v4667, 1e-05
    %v4684 = vadd.f32 %v4668, 1e-05
    %v4685 = vadd.f32 %v4669, 1e-05
    %v4686 = vadd.f32 %v4670, 1e-05
    %v4687 = vadd.f32 %v4671, 1e-05
    %v4688 = vadd.f32 %v4672, 1e-05
    %v4689 = vadd.f32 %v4673, 1e-05
    %v4690 = vadd.f32 %v4674, 1e-05
    %v4691 = vadd.f32 %v4675, 1e-05
    %v4692 = vadd.f32 %v4676, 1e-05
    %v4693 = vadd.f32 %v4677, 1e-05
    %v4694 = vadd.f32 %v4678, 1e-05
    %v4695 = vadd.f32 %v4679, 1e-05
    %v4696 = vadd.f32 %v4680, 1e-05
    %v4697 = vadd.f32 %v4681, 1e-05
    %v4698 = vadd.f32 %v4682, 1e-05
    %v4699 = vrsqrt.pop %v4683
    %v4700 = vrsqrt.pop %v4684
    %v4701 = vrsqrt.pop %v4685
    %v4702 = vrsqrt.pop %v4686
    %v4703 = vrsqrt.pop %v4687
    %v4704 = vrsqrt.pop %v4688
    %v4705 = vrsqrt.pop %v4689
    %v4706 = vrsqrt.pop %v4690
    %v4707 = vrsqrt.pop %v4691
    %v4708 = vrsqrt.pop %v4692
    %v4709 = vrsqrt.pop %v4693
    %v4710 = vrsqrt.pop %v4694
    %v4711 = vrsqrt.pop %v4695
    %v4712 = vrsqrt.pop %v4696
    %v4713 = vrsqrt.pop %v4697
    %v4714 = vrsqrt.pop %v4698
    %v4715 = vmul.f32 %v4587, %v4699
    %v4716 = vmul.f32 %v4588, %v4700
    %v4717 = vmul.f32 %v4589, %v4701
    %v4718 = vmul.f32 %v4590, %v4702
    %v4719 = vmul.f32 %v4591, %v4703
    %v4720 = vmul.f32 %v4592, %v4704
    %v4721 = vmul.f32 %v4593, %v4705
    %v4722 = vmul.f32 %v4594, %v4706
    %v4723 = vmul.f32 %v4595, %v4707
    %v4724 = vmul.f32 %v4596, %v4708
    %v4725 = vmul.f32 %v4597, %v4709
    %v4726 = vmul.f32 %v4598, %v4710
    %v4727 = vmul.f32 %v4599, %v4711
    %v4728 = vmul.f32 %v4600, %v4712
    %v4729 = vmul.f32 %v4601, %v4713
    %v4730 = vmul.f32 %v4602, %v4714
    %v4731 = vlaneseq
    %v4732 = vshrl.u32 %v4731, 7
    %v4733 = vsub.s32 0, %v4732
    %v4734 = vrot.slane %v965, %v4733
    %v4735 = vmul.f32 %v4715, %v4734
    %v4736 = vmul.f32 %v4716, %v4734
    %v4737 = vmul.f32 %v4717, %v4734
    %v4738 = vmul.f32 %v4718, %v4734
    %v4739 = vmul.f32 %v4719, %v4734
    %v4740 = vmul.f32 %v4720, %v4734
    %v4741 = vmul.f32 %v4721, %v4734
    %v4742 = vmul.f32 %v4722, %v4734
    %v4743 = vmul.f32 %v4723, %v4734
    %v4744 = vmul.f32 %v4724, %v4734
    %v4745 = vmul.f32 %v4725, %v4734
    %v4746 = vmul.f32 %v4726, %v4734
    %v4747 = vmul.f32 %v4727, %v4734
    %v4748 = vmul.f32 %v4728, %v4734
    %v4749 = vmul.f32 %v4729, %v4734
    %v4750 = vmul.f32 %v4730, %v4734
    %v4751 = vlaneseq
    %v4752 = vshrl.u32 %v4751, 7
    %v4753 = vsub.s32 1, %v4752
    %v4754 = vrot.slane %v965, %v4753
    %v4755 = vadd.f32 %v4735, %v4754
    %v4756 = vadd.f32 %v4736, %v4754
    %v4757 = vadd.f32 %v4737, %v4754
    %v4758 = vadd.f32 %v4738, %v4754
    %v4759 = vadd.f32 %v4739, %v4754
    %v4760 = vadd.f32 %v4740, %v4754
    %v4761 = vadd.f32 %v4741, %v4754
    %v4762 = vadd.f32 %v4742, %v4754
    %v4763 = vadd.f32 %v4743, %v4754
    %v4764 = vadd.f32 %v4744, %v4754
    %v4765 = vadd.f32 %v4745, %v4754
    %v4766 = vadd.f32 %v4746, %v4754
    %v4767 = vadd.f32 %v4747, %v4754
    %v4768 = vadd.f32 %v4748, %v4754
    %v4769 = vadd.f32 %v4749, %v4754
    %v4770 = vadd.f32 %v4750, %v4754
    %s4771 = scalar_lea.vmem %s2, 160
    %v4772 = vld [vmem:[%s4771] sm:$0xff]
    %v4773 = vld [vmem:[%s4771 + $0x8] sm:$0xff]
    %v4774 = vld [vmem:[%s4771 + $0x10] sm:$0xff]
    %v4775 = vld [vmem:[%s4771 + $0x18] sm:$0xff]
    %v4776 = vld [vmem:[%s4771 + $0x20] sm:$0xff]
    %v4777 = vld [vmem:[%s4771 + $0x28] sm:$0xff]
    %v4778 = vld [vmem:[%s4771 + $0x30] sm:$0xff]
    %v4779 = vld [vmem:[%s4771 + $0x38] sm:$0xff]
    %v4780 = vld [vmem:[%s4771 + $0x40] sm:$0xff]
    %v4781 = vld [vmem:[%s4771 + $0x48] sm:$0xff]
    %v4782 = vld [vmem:[%s4771 + $0x50] sm:$0xff]
    %v4783 = vld [vmem:[%s4771 + $0x58] sm:$0xff]
    %v4784 = vld [vmem:[%s4771 + $0x60] sm:$0xff]
    %v4785 = vld [vmem:[%s4771 + $0x68] sm:$0xff]
    %v4786 = vld [vmem:[%s4771 + $0x70] sm:$0xff]
    %v4787 = vld [vmem:[%s4771 + $0x78] sm:$0xff]
    %v4788 = vld [vmem:[%s4771 + $0x80] sm:$0xff]
    %v4789 = vld [vmem:[%s4771 + $0x88] sm:$0xff]
    %v4790 = vld [vmem:[%s4771 + $0x90] sm:$0xff]
    %v4791 = vld [vmem:[%s4771 + $0x98] sm:$0xff]
    %s4792 = scalar_lea.vmem %s3, 64
    %v4793 = vld [vmem:[%s4792] sm:$0xff]
    %v4794 = vld [vmem:[%s4792 + $0x8] sm:$0xff]
    %v4795 = vld [vmem:[%s4792 + $0x10] sm:$0xff]
    %v4796 = vld [vmem:[%s4792 + $0x18] sm:$0xff]
    %v4797 = vld [vmem:[%s4792 + $0x20] sm:$0xff]
    %v4798 = vld [vmem:[%s4792 + $0x28] sm:$0xff]
    %v4799 = vld [vmem:[%s4792 + $0x30] sm:$0xff]
    %v4800 = vld [vmem:[%s4792 + $0x38] sm:$0xff]
    %s4801 = scalar_lea.vmem %s4, 16
    %v4802 = vld [vmem:[%s4801] sm:$0xff]
    %v4803 = vld [vmem:[%s4801 + $0x8] sm:$0xff]
    %v4804 = vlaneseq
    %v4805 = vshrl.u32 %v4804, 7
    %v4806 = vsub.s32 0, %v4805
    %v4807 = vrot.slane %v4802, %v4806
    %v4809 = vsel %vm970, %v4755, 0
    %v4812 = vsel %vm970, %v4756, 0
    %v4815 = vsel %vm970, %v4757, 0
    %v4818 = vsel %vm970, %v4758, 0
    %v4821 = vsel %vm970, %v4759, 0
    %v4824 = vsel %vm970, %v4760, 0
    %v4827 = vsel %vm970, %v4761, 0
    %v4830 = vsel %vm970, %v4762, 0
    %v4833 = vsel %vm970, %v4763, 0
    %v4836 = vsel %vm970, %v4764, 0
    %v4839 = vsel %vm970, %v4765, 0
    %v4842 = vsel %vm970, %v4766, 0
    %v4845 = vsel %vm970, %v4767, 0
    %v4848 = vsel %vm970, %v4768, 0
    %v4851 = vsel %vm970, %v4769, 0
    %v4854 = vsel %vm970, %v4770, 0
    %4856 = vmatprep.subr.mxu0 0.0
    %4857 = vmatpush1.msra.mxu0 0.0
    %4858 = vmatprep.subr.mxu0 0.0
    %4859 = vmatpush1.msra.mxu0 0.0
    %4860 = vmatprep.subr.mxu0 0.0
    %4861 = vmatpush1.msra.mxu0 0.0
    %4862 = vmatprep.subr.mxu0 0.0
    %4863 = vmatpush1.msra.mxu0 0.0
    %4864 = vmatprep.subr.mxu0 0.0
    %4865 = vmatpush1.msra.mxu0 0.0
    %4866 = vmatprep.subr.mxu0 0.0
    %4867 = vmatpush1.msra.mxu0 0.0
    %4868 = vmatprep.subr.mxu0 0.0
    %4869 = vmatpush1.msra.mxu0 0.0
    %4870 = vmatprep.subr.mxu0 0.0
    %4871 = vmatpush1.msra.mxu0 0.0
    %4872 = vmatprep.subr.mxu0 0.0
    %4873 = vmatpush1.msra.mxu0 0.0
    %4874 = vmatprep.subr.mxu0 0.0
    %4875 = vmatpush1.msra.mxu0 0.0
    %4876 = vmatprep.subr.mxu0 0.0
    %4877 = vmatpush1.msra.mxu0 0.0
    %4878 = vmatprep.subr.mxu0 0.0
    %4879 = vmatpush1.msra.mxu0 0.0
    %4880 = vmatprep.subr.mxu0 0.0
    %4881 = vmatpush1.msra.mxu0 %v4787
    %4882 = vmatprep.subr.mxu0 0.0
    %4883 = vmatpush1.msra.mxu0 %v4782
    %4884 = vmatprep.subr.mxu0 0.0
    %4885 = vmatpush1.msra.mxu0 %v4777
    %4886 = vmatprep.subr.mxu0 0.0
    %4887 = vmatpush1.msra.mxu0 %v4772
    %4888 = vmatprep.subr.mxu0 0.0
    %4889 = vmatpush2.msra.mxu0 0.0
    %4890 = vmatprep.subr.mxu0 0.0
    %4891 = vmatpush2.msra.mxu0 0.0
    %4892 = vmatprep.subr.mxu0 0.0
    %4893 = vmatpush2.msra.mxu0 0.0
    %4894 = vmatprep.subr.mxu0 0.0
    %4895 = vmatpush2.msra.mxu0 0.0
    %4896 = vmatprep.subr.mxu0 0.0
    %4897 = vmatpush2.msra.mxu0 0.0
    %4898 = vmatprep.subr.mxu0 0.0
    %4899 = vmatpush2.msra.mxu0 0.0
    %4900 = vmatprep.subr.mxu0 0.0
    %4901 = vmatpush2.msra.mxu0 0.0
    %4902 = vmatprep.subr.mxu0 0.0
    %4903 = vmatpush2.msra.mxu0 0.0
    %4904 = vmatprep.subr.mxu0 0.0
    %4905 = vmatpush2.msra.mxu0 0.0
    %4906 = vmatprep.subr.mxu0 0.0
    %4907 = vmatpush2.msra.mxu0 0.0
    %4908 = vmatprep.subr.mxu0 0.0
    %4909 = vmatpush2.msra.mxu0 0.0
    %4910 = vmatprep.subr.mxu0 0.0
    %4911 = vmatpush2.msra.mxu0 0.0
    %4912 = vmatprep.subr.mxu0 0.0
    %4913 = vmatpush2.msra.mxu0 0.0
    %4914 = vmatprep.subr.mxu0 0.0
    %4915 = vmatpush2.msra.mxu0 0.0
    %4916 = vmatprep.subr.mxu0 0.0
    %4917 = vmatpush2.msra.mxu0 0.0
    %4918 = vmatprep.subr.mxu0 0.0
    %4919 = vmatpush2.msra.mxu0 0.0
    %4920 = vmatprep.mubr.f32.mxu0 0.0
    %4921 = vmatmul.mubr.f32.gmra.mxu0 %v4809
    %v4922 = vpop.f32.mrf.mxu0
    %v4923 = vadd.f32 %v4807, %v4922
    %v4924 = vpop.f32.mrf.mxu0
    %4925 = vmatprep.mubr.f32.mxu0 0.0
    %4926 = vmatmul.mubr.f32.gmra.mxu0 %v4812
    %v4927 = vpop.f32.mrf.mxu0
    %v4928 = vadd.f32 %v4807, %v4927
    %v4929 = vpop.f32.mrf.mxu0
    %4930 = vmatprep.mubr.f32.mxu0 0.0
    %4931 = vmatmul.mubr.f32.gmra.mxu0 %v4815
    %v4932 = vpop.f32.mrf.mxu0
    %v4933 = vadd.f32 %v4807, %v4932
    %v4934 = vpop.f32.mrf.mxu0
    %4935 = vmatprep.mubr.f32.mxu0 0.0
    %4936 = vmatmul.mubr.f32.gmra.mxu0 %v4818
    %v4937 = vpop.f32.mrf.mxu0
    %v4938 = vadd.f32 %v4807, %v4937
    %v4939 = vpop.f32.mrf.mxu0
    %4940 = vmatprep.mubr.f32.mxu0 0.0
    %4941 = vmatmul.mubr.f32.gmra.mxu0 %v4821
    %v4942 = vpop.f32.mrf.mxu0
    %v4943 = vadd.f32 %v4807, %v4942
    %v4944 = vpop.f32.mrf.mxu0
    %4945 = vmatprep.mubr.f32.mxu0 0.0
    %4946 = vmatmul.mubr.f32.gmra.mxu0 %v4824
    %v4947 = vpop.f32.mrf.mxu0
    %v4948 = vadd.f32 %v4807, %v4947
    %v4949 = vpop.f32.mrf.mxu0
    %4950 = vmatprep.mubr.f32.mxu0 0.0
    %4951 = vmatmul.mubr.f32.gmra.mxu0 %v4827
    %v4952 = vpop.f32.mrf.mxu0
    %v4953 = vadd.f32 %v4807, %v4952
    %v4954 = vpop.f32.mrf.mxu0
    %4955 = vmatprep.mubr.f32.mxu0 0.0
    %4956 = vmatmul.mubr.f32.gmra.mxu0 %v4830
    %v4957 = vpop.f32.mrf.mxu0
    %v4958 = vadd.f32 %v4807, %v4957
    %v4959 = vpop.f32.mrf.mxu0
    %4960 = vmatprep.mubr.f32.mxu0 0.0
    %4961 = vmatmul.mubr.f32.gmra.mxu0 %v4833
    %v4962 = vpop.f32.mrf.mxu0
    %v4963 = vadd.f32 %v4807, %v4962
    %v4964 = vpop.f32.mrf.mxu0
    %4965 = vmatprep.mubr.f32.mxu0 0.0
    %4966 = vmatmul.mubr.f32.gmra.mxu0 %v4836
    %v4967 = vpop.f32.mrf.mxu0
    %v4968 = vadd.f32 %v4807, %v4967
    %v4969 = vpop.f32.mrf.mxu0
    %4970 = vmatprep.mubr.f32.mxu0 0.0
    %4971 = vmatmul.mubr.f32.gmra.mxu0 %v4839
    %v4972 = vpop.f32.mrf.mxu0
    %v4973 = vadd.f32 %v4807, %v4972
    %v4974 = vpop.f32.mrf.mxu0
    %4975 = vmatprep.mubr.f32.mxu0 0.0
    %4976 = vmatmul.mubr.f32.gmra.mxu0 %v4842
    %v4977 = vpop.f32.mrf.mxu0
    %v4978 = vadd.f32 %v4807, %v4977
    %v4979 = vpop.f32.mrf.mxu0
    %4980 = vmatprep.mubr.f32.mxu0 0.0
    %4981 = vmatmul.mubr.f32.gmra.mxu0 %v4845
    %v4982 = vpop.f32.mrf.mxu0
    %v4983 = vadd.f32 %v4807, %v4982
    %v4984 = vpop.f32.mrf.mxu0
    %4985 = vmatprep.mubr.f32.mxu0 0.0
    %4986 = vmatmul.mubr.f32.gmra.mxu0 %v4848
    %v4987 = vpop.f32.mrf.mxu0
    %v4988 = vadd.f32 %v4807, %v4987
    %v4989 = vpop.f32.mrf.mxu0
    %4990 = vmatprep.mubr.f32.mxu0 0.0
    %4991 = vmatmul.mubr.f32.gmra.mxu0 %v4851
    %v4992 = vpop.f32.mrf.mxu0
    %v4993 = vadd.f32 %v4807, %v4992
    %v4994 = vpop.f32.mrf.mxu0
    %4995 = vmatprep.mubr.f32.mxu0 0.0
    %4996 = vmatmul.mubr.f32.gmra.mxu0 %v4854
    %v4997 = vpop.f32.mrf.mxu0
    %v4998 = vadd.f32 %v4807, %v4997
    %v4999 = vpop.f32.mrf.mxu0
    %5000 = vdwg.mxu0
    %v5001 = vmul.f32 %v4923, 0.35355338
    %v5002 = vmul.f32 %v4928, 0.35355338
    %v5003 = vmul.f32 %v4933, 0.35355338
    %v5004 = vmul.f32 %v4938, 0.35355338
    %v5005 = vmul.f32 %v4943, 0.35355338
    %v5006 = vmul.f32 %v4948, 0.35355338
    %v5007 = vmul.f32 %v4953, 0.35355338
    %v5008 = vmul.f32 %v4958, 0.35355338
    %v5009 = vmul.f32 %v4963, 0.35355338
    %v5010 = vmul.f32 %v4968, 0.35355338
    %v5011 = vmul.f32 %v4973, 0.35355338
    %v5012 = vmul.f32 %v4978, 0.35355338
    %v5013 = vmul.f32 %v4983, 0.35355338
    %v5014 = vmul.f32 %v4988, 0.35355338
    %v5015 = vmul.f32 %v4993, 0.35355338
    %v5016 = vmul.f32 %v4998, 0.35355338
    %v5017 = vlaneseq
    %v5018 = vshrl.u32 %v5017, 7
    %v5019 = vsub.s32 1, %v5018
    %v5020 = vrot.slane %v4802, %v5019
    %5021 = vmatprep.subr.mxu0 0.0
    %5022 = vmatpush1.msra.mxu0 0.0
    %5023 = vmatprep.subr.mxu0 0.0
    %5024 = vmatpush1.msra.mxu0 0.0
    %5025 = vmatprep.subr.mxu0 0.0
    %5026 = vmatpush1.msra.mxu0 0.0
    %5027 = vmatprep.subr.mxu0 0.0
    %5028 = vmatpush1.msra.mxu0 0.0
    %5029 = vmatprep.subr.mxu0 0.0
    %5030 = vmatpush1.msra.mxu0 0.0
    %5031 = vmatprep.subr.mxu0 0.0
    %5032 = vmatpush1.msra.mxu0 0.0
    %5033 = vmatprep.subr.mxu0 0.0
    %5034 = vmatpush1.msra.mxu0 0.0
    %5035 = vmatprep.subr.mxu0 0.0
    %5036 = vmatpush1.msra.mxu0 0.0
    %5037 = vmatprep.subr.mxu0 0.0
    %5038 = vmatpush1.msra.mxu0 0.0
    %5039 = vmatprep.subr.mxu0 0.0
    %5040 = vmatpush1.msra.mxu0 0.0
    %5041 = vmatprep.subr.mxu0 0.0
    %5042 = vmatpush1.msra.mxu0 0.0
    %5043 = vmatprep.subr.mxu0 0.0
    %5044 = vmatpush1.msra.mxu0 0.0
    %5045 = vmatprep.subr.mxu0 0.0
    %5046 = vmatpush1.msra.mxu0 %v4788
    %5047 = vmatprep.subr.mxu0 0.0
    %5048 = vmatpush1.msra.mxu0 %v4783
    %5049 = vmatprep.subr.mxu0 0.0
    %5050 = vmatpush1.msra.mxu0 %v4778
    %5051 = vmatprep.subr.mxu0 0.0
    %5052 = vmatpush1.msra.mxu0 %v4773
    %5053 = vmatprep.subr.mxu0 0.0
    %5054 = vmatpush2.msra.mxu0 0.0
    %5055 = vmatprep.subr.mxu0 0.0
    %5056 = vmatpush2.msra.mxu0 0.0
    %5057 = vmatprep.subr.mxu0 0.0
    %5058 = vmatpush2.msra.mxu0 0.0
    %5059 = vmatprep.subr.mxu0 0.0
    %5060 = vmatpush2.msra.mxu0 0.0
    %5061 = vmatprep.subr.mxu0 0.0
    %5062 = vmatpush2.msra.mxu0 0.0
    %5063 = vmatprep.subr.mxu0 0.0
    %5064 = vmatpush2.msra.mxu0 0.0
    %5065 = vmatprep.subr.mxu0 0.0
    %5066 = vmatpush2.msra.mxu0 0.0
    %5067 = vmatprep.subr.mxu0 0.0
    %5068 = vmatpush2.msra.mxu0 0.0
    %5069 = vmatprep.subr.mxu0 0.0
    %5070 = vmatpush2.msra.mxu0 0.0
    %5071 = vmatprep.subr.mxu0 0.0
    %5072 = vmatpush2.msra.mxu0 0.0
    %5073 = vmatprep.subr.mxu0 0.0
    %5074 = vmatpush2.msra.mxu0 0.0
    %5075 = vmatprep.subr.mxu0 0.0
    %5076 = vmatpush2.msra.mxu0 0.0
    %5077 = vmatprep.subr.mxu0 0.0
    %5078 = vmatpush2.msra.mxu0 0.0
    %5079 = vmatprep.subr.mxu0 0.0
    %5080 = vmatpush2.msra.mxu0 0.0
    %5081 = vmatprep.subr.mxu0 0.0
    %5082 = vmatpush2.msra.mxu0 0.0
    %5083 = vmatprep.subr.mxu0 0.0
    %5084 = vmatpush2.msra.mxu0 0.0
    %5085 = vmatprep.mubr.f32.mxu0 0.0
    %5086 = vmatmul.mubr.f32.gmra.mxu0 %v4809
    %v5087 = vpop.f32.mrf.mxu0
    %v5088 = vadd.f32 %v5020, %v5087
    %v5089 = vpop.f32.mrf.mxu0
    %5090 = vmatprep.mubr.f32.mxu0 0.0
    %5091 = vmatmul.mubr.f32.gmra.mxu0 %v4812
    %v5092 = vpop.f32.mrf.mxu0
    %v5093 = vadd.f32 %v5020, %v5092
    %v5094 = vpop.f32.mrf.mxu0
    %5095 = vmatprep.mubr.f32.mxu0 0.0
    %5096 = vmatmul.mubr.f32.gmra.mxu0 %v4815
    %v5097 = vpop.f32.mrf.mxu0
    %v5098 = vadd.f32 %v5020, %v5097
    %v5099 = vpop.f32.mrf.mxu0
    %5100 = vmatprep.mubr.f32.mxu0 0.0
    %5101 = vmatmul.mubr.f32.gmra.mxu0 %v4818
    %v5102 = vpop.f32.mrf.mxu0
    %v5103 = vadd.f32 %v5020, %v5102
    %v5104 = vpop.f32.mrf.mxu0
    %5105 = vmatprep.mubr.f32.mxu0 0.0
    %5106 = vmatmul.mubr.f32.gmra.mxu0 %v4821
    %v5107 = vpop.f32.mrf.mxu0
    %v5108 = vadd.f32 %v5020, %v5107
    %v5109 = vpop.f32.mrf.mxu0
    %5110 = vmatprep.mubr.f32.mxu0 0.0
    %5111 = vmatmul.mubr.f32.gmra.mxu0 %v4824
    %v5112 = vpop.f32.mrf.mxu0
    %v5113 = vadd.f32 %v5020, %v5112
    %v5114 = vpop.f32.mrf.mxu0
    %5115 = vmatprep.mubr.f32.mxu0 0.0
    %5116 = vmatmul.mubr.f32.gmra.mxu0 %v4827
    %v5117 = vpop.f32.mrf.mxu0
    %v5118 = vadd.f32 %v5020, %v5117
    %v5119 = vpop.f32.mrf.mxu0
    %5120 = vmatprep.mubr.f32.mxu0 0.0
    %5121 = vmatmul.mubr.f32.gmra.mxu0 %v4830
    %v5122 = vpop.f32.mrf.mxu0
    %v5123 = vadd.f32 %v5020, %v5122
    %v5124 = vpop.f32.mrf.mxu0
    %5125 = vmatprep.mubr.f32.mxu0 0.0
    %5126 = vmatmul.mubr.f32.gmra.mxu0 %v4833
    %v5127 = vpop.f32.mrf.mxu0
    %v5128 = vadd.f32 %v5020, %v5127
    %v5129 = vpop.f32.mrf.mxu0
    %5130 = vmatprep.mubr.f32.mxu0 0.0
    %5131 = vmatmul.mubr.f32.gmra.mxu0 %v4836
    %v5132 = vpop.f32.mrf.mxu0
    %v5133 = vadd.f32 %v5020, %v5132
    %v5134 = vpop.f32.mrf.mxu0
    %5135 = vmatprep.mubr.f32.mxu0 0.0
    %5136 = vmatmul.mubr.f32.gmra.mxu0 %v4839
    %v5137 = vpop.f32.mrf.mxu0
    %v5138 = vadd.f32 %v5020, %v5137
    %v5139 = vpop.f32.mrf.mxu0
    %5140 = vmatprep.mubr.f32.mxu0 0.0
    %5141 = vmatmul.mubr.f32.gmra.mxu0 %v4842
    %v5142 = vpop.f32.mrf.mxu0
    %v5143 = vadd.f32 %v5020, %v5142
    %v5144 = vpop.f32.mrf.mxu0
    %5145 = vmatprep.mubr.f32.mxu0 0.0
    %5146 = vmatmul.mubr.f32.gmra.mxu0 %v4845
    %v5147 = vpop.f32.mrf.mxu0
    %v5148 = vadd.f32 %v5020, %v5147
    %v5149 = vpop.f32.mrf.mxu0
    %5150 = vmatprep.mubr.f32.mxu0 0.0
    %5151 = vmatmul.mubr.f32.gmra.mxu0 %v4848
    %v5152 = vpop.f32.mrf.mxu0
    %v5153 = vadd.f32 %v5020, %v5152
    %v5154 = vpop.f32.mrf.mxu0
    %5155 = vmatprep.mubr.f32.mxu0 0.0
    %5156 = vmatmul.mubr.f32.gmra.mxu0 %v4851
    %v5157 = vpop.f32.mrf.mxu0
    %v5158 = vadd.f32 %v5020, %v5157
    %v5159 = vpop.f32.mrf.mxu0
    %5160 = vmatprep.mubr.f32.mxu0 0.0
    %5161 = vmatmul.mubr.f32.gmra.mxu0 %v4854
    %v5162 = vpop.f32.mrf.mxu0
    %v5163 = vadd.f32 %v5020, %v5162
    %v5164 = vpop.f32.mrf.mxu0
    %5165 = vdwg.mxu0
    %v5166 = vlaneseq
    %v5167 = vshrl.u32 %v5166, 7
    %v5168 = vsub.s32 2, %v5167
    %v5169 = vrot.slane %v4802, %v5168
    %5170 = vmatprep.subr.mxu0 0.0
    %5171 = vmatpush1.msra.mxu0 0.0
    %5172 = vmatprep.subr.mxu0 0.0
    %5173 = vmatpush1.msra.mxu0 0.0
    %5174 = vmatprep.subr.mxu0 0.0
    %5175 = vmatpush1.msra.mxu0 0.0
    %5176 = vmatprep.subr.mxu0 0.0
    %5177 = vmatpush1.msra.mxu0 0.0
    %5178 = vmatprep.subr.mxu0 0.0
    %5179 = vmatpush1.msra.mxu0 0.0
    %5180 = vmatprep.subr.mxu0 0.0
    %5181 = vmatpush1.msra.mxu0 0.0
    %5182 = vmatprep.subr.mxu0 0.0
    %5183 = vmatpush1.msra.mxu0 0.0
    %5184 = vmatprep.subr.mxu0 0.0
    %5185 = vmatpush1.msra.mxu0 0.0
    %5186 = vmatprep.subr.mxu0 0.0
    %5187 = vmatpush1.msra.mxu0 0.0
    %5188 = vmatprep.subr.mxu0 0.0
    %5189 = vmatpush1.msra.mxu0 0.0
    %5190 = vmatprep.subr.mxu0 0.0
    %5191 = vmatpush1.msra.mxu0 0.0
    %5192 = vmatprep.subr.mxu0 0.0
    %5193 = vmatpush1.msra.mxu0 0.0
    %5194 = vmatprep.subr.mxu0 0.0
    %5195 = vmatpush1.msra.mxu0 %v4789
    %5196 = vmatprep.subr.mxu0 0.0
    %5197 = vmatpush1.msra.mxu0 %v4784
    %5198 = vmatprep.subr.mxu0 0.0
    %5199 = vmatpush1.msra.mxu0 %v4779
    %5200 = vmatprep.subr.mxu0 0.0
    %5201 = vmatpush1.msra.mxu0 %v4774
    %5202 = vmatprep.subr.mxu0 0.0
    %5203 = vmatpush2.msra.mxu0 0.0
    %5204 = vmatprep.subr.mxu0 0.0
    %5205 = vmatpush2.msra.mxu0 0.0
    %5206 = vmatprep.subr.mxu0 0.0
    %5207 = vmatpush2.msra.mxu0 0.0
    %5208 = vmatprep.subr.mxu0 0.0
    %5209 = vmatpush2.msra.mxu0 0.0
    %5210 = vmatprep.subr.mxu0 0.0
    %5211 = vmatpush2.msra.mxu0 0.0
    %5212 = vmatprep.subr.mxu0 0.0
    %5213 = vmatpush2.msra.mxu0 0.0
    %5214 = vmatprep.subr.mxu0 0.0
    %5215 = vmatpush2.msra.mxu0 0.0
    %5216 = vmatprep.subr.mxu0 0.0
    %5217 = vmatpush2.msra.mxu0 0.0
    %5218 = vmatprep.subr.mxu0 0.0
    %5219 = vmatpush2.msra.mxu0 0.0
    %5220 = vmatprep.subr.mxu0 0.0
    %5221 = vmatpush2.msra.mxu0 0.0
    %5222 = vmatprep.subr.mxu0 0.0
    %5223 = vmatpush2.msra.mxu0 0.0
    %5224 = vmatprep.subr.mxu0 0.0
    %5225 = vmatpush2.msra.mxu0 0.0
    %5226 = vmatprep.subr.mxu0 0.0
    %5227 = vmatpush2.msra.mxu0 0.0
    %5228 = vmatprep.subr.mxu0 0.0
    %5229 = vmatpush2.msra.mxu0 0.0
    %5230 = vmatprep.subr.mxu0 0.0
    %5231 = vmatpush2.msra.mxu0 0.0
    %5232 = vmatprep.subr.mxu0 0.0
    %5233 = vmatpush2.msra.mxu0 0.0
    %5234 = vmatprep.mubr.f32.mxu0 0.0
    %5235 = vmatmul.mubr.f32.gmra.mxu0 %v4809
    %v5236 = vpop.f32.mrf.mxu0
    %v5237 = vadd.f32 %v5169, %v5236
    %v5238 = vpop.f32.mrf.mxu0
    %5239 = vmatprep.mubr.f32.mxu0 0.0
    %5240 = vmatmul.mubr.f32.gmra.mxu0 %v4812
    %v5241 = vpop.f32.mrf.mxu0
    %v5242 = vadd.f32 %v5169, %v5241
    %v5243 = vpop.f32.mrf.mxu0
    %5244 = vmatprep.mubr.f32.mxu0 0.0
    %5245 = vmatmul.mubr.f32.gmra.mxu0 %v4815
    %v5246 = vpop.f32.mrf.mxu0
    %v5247 = vadd.f32 %v5169, %v5246
    %v5248 = vpop.f32.mrf.mxu0
    %5249 = vmatprep.mubr.f32.mxu0 0.0
    %5250 = vmatmul.mubr.f32.gmra.mxu0 %v4818
    %v5251 = vpop.f32.mrf.mxu0
    %v5252 = vadd.f32 %v5169, %v5251
    %v5253 = vpop.f32.mrf.mxu0
    %5254 = vmatprep.mubr.f32.mxu0 0.0
    %5255 = vmatmul.mubr.f32.gmra.mxu0 %v4821
    %v5256 = vpop.f32.mrf.mxu0
    %v5257 = vadd.f32 %v5169, %v5256
    %v5258 = vpop.f32.mrf.mxu0
    %5259 = vmatprep.mubr.f32.mxu0 0.0
    %5260 = vmatmul.mubr.f32.gmra.mxu0 %v4824
    %v5261 = vpop.f32.mrf.mxu0
    %v5262 = vadd.f32 %v5169, %v5261
    %v5263 = vpop.f32.mrf.mxu0
    %5264 = vmatprep.mubr.f32.mxu0 0.0
    %5265 = vmatmul.mubr.f32.gmra.mxu0 %v4827
    %v5266 = vpop.f32.mrf.mxu0
    %v5267 = vadd.f32 %v5169, %v5266
    %v5268 = vpop.f32.mrf.mxu0
    %5269 = vmatprep.mubr.f32.mxu0 0.0
    %5270 = vmatmul.mubr.f32.gmra.mxu0 %v4830
    %v5271 = vpop.f32.mrf.mxu0
    %v5272 = vadd.f32 %v5169, %v5271
    %v5273 = vpop.f32.mrf.mxu0
    %5274 = vmatprep.mubr.f32.mxu0 0.0
    %5275 = vmatmul.mubr.f32.gmra.mxu0 %v4833
    %v5276 = vpop.f32.mrf.mxu0
    %v5277 = vadd.f32 %v5169, %v5276
    %v5278 = vpop.f32.mrf.mxu0
    %5279 = vmatprep.mubr.f32.mxu0 0.0
    %5280 = vmatmul.mubr.f32.gmra.mxu0 %v4836
    %v5281 = vpop.f32.mrf.mxu0
    %v5282 = vadd.f32 %v5169, %v5281
    %v5283 = vpop.f32.mrf.mxu0
    %5284 = vmatprep.mubr.f32.mxu0 0.0
    %5285 = vmatmul.mubr.f32.gmra.mxu0 %v4839
    %v5286 = vpop.f32.mrf.mxu0
    %v5287 = vadd.f32 %v5169, %v5286
    %v5288 = vpop.f32.mrf.mxu0
    %5289 = vmatprep.mubr.f32.mxu0 0.0
    %5290 = vmatmul.mubr.f32.gmra.mxu0 %v4842
    %v5291 = vpop.f32.mrf.mxu0
    %v5292 = vadd.f32 %v5169, %v5291
    %v5293 = vpop.f32.mrf.mxu0
    %5294 = vmatprep.mubr.f32.mxu0 0.0
    %5295 = vmatmul.mubr.f32.gmra.mxu0 %v4845
    %v5296 = vpop.f32.mrf.mxu0
    %v5297 = vadd.f32 %v5169, %v5296
    %v5298 = vpop.f32.mrf.mxu0
    %5299 = vmatprep.mubr.f32.mxu0 0.0
    %5300 = vmatmul.mubr.f32.gmra.mxu0 %v4848
    %v5301 = vpop.f32.mrf.mxu0
    %v5302 = vadd.f32 %v5169, %v5301
    %v5303 = vpop.f32.mrf.mxu0
    %5304 = vmatprep.mubr.f32.mxu0 0.0
    %5305 = vmatmul.mubr.f32.gmra.mxu0 %v4851
    %v5306 = vpop.f32.mrf.mxu0
    %v5307 = vadd.f32 %v5169, %v5306
    %v5308 = vpop.f32.mrf.mxu0
    %5309 = vmatprep.mubr.f32.mxu0 0.0
    %5310 = vmatmul.mubr.f32.gmra.mxu0 %v4854
    %v5311 = vpop.f32.mrf.mxu0
    %v5312 = vadd.f32 %v5169, %v5311
    %v5313 = vpop.f32.mrf.mxu0
    %5314 = vdwg.mxu0
    %v5315 = vmul.f32 %v5001, %v1482
    %v5316 = vmul.f32 %v5002, %v1482
    %v5317 = vmul.f32 %v5003, %v1482
    %v5318 = vmul.f32 %v5004, %v1482
    %v5319 = vmul.f32 %v5005, %v1482
    %v5320 = vmul.f32 %v5006, %v1482
    %v5321 = vmul.f32 %v5007, %v1482
    %v5322 = vmul.f32 %v5008, %v1482
    %v5323 = vmul.f32 %v5009, %v1482
    %v5324 = vmul.f32 %v5010, %v1482
    %v5325 = vmul.f32 %v5011, %v1482
    %v5326 = vmul.f32 %v5012, %v1482
    %v5327 = vmul.f32 %v5013, %v1482
    %v5328 = vmul.f32 %v5014, %v1482
    %v5329 = vmul.f32 %v5015, %v1482
    %v5330 = vmul.f32 %v5016, %v1482
    %v5332 = vsel %vm970, %v5315, 0
    %v5335 = vsel %vm970, %v5316, 0
    %v5338 = vsel %vm970, %v5317, 0
    %v5341 = vsel %vm970, %v5318, 0
    %v5344 = vsel %vm970, %v5319, 0
    %v5347 = vsel %vm970, %v5320, 0
    %v5350 = vsel %vm970, %v5321, 0
    %v5353 = vsel %vm970, %v5322, 0
    %v5356 = vsel %vm970, %v5323, 0
    %v5359 = vsel %vm970, %v5324, 0
    %v5362 = vsel %vm970, %v5325, 0
    %v5365 = vsel %vm970, %v5326, 0
    %v5368 = vsel %vm970, %v5327, 0
    %v5371 = vsel %vm970, %v5328, 0
    %v5374 = vsel %vm970, %v5329, 0
    %v5377 = vsel %vm970, %v5330, 0
    %v5380 = vsel %vm970, %v5088, 0
    %v5383 = vsel %vm970, %v5093, 0
    %v5386 = vsel %vm970, %v5098, 0
    %v5389 = vsel %vm970, %v5103, 0
    %v5392 = vsel %vm970, %v5108, 0
    %v5395 = vsel %vm970, %v5113, 0
    %v5398 = vsel %vm970, %v5118, 0
    %v5401 = vsel %vm970, %v5123, 0
    %v5404 = vsel %vm970, %v5128, 0
    %v5407 = vsel %vm970, %v5133, 0
    %v5410 = vsel %vm970, %v5138, 0
    %v5413 = vsel %vm970, %v5143, 0
    %v5416 = vsel %vm970, %v5148, 0
    %v5419 = vsel %vm970, %v5153, 0
    %v5422 = vsel %vm970, %v5158, 0
    %v5425 = vsel %vm970, %v5163, 0
    %5427 = vmatprep.subr.mxu0 0.0
    %5428 = vmatpush1.xpose.msra.mxu0 %v5425
    %5429 = vmatprep.subr.mxu0 0.0
    %5430 = vmatpush1.xpose.msra.mxu0 %v5422
    %5431 = vmatprep.subr.mxu0 0.0
    %5432 = vmatpush1.xpose.msra.mxu0 %v5419
    %5433 = vmatprep.subr.mxu0 0.0
    %5434 = vmatpush1.xpose.msra.mxu0 %v5416
    %5435 = vmatprep.subr.mxu0 0.0
    %5436 = vmatpush1.xpose.msra.mxu0 %v5413
    %5437 = vmatprep.subr.mxu0 0.0
    %5438 = vmatpush1.xpose.msra.mxu0 %v5410
    %5439 = vmatprep.subr.mxu0 0.0
    %5440 = vmatpush1.xpose.msra.mxu0 %v5407
    %5441 = vmatprep.subr.mxu0 0.0
    %5442 = vmatpush1.xpose.msra.mxu0 %v5404
    %5443 = vmatprep.subr.mxu0 0.0
    %5444 = vmatpush1.xpose.msra.mxu0 %v5401
    %5445 = vmatprep.subr.mxu0 0.0
    %5446 = vmatpush1.xpose.msra.mxu0 %v5398
    %5447 = vmatprep.subr.mxu0 0.0
    %5448 = vmatpush1.xpose.msra.mxu0 %v5395
    %5449 = vmatprep.subr.mxu0 0.0
    %5450 = vmatpush1.xpose.msra.mxu0 %v5392
    %5451 = vmatprep.subr.mxu0 0.0
    %5452 = vmatpush1.xpose.msra.mxu0 %v5389
    %5453 = vmatprep.subr.mxu0 0.0
    %5454 = vmatpush1.xpose.msra.mxu0 %v5386
    %5455 = vmatprep.subr.mxu0 0.0
    %5456 = vmatpush1.xpose.msra.mxu0 %v5383
    %5457 = vmatprep.subr.mxu0 0.0
    %5458 = vmatpush1.xpose.msra.mxu0 %v5380
    %5459 = vmatprep.subr.mxu0 0.0
    %5460 = vmatpush2.xpose.msra.mxu0 0.0
    %5461 = vmatprep.subr.mxu0 0.0
    %5462 = vmatpush2.xpose.msra.mxu0 0.0
    %5463 = vmatprep.subr.mxu0 0.0
    %5464 = vmatpush2.xpose.msra.mxu0 0.0
    %5465 = vmatprep.subr.mxu0 0.0
    %5466 = vmatpush2.xpose.msra.mxu0 0.0
    %5467 = vmatprep.subr.mxu0 0.0
    %5468 = vmatpush2.xpose.msra.mxu0 0.0
    %5469 = vmatprep.subr.mxu0 0.0
    %5470 = vmatpush2.xpose.msra.mxu0 0.0
    %5471 = vmatprep.subr.mxu0 0.0
    %5472 = vmatpush2.xpose.msra.mxu0 0.0
    %5473 = vmatprep.subr.mxu0 0.0
    %5474 = vmatpush2.xpose.msra.mxu0 0.0
    %5475 = vmatprep.subr.mxu0 0.0
    %5476 = vmatpush2.xpose.msra.mxu0 0.0
    %5477 = vmatprep.subr.mxu0 0.0
    %5478 = vmatpush2.xpose.msra.mxu0 0.0
    %5479 = vmatprep.subr.mxu0 0.0
    %5480 = vmatpush2.xpose.msra.mxu0 0.0
    %5481 = vmatprep.subr.mxu0 0.0
    %5482 = vmatpush2.xpose.msra.mxu0 0.0
    %5483 = vmatprep.subr.mxu0 0.0
    %5484 = vmatpush2.xpose.msra.mxu0 0.0
    %5485 = vmatprep.subr.mxu0 0.0
    %5486 = vmatpush2.xpose.msra.mxu0 0.0
    %5487 = vmatprep.subr.mxu0 0.0
    %5488 = vmatpush2.xpose.msra.mxu0 0.0
    %5489 = vmatprep.subr.mxu0 0.0
    %5490 = vmatpush2.xpose.msra.mxu0 0.0
    %5491 = vmatprep.mubr.f32.mxu0 0.0
    %5492 = vmatmul.mubr.f32.gmra.mxu0 %v5332
    %v5493 = vpop.f32.mrf.mxu0
    %v5494 = vadd.f32 %v920, %v5493
    %v5495 = vpop.f32.mrf.mxu0
    %5496 = vmatprep.mubr.f32.mxu0 0.0
    %5497 = vmatmul.mubr.f32.gmra.mxu0 %v5335
    %v5498 = vpop.f32.mrf.mxu0
    %v5499 = vadd.f32 %v921, %v5498
    %v5500 = vpop.f32.mrf.mxu0
    %5501 = vmatprep.mubr.f32.mxu0 0.0
    %5502 = vmatmul.mubr.f32.gmra.mxu0 %v5338
    %v5503 = vpop.f32.mrf.mxu0
    %v5504 = vadd.f32 %v922, %v5503
    %v5505 = vpop.f32.mrf.mxu0
    %5506 = vmatprep.mubr.f32.mxu0 0.0
    %5507 = vmatmul.mubr.f32.gmra.mxu0 %v5341
    %v5508 = vpop.f32.mrf.mxu0
    %v5509 = vadd.f32 %v923, %v5508
    %v5510 = vpop.f32.mrf.mxu0
    %5511 = vmatprep.mubr.f32.mxu0 0.0
    %5512 = vmatmul.mubr.f32.gmra.mxu0 %v5344
    %v5513 = vpop.f32.mrf.mxu0
    %v5514 = vadd.f32 %v924, %v5513
    %v5515 = vpop.f32.mrf.mxu0
    %5516 = vmatprep.mubr.f32.mxu0 0.0
    %5517 = vmatmul.mubr.f32.gmra.mxu0 %v5347
    %v5518 = vpop.f32.mrf.mxu0
    %v5519 = vadd.f32 %v925, %v5518
    %v5520 = vpop.f32.mrf.mxu0
    %5521 = vmatprep.mubr.f32.mxu0 0.0
    %5522 = vmatmul.mubr.f32.gmra.mxu0 %v5350
    %v5523 = vpop.f32.mrf.mxu0
    %v5524 = vadd.f32 %v926, %v5523
    %v5525 = vpop.f32.mrf.mxu0
    %5526 = vmatprep.mubr.f32.mxu0 0.0
    %5527 = vmatmul.mubr.f32.gmra.mxu0 %v5353
    %v5528 = vpop.f32.mrf.mxu0
    %v5529 = vadd.f32 %v927, %v5528
    %v5530 = vpop.f32.mrf.mxu0
    %5531 = vmatprep.mubr.f32.mxu0 0.0
    %5532 = vmatmul.mubr.f32.gmra.mxu0 %v5356
    %v5533 = vpop.f32.mrf.mxu0
    %v5534 = vadd.f32 %v928, %v5533
    %v5535 = vpop.f32.mrf.mxu0
    %5536 = vmatprep.mubr.f32.mxu0 0.0
    %5537 = vmatmul.mubr.f32.gmra.mxu0 %v5359
    %v5538 = vpop.f32.mrf.mxu0
    %v5539 = vadd.f32 %v929, %v5538
    %v5540 = vpop.f32.mrf.mxu0
    %5541 = vmatprep.mubr.f32.mxu0 0.0
    %5542 = vmatmul.mubr.f32.gmra.mxu0 %v5362
    %v5543 = vpop.f32.mrf.mxu0
    %v5544 = vadd.f32 %v930, %v5543
    %v5545 = vpop.f32.mrf.mxu0
    %5546 = vmatprep.mubr.f32.mxu0 0.0
    %5547 = vmatmul.mubr.f32.gmra.mxu0 %v5365
    %v5548 = vpop.f32.mrf.mxu0
    %v5549 = vadd.f32 %v931, %v5548
    %v5550 = vpop.f32.mrf.mxu0
    %5551 = vmatprep.mubr.f32.mxu0 0.0
    %5552 = vmatmul.mubr.f32.gmra.mxu0 %v5368
    %v5553 = vpop.f32.mrf.mxu0
    %v5554 = vadd.f32 %v932, %v5553
    %v5555 = vpop.f32.mrf.mxu0
    %5556 = vmatprep.mubr.f32.mxu0 0.0
    %5557 = vmatmul.mubr.f32.gmra.mxu0 %v5371
    %v5558 = vpop.f32.mrf.mxu0
    %v5559 = vadd.f32 %v933, %v5558
    %v5560 = vpop.f32.mrf.mxu0
    %5561 = vmatprep.mubr.f32.mxu0 0.0
    %5562 = vmatmul.mubr.f32.gmra.mxu0 %v5374
    %v5563 = vpop.f32.mrf.mxu0
    %v5564 = vadd.f32 %v934, %v5563
    %v5565 = vpop.f32.mrf.mxu0
    %5566 = vmatprep.mubr.f32.mxu0 0.0
    %5567 = vmatmul.mubr.f32.gmra.mxu0 %v5377
    %v5568 = vpop.f32.mrf.mxu0
    %v5569 = vadd.f32 %v935, %v5568
    %v5570 = vpop.f32.mrf.mxu0
    %5571 = vdwg.mxu0
    %5572 = vmax.xlane.f32.xlu0 %v5494
    %v5573 = vpop.xlane.xlu0 %5572
    %5574 = vmax.xlane.f32.xlu0 %v5499
    %v5575 = vpop.xlane.xlu0 %5574
    %5576 = vmax.xlane.f32.xlu0 %v5504
    %v5577 = vpop.xlane.xlu0 %5576
    %5578 = vmax.xlane.f32.xlu0 %v5509
    %v5579 = vpop.xlane.xlu0 %5578
    %5580 = vmax.xlane.f32.xlu0 %v5514
    %v5581 = vpop.xlane.xlu0 %5580
    %5582 = vmax.xlane.f32.xlu0 %v5519
    %v5583 = vpop.xlane.xlu0 %5582
    %5584 = vmax.xlane.f32.xlu0 %v5524
    %v5585 = vpop.xlane.xlu0 %5584
    %5586 = vmax.xlane.f32.xlu0 %v5529
    %v5587 = vpop.xlane.xlu0 %5586
    %5588 = vmax.xlane.f32.xlu0 %v5534
    %v5589 = vpop.xlane.xlu0 %5588
    %5590 = vmax.xlane.f32.xlu0 %v5539
    %v5591 = vpop.xlane.xlu0 %5590
    %5592 = vmax.xlane.f32.xlu0 %v5544
    %v5593 = vpop.xlane.xlu0 %5592
    %5594 = vmax.xlane.f32.xlu0 %v5549
    %v5595 = vpop.xlane.xlu0 %5594
    %5596 = vmax.xlane.f32.xlu0 %v5554
    %v5597 = vpop.xlane.xlu0 %5596
    %5598 = vmax.xlane.f32.xlu0 %v5559
    %v5599 = vpop.xlane.xlu0 %5598
    %5600 = vmax.xlane.f32.xlu0 %v5564
    %v5601 = vpop.xlane.xlu0 %5600
    %5602 = vmax.xlane.f32.xlu0 %v5569
    %v5603 = vpop.xlane.xlu0 %5602
    %v5604 = vsub.f32 %v5494, %v5573
    %v5605 = vsub.f32 %v5499, %v5575
    %v5606 = vsub.f32 %v5504, %v5577
    %v5607 = vsub.f32 %v5509, %v5579
    %v5608 = vsub.f32 %v5514, %v5581
    %v5609 = vsub.f32 %v5519, %v5583
    %v5610 = vsub.f32 %v5524, %v5585
    %v5611 = vsub.f32 %v5529, %v5587
    %v5612 = vsub.f32 %v5534, %v5589
    %v5613 = vsub.f32 %v5539, %v5591
    %v5614 = vsub.f32 %v5544, %v5593
    %v5615 = vsub.f32 %v5549, %v5595
    %v5616 = vsub.f32 %v5554, %v5597
    %v5617 = vsub.f32 %v5559, %v5599
    %v5618 = vsub.f32 %v5564, %v5601
    %v5619 = vsub.f32 %v5569, %v5603
    %v5620 = vmul.f32 %v5604, 1.442695
    %v5621 = vpow.pop %v5620
    %v5622 = vmul.f32 %v5605, 1.442695
    %v5623 = vpow.pop %v5622
    %v5624 = vmul.f32 %v5606, 1.442695
    %v5625 = vpow.pop %v5624
    %v5626 = vmul.f32 %v5607, 1.442695
    %v5627 = vpow.pop %v5626
    %v5628 = vmul.f32 %v5608, 1.442695
    %v5629 = vpow.pop %v5628
    %v5630 = vmul.f32 %v5609, 1.442695
    %v5631 = vpow.pop %v5630
    %v5632 = vmul.f32 %v5610, 1.442695
    %v5633 = vpow.pop %v5632
    %v5634 = vmul.f32 %v5611, 1.442695
    %v5635 = vpow.pop %v5634
    %v5636 = vmul.f32 %v5612, 1.442695
    %v5637 = vpow.pop %v5636
    %v5638 = vmul.f32 %v5613, 1.442695
    %v5639 = vpow.pop %v5638
    %v5640 = vmul.f32 %v5614, 1.442695
    %v5641 = vpow.pop %v5640
    %v5642 = vmul.f32 %v5615, 1.442695
    %v5643 = vpow.pop %v5642
    %v5644 = vmul.f32 %v5616, 1.442695
    %v5645 = vpow.pop %v5644
    %v5646 = vmul.f32 %v5617, 1.442695
    %v5647 = vpow.pop %v5646
    %v5648 = vmul.f32 %v5618, 1.442695
    %v5649 = vpow.pop %v5648
    %v5650 = vmul.f32 %v5619, 1.442695
    %v5651 = vpow.pop %v5650
    %5652 = vadd.xlane.f32.xlu0 %v5621
    %v5653 = vpop.xlane.xlu0 %5652
    %5654 = vadd.xlane.f32.xlu0 %v5623
    %v5655 = vpop.xlane.xlu0 %5654
    %5656 = vadd.xlane.f32.xlu0 %v5625
    %v5657 = vpop.xlane.xlu0 %5656
    %5658 = vadd.xlane.f32.xlu0 %v5627
    %v5659 = vpop.xlane.xlu0 %5658
    %5660 = vadd.xlane.f32.xlu0 %v5629
    %v5661 = vpop.xlane.xlu0 %5660
    %5662 = vadd.xlane.f32.xlu0 %v5631
    %v5663 = vpop.xlane.xlu0 %5662
    %5664 = vadd.xlane.f32.xlu0 %v5633
    %v5665 = vpop.xlane.xlu0 %5664
    %5666 = vadd.xlane.f32.xlu0 %v5635
    %v5667 = vpop.xlane.xlu0 %5666
    %5668 = vadd.xlane.f32.xlu0 %v5637
    %v5669 = vpop.xlane.xlu0 %5668
    %5670 = vadd.xlane.f32.xlu0 %v5639
    %v5671 = vpop.xlane.xlu0 %5670
    %5672 = vadd.xlane.f32.xlu0 %v5641
    %v5673 = vpop.xlane.xlu0 %5672
    %5674 = vadd.xlane.f32.xlu0 %v5643
    %v5675 = vpop.xlane.xlu0 %5674
    %5676 = vadd.xlane.f32.xlu0 %v5645
    %v5677 = vpop.xlane.xlu0 %5676
    %5678 = vadd.xlane.f32.xlu0 %v5647
    %v5679 = vpop.xlane.xlu0 %5678
    %5680 = vadd.xlane.f32.xlu0 %v5649
    %v5681 = vpop.xlane.xlu0 %5680
    %5682 = vadd.xlane.f32.xlu0 %v5651
    %v5683 = vpop.xlane.xlu0 %5682
    %v5684 = vrcp.pop %v5653
    %v5685 = vrcp.pop %v5655
    %v5686 = vrcp.pop %v5657
    %v5687 = vrcp.pop %v5659
    %v5688 = vrcp.pop %v5661
    %v5689 = vrcp.pop %v5663
    %v5690 = vrcp.pop %v5665
    %v5691 = vrcp.pop %v5667
    %v5692 = vrcp.pop %v5669
    %v5693 = vrcp.pop %v5671
    %v5694 = vrcp.pop %v5673
    %v5695 = vrcp.pop %v5675
    %v5696 = vrcp.pop %v5677
    %v5697 = vrcp.pop %v5679
    %v5698 = vrcp.pop %v5681
    %v5699 = vrcp.pop %v5683
    %v5700 = vmul.f32 %v5621, %v5684
    %v5701 = vmul.f32 %v5623, %v5685
    %v5702 = vmul.f32 %v5625, %v5686
    %v5703 = vmul.f32 %v5627, %v5687
    %v5704 = vmul.f32 %v5629, %v5688
    %v5705 = vmul.f32 %v5631, %v5689
    %v5706 = vmul.f32 %v5633, %v5690
    %v5707 = vmul.f32 %v5635, %v5691
    %v5708 = vmul.f32 %v5637, %v5692
    %v5709 = vmul.f32 %v5639, %v5693
    %v5710 = vmul.f32 %v5641, %v5694
    %v5711 = vmul.f32 %v5643, %v5695
    %v5712 = vmul.f32 %v5645, %v5696
    %v5713 = vmul.f32 %v5647, %v5697
    %v5714 = vmul.f32 %v5649, %v5698
    %v5715 = vmul.f32 %v5651, %v5699
    %v5716 = vmul.f32 %v5237, %v1482
    %v5717 = vmul.f32 %v5242, %v1482
    %v5718 = vmul.f32 %v5247, %v1482
    %v5719 = vmul.f32 %v5252, %v1482
    %v5720 = vmul.f32 %v5257, %v1482
    %v5721 = vmul.f32 %v5262, %v1482
    %v5722 = vmul.f32 %v5267, %v1482
    %v5723 = vmul.f32 %v5272, %v1482
    %v5724 = vmul.f32 %v5277, %v1482
    %v5725 = vmul.f32 %v5282, %v1482
    %v5726 = vmul.f32 %v5287, %v1482
    %v5727 = vmul.f32 %v5292, %v1482
    %v5728 = vmul.f32 %v5297, %v1482
    %v5729 = vmul.f32 %v5302, %v1482
    %v5730 = vmul.f32 %v5307, %v1482
    %v5731 = vmul.f32 %v5312, %v1482
    %v5732 = vmul.f32 %v5001, %v1904
    %v5733 = vmul.f32 %v5002, %v1904
    %v5734 = vmul.f32 %v5003, %v1904
    %v5735 = vmul.f32 %v5004, %v1904
    %v5736 = vmul.f32 %v5005, %v1904
    %v5737 = vmul.f32 %v5006, %v1904
    %v5738 = vmul.f32 %v5007, %v1904
    %v5739 = vmul.f32 %v5008, %v1904
    %v5740 = vmul.f32 %v5009, %v1904
    %v5741 = vmul.f32 %v5010, %v1904
    %v5742 = vmul.f32 %v5011, %v1904
    %v5743 = vmul.f32 %v5012, %v1904
    %v5744 = vmul.f32 %v5013, %v1904
    %v5745 = vmul.f32 %v5014, %v1904
    %v5746 = vmul.f32 %v5015, %v1904
    %v5747 = vmul.f32 %v5016, %v1904
    %v5749 = vsel %vm970, %v5732, 0
    %v5752 = vsel %vm970, %v5733, 0
    %v5755 = vsel %vm970, %v5734, 0
    %v5758 = vsel %vm970, %v5735, 0
    %v5761 = vsel %vm970, %v5736, 0
    %v5764 = vsel %vm970, %v5737, 0
    %v5767 = vsel %vm970, %v5738, 0
    %v5770 = vsel %vm970, %v5739, 0
    %v5773 = vsel %vm970, %v5740, 0
    %v5776 = vsel %vm970, %v5741, 0
    %v5779 = vsel %vm970, %v5742, 0
    %v5782 = vsel %vm970, %v5743, 0
    %v5785 = vsel %vm970, %v5744, 0
    %v5788 = vsel %vm970, %v5745, 0
    %v5791 = vsel %vm970, %v5746, 0
    %v5794 = vsel %vm970, %v5747, 0
    %5796 = vmatprep.subr.mxu0 0.0
    %5797 = vmatpush1.xpose.msra.mxu0 %v5425
    %5798 = vmatprep.subr.mxu0 0.0
    %5799 = vmatpush1.xpose.msra.mxu0 %v5422
    %5800 = vmatprep.subr.mxu0 0.0
    %5801 = vmatpush1.xpose.msra.mxu0 %v5419
    %5802 = vmatprep.subr.mxu0 0.0
    %5803 = vmatpush1.xpose.msra.mxu0 %v5416
    %5804 = vmatprep.subr.mxu0 0.0
    %5805 = vmatpush1.xpose.msra.mxu0 %v5413
    %5806 = vmatprep.subr.mxu0 0.0
    %5807 = vmatpush1.xpose.msra.mxu0 %v5410
    %5808 = vmatprep.subr.mxu0 0.0
    %5809 = vmatpush1.xpose.msra.mxu0 %v5407
    %5810 = vmatprep.subr.mxu0 0.0
    %5811 = vmatpush1.xpose.msra.mxu0 %v5404
    %5812 = vmatprep.subr.mxu0 0.0
    %5813 = vmatpush1.xpose.msra.mxu0 %v5401
    %5814 = vmatprep.subr.mxu0 0.0
    %5815 = vmatpush1.xpose.msra.mxu0 %v5398
    %5816 = vmatprep.subr.mxu0 0.0
    %5817 = vmatpush1.xpose.msra.mxu0 %v5395
    %5818 = vmatprep.subr.mxu0 0.0
    %5819 = vmatpush1.xpose.msra.mxu0 %v5392
    %5820 = vmatprep.subr.mxu0 0.0
    %5821 = vmatpush1.xpose.msra.mxu0 %v5389
    %5822 = vmatprep.subr.mxu0 0.0
    %5823 = vmatpush1.xpose.msra.mxu0 %v5386
    %5824 = vmatprep.subr.mxu0 0.0
    %5825 = vmatpush1.xpose.msra.mxu0 %v5383
    %5826 = vmatprep.subr.mxu0 0.0
    %5827 = vmatpush1.xpose.msra.mxu0 %v5380
    %5828 = vmatprep.subr.mxu0 0.0
    %5829 = vmatpush2.xpose.msra.mxu0 0.0
    %5830 = vmatprep.subr.mxu0 0.0
    %5831 = vmatpush2.xpose.msra.mxu0 0.0
    %5832 = vmatprep.subr.mxu0 0.0
    %5833 = vmatpush2.xpose.msra.mxu0 0.0
    %5834 = vmatprep.subr.mxu0 0.0
    %5835 = vmatpush2.xpose.msra.mxu0 0.0
    %5836 = vmatprep.subr.mxu0 0.0
    %5837 = vmatpush2.xpose.msra.mxu0 0.0
    %5838 = vmatprep.subr.mxu0 0.0
    %5839 = vmatpush2.xpose.msra.mxu0 0.0
    %5840 = vmatprep.subr.mxu0 0.0
    %5841 = vmatpush2.xpose.msra.mxu0 0.0
    %5842 = vmatprep.subr.mxu0 0.0
    %5843 = vmatpush2.xpose.msra.mxu0 0.0
    %5844 = vmatprep.subr.mxu0 0.0
    %5845 = vmatpush2.xpose.msra.mxu0 0.0
    %5846 = vmatprep.subr.mxu0 0.0
    %5847 = vmatpush2.xpose.msra.mxu0 0.0
    %5848 = vmatprep.subr.mxu0 0.0
    %5849 = vmatpush2.xpose.msra.mxu0 0.0
    %5850 = vmatprep.subr.mxu0 0.0
    %5851 = vmatpush2.xpose.msra.mxu0 0.0
    %5852 = vmatprep.subr.mxu0 0.0
    %5853 = vmatpush2.xpose.msra.mxu0 0.0
    %5854 = vmatprep.subr.mxu0 0.0
    %5855 = vmatpush2.xpose.msra.mxu0 0.0
    %5856 = vmatprep.subr.mxu0 0.0
    %5857 = vmatpush2.xpose.msra.mxu0 0.0
    %5858 = vmatprep.subr.mxu0 0.0
    %5859 = vmatpush2.xpose.msra.mxu0 0.0
    %5860 = vmatprep.mubr.f32.mxu0 0.0
    %5861 = vmatmul.mubr.f32.gmra.mxu0 %v5749
    %v5862 = vpop.f32.mrf.mxu0
    %v5863 = vadd.f32 %v920, %v5862
    %v5864 = vpop.f32.mrf.mxu0
    %5865 = vmatprep.mubr.f32.mxu0 0.0
    %5866 = vmatmul.mubr.f32.gmra.mxu0 %v5752
    %v5867 = vpop.f32.mrf.mxu0
    %v5868 = vadd.f32 %v921, %v5867
    %v5869 = vpop.f32.mrf.mxu0
    %5870 = vmatprep.mubr.f32.mxu0 0.0
    %5871 = vmatmul.mubr.f32.gmra.mxu0 %v5755
    %v5872 = vpop.f32.mrf.mxu0
    %v5873 = vadd.f32 %v922, %v5872
    %v5874 = vpop.f32.mrf.mxu0
    %5875 = vmatprep.mubr.f32.mxu0 0.0
    %5876 = vmatmul.mubr.f32.gmra.mxu0 %v5758
    %v5877 = vpop.f32.mrf.mxu0
    %v5878 = vadd.f32 %v923, %v5877
    %v5879 = vpop.f32.mrf.mxu0
    %5880 = vmatprep.mubr.f32.mxu0 0.0
    %5881 = vmatmul.mubr.f32.gmra.mxu0 %v5761
    %v5882 = vpop.f32.mrf.mxu0
    %v5883 = vadd.f32 %v924, %v5882
    %v5884 = vpop.f32.mrf.mxu0
    %5885 = vmatprep.mubr.f32.mxu0 0.0
    %5886 = vmatmul.mubr.f32.gmra.mxu0 %v5764
    %v5887 = vpop.f32.mrf.mxu0
    %v5888 = vadd.f32 %v925, %v5887
    %v5889 = vpop.f32.mrf.mxu0
    %5890 = vmatprep.mubr.f32.mxu0 0.0
    %5891 = vmatmul.mubr.f32.gmra.mxu0 %v5767
    %v5892 = vpop.f32.mrf.mxu0
    %v5893 = vadd.f32 %v926, %v5892
    %v5894 = vpop.f32.mrf.mxu0
    %5895 = vmatprep.mubr.f32.mxu0 0.0
    %5896 = vmatmul.mubr.f32.gmra.mxu0 %v5770
    %v5897 = vpop.f32.mrf.mxu0
    %v5898 = vadd.f32 %v927, %v5897
    %v5899 = vpop.f32.mrf.mxu0
    %5900 = vmatprep.mubr.f32.mxu0 0.0
    %5901 = vmatmul.mubr.f32.gmra.mxu0 %v5773
    %v5902 = vpop.f32.mrf.mxu0
    %v5903 = vadd.f32 %v928, %v5902
    %v5904 = vpop.f32.mrf.mxu0
    %5905 = vmatprep.mubr.f32.mxu0 0.0
    %5906 = vmatmul.mubr.f32.gmra.mxu0 %v5776
    %v5907 = vpop.f32.mrf.mxu0
    %v5908 = vadd.f32 %v929, %v5907
    %v5909 = vpop.f32.mrf.mxu0
    %5910 = vmatprep.mubr.f32.mxu0 0.0
    %5911 = vmatmul.mubr.f32.gmra.mxu0 %v5779
    %v5912 = vpop.f32.mrf.mxu0
    %v5913 = vadd.f32 %v930, %v5912
    %v5914 = vpop.f32.mrf.mxu0
    %5915 = vmatprep.mubr.f32.mxu0 0.0
    %5916 = vmatmul.mubr.f32.gmra.mxu0 %v5782
    %v5917 = vpop.f32.mrf.mxu0
    %v5918 = vadd.f32 %v931, %v5917
    %v5919 = vpop.f32.mrf.mxu0
    %5920 = vmatprep.mubr.f32.mxu0 0.0
    %5921 = vmatmul.mubr.f32.gmra.mxu0 %v5785
    %v5922 = vpop.f32.mrf.mxu0
    %v5923 = vadd.f32 %v932, %v5922
    %v5924 = vpop.f32.mrf.mxu0
    %5925 = vmatprep.mubr.f32.mxu0 0.0
    %5926 = vmatmul.mubr.f32.gmra.mxu0 %v5788
    %v5927 = vpop.f32.mrf.mxu0
    %v5928 = vadd.f32 %v933, %v5927
    %v5929 = vpop.f32.mrf.mxu0
    %5930 = vmatprep.mubr.f32.mxu0 0.0
    %5931 = vmatmul.mubr.f32.gmra.mxu0 %v5791
    %v5932 = vpop.f32.mrf.mxu0
    %v5933 = vadd.f32 %v934, %v5932
    %v5934 = vpop.f32.mrf.mxu0
    %5935 = vmatprep.mubr.f32.mxu0 0.0
    %5936 = vmatmul.mubr.f32.gmra.mxu0 %v5794
    %v5937 = vpop.f32.mrf.mxu0
    %v5938 = vadd.f32 %v935, %v5937
    %v5939 = vpop.f32.mrf.mxu0
    %5940 = vdwg.mxu0
    %5941 = vmax.xlane.f32.xlu0 %v5863
    %v5942 = vpop.xlane.xlu0 %5941
    %5943 = vmax.xlane.f32.xlu0 %v5868
    %v5944 = vpop.xlane.xlu0 %5943
    %5945 = vmax.xlane.f32.xlu0 %v5873
    %v5946 = vpop.xlane.xlu0 %5945
    %5947 = vmax.xlane.f32.xlu0 %v5878
    %v5948 = vpop.xlane.xlu0 %5947
    %5949 = vmax.xlane.f32.xlu0 %v5883
    %v5950 = vpop.xlane.xlu0 %5949
    %5951 = vmax.xlane.f32.xlu0 %v5888
    %v5952 = vpop.xlane.xlu0 %5951
    %5953 = vmax.xlane.f32.xlu0 %v5893
    %v5954 = vpop.xlane.xlu0 %5953
    %5955 = vmax.xlane.f32.xlu0 %v5898
    %v5956 = vpop.xlane.xlu0 %5955
    %5957 = vmax.xlane.f32.xlu0 %v5903
    %v5958 = vpop.xlane.xlu0 %5957
    %5959 = vmax.xlane.f32.xlu0 %v5908
    %v5960 = vpop.xlane.xlu0 %5959
    %5961 = vmax.xlane.f32.xlu0 %v5913
    %v5962 = vpop.xlane.xlu0 %5961
    %5963 = vmax.xlane.f32.xlu0 %v5918
    %v5964 = vpop.xlane.xlu0 %5963
    %5965 = vmax.xlane.f32.xlu0 %v5923
    %v5966 = vpop.xlane.xlu0 %5965
    %5967 = vmax.xlane.f32.xlu0 %v5928
    %v5968 = vpop.xlane.xlu0 %5967
    %5969 = vmax.xlane.f32.xlu0 %v5933
    %v5970 = vpop.xlane.xlu0 %5969
    %5971 = vmax.xlane.f32.xlu0 %v5938
    %v5972 = vpop.xlane.xlu0 %5971
    %v5973 = vsub.f32 %v5863, %v5942
    %v5974 = vsub.f32 %v5868, %v5944
    %v5975 = vsub.f32 %v5873, %v5946
    %v5976 = vsub.f32 %v5878, %v5948
    %v5977 = vsub.f32 %v5883, %v5950
    %v5978 = vsub.f32 %v5888, %v5952
    %v5979 = vsub.f32 %v5893, %v5954
    %v5980 = vsub.f32 %v5898, %v5956
    %v5981 = vsub.f32 %v5903, %v5958
    %v5982 = vsub.f32 %v5908, %v5960
    %v5983 = vsub.f32 %v5913, %v5962
    %v5984 = vsub.f32 %v5918, %v5964
    %v5985 = vsub.f32 %v5923, %v5966
    %v5986 = vsub.f32 %v5928, %v5968
    %v5987 = vsub.f32 %v5933, %v5970
    %v5988 = vsub.f32 %v5938, %v5972
    %v5989 = vmul.f32 %v5973, 1.442695
    %v5990 = vpow.pop %v5989
    %v5991 = vmul.f32 %v5974, 1.442695
    %v5992 = vpow.pop %v5991
    %v5993 = vmul.f32 %v5975, 1.442695
    %v5994 = vpow.pop %v5993
    %v5995 = vmul.f32 %v5976, 1.442695
    %v5996 = vpow.pop %v5995
    %v5997 = vmul.f32 %v5977, 1.442695
    %v5998 = vpow.pop %v5997
    %v5999 = vmul.f32 %v5978, 1.442695
    %v6000 = vpow.pop %v5999
    %v6001 = vmul.f32 %v5979, 1.442695
    %v6002 = vpow.pop %v6001
    %v6003 = vmul.f32 %v5980, 1.442695
    %v6004 = vpow.pop %v6003
    %v6005 = vmul.f32 %v5981, 1.442695
    %v6006 = vpow.pop %v6005
    %v6007 = vmul.f32 %v5982, 1.442695
    %v6008 = vpow.pop %v6007
    %v6009 = vmul.f32 %v5983, 1.442695
    %v6010 = vpow.pop %v6009
    %v6011 = vmul.f32 %v5984, 1.442695
    %v6012 = vpow.pop %v6011
    %v6013 = vmul.f32 %v5985, 1.442695
    %v6014 = vpow.pop %v6013
    %v6015 = vmul.f32 %v5986, 1.442695
    %v6016 = vpow.pop %v6015
    %v6017 = vmul.f32 %v5987, 1.442695
    %v6018 = vpow.pop %v6017
    %v6019 = vmul.f32 %v5988, 1.442695
    %v6020 = vpow.pop %v6019
    %6021 = vadd.xlane.f32.xlu0 %v5990
    %v6022 = vpop.xlane.xlu0 %6021
    %6023 = vadd.xlane.f32.xlu0 %v5992
    %v6024 = vpop.xlane.xlu0 %6023
    %6025 = vadd.xlane.f32.xlu0 %v5994
    %v6026 = vpop.xlane.xlu0 %6025
    %6027 = vadd.xlane.f32.xlu0 %v5996
    %v6028 = vpop.xlane.xlu0 %6027
    %6029 = vadd.xlane.f32.xlu0 %v5998
    %v6030 = vpop.xlane.xlu0 %6029
    %6031 = vadd.xlane.f32.xlu0 %v6000
    %v6032 = vpop.xlane.xlu0 %6031
    %6033 = vadd.xlane.f32.xlu0 %v6002
    %v6034 = vpop.xlane.xlu0 %6033
    %6035 = vadd.xlane.f32.xlu0 %v6004
    %v6036 = vpop.xlane.xlu0 %6035
    %6037 = vadd.xlane.f32.xlu0 %v6006
    %v6038 = vpop.xlane.xlu0 %6037
    %6039 = vadd.xlane.f32.xlu0 %v6008
    %v6040 = vpop.xlane.xlu0 %6039
    %6041 = vadd.xlane.f32.xlu0 %v6010
    %v6042 = vpop.xlane.xlu0 %6041
    %6043 = vadd.xlane.f32.xlu0 %v6012
    %v6044 = vpop.xlane.xlu0 %6043
    %6045 = vadd.xlane.f32.xlu0 %v6014
    %v6046 = vpop.xlane.xlu0 %6045
    %6047 = vadd.xlane.f32.xlu0 %v6016
    %v6048 = vpop.xlane.xlu0 %6047
    %6049 = vadd.xlane.f32.xlu0 %v6018
    %v6050 = vpop.xlane.xlu0 %6049
    %6051 = vadd.xlane.f32.xlu0 %v6020
    %v6052 = vpop.xlane.xlu0 %6051
    %v6053 = vrcp.pop %v6022
    %v6054 = vrcp.pop %v6024
    %v6055 = vrcp.pop %v6026
    %v6056 = vrcp.pop %v6028
    %v6057 = vrcp.pop %v6030
    %v6058 = vrcp.pop %v6032
    %v6059 = vrcp.pop %v6034
    %v6060 = vrcp.pop %v6036
    %v6061 = vrcp.pop %v6038
    %v6062 = vrcp.pop %v6040
    %v6063 = vrcp.pop %v6042
    %v6064 = vrcp.pop %v6044
    %v6065 = vrcp.pop %v6046
    %v6066 = vrcp.pop %v6048
    %v6067 = vrcp.pop %v6050
    %v6068 = vrcp.pop %v6052
    %v6069 = vmul.f32 %v5990, %v6053
    %v6070 = vmul.f32 %v5992, %v6054
    %v6071 = vmul.f32 %v5994, %v6055
    %v6072 = vmul.f32 %v5996, %v6056
    %v6073 = vmul.f32 %v5998, %v6057
    %v6074 = vmul.f32 %v6000, %v6058
    %v6075 = vmul.f32 %v6002, %v6059
    %v6076 = vmul.f32 %v6004, %v6060
    %v6077 = vmul.f32 %v6006, %v6061
    %v6078 = vmul.f32 %v6008, %v6062
    %v6079 = vmul.f32 %v6010, %v6063
    %v6080 = vmul.f32 %v6012, %v6064
    %v6081 = vmul.f32 %v6014, %v6065
    %v6082 = vmul.f32 %v6016, %v6066
    %v6083 = vmul.f32 %v6018, %v6067
    %v6084 = vmul.f32 %v6020, %v6068
    %v6085 = vmul.f32 %v5237, %v1904
    %v6086 = vmul.f32 %v5242, %v1904
    %v6087 = vmul.f32 %v5247, %v1904
    %v6088 = vmul.f32 %v5252, %v1904
    %v6089 = vmul.f32 %v5257, %v1904
    %v6090 = vmul.f32 %v5262, %v1904
    %v6091 = vmul.f32 %v5267, %v1904
    %v6092 = vmul.f32 %v5272, %v1904
    %v6093 = vmul.f32 %v5277, %v1904
    %v6094 = vmul.f32 %v5282, %v1904
    %v6095 = vmul.f32 %v5287, %v1904
    %v6096 = vmul.f32 %v5292, %v1904
    %v6097 = vmul.f32 %v5297, %v1904
    %v6098 = vmul.f32 %v5302, %v1904
    %v6099 = vmul.f32 %v5307, %v1904
    %v6100 = vmul.f32 %v5312, %v1904
    %6101 = vmatprep.subr.mxu0 0.0
    %6102 = vmatpush1.msra.mxu0 %v6100
    %6103 = vmatprep.subr.mxu0 0.0
    %6104 = vmatpush1.msra.mxu0 %v6099
    %6105 = vmatprep.subr.mxu0 0.0
    %6106 = vmatpush1.msra.mxu0 %v6098
    %6107 = vmatprep.subr.mxu0 0.0
    %6108 = vmatpush1.msra.mxu0 %v6097
    %6109 = vmatprep.subr.mxu0 0.0
    %6110 = vmatpush1.msra.mxu0 %v6096
    %6111 = vmatprep.subr.mxu0 0.0
    %6112 = vmatpush1.msra.mxu0 %v6095
    %6113 = vmatprep.subr.mxu0 0.0
    %6114 = vmatpush1.msra.mxu0 %v6094
    %6115 = vmatprep.subr.mxu0 0.0
    %6116 = vmatpush1.msra.mxu0 %v6093
    %6117 = vmatprep.subr.mxu0 0.0
    %6118 = vmatpush1.msra.mxu0 %v6092
    %6119 = vmatprep.subr.mxu0 0.0
    %6120 = vmatpush1.msra.mxu0 %v6091
    %6121 = vmatprep.subr.mxu0 0.0
    %6122 = vmatpush1.msra.mxu0 %v6090
    %6123 = vmatprep.subr.mxu0 0.0
    %6124 = vmatpush1.msra.mxu0 %v6089
    %6125 = vmatprep.subr.mxu0 0.0
    %6126 = vmatpush1.msra.mxu0 %v6088
    %6127 = vmatprep.subr.mxu0 0.0
    %6128 = vmatpush1.msra.mxu0 %v6087
    %6129 = vmatprep.subr.mxu0 0.0
    %6130 = vmatpush1.msra.mxu0 %v6086
    %6131 = vmatprep.subr.mxu0 0.0
    %6132 = vmatpush1.msra.mxu0 %v6085
    %6133 = vmatprep.subr.mxu0 0.0
    %6134 = vmatpush2.msra.mxu0 0.0
    %6135 = vmatprep.subr.mxu0 0.0
    %6136 = vmatpush2.msra.mxu0 0.0
    %6137 = vmatprep.subr.mxu0 0.0
    %6138 = vmatpush2.msra.mxu0 0.0
    %6139 = vmatprep.subr.mxu0 0.0
    %6140 = vmatpush2.msra.mxu0 0.0
    %6141 = vmatprep.subr.mxu0 0.0
    %6142 = vmatpush2.msra.mxu0 0.0
    %6143 = vmatprep.subr.mxu0 0.0
    %6144 = vmatpush2.msra.mxu0 0.0
    %6145 = vmatprep.subr.mxu0 0.0
    %6146 = vmatpush2.msra.mxu0 0.0
    %6147 = vmatprep.subr.mxu0 0.0
    %6148 = vmatpush2.msra.mxu0 0.0
    %6149 = vmatprep.subr.mxu0 0.0
    %6150 = vmatpush2.msra.mxu0 0.0
    %6151 = vmatprep.subr.mxu0 0.0
    %6152 = vmatpush2.msra.mxu0 0.0
    %6153 = vmatprep.subr.mxu0 0.0
    %6154 = vmatpush2.msra.mxu0 0.0
    %6155 = vmatprep.subr.mxu0 0.0
    %6156 = vmatpush2.msra.mxu0 0.0
    %6157 = vmatprep.subr.mxu0 0.0
    %6158 = vmatpush2.msra.mxu0 0.0
    %6159 = vmatprep.subr.mxu0 0.0
    %6160 = vmatpush2.msra.mxu0 0.0
    %6161 = vmatprep.subr.mxu0 0.0
    %6162 = vmatpush2.msra.mxu0 0.0
    %6163 = vmatprep.subr.mxu0 0.0
    %6164 = vmatpush2.msra.mxu0 0.0
    %6165 = vmatprep.mubr.f32.mxu0 0.0
    %6166 = vmatmul.mubr.f32.gmra.mxu0 %v6069
    %v6167 = vpop.f32.mrf.mxu0
    %v6168 = vadd.f32 0.0, %v6167
    %v6169 = vpop.f32.mrf.mxu0
    %6170 = vmatprep.mubr.f32.mxu0 0.0
    %6171 = vmatmul.mubr.f32.gmra.mxu0 %v6070
    %v6172 = vpop.f32.mrf.mxu0
    %v6173 = vadd.f32 0.0, %v6172
    %v6174 = vpop.f32.mrf.mxu0
    %6175 = vmatprep.mubr.f32.mxu0 0.0
    %6176 = vmatmul.mubr.f32.gmra.mxu0 %v6071
    %v6177 = vpop.f32.mrf.mxu0
    %v6178 = vadd.f32 0.0, %v6177
    %v6179 = vpop.f32.mrf.mxu0
    %6180 = vmatprep.mubr.f32.mxu0 0.0
    %6181 = vmatmul.mubr.f32.gmra.mxu0 %v6072
    %v6182 = vpop.f32.mrf.mxu0
    %v6183 = vadd.f32 0.0, %v6182
    %v6184 = vpop.f32.mrf.mxu0
    %6185 = vmatprep.mubr.f32.mxu0 0.0
    %6186 = vmatmul.mubr.f32.gmra.mxu0 %v6073
    %v6187 = vpop.f32.mrf.mxu0
    %v6188 = vadd.f32 0.0, %v6187
    %v6189 = vpop.f32.mrf.mxu0
    %6190 = vmatprep.mubr.f32.mxu0 0.0
    %6191 = vmatmul.mubr.f32.gmra.mxu0 %v6074
    %v6192 = vpop.f32.mrf.mxu0
    %v6193 = vadd.f32 0.0, %v6192
    %v6194 = vpop.f32.mrf.mxu0
    %6195 = vmatprep.mubr.f32.mxu0 0.0
    %6196 = vmatmul.mubr.f32.gmra.mxu0 %v6075
    %v6197 = vpop.f32.mrf.mxu0
    %v6198 = vadd.f32 0.0, %v6197
    %v6199 = vpop.f32.mrf.mxu0
    %6200 = vmatprep.mubr.f32.mxu0 0.0
    %6201 = vmatmul.mubr.f32.gmra.mxu0 %v6076
    %v6202 = vpop.f32.mrf.mxu0
    %v6203 = vadd.f32 0.0, %v6202
    %v6204 = vpop.f32.mrf.mxu0
    %6205 = vmatprep.mubr.f32.mxu0 0.0
    %6206 = vmatmul.mubr.f32.gmra.mxu0 %v6077
    %v6207 = vpop.f32.mrf.mxu0
    %v6208 = vadd.f32 0.0, %v6207
    %v6209 = vpop.f32.mrf.mxu0
    %6210 = vmatprep.mubr.f32.mxu0 0.0
    %6211 = vmatmul.mubr.f32.gmra.mxu0 %v6078
    %v6212 = vpop.f32.mrf.mxu0
    %v6213 = vadd.f32 0.0, %v6212
    %v6214 = vpop.f32.mrf.mxu0
    %6215 = vmatprep.mubr.f32.mxu0 0.0
    %6216 = vmatmul.mubr.f32.gmra.mxu0 %v6079
    %v6217 = vpop.f32.mrf.mxu0
    %v6218 = vadd.f32 0.0, %v6217
    %v6219 = vpop.f32.mrf.mxu0
    %6220 = vmatprep.mubr.f32.mxu0 0.0
    %6221 = vmatmul.mubr.f32.gmra.mxu0 %v6080
    %v6222 = vpop.f32.mrf.mxu0
    %v6223 = vadd.f32 0.0, %v6222
    %v6224 = vpop.f32.mrf.mxu0
    %6225 = vmatprep.mubr.f32.mxu0 0.0
    %6226 = vmatmul.mubr.f32.gmra.mxu0 %v6081
    %v6227 = vpop.f32.mrf.mxu0
    %v6228 = vadd.f32 0.0, %v6227
    %v6229 = vpop.f32.mrf.mxu0
    %6230 = vmatprep.mubr.f32.mxu0 0.0
    %6231 = vmatmul.mubr.f32.gmra.mxu0 %v6082
    %v6232 = vpop.f32.mrf.mxu0
    %v6233 = vadd.f32 0.0, %v6232
    %v6234 = vpop.f32.mrf.mxu0
    %6235 = vmatprep.mubr.f32.mxu0 0.0
    %6236 = vmatmul.mubr.f32.gmra.mxu0 %v6083
    %v6237 = vpop.f32.mrf.mxu0
    %v6238 = vadd.f32 0.0, %v6237
    %v6239 = vpop.f32.mrf.mxu0
    %6240 = vmatprep.mubr.f32.mxu0 0.0
    %6241 = vmatmul.mubr.f32.gmra.mxu0 %v6084
    %v6242 = vpop.f32.mrf.mxu0
    %v6243 = vadd.f32 0.0, %v6242
    %v6244 = vpop.f32.mrf.mxu0
    %6245 = vdwg.mxu0
    %6246 = vmatprep.subr.mxu0 0.0
    %6247 = vmatpush1.msra.mxu0 %v5731
    %6248 = vmatprep.subr.mxu0 0.0
    %6249 = vmatpush1.msra.mxu0 %v5730
    %6250 = vmatprep.subr.mxu0 0.0
    %6251 = vmatpush1.msra.mxu0 %v5729
    %6252 = vmatprep.subr.mxu0 0.0
    %6253 = vmatpush1.msra.mxu0 %v5728
    %6254 = vmatprep.subr.mxu0 0.0
    %6255 = vmatpush1.msra.mxu0 %v5727
    %6256 = vmatprep.subr.mxu0 0.0
    %6257 = vmatpush1.msra.mxu0 %v5726
    %6258 = vmatprep.subr.mxu0 0.0
    %6259 = vmatpush1.msra.mxu0 %v5725
    %6260 = vmatprep.subr.mxu0 0.0
    %6261 = vmatpush1.msra.mxu0 %v5724
    %6262 = vmatprep.subr.mxu0 0.0
    %6263 = vmatpush1.msra.mxu0 %v5723
    %6264 = vmatprep.subr.mxu0 0.0
    %6265 = vmatpush1.msra.mxu0 %v5722
    %6266 = vmatprep.subr.mxu0 0.0
    %6267 = vmatpush1.msra.mxu0 %v5721
    %6268 = vmatprep.subr.mxu0 0.0
    %6269 = vmatpush1.msra.mxu0 %v5720
    %6270 = vmatprep.subr.mxu0 0.0
    %6271 = vmatpush1.msra.mxu0 %v5719
    %6272 = vmatprep.subr.mxu0 0.0
    %6273 = vmatpush1.msra.mxu0 %v5718
    %6274 = vmatprep.subr.mxu0 0.0
    %6275 = vmatpush1.msra.mxu0 %v5717
    %6276 = vmatprep.subr.mxu0 0.0
    %6277 = vmatpush1.msra.mxu0 %v5716
    %6278 = vmatprep.subr.mxu0 0.0
    %6279 = vmatpush2.msra.mxu0 0.0
    %6280 = vmatprep.subr.mxu0 0.0
    %6281 = vmatpush2.msra.mxu0 0.0
    %6282 = vmatprep.subr.mxu0 0.0
    %6283 = vmatpush2.msra.mxu0 0.0
    %6284 = vmatprep.subr.mxu0 0.0
    %6285 = vmatpush2.msra.mxu0 0.0
    %6286 = vmatprep.subr.mxu0 0.0
    %6287 = vmatpush2.msra.mxu0 0.0
    %6288 = vmatprep.subr.mxu0 0.0
    %6289 = vmatpush2.msra.mxu0 0.0
    %6290 = vmatprep.subr.mxu0 0.0
    %6291 = vmatpush2.msra.mxu0 0.0
    %6292 = vmatprep.subr.mxu0 0.0
    %6293 = vmatpush2.msra.mxu0 0.0
    %6294 = vmatprep.subr.mxu0 0.0
    %6295 = vmatpush2.msra.mxu0 0.0
    %6296 = vmatprep.subr.mxu0 0.0
    %6297 = vmatpush2.msra.mxu0 0.0
    %6298 = vmatprep.subr.mxu0 0.0
    %6299 = vmatpush2.msra.mxu0 0.0
    %6300 = vmatprep.subr.mxu0 0.0
    %6301 = vmatpush2.msra.mxu0 0.0
    %6302 = vmatprep.subr.mxu0 0.0
    %6303 = vmatpush2.msra.mxu0 0.0
    %6304 = vmatprep.subr.mxu0 0.0
    %6305 = vmatpush2.msra.mxu0 0.0
    %6306 = vmatprep.subr.mxu0 0.0
    %6307 = vmatpush2.msra.mxu0 0.0
    %6308 = vmatprep.subr.mxu0 0.0
    %6309 = vmatpush2.msra.mxu0 0.0
    %6310 = vmatprep.mubr.f32.mxu0 0.0
    %6311 = vmatmul.mubr.f32.gmra.mxu0 %v5700
    %v6312 = vpop.f32.mrf.mxu0
    %v6313 = vadd.f32 %v6168, %v6312
    %v6314 = vpop.f32.mrf.mxu0
    %6315 = vmatprep.mubr.f32.mxu0 0.0
    %6316 = vmatmul.mubr.f32.gmra.mxu0 %v5701
    %v6317 = vpop.f32.mrf.mxu0
    %v6318 = vadd.f32 %v6173, %v6317
    %v6319 = vpop.f32.mrf.mxu0
    %6320 = vmatprep.mubr.f32.mxu0 0.0
    %6321 = vmatmul.mubr.f32.gmra.mxu0 %v5702
    %v6322 = vpop.f32.mrf.mxu0
    %v6323 = vadd.f32 %v6178, %v6322
    %v6324 = vpop.f32.mrf.mxu0
    %6325 = vmatprep.mubr.f32.mxu0 0.0
    %6326 = vmatmul.mubr.f32.gmra.mxu0 %v5703
    %v6327 = vpop.f32.mrf.mxu0
    %v6328 = vadd.f32 %v6183, %v6327
    %v6329 = vpop.f32.mrf.mxu0
    %6330 = vmatprep.mubr.f32.mxu0 0.0
    %6331 = vmatmul.mubr.f32.gmra.mxu0 %v5704
    %v6332 = vpop.f32.mrf.mxu0
    %v6333 = vadd.f32 %v6188, %v6332
    %v6334 = vpop.f32.mrf.mxu0
    %6335 = vmatprep.mubr.f32.mxu0 0.0
    %6336 = vmatmul.mubr.f32.gmra.mxu0 %v5705
    %v6337 = vpop.f32.mrf.mxu0
    %v6338 = vadd.f32 %v6193, %v6337
    %v6339 = vpop.f32.mrf.mxu0
    %6340 = vmatprep.mubr.f32.mxu0 0.0
    %6341 = vmatmul.mubr.f32.gmra.mxu0 %v5706
    %v6342 = vpop.f32.mrf.mxu0
    %v6343 = vadd.f32 %v6198, %v6342
    %v6344 = vpop.f32.mrf.mxu0
    %6345 = vmatprep.mubr.f32.mxu0 0.0
    %6346 = vmatmul.mubr.f32.gmra.mxu0 %v5707
    %v6347 = vpop.f32.mrf.mxu0
    %v6348 = vadd.f32 %v6203, %v6347
    %v6349 = vpop.f32.mrf.mxu0
    %6350 = vmatprep.mubr.f32.mxu0 0.0
    %6351 = vmatmul.mubr.f32.gmra.mxu0 %v5708
    %v6352 = vpop.f32.mrf.mxu0
    %v6353 = vadd.f32 %v6208, %v6352
    %v6354 = vpop.f32.mrf.mxu0
    %6355 = vmatprep.mubr.f32.mxu0 0.0
    %6356 = vmatmul.mubr.f32.gmra.mxu0 %v5709
    %v6357 = vpop.f32.mrf.mxu0
    %v6358 = vadd.f32 %v6213, %v6357
    %v6359 = vpop.f32.mrf.mxu0
    %6360 = vmatprep.mubr.f32.mxu0 0.0
    %6361 = vmatmul.mubr.f32.gmra.mxu0 %v5710
    %v6362 = vpop.f32.mrf.mxu0
    %v6363 = vadd.f32 %v6218, %v6362
    %v6364 = vpop.f32.mrf.mxu0
    %6365 = vmatprep.mubr.f32.mxu0 0.0
    %6366 = vmatmul.mubr.f32.gmra.mxu0 %v5711
    %v6367 = vpop.f32.mrf.mxu0
    %v6368 = vadd.f32 %v6223, %v6367
    %v6369 = vpop.f32.mrf.mxu0
    %6370 = vmatprep.mubr.f32.mxu0 0.0
    %6371 = vmatmul.mubr.f32.gmra.mxu0 %v5712
    %v6372 = vpop.f32.mrf.mxu0
    %v6373 = vadd.f32 %v6228, %v6372
    %v6374 = vpop.f32.mrf.mxu0
    %6375 = vmatprep.mubr.f32.mxu0 0.0
    %6376 = vmatmul.mubr.f32.gmra.mxu0 %v5713
    %v6377 = vpop.f32.mrf.mxu0
    %v6378 = vadd.f32 %v6233, %v6377
    %v6379 = vpop.f32.mrf.mxu0
    %6380 = vmatprep.mubr.f32.mxu0 0.0
    %6381 = vmatmul.mubr.f32.gmra.mxu0 %v5714
    %v6382 = vpop.f32.mrf.mxu0
    %v6383 = vadd.f32 %v6238, %v6382
    %v6384 = vpop.f32.mrf.mxu0
    %6385 = vmatprep.mubr.f32.mxu0 0.0
    %6386 = vmatmul.mubr.f32.gmra.mxu0 %v5715
    %v6387 = vpop.f32.mrf.mxu0
    %v6388 = vadd.f32 %v6243, %v6387
    %v6389 = vpop.f32.mrf.mxu0
    %6390 = vdwg.mxu0
    %v6391 = vmul.f32 %v5001, %v2568
    %v6392 = vmul.f32 %v5002, %v2568
    %v6393 = vmul.f32 %v5003, %v2568
    %v6394 = vmul.f32 %v5004, %v2568
    %v6395 = vmul.f32 %v5005, %v2568
    %v6396 = vmul.f32 %v5006, %v2568
    %v6397 = vmul.f32 %v5007, %v2568
    %v6398 = vmul.f32 %v5008, %v2568
    %v6399 = vmul.f32 %v5009, %v2568
    %v6400 = vmul.f32 %v5010, %v2568
    %v6401 = vmul.f32 %v5011, %v2568
    %v6402 = vmul.f32 %v5012, %v2568
    %v6403 = vmul.f32 %v5013, %v2568
    %v6404 = vmul.f32 %v5014, %v2568
    %v6405 = vmul.f32 %v5015, %v2568
    %v6406 = vmul.f32 %v5016, %v2568
    %v6408 = vsel %vm970, %v6391, 0
    %v6411 = vsel %vm970, %v6392, 0
    %v6414 = vsel %vm970, %v6393, 0
    %v6417 = vsel %vm970, %v6394, 0
    %v6420 = vsel %vm970, %v6395, 0
    %v6423 = vsel %vm970, %v6396, 0
    %v6426 = vsel %vm970, %v6397, 0
    %v6429 = vsel %vm970, %v6398, 0
    %v6432 = vsel %vm970, %v6399, 0
    %v6435 = vsel %vm970, %v6400, 0
    %v6438 = vsel %vm970, %v6401, 0
    %v6441 = vsel %vm970, %v6402, 0
    %v6444 = vsel %vm970, %v6403, 0
    %v6447 = vsel %vm970, %v6404, 0
    %v6450 = vsel %vm970, %v6405, 0
    %v6453 = vsel %vm970, %v6406, 0
    %6455 = vmatprep.subr.mxu0 0.0
    %6456 = vmatpush1.xpose.msra.mxu0 %v5425
    %6457 = vmatprep.subr.mxu0 0.0
    %6458 = vmatpush1.xpose.msra.mxu0 %v5422
    %6459 = vmatprep.subr.mxu0 0.0
    %6460 = vmatpush1.xpose.msra.mxu0 %v5419
    %6461 = vmatprep.subr.mxu0 0.0
    %6462 = vmatpush1.xpose.msra.mxu0 %v5416
    %6463 = vmatprep.subr.mxu0 0.0
    %6464 = vmatpush1.xpose.msra.mxu0 %v5413
    %6465 = vmatprep.subr.mxu0 0.0
    %6466 = vmatpush1.xpose.msra.mxu0 %v5410
    %6467 = vmatprep.subr.mxu0 0.0
    %6468 = vmatpush1.xpose.msra.mxu0 %v5407
    %6469 = vmatprep.subr.mxu0 0.0
    %6470 = vmatpush1.xpose.msra.mxu0 %v5404
    %6471 = vmatprep.subr.mxu0 0.0
    %6472 = vmatpush1.xpose.msra.mxu0 %v5401
    %6473 = vmatprep.subr.mxu0 0.0
    %6474 = vmatpush1.xpose.msra.mxu0 %v5398
    %6475 = vmatprep.subr.mxu0 0.0
    %6476 = vmatpush1.xpose.msra.mxu0 %v5395
    %6477 = vmatprep.subr.mxu0 0.0
    %6478 = vmatpush1.xpose.msra.mxu0 %v5392
    %6479 = vmatprep.subr.mxu0 0.0
    %6480 = vmatpush1.xpose.msra.mxu0 %v5389
    %6481 = vmatprep.subr.mxu0 0.0
    %6482 = vmatpush1.xpose.msra.mxu0 %v5386
    %6483 = vmatprep.subr.mxu0 0.0
    %6484 = vmatpush1.xpose.msra.mxu0 %v5383
    %6485 = vmatprep.subr.mxu0 0.0
    %6486 = vmatpush1.xpose.msra.mxu0 %v5380
    %6487 = vmatprep.subr.mxu0 0.0
    %6488 = vmatpush2.xpose.msra.mxu0 0.0
    %6489 = vmatprep.subr.mxu0 0.0
    %6490 = vmatpush2.xpose.msra.mxu0 0.0
    %6491 = vmatprep.subr.mxu0 0.0
    %6492 = vmatpush2.xpose.msra.mxu0 0.0
    %6493 = vmatprep.subr.mxu0 0.0
    %6494 = vmatpush2.xpose.msra.mxu0 0.0
    %6495 = vmatprep.subr.mxu0 0.0
    %6496 = vmatpush2.xpose.msra.mxu0 0.0
    %6497 = vmatprep.subr.mxu0 0.0
    %6498 = vmatpush2.xpose.msra.mxu0 0.0
    %6499 = vmatprep.subr.mxu0 0.0
    %6500 = vmatpush2.xpose.msra.mxu0 0.0
    %6501 = vmatprep.subr.mxu0 0.0
    %6502 = vmatpush2.xpose.msra.mxu0 0.0
    %6503 = vmatprep.subr.mxu0 0.0
    %6504 = vmatpush2.xpose.msra.mxu0 0.0
    %6505 = vmatprep.subr.mxu0 0.0
    %6506 = vmatpush2.xpose.msra.mxu0 0.0
    %6507 = vmatprep.subr.mxu0 0.0
    %6508 = vmatpush2.xpose.msra.mxu0 0.0
    %6509 = vmatprep.subr.mxu0 0.0
    %6510 = vmatpush2.xpose.msra.mxu0 0.0
    %6511 = vmatprep.subr.mxu0 0.0
    %6512 = vmatpush2.xpose.msra.mxu0 0.0
    %6513 = vmatprep.subr.mxu0 0.0
    %6514 = vmatpush2.xpose.msra.mxu0 0.0
    %6515 = vmatprep.subr.mxu0 0.0
    %6516 = vmatpush2.xpose.msra.mxu0 0.0
    %6517 = vmatprep.subr.mxu0 0.0
    %6518 = vmatpush2.xpose.msra.mxu0 0.0
    %6519 = vmatprep.mubr.f32.mxu0 0.0
    %6520 = vmatmul.mubr.f32.gmra.mxu0 %v6408
    %v6521 = vpop.f32.mrf.mxu0
    %v6522 = vadd.f32 %v920, %v6521
    %v6523 = vpop.f32.mrf.mxu0
    %6524 = vmatprep.mubr.f32.mxu0 0.0
    %6525 = vmatmul.mubr.f32.gmra.mxu0 %v6411
    %v6526 = vpop.f32.mrf.mxu0
    %v6527 = vadd.f32 %v921, %v6526
    %v6528 = vpop.f32.mrf.mxu0
    %6529 = vmatprep.mubr.f32.mxu0 0.0
    %6530 = vmatmul.mubr.f32.gmra.mxu0 %v6414
    %v6531 = vpop.f32.mrf.mxu0
    %v6532 = vadd.f32 %v922, %v6531
    %v6533 = vpop.f32.mrf.mxu0
    %6534 = vmatprep.mubr.f32.mxu0 0.0
    %6535 = vmatmul.mubr.f32.gmra.mxu0 %v6417
    %v6536 = vpop.f32.mrf.mxu0
    %v6537 = vadd.f32 %v923, %v6536
    %v6538 = vpop.f32.mrf.mxu0
    %6539 = vmatprep.mubr.f32.mxu0 0.0
    %6540 = vmatmul.mubr.f32.gmra.mxu0 %v6420
    %v6541 = vpop.f32.mrf.mxu0
    %v6542 = vadd.f32 %v924, %v6541
    %v6543 = vpop.f32.mrf.mxu0
    %6544 = vmatprep.mubr.f32.mxu0 0.0
    %6545 = vmatmul.mubr.f32.gmra.mxu0 %v6423
    %v6546 = vpop.f32.mrf.mxu0
    %v6547 = vadd.f32 %v925, %v6546
    %v6548 = vpop.f32.mrf.mxu0
    %6549 = vmatprep.mubr.f32.mxu0 0.0
    %6550 = vmatmul.mubr.f32.gmra.mxu0 %v6426
    %v6551 = vpop.f32.mrf.mxu0
    %v6552 = vadd.f32 %v926, %v6551
    %v6553 = vpop.f32.mrf.mxu0
    %6554 = vmatprep.mubr.f32.mxu0 0.0
    %6555 = vmatmul.mubr.f32.gmra.mxu0 %v6429
    %v6556 = vpop.f32.mrf.mxu0
    %v6557 = vadd.f32 %v927, %v6556
    %v6558 = vpop.f32.mrf.mxu0
    %6559 = vmatprep.mubr.f32.mxu0 0.0
    %6560 = vmatmul.mubr.f32.gmra.mxu0 %v6432
    %v6561 = vpop.f32.mrf.mxu0
    %v6562 = vadd.f32 %v928, %v6561
    %v6563 = vpop.f32.mrf.mxu0
    %6564 = vmatprep.mubr.f32.mxu0 0.0
    %6565 = vmatmul.mubr.f32.gmra.mxu0 %v6435
    %v6566 = vpop.f32.mrf.mxu0
    %v6567 = vadd.f32 %v929, %v6566
    %v6568 = vpop.f32.mrf.mxu0
    %6569 = vmatprep.mubr.f32.mxu0 0.0
    %6570 = vmatmul.mubr.f32.gmra.mxu0 %v6438
    %v6571 = vpop.f32.mrf.mxu0
    %v6572 = vadd.f32 %v930, %v6571
    %v6573 = vpop.f32.mrf.mxu0
    %6574 = vmatprep.mubr.f32.mxu0 0.0
    %6575 = vmatmul.mubr.f32.gmra.mxu0 %v6441
    %v6576 = vpop.f32.mrf.mxu0
    %v6577 = vadd.f32 %v931, %v6576
    %v6578 = vpop.f32.mrf.mxu0
    %6579 = vmatprep.mubr.f32.mxu0 0.0
    %6580 = vmatmul.mubr.f32.gmra.mxu0 %v6444
    %v6581 = vpop.f32.mrf.mxu0
    %v6582 = vadd.f32 %v932, %v6581
    %v6583 = vpop.f32.mrf.mxu0
    %6584 = vmatprep.mubr.f32.mxu0 0.0
    %6585 = vmatmul.mubr.f32.gmra.mxu0 %v6447
    %v6586 = vpop.f32.mrf.mxu0
    %v6587 = vadd.f32 %v933, %v6586
    %v6588 = vpop.f32.mrf.mxu0
    %6589 = vmatprep.mubr.f32.mxu0 0.0
    %6590 = vmatmul.mubr.f32.gmra.mxu0 %v6450
    %v6591 = vpop.f32.mrf.mxu0
    %v6592 = vadd.f32 %v934, %v6591
    %v6593 = vpop.f32.mrf.mxu0
    %6594 = vmatprep.mubr.f32.mxu0 0.0
    %6595 = vmatmul.mubr.f32.gmra.mxu0 %v6453
    %v6596 = vpop.f32.mrf.mxu0
    %v6597 = vadd.f32 %v935, %v6596
    %v6598 = vpop.f32.mrf.mxu0
    %6599 = vdwg.mxu0
    %6600 = vmax.xlane.f32.xlu0 %v6522
    %v6601 = vpop.xlane.xlu0 %6600
    %6602 = vmax.xlane.f32.xlu0 %v6527
    %v6603 = vpop.xlane.xlu0 %6602
    %6604 = vmax.xlane.f32.xlu0 %v6532
    %v6605 = vpop.xlane.xlu0 %6604
    %6606 = vmax.xlane.f32.xlu0 %v6537
    %v6607 = vpop.xlane.xlu0 %6606
    %6608 = vmax.xlane.f32.xlu0 %v6542
    %v6609 = vpop.xlane.xlu0 %6608
    %6610 = vmax.xlane.f32.xlu0 %v6547
    %v6611 = vpop.xlane.xlu0 %6610
    %6612 = vmax.xlane.f32.xlu0 %v6552
    %v6613 = vpop.xlane.xlu0 %6612
    %6614 = vmax.xlane.f32.xlu0 %v6557
    %v6615 = vpop.xlane.xlu0 %6614
    %6616 = vmax.xlane.f32.xlu0 %v6562
    %v6617 = vpop.xlane.xlu0 %6616
    %6618 = vmax.xlane.f32.xlu0 %v6567
    %v6619 = vpop.xlane.xlu0 %6618
    %6620 = vmax.xlane.f32.xlu0 %v6572
    %v6621 = vpop.xlane.xlu0 %6620
    %6622 = vmax.xlane.f32.xlu0 %v6577
    %v6623 = vpop.xlane.xlu0 %6622
    %6624 = vmax.xlane.f32.xlu0 %v6582
    %v6625 = vpop.xlane.xlu0 %6624
    %6626 = vmax.xlane.f32.xlu0 %v6587
    %v6627 = vpop.xlane.xlu0 %6626
    %6628 = vmax.xlane.f32.xlu0 %v6592
    %v6629 = vpop.xlane.xlu0 %6628
    %6630 = vmax.xlane.f32.xlu0 %v6597
    %v6631 = vpop.xlane.xlu0 %6630
    %v6632 = vsub.f32 %v6522, %v6601
    %v6633 = vsub.f32 %v6527, %v6603
    %v6634 = vsub.f32 %v6532, %v6605
    %v6635 = vsub.f32 %v6537, %v6607
    %v6636 = vsub.f32 %v6542, %v6609
    %v6637 = vsub.f32 %v6547, %v6611
    %v6638 = vsub.f32 %v6552, %v6613
    %v6639 = vsub.f32 %v6557, %v6615
    %v6640 = vsub.f32 %v6562, %v6617
    %v6641 = vsub.f32 %v6567, %v6619
    %v6642 = vsub.f32 %v6572, %v6621
    %v6643 = vsub.f32 %v6577, %v6623
    %v6644 = vsub.f32 %v6582, %v6625
    %v6645 = vsub.f32 %v6587, %v6627
    %v6646 = vsub.f32 %v6592, %v6629
    %v6647 = vsub.f32 %v6597, %v6631
    %v6648 = vmul.f32 %v6632, 1.442695
    %v6649 = vpow.pop %v6648
    %v6650 = vmul.f32 %v6633, 1.442695
    %v6651 = vpow.pop %v6650
    %v6652 = vmul.f32 %v6634, 1.442695
    %v6653 = vpow.pop %v6652
    %v6654 = vmul.f32 %v6635, 1.442695
    %v6655 = vpow.pop %v6654
    %v6656 = vmul.f32 %v6636, 1.442695
    %v6657 = vpow.pop %v6656
    %v6658 = vmul.f32 %v6637, 1.442695
    %v6659 = vpow.pop %v6658
    %v6660 = vmul.f32 %v6638, 1.442695
    %v6661 = vpow.pop %v6660
    %v6662 = vmul.f32 %v6639, 1.442695
    %v6663 = vpow.pop %v6662
    %v6664 = vmul.f32 %v6640, 1.442695
    %v6665 = vpow.pop %v6664
    %v6666 = vmul.f32 %v6641, 1.442695
    %v6667 = vpow.pop %v6666
    %v6668 = vmul.f32 %v6642, 1.442695
    %v6669 = vpow.pop %v6668
    %v6670 = vmul.f32 %v6643, 1.442695
    %v6671 = vpow.pop %v6670
    %v6672 = vmul.f32 %v6644, 1.442695
    %v6673 = vpow.pop %v6672
    %v6674 = vmul.f32 %v6645, 1.442695
    %v6675 = vpow.pop %v6674
    %v6676 = vmul.f32 %v6646, 1.442695
    %v6677 = vpow.pop %v6676
    %v6678 = vmul.f32 %v6647, 1.442695
    %v6679 = vpow.pop %v6678
    %6680 = vadd.xlane.f32.xlu0 %v6649
    %v6681 = vpop.xlane.xlu0 %6680
    %6682 = vadd.xlane.f32.xlu0 %v6651
    %v6683 = vpop.xlane.xlu0 %6682
    %6684 = vadd.xlane.f32.xlu0 %v6653
    %v6685 = vpop.xlane.xlu0 %6684
    %6686 = vadd.xlane.f32.xlu0 %v6655
    %v6687 = vpop.xlane.xlu0 %6686
    %6688 = vadd.xlane.f32.xlu0 %v6657
    %v6689 = vpop.xlane.xlu0 %6688
    %6690 = vadd.xlane.f32.xlu0 %v6659
    %v6691 = vpop.xlane.xlu0 %6690
    %6692 = vadd.xlane.f32.xlu0 %v6661
    %v6693 = vpop.xlane.xlu0 %6692
    %6694 = vadd.xlane.f32.xlu0 %v6663
    %v6695 = vpop.xlane.xlu0 %6694
    %6696 = vadd.xlane.f32.xlu0 %v6665
    %v6697 = vpop.xlane.xlu0 %6696
    %6698 = vadd.xlane.f32.xlu0 %v6667
    %v6699 = vpop.xlane.xlu0 %6698
    %6700 = vadd.xlane.f32.xlu0 %v6669
    %v6701 = vpop.xlane.xlu0 %6700
    %6702 = vadd.xlane.f32.xlu0 %v6671
    %v6703 = vpop.xlane.xlu0 %6702
    %6704 = vadd.xlane.f32.xlu0 %v6673
    %v6705 = vpop.xlane.xlu0 %6704
    %6706 = vadd.xlane.f32.xlu0 %v6675
    %v6707 = vpop.xlane.xlu0 %6706
    %6708 = vadd.xlane.f32.xlu0 %v6677
    %v6709 = vpop.xlane.xlu0 %6708
    %6710 = vadd.xlane.f32.xlu0 %v6679
    %v6711 = vpop.xlane.xlu0 %6710
    %v6712 = vrcp.pop %v6681
    %v6713 = vrcp.pop %v6683
    %v6714 = vrcp.pop %v6685
    %v6715 = vrcp.pop %v6687
    %v6716 = vrcp.pop %v6689
    %v6717 = vrcp.pop %v6691
    %v6718 = vrcp.pop %v6693
    %v6719 = vrcp.pop %v6695
    %v6720 = vrcp.pop %v6697
    %v6721 = vrcp.pop %v6699
    %v6722 = vrcp.pop %v6701
    %v6723 = vrcp.pop %v6703
    %v6724 = vrcp.pop %v6705
    %v6725 = vrcp.pop %v6707
    %v6726 = vrcp.pop %v6709
    %v6727 = vrcp.pop %v6711
    %v6728 = vmul.f32 %v6649, %v6712
    %v6729 = vmul.f32 %v6651, %v6713
    %v6730 = vmul.f32 %v6653, %v6714
    %v6731 = vmul.f32 %v6655, %v6715
    %v6732 = vmul.f32 %v6657, %v6716
    %v6733 = vmul.f32 %v6659, %v6717
    %v6734 = vmul.f32 %v6661, %v6718
    %v6735 = vmul.f32 %v6663, %v6719
    %v6736 = vmul.f32 %v6665, %v6720
    %v6737 = vmul.f32 %v6667, %v6721
    %v6738 = vmul.f32 %v6669, %v6722
    %v6739 = vmul.f32 %v6671, %v6723
    %v6740 = vmul.f32 %v6673, %v6724
    %v6741 = vmul.f32 %v6675, %v6725
    %v6742 = vmul.f32 %v6677, %v6726
    %v6743 = vmul.f32 %v6679, %v6727
    %v6744 = vmul.f32 %v5237, %v2568
    %v6745 = vmul.f32 %v5242, %v2568
    %v6746 = vmul.f32 %v5247, %v2568
    %v6747 = vmul.f32 %v5252, %v2568
    %v6748 = vmul.f32 %v5257, %v2568
    %v6749 = vmul.f32 %v5262, %v2568
    %v6750 = vmul.f32 %v5267, %v2568
    %v6751 = vmul.f32 %v5272, %v2568
    %v6752 = vmul.f32 %v5277, %v2568
    %v6753 = vmul.f32 %v5282, %v2568
    %v6754 = vmul.f32 %v5287, %v2568
    %v6755 = vmul.f32 %v5292, %v2568
    %v6756 = vmul.f32 %v5297, %v2568
    %v6757 = vmul.f32 %v5302, %v2568
    %v6758 = vmul.f32 %v5307, %v2568
    %v6759 = vmul.f32 %v5312, %v2568
    %6760 = vmatprep.subr.mxu0 0.0
    %6761 = vmatpush1.msra.mxu0 %v6759
    %6762 = vmatprep.subr.mxu0 0.0
    %6763 = vmatpush1.msra.mxu0 %v6758
    %6764 = vmatprep.subr.mxu0 0.0
    %6765 = vmatpush1.msra.mxu0 %v6757
    %6766 = vmatprep.subr.mxu0 0.0
    %6767 = vmatpush1.msra.mxu0 %v6756
    %6768 = vmatprep.subr.mxu0 0.0
    %6769 = vmatpush1.msra.mxu0 %v6755
    %6770 = vmatprep.subr.mxu0 0.0
    %6771 = vmatpush1.msra.mxu0 %v6754
    %6772 = vmatprep.subr.mxu0 0.0
    %6773 = vmatpush1.msra.mxu0 %v6753
    %6774 = vmatprep.subr.mxu0 0.0
    %6775 = vmatpush1.msra.mxu0 %v6752
    %6776 = vmatprep.subr.mxu0 0.0
    %6777 = vmatpush1.msra.mxu0 %v6751
    %6778 = vmatprep.subr.mxu0 0.0
    %6779 = vmatpush1.msra.mxu0 %v6750
    %6780 = vmatprep.subr.mxu0 0.0
    %6781 = vmatpush1.msra.mxu0 %v6749
    %6782 = vmatprep.subr.mxu0 0.0
    %6783 = vmatpush1.msra.mxu0 %v6748
    %6784 = vmatprep.subr.mxu0 0.0
    %6785 = vmatpush1.msra.mxu0 %v6747
    %6786 = vmatprep.subr.mxu0 0.0
    %6787 = vmatpush1.msra.mxu0 %v6746
    %6788 = vmatprep.subr.mxu0 0.0
    %6789 = vmatpush1.msra.mxu0 %v6745
    %6790 = vmatprep.subr.mxu0 0.0
    %6791 = vmatpush1.msra.mxu0 %v6744
    %6792 = vmatprep.subr.mxu0 0.0
    %6793 = vmatpush2.msra.mxu0 0.0
    %6794 = vmatprep.subr.mxu0 0.0
    %6795 = vmatpush2.msra.mxu0 0.0
    %6796 = vmatprep.subr.mxu0 0.0
    %6797 = vmatpush2.msra.mxu0 0.0
    %6798 = vmatprep.subr.mxu0 0.0
    %6799 = vmatpush2.msra.mxu0 0.0
    %6800 = vmatprep.subr.mxu0 0.0
    %6801 = vmatpush2.msra.mxu0 0.0
    %6802 = vmatprep.subr.mxu0 0.0
    %6803 = vmatpush2.msra.mxu0 0.0
    %6804 = vmatprep.subr.mxu0 0.0
    %6805 = vmatpush2.msra.mxu0 0.0
    %6806 = vmatprep.subr.mxu0 0.0
    %6807 = vmatpush2.msra.mxu0 0.0
    %6808 = vmatprep.subr.mxu0 0.0
    %6809 = vmatpush2.msra.mxu0 0.0
    %6810 = vmatprep.subr.mxu0 0.0
    %6811 = vmatpush2.msra.mxu0 0.0
    %6812 = vmatprep.subr.mxu0 0.0
    %6813 = vmatpush2.msra.mxu0 0.0
    %6814 = vmatprep.subr.mxu0 0.0
    %6815 = vmatpush2.msra.mxu0 0.0
    %6816 = vmatprep.subr.mxu0 0.0
    %6817 = vmatpush2.msra.mxu0 0.0
    %6818 = vmatprep.subr.mxu0 0.0
    %6819 = vmatpush2.msra.mxu0 0.0
    %6820 = vmatprep.subr.mxu0 0.0
    %6821 = vmatpush2.msra.mxu0 0.0
    %6822 = vmatprep.subr.mxu0 0.0
    %6823 = vmatpush2.msra.mxu0 0.0
    %6824 = vmatprep.mubr.f32.mxu0 0.0
    %6825 = vmatmul.mubr.f32.gmra.mxu0 %v6728
    %v6826 = vpop.f32.mrf.mxu0
    %v6827 = vadd.f32 0.0, %v6826
    %v6828 = vpop.f32.mrf.mxu0
    %6829 = vmatprep.mubr.f32.mxu0 0.0
    %6830 = vmatmul.mubr.f32.gmra.mxu0 %v6729
    %v6831 = vpop.f32.mrf.mxu0
    %v6832 = vadd.f32 0.0, %v6831
    %v6833 = vpop.f32.mrf.mxu0
    %6834 = vmatprep.mubr.f32.mxu0 0.0
    %6835 = vmatmul.mubr.f32.gmra.mxu0 %v6730
    %v6836 = vpop.f32.mrf.mxu0
    %v6837 = vadd.f32 0.0, %v6836
    %v6838 = vpop.f32.mrf.mxu0
    %6839 = vmatprep.mubr.f32.mxu0 0.0
    %6840 = vmatmul.mubr.f32.gmra.mxu0 %v6731
    %v6841 = vpop.f32.mrf.mxu0
    %v6842 = vadd.f32 0.0, %v6841
    %v6843 = vpop.f32.mrf.mxu0
    %6844 = vmatprep.mubr.f32.mxu0 0.0
    %6845 = vmatmul.mubr.f32.gmra.mxu0 %v6732
    %v6846 = vpop.f32.mrf.mxu0
    %v6847 = vadd.f32 0.0, %v6846
    %v6848 = vpop.f32.mrf.mxu0
    %6849 = vmatprep.mubr.f32.mxu0 0.0
    %6850 = vmatmul.mubr.f32.gmra.mxu0 %v6733
    %v6851 = vpop.f32.mrf.mxu0
    %v6852 = vadd.f32 0.0, %v6851
    %v6853 = vpop.f32.mrf.mxu0
    %6854 = vmatprep.mubr.f32.mxu0 0.0
    %6855 = vmatmul.mubr.f32.gmra.mxu0 %v6734
    %v6856 = vpop.f32.mrf.mxu0
    %v6857 = vadd.f32 0.0, %v6856
    %v6858 = vpop.f32.mrf.mxu0
    %6859 = vmatprep.mubr.f32.mxu0 0.0
    %6860 = vmatmul.mubr.f32.gmra.mxu0 %v6735
    %v6861 = vpop.f32.mrf.mxu0
    %v6862 = vadd.f32 0.0, %v6861
    %v6863 = vpop.f32.mrf.mxu0
    %6864 = vmatprep.mubr.f32.mxu0 0.0
    %6865 = vmatmul.mubr.f32.gmra.mxu0 %v6736
    %v6866 = vpop.f32.mrf.mxu0
    %v6867 = vadd.f32 0.0, %v6866
    %v6868 = vpop.f32.mrf.mxu0
    %6869 = vmatprep.mubr.f32.mxu0 0.0
    %6870 = vmatmul.mubr.f32.gmra.mxu0 %v6737
    %v6871 = vpop.f32.mrf.mxu0
    %v6872 = vadd.f32 0.0, %v6871
    %v6873 = vpop.f32.mrf.mxu0
    %6874 = vmatprep.mubr.f32.mxu0 0.0
    %6875 = vmatmul.mubr.f32.gmra.mxu0 %v6738
    %v6876 = vpop.f32.mrf.mxu0
    %v6877 = vadd.f32 0.0, %v6876
    %v6878 = vpop.f32.mrf.mxu0
    %6879 = vmatprep.mubr.f32.mxu0 0.0
    %6880 = vmatmul.mubr.f32.gmra.mxu0 %v6739
    %v6881 = vpop.f32.mrf.mxu0
    %v6882 = vadd.f32 0.0, %v6881
    %v6883 = vpop.f32.mrf.mxu0
    %6884 = vmatprep.mubr.f32.mxu0 0.0
    %6885 = vmatmul.mubr.f32.gmra.mxu0 %v6740
    %v6886 = vpop.f32.mrf.mxu0
    %v6887 = vadd.f32 0.0, %v6886
    %v6888 = vpop.f32.mrf.mxu0
    %6889 = vmatprep.mubr.f32.mxu0 0.0
    %6890 = vmatmul.mubr.f32.gmra.mxu0 %v6741
    %v6891 = vpop.f32.mrf.mxu0
    %v6892 = vadd.f32 0.0, %v6891
    %v6893 = vpop.f32.mrf.mxu0
    %6894 = vmatprep.mubr.f32.mxu0 0.0
    %6895 = vmatmul.mubr.f32.gmra.mxu0 %v6742
    %v6896 = vpop.f32.mrf.mxu0
    %v6897 = vadd.f32 0.0, %v6896
    %v6898 = vpop.f32.mrf.mxu0
    %6899 = vmatprep.mubr.f32.mxu0 0.0
    %6900 = vmatmul.mubr.f32.gmra.mxu0 %v6743
    %v6901 = vpop.f32.mrf.mxu0
    %v6902 = vadd.f32 0.0, %v6901
    %v6903 = vpop.f32.mrf.mxu0
    %6904 = vdwg.mxu0
    %v6905 = vadd.f32 %v6313, %v6827
    %v6906 = vadd.f32 %v6318, %v6832
    %v6907 = vadd.f32 %v6323, %v6837
    %v6908 = vadd.f32 %v6328, %v6842
    %v6909 = vadd.f32 %v6333, %v6847
    %v6910 = vadd.f32 %v6338, %v6852
    %v6911 = vadd.f32 %v6343, %v6857
    %v6912 = vadd.f32 %v6348, %v6862
    %v6913 = vadd.f32 %v6353, %v6867
    %v6914 = vadd.f32 %v6358, %v6872
    %v6915 = vadd.f32 %v6363, %v6877
    %v6916 = vadd.f32 %v6368, %v6882
    %v6917 = vadd.f32 %v6373, %v6887
    %v6918 = vadd.f32 %v6378, %v6892
    %v6919 = vadd.f32 %v6383, %v6897
    %v6920 = vadd.f32 %v6388, %v6902
    %v6921 = vmul.f32 %v5001, %v3103
    %v6922 = vmul.f32 %v5002, %v3103
    %v6923 = vmul.f32 %v5003, %v3103
    %v6924 = vmul.f32 %v5004, %v3103
    %v6925 = vmul.f32 %v5005, %v3103
    %v6926 = vmul.f32 %v5006, %v3103
    %v6927 = vmul.f32 %v5007, %v3103
    %v6928 = vmul.f32 %v5008, %v3103
    %v6929 = vmul.f32 %v5009, %v3103
    %v6930 = vmul.f32 %v5010, %v3103
    %v6931 = vmul.f32 %v5011, %v3103
    %v6932 = vmul.f32 %v5012, %v3103
    %v6933 = vmul.f32 %v5013, %v3103
    %v6934 = vmul.f32 %v5014, %v3103
    %v6935 = vmul.f32 %v5015, %v3103
    %v6936 = vmul.f32 %v5016, %v3103
    %v6938 = vsel %vm970, %v6921, 0
    %v6941 = vsel %vm970, %v6922, 0
    %v6944 = vsel %vm970, %v6923, 0
    %v6947 = vsel %vm970, %v6924, 0
    %v6950 = vsel %vm970, %v6925, 0
    %v6953 = vsel %vm970, %v6926, 0
    %v6956 = vsel %vm970, %v6927, 0
    %v6959 = vsel %vm970, %v6928, 0
    %v6962 = vsel %vm970, %v6929, 0
    %v6965 = vsel %vm970, %v6930, 0
    %v6968 = vsel %vm970, %v6931, 0
    %v6971 = vsel %vm970, %v6932, 0
    %v6974 = vsel %vm970, %v6933, 0
    %v6977 = vsel %vm970, %v6934, 0
    %v6980 = vsel %vm970, %v6935, 0
    %v6983 = vsel %vm970, %v6936, 0
    %6985 = vmatprep.subr.mxu0 0.0
    %6986 = vmatpush1.xpose.msra.mxu0 %v5425
    %6987 = vmatprep.subr.mxu0 0.0
    %6988 = vmatpush1.xpose.msra.mxu0 %v5422
    %6989 = vmatprep.subr.mxu0 0.0
    %6990 = vmatpush1.xpose.msra.mxu0 %v5419
    %6991 = vmatprep.subr.mxu0 0.0
    %6992 = vmatpush1.xpose.msra.mxu0 %v5416
    %6993 = vmatprep.subr.mxu0 0.0
    %6994 = vmatpush1.xpose.msra.mxu0 %v5413
    %6995 = vmatprep.subr.mxu0 0.0
    %6996 = vmatpush1.xpose.msra.mxu0 %v5410
    %6997 = vmatprep.subr.mxu0 0.0
    %6998 = vmatpush1.xpose.msra.mxu0 %v5407
    %6999 = vmatprep.subr.mxu0 0.0
    %7000 = vmatpush1.xpose.msra.mxu0 %v5404
    %7001 = vmatprep.subr.mxu0 0.0
    %7002 = vmatpush1.xpose.msra.mxu0 %v5401
    %7003 = vmatprep.subr.mxu0 0.0
    %7004 = vmatpush1.xpose.msra.mxu0 %v5398
    %7005 = vmatprep.subr.mxu0 0.0
    %7006 = vmatpush1.xpose.msra.mxu0 %v5395
    %7007 = vmatprep.subr.mxu0 0.0
    %7008 = vmatpush1.xpose.msra.mxu0 %v5392
    %7009 = vmatprep.subr.mxu0 0.0
    %7010 = vmatpush1.xpose.msra.mxu0 %v5389
    %7011 = vmatprep.subr.mxu0 0.0
    %7012 = vmatpush1.xpose.msra.mxu0 %v5386
    %7013 = vmatprep.subr.mxu0 0.0
    %7014 = vmatpush1.xpose.msra.mxu0 %v5383
    %7015 = vmatprep.subr.mxu0 0.0
    %7016 = vmatpush1.xpose.msra.mxu0 %v5380
    %7017 = vmatprep.subr.mxu0 0.0
    %7018 = vmatpush2.xpose.msra.mxu0 0.0
    %7019 = vmatprep.subr.mxu0 0.0
    %7020 = vmatpush2.xpose.msra.mxu0 0.0
    %7021 = vmatprep.subr.mxu0 0.0
    %7022 = vmatpush2.xpose.msra.mxu0 0.0
    %7023 = vmatprep.subr.mxu0 0.0
    %7024 = vmatpush2.xpose.msra.mxu0 0.0
    %7025 = vmatprep.subr.mxu0 0.0
    %7026 = vmatpush2.xpose.msra.mxu0 0.0
    %7027 = vmatprep.subr.mxu0 0.0
    %7028 = vmatpush2.xpose.msra.mxu0 0.0
    %7029 = vmatprep.subr.mxu0 0.0
    %7030 = vmatpush2.xpose.msra.mxu0 0.0
    %7031 = vmatprep.subr.mxu0 0.0
    %7032 = vmatpush2.xpose.msra.mxu0 0.0
    %7033 = vmatprep.subr.mxu0 0.0
    %7034 = vmatpush2.xpose.msra.mxu0 0.0
    %7035 = vmatprep.subr.mxu0 0.0
    %7036 = vmatpush2.xpose.msra.mxu0 0.0
    %7037 = vmatprep.subr.mxu0 0.0
    %7038 = vmatpush2.xpose.msra.mxu0 0.0
    %7039 = vmatprep.subr.mxu0 0.0
    %7040 = vmatpush2.xpose.msra.mxu0 0.0
    %7041 = vmatprep.subr.mxu0 0.0
    %7042 = vmatpush2.xpose.msra.mxu0 0.0
    %7043 = vmatprep.subr.mxu0 0.0
    %7044 = vmatpush2.xpose.msra.mxu0 0.0
    %7045 = vmatprep.subr.mxu0 0.0
    %7046 = vmatpush2.xpose.msra.mxu0 0.0
    %7047 = vmatprep.subr.mxu0 0.0
    %7048 = vmatpush2.xpose.msra.mxu0 0.0
    %7049 = vmatprep.mubr.f32.mxu0 0.0
    %7050 = vmatmul.mubr.f32.gmra.mxu0 %v6938
    %v7051 = vpop.f32.mrf.mxu0
    %v7052 = vadd.f32 %v920, %v7051
    %v7053 = vpop.f32.mrf.mxu0
    %7054 = vmatprep.mubr.f32.mxu0 0.0
    %7055 = vmatmul.mubr.f32.gmra.mxu0 %v6941
    %v7056 = vpop.f32.mrf.mxu0
    %v7057 = vadd.f32 %v921, %v7056
    %v7058 = vpop.f32.mrf.mxu0
    %7059 = vmatprep.mubr.f32.mxu0 0.0
    %7060 = vmatmul.mubr.f32.gmra.mxu0 %v6944
    %v7061 = vpop.f32.mrf.mxu0
    %v7062 = vadd.f32 %v922, %v7061
    %v7063 = vpop.f32.mrf.mxu0
    %7064 = vmatprep.mubr.f32.mxu0 0.0
    %7065 = vmatmul.mubr.f32.gmra.mxu0 %v6947
    %v7066 = vpop.f32.mrf.mxu0
    %v7067 = vadd.f32 %v923, %v7066
    %v7068 = vpop.f32.mrf.mxu0
    %7069 = vmatprep.mubr.f32.mxu0 0.0
    %7070 = vmatmul.mubr.f32.gmra.mxu0 %v6950
    %v7071 = vpop.f32.mrf.mxu0
    %v7072 = vadd.f32 %v924, %v7071
    %v7073 = vpop.f32.mrf.mxu0
    %7074 = vmatprep.mubr.f32.mxu0 0.0
    %7075 = vmatmul.mubr.f32.gmra.mxu0 %v6953
    %v7076 = vpop.f32.mrf.mxu0
    %v7077 = vadd.f32 %v925, %v7076
    %v7078 = vpop.f32.mrf.mxu0
    %7079 = vmatprep.mubr.f32.mxu0 0.0
    %7080 = vmatmul.mubr.f32.gmra.mxu0 %v6956
    %v7081 = vpop.f32.mrf.mxu0
    %v7082 = vadd.f32 %v926, %v7081
    %v7083 = vpop.f32.mrf.mxu0
    %7084 = vmatprep.mubr.f32.mxu0 0.0
    %7085 = vmatmul.mubr.f32.gmra.mxu0 %v6959
    %v7086 = vpop.f32.mrf.mxu0
    %v7087 = vadd.f32 %v927, %v7086
    %v7088 = vpop.f32.mrf.mxu0
    %7089 = vmatprep.mubr.f32.mxu0 0.0
    %7090 = vmatmul.mubr.f32.gmra.mxu0 %v6962
    %v7091 = vpop.f32.mrf.mxu0
    %v7092 = vadd.f32 %v928, %v7091
    %v7093 = vpop.f32.mrf.mxu0
    %7094 = vmatprep.mubr.f32.mxu0 0.0
    %7095 = vmatmul.mubr.f32.gmra.mxu0 %v6965
    %v7096 = vpop.f32.mrf.mxu0
    %v7097 = vadd.f32 %v929, %v7096
    %v7098 = vpop.f32.mrf.mxu0
    %7099 = vmatprep.mubr.f32.mxu0 0.0
    %7100 = vmatmul.mubr.f32.gmra.mxu0 %v6968
    %v7101 = vpop.f32.mrf.mxu0
    %v7102 = vadd.f32 %v930, %v7101
    %v7103 = vpop.f32.mrf.mxu0
    %7104 = vmatprep.mubr.f32.mxu0 0.0
    %7105 = vmatmul.mubr.f32.gmra.mxu0 %v6971
    %v7106 = vpop.f32.mrf.mxu0
    %v7107 = vadd.f32 %v931, %v7106
    %v7108 = vpop.f32.mrf.mxu0
    %7109 = vmatprep.mubr.f32.mxu0 0.0
    %7110 = vmatmul.mubr.f32.gmra.mxu0 %v6974
    %v7111 = vpop.f32.mrf.mxu0
    %v7112 = vadd.f32 %v932, %v7111
    %v7113 = vpop.f32.mrf.mxu0
    %7114 = vmatprep.mubr.f32.mxu0 0.0
    %7115 = vmatmul.mubr.f32.gmra.mxu0 %v6977
    %v7116 = vpop.f32.mrf.mxu0
    %v7117 = vadd.f32 %v933, %v7116
    %v7118 = vpop.f32.mrf.mxu0
    %7119 = vmatprep.mubr.f32.mxu0 0.0
    %7120 = vmatmul.mubr.f32.gmra.mxu0 %v6980
    %v7121 = vpop.f32.mrf.mxu0
    %v7122 = vadd.f32 %v934, %v7121
    %v7123 = vpop.f32.mrf.mxu0
    %7124 = vmatprep.mubr.f32.mxu0 0.0
    %7125 = vmatmul.mubr.f32.gmra.mxu0 %v6983
    %v7126 = vpop.f32.mrf.mxu0
    %v7127 = vadd.f32 %v935, %v7126
    %v7128 = vpop.f32.mrf.mxu0
    %7129 = vdwg.mxu0
    %7130 = vmax.xlane.f32.xlu0 %v7052
    %v7131 = vpop.xlane.xlu0 %7130
    %7132 = vmax.xlane.f32.xlu0 %v7057
    %v7133 = vpop.xlane.xlu0 %7132
    %7134 = vmax.xlane.f32.xlu0 %v7062
    %v7135 = vpop.xlane.xlu0 %7134
    %7136 = vmax.xlane.f32.xlu0 %v7067
    %v7137 = vpop.xlane.xlu0 %7136
    %7138 = vmax.xlane.f32.xlu0 %v7072
    %v7139 = vpop.xlane.xlu0 %7138
    %7140 = vmax.xlane.f32.xlu0 %v7077
    %v7141 = vpop.xlane.xlu0 %7140
    %7142 = vmax.xlane.f32.xlu0 %v7082
    %v7143 = vpop.xlane.xlu0 %7142
    %7144 = vmax.xlane.f32.xlu0 %v7087
    %v7145 = vpop.xlane.xlu0 %7144
    %7146 = vmax.xlane.f32.xlu0 %v7092
    %v7147 = vpop.xlane.xlu0 %7146
    %7148 = vmax.xlane.f32.xlu0 %v7097
    %v7149 = vpop.xlane.xlu0 %7148
    %7150 = vmax.xlane.f32.xlu0 %v7102
    %v7151 = vpop.xlane.xlu0 %7150
    %7152 = vmax.xlane.f32.xlu0 %v7107
    %v7153 = vpop.xlane.xlu0 %7152
    %7154 = vmax.xlane.f32.xlu0 %v7112
    %v7155 = vpop.xlane.xlu0 %7154
    %7156 = vmax.xlane.f32.xlu0 %v7117
    %v7157 = vpop.xlane.xlu0 %7156
    %7158 = vmax.xlane.f32.xlu0 %v7122
    %v7159 = vpop.xlane.xlu0 %7158
    %7160 = vmax.xlane.f32.xlu0 %v7127
    %v7161 = vpop.xlane.xlu0 %7160
    %v7162 = vsub.f32 %v7052, %v7131
    %v7163 = vsub.f32 %v7057, %v7133
    %v7164 = vsub.f32 %v7062, %v7135
    %v7165 = vsub.f32 %v7067, %v7137
    %v7166 = vsub.f32 %v7072, %v7139
    %v7167 = vsub.f32 %v7077, %v7141
    %v7168 = vsub.f32 %v7082, %v7143
    %v7169 = vsub.f32 %v7087, %v7145
    %v7170 = vsub.f32 %v7092, %v7147
    %v7171 = vsub.f32 %v7097, %v7149
    %v7172 = vsub.f32 %v7102, %v7151
    %v7173 = vsub.f32 %v7107, %v7153
    %v7174 = vsub.f32 %v7112, %v7155
    %v7175 = vsub.f32 %v7117, %v7157
    %v7176 = vsub.f32 %v7122, %v7159
    %v7177 = vsub.f32 %v7127, %v7161
    %v7178 = vmul.f32 %v7162, 1.442695
    %v7179 = vpow.pop %v7178
    %v7180 = vmul.f32 %v7163, 1.442695
    %v7181 = vpow.pop %v7180
    %v7182 = vmul.f32 %v7164, 1.442695
    %v7183 = vpow.pop %v7182
    %v7184 = vmul.f32 %v7165, 1.442695
    %v7185 = vpow.pop %v7184
    %v7186 = vmul.f32 %v7166, 1.442695
    %v7187 = vpow.pop %v7186
    %v7188 = vmul.f32 %v7167, 1.442695
    %v7189 = vpow.pop %v7188
    %v7190 = vmul.f32 %v7168, 1.442695
    %v7191 = vpow.pop %v7190
    %v7192 = vmul.f32 %v7169, 1.442695
    %v7193 = vpow.pop %v7192
    %v7194 = vmul.f32 %v7170, 1.442695
    %v7195 = vpow.pop %v7194
    %v7196 = vmul.f32 %v7171, 1.442695
    %v7197 = vpow.pop %v7196
    %v7198 = vmul.f32 %v7172, 1.442695
    %v7199 = vpow.pop %v7198
    %v7200 = vmul.f32 %v7173, 1.442695
    %v7201 = vpow.pop %v7200
    %v7202 = vmul.f32 %v7174, 1.442695
    %v7203 = vpow.pop %v7202
    %v7204 = vmul.f32 %v7175, 1.442695
    %v7205 = vpow.pop %v7204
    %v7206 = vmul.f32 %v7176, 1.442695
    %v7207 = vpow.pop %v7206
    %v7208 = vmul.f32 %v7177, 1.442695
    %v7209 = vpow.pop %v7208
    %7210 = vadd.xlane.f32.xlu0 %v7179
    %v7211 = vpop.xlane.xlu0 %7210
    %7212 = vadd.xlane.f32.xlu0 %v7181
    %v7213 = vpop.xlane.xlu0 %7212
    %7214 = vadd.xlane.f32.xlu0 %v7183
    %v7215 = vpop.xlane.xlu0 %7214
    %7216 = vadd.xlane.f32.xlu0 %v7185
    %v7217 = vpop.xlane.xlu0 %7216
    %7218 = vadd.xlane.f32.xlu0 %v7187
    %v7219 = vpop.xlane.xlu0 %7218
    %7220 = vadd.xlane.f32.xlu0 %v7189
    %v7221 = vpop.xlane.xlu0 %7220
    %7222 = vadd.xlane.f32.xlu0 %v7191
    %v7223 = vpop.xlane.xlu0 %7222
    %7224 = vadd.xlane.f32.xlu0 %v7193
    %v7225 = vpop.xlane.xlu0 %7224
    %7226 = vadd.xlane.f32.xlu0 %v7195
    %v7227 = vpop.xlane.xlu0 %7226
    %7228 = vadd.xlane.f32.xlu0 %v7197
    %v7229 = vpop.xlane.xlu0 %7228
    %7230 = vadd.xlane.f32.xlu0 %v7199
    %v7231 = vpop.xlane.xlu0 %7230
    %7232 = vadd.xlane.f32.xlu0 %v7201
    %v7233 = vpop.xlane.xlu0 %7232
    %7234 = vadd.xlane.f32.xlu0 %v7203
    %v7235 = vpop.xlane.xlu0 %7234
    %7236 = vadd.xlane.f32.xlu0 %v7205
    %v7237 = vpop.xlane.xlu0 %7236
    %7238 = vadd.xlane.f32.xlu0 %v7207
    %v7239 = vpop.xlane.xlu0 %7238
    %7240 = vadd.xlane.f32.xlu0 %v7209
    %v7241 = vpop.xlane.xlu0 %7240
    %v7242 = vrcp.pop %v7211
    %v7243 = vrcp.pop %v7213
    %v7244 = vrcp.pop %v7215
    %v7245 = vrcp.pop %v7217
    %v7246 = vrcp.pop %v7219
    %v7247 = vrcp.pop %v7221
    %v7248 = vrcp.pop %v7223
    %v7249 = vrcp.pop %v7225
    %v7250 = vrcp.pop %v7227
    %v7251 = vrcp.pop %v7229
    %v7252 = vrcp.pop %v7231
    %v7253 = vrcp.pop %v7233
    %v7254 = vrcp.pop %v7235
    %v7255 = vrcp.pop %v7237
    %v7256 = vrcp.pop %v7239
    %v7257 = vrcp.pop %v7241
    %v7258 = vmul.f32 %v7179, %v7242
    %v7259 = vmul.f32 %v7181, %v7243
    %v7260 = vmul.f32 %v7183, %v7244
    %v7261 = vmul.f32 %v7185, %v7245
    %v7262 = vmul.f32 %v7187, %v7246
    %v7263 = vmul.f32 %v7189, %v7247
    %v7264 = vmul.f32 %v7191, %v7248
    %v7265 = vmul.f32 %v7193, %v7249
    %v7266 = vmul.f32 %v7195, %v7250
    %v7267 = vmul.f32 %v7197, %v7251
    %v7268 = vmul.f32 %v7199, %v7252
    %v7269 = vmul.f32 %v7201, %v7253
    %v7270 = vmul.f32 %v7203, %v7254
    %v7271 = vmul.f32 %v7205, %v7255
    %v7272 = vmul.f32 %v7207, %v7256
    %v7273 = vmul.f32 %v7209, %v7257
    %v7274 = vmul.f32 %v5237, %v3103
    %v7275 = vmul.f32 %v5242, %v3103
    %v7276 = vmul.f32 %v5247, %v3103
    %v7277 = vmul.f32 %v5252, %v3103
    %v7278 = vmul.f32 %v5257, %v3103
    %v7279 = vmul.f32 %v5262, %v3103
    %v7280 = vmul.f32 %v5267, %v3103
    %v7281 = vmul.f32 %v5272, %v3103
    %v7282 = vmul.f32 %v5277, %v3103
    %v7283 = vmul.f32 %v5282, %v3103
    %v7284 = vmul.f32 %v5287, %v3103
    %v7285 = vmul.f32 %v5292, %v3103
    %v7286 = vmul.f32 %v5297, %v3103
    %v7287 = vmul.f32 %v5302, %v3103
    %v7288 = vmul.f32 %v5307, %v3103
    %v7289 = vmul.f32 %v5312, %v3103
    %7290 = vmatprep.subr.mxu0 0.0
    %7291 = vmatpush1.msra.mxu0 %v7289
    %7292 = vmatprep.subr.mxu0 0.0
    %7293 = vmatpush1.msra.mxu0 %v7288
    %7294 = vmatprep.subr.mxu0 0.0
    %7295 = vmatpush1.msra.mxu0 %v7287
    %7296 = vmatprep.subr.mxu0 0.0
    %7297 = vmatpush1.msra.mxu0 %v7286
    %7298 = vmatprep.subr.mxu0 0.0
    %7299 = vmatpush1.msra.mxu0 %v7285
    %7300 = vmatprep.subr.mxu0 0.0
    %7301 = vmatpush1.msra.mxu0 %v7284
    %7302 = vmatprep.subr.mxu0 0.0
    %7303 = vmatpush1.msra.mxu0 %v7283
    %7304 = vmatprep.subr.mxu0 0.0
    %7305 = vmatpush1.msra.mxu0 %v7282
    %7306 = vmatprep.subr.mxu0 0.0
    %7307 = vmatpush1.msra.mxu0 %v7281
    %7308 = vmatprep.subr.mxu0 0.0
    %7309 = vmatpush1.msra.mxu0 %v7280
    %7310 = vmatprep.subr.mxu0 0.0
    %7311 = vmatpush1.msra.mxu0 %v7279
    %7312 = vmatprep.subr.mxu0 0.0
    %7313 = vmatpush1.msra.mxu0 %v7278
    %7314 = vmatprep.subr.mxu0 0.0
    %7315 = vmatpush1.msra.mxu0 %v7277
    %7316 = vmatprep.subr.mxu0 0.0
    %7317 = vmatpush1.msra.mxu0 %v7276
    %7318 = vmatprep.subr.mxu0 0.0
    %7319 = vmatpush1.msra.mxu0 %v7275
    %7320 = vmatprep.subr.mxu0 0.0
    %7321 = vmatpush1.msra.mxu0 %v7274
    %7322 = vmatprep.subr.mxu0 0.0
    %7323 = vmatpush2.msra.mxu0 0.0
    %7324 = vmatprep.subr.mxu0 0.0
    %7325 = vmatpush2.msra.mxu0 0.0
    %7326 = vmatprep.subr.mxu0 0.0
    %7327 = vmatpush2.msra.mxu0 0.0
    %7328 = vmatprep.subr.mxu0 0.0
    %7329 = vmatpush2.msra.mxu0 0.0
    %7330 = vmatprep.subr.mxu0 0.0
    %7331 = vmatpush2.msra.mxu0 0.0
    %7332 = vmatprep.subr.mxu0 0.0
    %7333 = vmatpush2.msra.mxu0 0.0
    %7334 = vmatprep.subr.mxu0 0.0
    %7335 = vmatpush2.msra.mxu0 0.0
    %7336 = vmatprep.subr.mxu0 0.0
    %7337 = vmatpush2.msra.mxu0 0.0
    %7338 = vmatprep.subr.mxu0 0.0
    %7339 = vmatpush2.msra.mxu0 0.0
    %7340 = vmatprep.subr.mxu0 0.0
    %7341 = vmatpush2.msra.mxu0 0.0
    %7342 = vmatprep.subr.mxu0 0.0
    %7343 = vmatpush2.msra.mxu0 0.0
    %7344 = vmatprep.subr.mxu0 0.0
    %7345 = vmatpush2.msra.mxu0 0.0
    %7346 = vmatprep.subr.mxu0 0.0
    %7347 = vmatpush2.msra.mxu0 0.0
    %7348 = vmatprep.subr.mxu0 0.0
    %7349 = vmatpush2.msra.mxu0 0.0
    %7350 = vmatprep.subr.mxu0 0.0
    %7351 = vmatpush2.msra.mxu0 0.0
    %7352 = vmatprep.subr.mxu0 0.0
    %7353 = vmatpush2.msra.mxu0 0.0
    %7354 = vmatprep.mubr.f32.mxu0 0.0
    %7355 = vmatmul.mubr.f32.gmra.mxu0 %v7258
    %v7356 = vpop.f32.mrf.mxu0
    %v7357 = vadd.f32 0.0, %v7356
    %v7358 = vpop.f32.mrf.mxu0
    %7359 = vmatprep.mubr.f32.mxu0 0.0
    %7360 = vmatmul.mubr.f32.gmra.mxu0 %v7259
    %v7361 = vpop.f32.mrf.mxu0
    %v7362 = vadd.f32 0.0, %v7361
    %v7363 = vpop.f32.mrf.mxu0
    %7364 = vmatprep.mubr.f32.mxu0 0.0
    %7365 = vmatmul.mubr.f32.gmra.mxu0 %v7260
    %v7366 = vpop.f32.mrf.mxu0
    %v7367 = vadd.f32 0.0, %v7366
    %v7368 = vpop.f32.mrf.mxu0
    %7369 = vmatprep.mubr.f32.mxu0 0.0
    %7370 = vmatmul.mubr.f32.gmra.mxu0 %v7261
    %v7371 = vpop.f32.mrf.mxu0
    %v7372 = vadd.f32 0.0, %v7371
    %v7373 = vpop.f32.mrf.mxu0
    %7374 = vmatprep.mubr.f32.mxu0 0.0
    %7375 = vmatmul.mubr.f32.gmra.mxu0 %v7262
    %v7376 = vpop.f32.mrf.mxu0
    %v7377 = vadd.f32 0.0, %v7376
    %v7378 = vpop.f32.mrf.mxu0
    %7379 = vmatprep.mubr.f32.mxu0 0.0
    %7380 = vmatmul.mubr.f32.gmra.mxu0 %v7263
    %v7381 = vpop.f32.mrf.mxu0
    %v7382 = vadd.f32 0.0, %v7381
    %v7383 = vpop.f32.mrf.mxu0
    %7384 = vmatprep.mubr.f32.mxu0 0.0
    %7385 = vmatmul.mubr.f32.gmra.mxu0 %v7264
    %v7386 = vpop.f32.mrf.mxu0
    %v7387 = vadd.f32 0.0, %v7386
    %v7388 = vpop.f32.mrf.mxu0
    %7389 = vmatprep.mubr.f32.mxu0 0.0
    %7390 = vmatmul.mubr.f32.gmra.mxu0 %v7265
    %v7391 = vpop.f32.mrf.mxu0
    %v7392 = vadd.f32 0.0, %v7391
    %v7393 = vpop.f32.mrf.mxu0
    %7394 = vmatprep.mubr.f32.mxu0 0.0
    %7395 = vmatmul.mubr.f32.gmra.mxu0 %v7266
    %v7396 = vpop.f32.mrf.mxu0
    %v7397 = vadd.f32 0.0, %v7396
    %v7398 = vpop.f32.mrf.mxu0
    %7399 = vmatprep.mubr.f32.mxu0 0.0
    %7400 = vmatmul.mubr.f32.gmra.mxu0 %v7267
    %v7401 = vpop.f32.mrf.mxu0
    %v7402 = vadd.f32 0.0, %v7401
    %v7403 = vpop.f32.mrf.mxu0
    %7404 = vmatprep.mubr.f32.mxu0 0.0
    %7405 = vmatmul.mubr.f32.gmra.mxu0 %v7268
    %v7406 = vpop.f32.mrf.mxu0
    %v7407 = vadd.f32 0.0, %v7406
    %v7408 = vpop.f32.mrf.mxu0
    %7409 = vmatprep.mubr.f32.mxu0 0.0
    %7410 = vmatmul.mubr.f32.gmra.mxu0 %v7269
    %v7411 = vpop.f32.mrf.mxu0
    %v7412 = vadd.f32 0.0, %v7411
    %v7413 = vpop.f32.mrf.mxu0
    %7414 = vmatprep.mubr.f32.mxu0 0.0
    %7415 = vmatmul.mubr.f32.gmra.mxu0 %v7270
    %v7416 = vpop.f32.mrf.mxu0
    %v7417 = vadd.f32 0.0, %v7416
    %v7418 = vpop.f32.mrf.mxu0
    %7419 = vmatprep.mubr.f32.mxu0 0.0
    %7420 = vmatmul.mubr.f32.gmra.mxu0 %v7271
    %v7421 = vpop.f32.mrf.mxu0
    %v7422 = vadd.f32 0.0, %v7421
    %v7423 = vpop.f32.mrf.mxu0
    %7424 = vmatprep.mubr.f32.mxu0 0.0
    %7425 = vmatmul.mubr.f32.gmra.mxu0 %v7272
    %v7426 = vpop.f32.mrf.mxu0
    %v7427 = vadd.f32 0.0, %v7426
    %v7428 = vpop.f32.mrf.mxu0
    %7429 = vmatprep.mubr.f32.mxu0 0.0
    %7430 = vmatmul.mubr.f32.gmra.mxu0 %v7273
    %v7431 = vpop.f32.mrf.mxu0
    %v7432 = vadd.f32 0.0, %v7431
    %v7433 = vpop.f32.mrf.mxu0
    %7434 = vdwg.mxu0
    %v7435 = vadd.f32 %v6905, %v7357
    %v7436 = vadd.f32 %v6906, %v7362
    %v7437 = vadd.f32 %v6907, %v7367
    %v7438 = vadd.f32 %v6908, %v7372
    %v7439 = vadd.f32 %v6909, %v7377
    %v7440 = vadd.f32 %v6910, %v7382
    %v7441 = vadd.f32 %v6911, %v7387
    %v7442 = vadd.f32 %v6912, %v7392
    %v7443 = vadd.f32 %v6913, %v7397
    %v7444 = vadd.f32 %v6914, %v7402
    %v7445 = vadd.f32 %v6915, %v7407
    %v7446 = vadd.f32 %v6916, %v7412
    %v7447 = vadd.f32 %v6917, %v7417
    %v7448 = vadd.f32 %v6918, %v7422
    %v7449 = vadd.f32 %v6919, %v7427
    %v7450 = vadd.f32 %v6920, %v7432
    %v7451 = vlaneseq
    %v7452 = vshrl.u32 %v7451, 7
    %v7453 = vsub.s32 3, %v7452
    %v7454 = vrot.slane %v4802, %v7453
    %v7456 = vsel %vm970, %v7435, 0
    %v7459 = vsel %vm970, %v7436, 0
    %v7462 = vsel %vm970, %v7437, 0
    %v7465 = vsel %vm970, %v7438, 0
    %v7468 = vsel %vm970, %v7439, 0
    %v7471 = vsel %vm970, %v7440, 0
    %v7474 = vsel %vm970, %v7441, 0
    %v7477 = vsel %vm970, %v7442, 0
    %v7480 = vsel %vm970, %v7443, 0
    %v7483 = vsel %vm970, %v7444, 0
    %v7486 = vsel %vm970, %v7445, 0
    %v7489 = vsel %vm970, %v7446, 0
    %v7492 = vsel %vm970, %v7447, 0
    %v7495 = vsel %vm970, %v7448, 0
    %v7498 = vsel %vm970, %v7449, 0
    %v7501 = vsel %vm970, %v7450, 0
    %7503 = vmatprep.subr.mxu0 0.0
    %7504 = vmatpush1.msra.mxu0 0.0
    %7505 = vmatprep.subr.mxu0 0.0
    %7506 = vmatpush1.msra.mxu0 0.0
    %7507 = vmatprep.subr.mxu0 0.0
    %7508 = vmatpush1.msra.mxu0 0.0
    %7509 = vmatprep.subr.mxu0 0.0
    %7510 = vmatpush1.msra.mxu0 0.0
    %7511 = vmatprep.subr.mxu0 0.0
    %7512 = vmatpush1.msra.mxu0 0.0
    %7513 = vmatprep.subr.mxu0 0.0
    %7514 = vmatpush1.msra.mxu0 0.0
    %7515 = vmatprep.subr.mxu0 0.0
    %7516 = vmatpush1.msra.mxu0 0.0
    %7517 = vmatprep.subr.mxu0 0.0
    %7518 = vmatpush1.msra.mxu0 0.0
    %7519 = vmatprep.subr.mxu0 0.0
    %7520 = vmatpush1.msra.mxu0 0.0
    %7521 = vmatprep.subr.mxu0 0.0
    %7522 = vmatpush1.msra.mxu0 0.0
    %7523 = vmatprep.subr.mxu0 0.0
    %7524 = vmatpush1.msra.mxu0 0.0
    %7525 = vmatprep.subr.mxu0 0.0
    %7526 = vmatpush1.msra.mxu0 0.0
    %7527 = vmatprep.subr.mxu0 0.0
    %7528 = vmatpush1.msra.mxu0 %v4790
    %7529 = vmatprep.subr.mxu0 0.0
    %7530 = vmatpush1.msra.mxu0 %v4785
    %7531 = vmatprep.subr.mxu0 0.0
    %7532 = vmatpush1.msra.mxu0 %v4780
    %7533 = vmatprep.subr.mxu0 0.0
    %7534 = vmatpush1.msra.mxu0 %v4775
    %7535 = vmatprep.subr.mxu0 0.0
    %7536 = vmatpush2.msra.mxu0 0.0
    %7537 = vmatprep.subr.mxu0 0.0
    %7538 = vmatpush2.msra.mxu0 0.0
    %7539 = vmatprep.subr.mxu0 0.0
    %7540 = vmatpush2.msra.mxu0 0.0
    %7541 = vmatprep.subr.mxu0 0.0
    %7542 = vmatpush2.msra.mxu0 0.0
    %7543 = vmatprep.subr.mxu0 0.0
    %7544 = vmatpush2.msra.mxu0 0.0
    %7545 = vmatprep.subr.mxu0 0.0
    %7546 = vmatpush2.msra.mxu0 0.0
    %7547 = vmatprep.subr.mxu0 0.0
    %7548 = vmatpush2.msra.mxu0 0.0
    %7549 = vmatprep.subr.mxu0 0.0
    %7550 = vmatpush2.msra.mxu0 0.0
    %7551 = vmatprep.subr.mxu0 0.0
    %7552 = vmatpush2.msra.mxu0 0.0
    %7553 = vmatprep.subr.mxu0 0.0
    %7554 = vmatpush2.msra.mxu0 0.0
    %7555 = vmatprep.subr.mxu0 0.0
    %7556 = vmatpush2.msra.mxu0 0.0
    %7557 = vmatprep.subr.mxu0 0.0
    %7558 = vmatpush2.msra.mxu0 0.0
    %7559 = vmatprep.subr.mxu0 0.0
    %7560 = vmatpush2.msra.mxu0 0.0
    %7561 = vmatprep.subr.mxu0 0.0
    %7562 = vmatpush2.msra.mxu0 0.0
    %7563 = vmatprep.subr.mxu0 0.0
    %7564 = vmatpush2.msra.mxu0 0.0
    %7565 = vmatprep.subr.mxu0 0.0
    %7566 = vmatpush2.msra.mxu0 0.0
    %7567 = vmatprep.mubr.f32.mxu0 0.0
    %7568 = vmatmul.mubr.f32.gmra.mxu0 %v7456
    %v7569 = vpop.f32.mrf.mxu0
    %v7570 = vadd.f32 %v7454, %v7569
    %v7571 = vpop.f32.mrf.mxu0
    %7572 = vmatprep.mubr.f32.mxu0 0.0
    %7573 = vmatmul.mubr.f32.gmra.mxu0 %v7459
    %v7574 = vpop.f32.mrf.mxu0
    %v7575 = vadd.f32 %v7454, %v7574
    %v7576 = vpop.f32.mrf.mxu0
    %7577 = vmatprep.mubr.f32.mxu0 0.0
    %7578 = vmatmul.mubr.f32.gmra.mxu0 %v7462
    %v7579 = vpop.f32.mrf.mxu0
    %v7580 = vadd.f32 %v7454, %v7579
    %v7581 = vpop.f32.mrf.mxu0
    %7582 = vmatprep.mubr.f32.mxu0 0.0
    %7583 = vmatmul.mubr.f32.gmra.mxu0 %v7465
    %v7584 = vpop.f32.mrf.mxu0
    %v7585 = vadd.f32 %v7454, %v7584
    %v7586 = vpop.f32.mrf.mxu0
    %7587 = vmatprep.mubr.f32.mxu0 0.0
    %7588 = vmatmul.mubr.f32.gmra.mxu0 %v7468
    %v7589 = vpop.f32.mrf.mxu0
    %v7590 = vadd.f32 %v7454, %v7589
    %v7591 = vpop.f32.mrf.mxu0
    %7592 = vmatprep.mubr.f32.mxu0 0.0
    %7593 = vmatmul.mubr.f32.gmra.mxu0 %v7471
    %v7594 = vpop.f32.mrf.mxu0
    %v7595 = vadd.f32 %v7454, %v7594
    %v7596 = vpop.f32.mrf.mxu0
    %7597 = vmatprep.mubr.f32.mxu0 0.0
    %7598 = vmatmul.mubr.f32.gmra.mxu0 %v7474
    %v7599 = vpop.f32.mrf.mxu0
    %v7600 = vadd.f32 %v7454, %v7599
    %v7601 = vpop.f32.mrf.mxu0
    %7602 = vmatprep.mubr.f32.mxu0 0.0
    %7603 = vmatmul.mubr.f32.gmra.mxu0 %v7477
    %v7604 = vpop.f32.mrf.mxu0
    %v7605 = vadd.f32 %v7454, %v7604
    %v7606 = vpop.f32.mrf.mxu0
    %7607 = vmatprep.mubr.f32.mxu0 0.0
    %7608 = vmatmul.mubr.f32.gmra.mxu0 %v7480
    %v7609 = vpop.f32.mrf.mxu0
    %v7610 = vadd.f32 %v7454, %v7609
    %v7611 = vpop.f32.mrf.mxu0
    %7612 = vmatprep.mubr.f32.mxu0 0.0
    %7613 = vmatmul.mubr.f32.gmra.mxu0 %v7483
    %v7614 = vpop.f32.mrf.mxu0
    %v7615 = vadd.f32 %v7454, %v7614
    %v7616 = vpop.f32.mrf.mxu0
    %7617 = vmatprep.mubr.f32.mxu0 0.0
    %7618 = vmatmul.mubr.f32.gmra.mxu0 %v7486
    %v7619 = vpop.f32.mrf.mxu0
    %v7620 = vadd.f32 %v7454, %v7619
    %v7621 = vpop.f32.mrf.mxu0
    %7622 = vmatprep.mubr.f32.mxu0 0.0
    %7623 = vmatmul.mubr.f32.gmra.mxu0 %v7489
    %v7624 = vpop.f32.mrf.mxu0
    %v7625 = vadd.f32 %v7454, %v7624
    %v7626 = vpop.f32.mrf.mxu0
    %7627 = vmatprep.mubr.f32.mxu0 0.0
    %7628 = vmatmul.mubr.f32.gmra.mxu0 %v7492
    %v7629 = vpop.f32.mrf.mxu0
    %v7630 = vadd.f32 %v7454, %v7629
    %v7631 = vpop.f32.mrf.mxu0
    %7632 = vmatprep.mubr.f32.mxu0 0.0
    %7633 = vmatmul.mubr.f32.gmra.mxu0 %v7495
    %v7634 = vpop.f32.mrf.mxu0
    %v7635 = vadd.f32 %v7454, %v7634
    %v7636 = vpop.f32.mrf.mxu0
    %7637 = vmatprep.mubr.f32.mxu0 0.0
    %7638 = vmatmul.mubr.f32.gmra.mxu0 %v7498
    %v7639 = vpop.f32.mrf.mxu0
    %v7640 = vadd.f32 %v7454, %v7639
    %v7641 = vpop.f32.mrf.mxu0
    %7642 = vmatprep.mubr.f32.mxu0 0.0
    %7643 = vmatmul.mubr.f32.gmra.mxu0 %v7501
    %v7644 = vpop.f32.mrf.mxu0
    %v7645 = vadd.f32 %v7454, %v7644
    %v7646 = vpop.f32.mrf.mxu0
    %7647 = vdwg.mxu0
    %v7648 = vadd.f32 %v4755, %v7570
    %v7649 = vadd.f32 %v4756, %v7575
    %v7650 = vadd.f32 %v4757, %v7580
    %v7651 = vadd.f32 %v4758, %v7585
    %v7652 = vadd.f32 %v4759, %v7590
    %v7653 = vadd.f32 %v4760, %v7595
    %v7654 = vadd.f32 %v4761, %v7600
    %v7655 = vadd.f32 %v4762, %v7605
    %v7656 = vadd.f32 %v4763, %v7610
    %v7657 = vadd.f32 %v4764, %v7615
    %v7658 = vadd.f32 %v4765, %v7620
    %v7659 = vadd.f32 %v4766, %v7625
    %v7660 = vadd.f32 %v4767, %v7630
    %v7661 = vadd.f32 %v4768, %v7635
    %v7662 = vadd.f32 %v4769, %v7640
    %v7663 = vadd.f32 %v4770, %v7645
    %v7664 = vsel %vm970, %v7648, 0.0
    %7665 = vadd.xlane.f32.xlu0 %v7664
    %v7666 = vpop.xlane.xlu0 %7665
    %v7667 = vsel %vm970, %v7649, 0.0
    %7668 = vadd.xlane.f32.xlu0 %v7667
    %v7669 = vpop.xlane.xlu0 %7668
    %v7670 = vsel %vm970, %v7650, 0.0
    %7671 = vadd.xlane.f32.xlu0 %v7670
    %v7672 = vpop.xlane.xlu0 %7671
    %v7673 = vsel %vm970, %v7651, 0.0
    %7674 = vadd.xlane.f32.xlu0 %v7673
    %v7675 = vpop.xlane.xlu0 %7674
    %v7676 = vsel %vm970, %v7652, 0.0
    %7677 = vadd.xlane.f32.xlu0 %v7676
    %v7678 = vpop.xlane.xlu0 %7677
    %v7679 = vsel %vm970, %v7653, 0.0
    %7680 = vadd.xlane.f32.xlu0 %v7679
    %v7681 = vpop.xlane.xlu0 %7680
    %v7682 = vsel %vm970, %v7654, 0.0
    %7683 = vadd.xlane.f32.xlu0 %v7682
    %v7684 = vpop.xlane.xlu0 %7683
    %v7685 = vsel %vm970, %v7655, 0.0
    %7686 = vadd.xlane.f32.xlu0 %v7685
    %v7687 = vpop.xlane.xlu0 %7686
    %v7688 = vsel %vm970, %v7656, 0.0
    %7689 = vadd.xlane.f32.xlu0 %v7688
    %v7690 = vpop.xlane.xlu0 %7689
    %v7691 = vsel %vm970, %v7657, 0.0
    %7692 = vadd.xlane.f32.xlu0 %v7691
    %v7693 = vpop.xlane.xlu0 %7692
    %v7694 = vsel %vm970, %v7658, 0.0
    %7695 = vadd.xlane.f32.xlu0 %v7694
    %v7696 = vpop.xlane.xlu0 %7695
    %v7697 = vsel %vm970, %v7659, 0.0
    %7698 = vadd.xlane.f32.xlu0 %v7697
    %v7699 = vpop.xlane.xlu0 %7698
    %v7700 = vsel %vm970, %v7660, 0.0
    %7701 = vadd.xlane.f32.xlu0 %v7700
    %v7702 = vpop.xlane.xlu0 %7701
    %v7703 = vsel %vm970, %v7661, 0.0
    %7704 = vadd.xlane.f32.xlu0 %v7703
    %v7705 = vpop.xlane.xlu0 %7704
    %v7706 = vsel %vm970, %v7662, 0.0
    %7707 = vadd.xlane.f32.xlu0 %v7706
    %v7708 = vpop.xlane.xlu0 %7707
    %v7709 = vsel %vm970, %v7663, 0.0
    %7710 = vadd.xlane.f32.xlu0 %v7709
    %v7711 = vpop.xlane.xlu0 %7710
    %v7712 = vmul.f32 %v7666, %v3895
    %v7713 = vmul.f32 %v7669, %v3895
    %v7714 = vmul.f32 %v7672, %v3895
    %v7715 = vmul.f32 %v7675, %v3895
    %v7716 = vmul.f32 %v7678, %v3895
    %v7717 = vmul.f32 %v7681, %v3895
    %v7718 = vmul.f32 %v7684, %v3895
    %v7719 = vmul.f32 %v7687, %v3895
    %v7720 = vmul.f32 %v7690, %v3895
    %v7721 = vmul.f32 %v7693, %v3895
    %v7722 = vmul.f32 %v7696, %v3895
    %v7723 = vmul.f32 %v7699, %v3895
    %v7724 = vmul.f32 %v7702, %v3895
    %v7725 = vmul.f32 %v7705, %v3895
    %v7726 = vmul.f32 %v7708, %v3895
    %v7727 = vmul.f32 %v7711, %v3895
    %v7728 = vsub.f32 %v7648, %v7712
    %v7729 = vsub.f32 %v7649, %v7713
    %v7730 = vsub.f32 %v7650, %v7714
    %v7731 = vsub.f32 %v7651, %v7715
    %v7732 = vsub.f32 %v7652, %v7716
    %v7733 = vsub.f32 %v7653, %v7717
    %v7734 = vsub.f32 %v7654, %v7718
    %v7735 = vsub.f32 %v7655, %v7719
    %v7736 = vsub.f32 %v7656, %v7720
    %v7737 = vsub.f32 %v7657, %v7721
    %v7738 = vsub.f32 %v7658, %v7722
    %v7739 = vsub.f32 %v7659, %v7723
    %v7740 = vsub.f32 %v7660, %v7724
    %v7741 = vsub.f32 %v7661, %v7725
    %v7742 = vsub.f32 %v7662, %v7726
    %v7743 = vsub.f32 %v7663, %v7727
    %v7744 = vmul.f32 %v7728, %v7728
    %v7745 = vmul.f32 %v7729, %v7729
    %v7746 = vmul.f32 %v7730, %v7730
    %v7747 = vmul.f32 %v7731, %v7731
    %v7748 = vmul.f32 %v7732, %v7732
    %v7749 = vmul.f32 %v7733, %v7733
    %v7750 = vmul.f32 %v7734, %v7734
    %v7751 = vmul.f32 %v7735, %v7735
    %v7752 = vmul.f32 %v7736, %v7736
    %v7753 = vmul.f32 %v7737, %v7737
    %v7754 = vmul.f32 %v7738, %v7738
    %v7755 = vmul.f32 %v7739, %v7739
    %v7756 = vmul.f32 %v7740, %v7740
    %v7757 = vmul.f32 %v7741, %v7741
    %v7758 = vmul.f32 %v7742, %v7742
    %v7759 = vmul.f32 %v7743, %v7743
    %v7760 = vsel %vm970, %v7744, 0.0
    %7761 = vadd.xlane.f32.xlu0 %v7760
    %v7762 = vpop.xlane.xlu0 %7761
    %v7763 = vsel %vm970, %v7745, 0.0
    %7764 = vadd.xlane.f32.xlu0 %v7763
    %v7765 = vpop.xlane.xlu0 %7764
    %v7766 = vsel %vm970, %v7746, 0.0
    %7767 = vadd.xlane.f32.xlu0 %v7766
    %v7768 = vpop.xlane.xlu0 %7767
    %v7769 = vsel %vm970, %v7747, 0.0
    %7770 = vadd.xlane.f32.xlu0 %v7769
    %v7771 = vpop.xlane.xlu0 %7770
    %v7772 = vsel %vm970, %v7748, 0.0
    %7773 = vadd.xlane.f32.xlu0 %v7772
    %v7774 = vpop.xlane.xlu0 %7773
    %v7775 = vsel %vm970, %v7749, 0.0
    %7776 = vadd.xlane.f32.xlu0 %v7775
    %v7777 = vpop.xlane.xlu0 %7776
    %v7778 = vsel %vm970, %v7750, 0.0
    %7779 = vadd.xlane.f32.xlu0 %v7778
    %v7780 = vpop.xlane.xlu0 %7779
    %v7781 = vsel %vm970, %v7751, 0.0
    %7782 = vadd.xlane.f32.xlu0 %v7781
    %v7783 = vpop.xlane.xlu0 %7782
    %v7784 = vsel %vm970, %v7752, 0.0
    %7785 = vadd.xlane.f32.xlu0 %v7784
    %v7786 = vpop.xlane.xlu0 %7785
    %v7787 = vsel %vm970, %v7753, 0.0
    %7788 = vadd.xlane.f32.xlu0 %v7787
    %v7789 = vpop.xlane.xlu0 %7788
    %v7790 = vsel %vm970, %v7754, 0.0
    %7791 = vadd.xlane.f32.xlu0 %v7790
    %v7792 = vpop.xlane.xlu0 %7791
    %v7793 = vsel %vm970, %v7755, 0.0
    %7794 = vadd.xlane.f32.xlu0 %v7793
    %v7795 = vpop.xlane.xlu0 %7794
    %v7796 = vsel %vm970, %v7756, 0.0
    %7797 = vadd.xlane.f32.xlu0 %v7796
    %v7798 = vpop.xlane.xlu0 %7797
    %v7799 = vsel %vm970, %v7757, 0.0
    %7800 = vadd.xlane.f32.xlu0 %v7799
    %v7801 = vpop.xlane.xlu0 %7800
    %v7802 = vsel %vm970, %v7758, 0.0
    %7803 = vadd.xlane.f32.xlu0 %v7802
    %v7804 = vpop.xlane.xlu0 %7803
    %v7805 = vsel %vm970, %v7759, 0.0
    %7806 = vadd.xlane.f32.xlu0 %v7805
    %v7807 = vpop.xlane.xlu0 %7806
    %v7808 = vmul.f32 %v7762, %v3895
    %v7809 = vmul.f32 %v7765, %v3895
    %v7810 = vmul.f32 %v7768, %v3895
    %v7811 = vmul.f32 %v7771, %v3895
    %v7812 = vmul.f32 %v7774, %v3895
    %v7813 = vmul.f32 %v7777, %v3895
    %v7814 = vmul.f32 %v7780, %v3895
    %v7815 = vmul.f32 %v7783, %v3895
    %v7816 = vmul.f32 %v7786, %v3895
    %v7817 = vmul.f32 %v7789, %v3895
    %v7818 = vmul.f32 %v7792, %v3895
    %v7819 = vmul.f32 %v7795, %v3895
    %v7820 = vmul.f32 %v7798, %v3895
    %v7821 = vmul.f32 %v7801, %v3895
    %v7822 = vmul.f32 %v7804, %v3895
    %v7823 = vmul.f32 %v7807, %v3895
    %v7824 = vadd.f32 %v7808, 1e-05
    %v7825 = vadd.f32 %v7809, 1e-05
    %v7826 = vadd.f32 %v7810, 1e-05
    %v7827 = vadd.f32 %v7811, 1e-05
    %v7828 = vadd.f32 %v7812, 1e-05
    %v7829 = vadd.f32 %v7813, 1e-05
    %v7830 = vadd.f32 %v7814, 1e-05
    %v7831 = vadd.f32 %v7815, 1e-05
    %v7832 = vadd.f32 %v7816, 1e-05
    %v7833 = vadd.f32 %v7817, 1e-05
    %v7834 = vadd.f32 %v7818, 1e-05
    %v7835 = vadd.f32 %v7819, 1e-05
    %v7836 = vadd.f32 %v7820, 1e-05
    %v7837 = vadd.f32 %v7821, 1e-05
    %v7838 = vadd.f32 %v7822, 1e-05
    %v7839 = vadd.f32 %v7823, 1e-05
    %v7840 = vrsqrt.pop %v7824
    %v7841 = vrsqrt.pop %v7825
    %v7842 = vrsqrt.pop %v7826
    %v7843 = vrsqrt.pop %v7827
    %v7844 = vrsqrt.pop %v7828
    %v7845 = vrsqrt.pop %v7829
    %v7846 = vrsqrt.pop %v7830
    %v7847 = vrsqrt.pop %v7831
    %v7848 = vrsqrt.pop %v7832
    %v7849 = vrsqrt.pop %v7833
    %v7850 = vrsqrt.pop %v7834
    %v7851 = vrsqrt.pop %v7835
    %v7852 = vrsqrt.pop %v7836
    %v7853 = vrsqrt.pop %v7837
    %v7854 = vrsqrt.pop %v7838
    %v7855 = vrsqrt.pop %v7839
    %v7856 = vmul.f32 %v7728, %v7840
    %v7857 = vmul.f32 %v7729, %v7841
    %v7858 = vmul.f32 %v7730, %v7842
    %v7859 = vmul.f32 %v7731, %v7843
    %v7860 = vmul.f32 %v7732, %v7844
    %v7861 = vmul.f32 %v7733, %v7845
    %v7862 = vmul.f32 %v7734, %v7846
    %v7863 = vmul.f32 %v7735, %v7847
    %v7864 = vmul.f32 %v7736, %v7848
    %v7865 = vmul.f32 %v7737, %v7849
    %v7866 = vmul.f32 %v7738, %v7850
    %v7867 = vmul.f32 %v7739, %v7851
    %v7868 = vmul.f32 %v7740, %v7852
    %v7869 = vmul.f32 %v7741, %v7853
    %v7870 = vmul.f32 %v7742, %v7854
    %v7871 = vmul.f32 %v7743, %v7855
    %v7872 = vlaneseq
    %v7873 = vshrl.u32 %v7872, 7
    %v7874 = vsub.s32 6, %v7873
    %v7875 = vrot.slane %v4802, %v7874
    %v7876 = vmul.f32 %v7856, %v7875
    %v7877 = vmul.f32 %v7857, %v7875
    %v7878 = vmul.f32 %v7858, %v7875
    %v7879 = vmul.f32 %v7859, %v7875
    %v7880 = vmul.f32 %v7860, %v7875
    %v7881 = vmul.f32 %v7861, %v7875
    %v7882 = vmul.f32 %v7862, %v7875
    %v7883 = vmul.f32 %v7863, %v7875
    %v7884 = vmul.f32 %v7864, %v7875
    %v7885 = vmul.f32 %v7865, %v7875
    %v7886 = vmul.f32 %v7866, %v7875
    %v7887 = vmul.f32 %v7867, %v7875
    %v7888 = vmul.f32 %v7868, %v7875
    %v7889 = vmul.f32 %v7869, %v7875
    %v7890 = vmul.f32 %v7870, %v7875
    %v7891 = vmul.f32 %v7871, %v7875
    %v7892 = vlaneseq
    %v7893 = vshrl.u32 %v7892, 7
    %v7894 = vsub.s32 7, %v7893
    %v7895 = vrot.slane %v4802, %v7894
    %v7896 = vadd.f32 %v7876, %v7895
    %v7897 = vadd.f32 %v7877, %v7895
    %v7898 = vadd.f32 %v7878, %v7895
    %v7899 = vadd.f32 %v7879, %v7895
    %v7900 = vadd.f32 %v7880, %v7895
    %v7901 = vadd.f32 %v7881, %v7895
    %v7902 = vadd.f32 %v7882, %v7895
    %v7903 = vadd.f32 %v7883, %v7895
    %v7904 = vadd.f32 %v7884, %v7895
    %v7905 = vadd.f32 %v7885, %v7895
    %v7906 = vadd.f32 %v7886, %v7895
    %v7907 = vadd.f32 %v7887, %v7895
    %v7908 = vadd.f32 %v7888, %v7895
    %v7909 = vadd.f32 %v7889, %v7895
    %v7910 = vadd.f32 %v7890, %v7895
    %v7911 = vadd.f32 %v7891, %v7895
    %v7912 = vlaneseq
    %v7913 = vshrl.u32 %v7912, 7
    %v7914 = vsub.s32 4, %v7913
    %v7915 = vrot.slane %v4802, %v7914
    %v7917 = vsel %vm970, %v7896, 0
    %v7920 = vsel %vm970, %v7897, 0
    %v7923 = vsel %vm970, %v7898, 0
    %v7926 = vsel %vm970, %v7899, 0
    %v7929 = vsel %vm970, %v7900, 0
    %v7932 = vsel %vm970, %v7901, 0
    %v7935 = vsel %vm970, %v7902, 0
    %v7938 = vsel %vm970, %v7903, 0
    %v7941 = vsel %vm970, %v7904, 0
    %v7944 = vsel %vm970, %v7905, 0
    %v7947 = vsel %vm970, %v7906, 0
    %v7950 = vsel %vm970, %v7907, 0
    %v7953 = vsel %vm970, %v7908, 0
    %v7956 = vsel %vm970, %v7909, 0
    %v7959 = vsel %vm970, %v7910, 0
    %v7962 = vsel %vm970, %v7911, 0
    %7964 = vmatprep.subr.mxu0 0.0
    %7965 = vmatpush1.msra.mxu0 0.0
    %7966 = vmatprep.subr.mxu0 0.0
    %7967 = vmatpush1.msra.mxu0 0.0
    %7968 = vmatprep.subr.mxu0 0.0
    %7969 = vmatpush1.msra.mxu0 0.0
    %7970 = vmatprep.subr.mxu0 0.0
    %7971 = vmatpush1.msra.mxu0 0.0
    %7972 = vmatprep.subr.mxu0 0.0
    %7973 = vmatpush1.msra.mxu0 0.0
    %7974 = vmatprep.subr.mxu0 0.0
    %7975 = vmatpush1.msra.mxu0 0.0
    %7976 = vmatprep.subr.mxu0 0.0
    %7977 = vmatpush1.msra.mxu0 0.0
    %7978 = vmatprep.subr.mxu0 0.0
    %7979 = vmatpush1.msra.mxu0 0.0
    %7980 = vmatprep.subr.mxu0 0.0
    %7981 = vmatpush1.msra.mxu0 0.0
    %7982 = vmatprep.subr.mxu0 0.0
    %7983 = vmatpush1.msra.mxu0 0.0
    %7984 = vmatprep.subr.mxu0 0.0
    %7985 = vmatpush1.msra.mxu0 0.0
    %7986 = vmatprep.subr.mxu0 0.0
    %7987 = vmatpush1.msra.mxu0 0.0
    %7988 = vmatprep.subr.mxu0 0.0
    %7989 = vmatpush1.msra.mxu0 %v4791
    %7990 = vmatprep.subr.mxu0 0.0
    %7991 = vmatpush1.msra.mxu0 %v4786
    %7992 = vmatprep.subr.mxu0 0.0
    %7993 = vmatpush1.msra.mxu0 %v4781
    %7994 = vmatprep.subr.mxu0 0.0
    %7995 = vmatpush1.msra.mxu0 %v4776
    %7996 = vmatprep.subr.mxu0 0.0
    %7997 = vmatpush2.msra.mxu0 0.0
    %7998 = vmatprep.subr.mxu0 0.0
    %7999 = vmatpush2.msra.mxu0 0.0
    %8000 = vmatprep.subr.mxu0 0.0
    %8001 = vmatpush2.msra.mxu0 0.0
    %8002 = vmatprep.subr.mxu0 0.0
    %8003 = vmatpush2.msra.mxu0 0.0
    %8004 = vmatprep.subr.mxu0 0.0
    %8005 = vmatpush2.msra.mxu0 0.0
    %8006 = vmatprep.subr.mxu0 0.0
    %8007 = vmatpush2.msra.mxu0 0.0
    %8008 = vmatprep.subr.mxu0 0.0
    %8009 = vmatpush2.msra.mxu0 0.0
    %8010 = vmatprep.subr.mxu0 0.0
    %8011 = vmatpush2.msra.mxu0 0.0
    %8012 = vmatprep.subr.mxu0 0.0
    %8013 = vmatpush2.msra.mxu0 0.0
    %8014 = vmatprep.subr.mxu0 0.0
    %8015 = vmatpush2.msra.mxu0 0.0
    %8016 = vmatprep.subr.mxu0 0.0
    %8017 = vmatpush2.msra.mxu0 0.0
    %8018 = vmatprep.subr.mxu0 0.0
    %8019 = vmatpush2.msra.mxu0 0.0
    %8020 = vmatprep.subr.mxu0 0.0
    %8021 = vmatpush2.msra.mxu0 0.0
    %8022 = vmatprep.subr.mxu0 0.0
    %8023 = vmatpush2.msra.mxu0 0.0
    %8024 = vmatprep.subr.mxu0 0.0
    %8025 = vmatpush2.msra.mxu0 0.0
    %8026 = vmatprep.subr.mxu0 0.0
    %8027 = vmatpush2.msra.mxu0 0.0
    %8028 = vmatprep.mubr.f32.mxu0 0.0
    %8029 = vmatmul.mubr.f32.gmra.mxu0 %v7917
    %v8030 = vpop.f32.mrf.mxu0
    %v8031 = vadd.f32 %v7915, %v8030
    %v8032 = vpop.f32.mrf.mxu0
    %8033 = vmatprep.mubr.f32.mxu0 0.0
    %8034 = vmatmul.mubr.f32.gmra.mxu0 %v7920
    %v8035 = vpop.f32.mrf.mxu0
    %v8036 = vadd.f32 %v7915, %v8035
    %v8037 = vpop.f32.mrf.mxu0
    %8038 = vmatprep.mubr.f32.mxu0 0.0
    %8039 = vmatmul.mubr.f32.gmra.mxu0 %v7923
    %v8040 = vpop.f32.mrf.mxu0
    %v8041 = vadd.f32 %v7915, %v8040
    %v8042 = vpop.f32.mrf.mxu0
    %8043 = vmatprep.mubr.f32.mxu0 0.0
    %8044 = vmatmul.mubr.f32.gmra.mxu0 %v7926
    %v8045 = vpop.f32.mrf.mxu0
    %v8046 = vadd.f32 %v7915, %v8045
    %v8047 = vpop.f32.mrf.mxu0
    %8048 = vmatprep.mubr.f32.mxu0 0.0
    %8049 = vmatmul.mubr.f32.gmra.mxu0 %v7929
    %v8050 = vpop.f32.mrf.mxu0
    %v8051 = vadd.f32 %v7915, %v8050
    %v8052 = vpop.f32.mrf.mxu0
    %8053 = vmatprep.mubr.f32.mxu0 0.0
    %8054 = vmatmul.mubr.f32.gmra.mxu0 %v7932
    %v8055 = vpop.f32.mrf.mxu0
    %v8056 = vadd.f32 %v7915, %v8055
    %v8057 = vpop.f32.mrf.mxu0
    %8058 = vmatprep.mubr.f32.mxu0 0.0
    %8059 = vmatmul.mubr.f32.gmra.mxu0 %v7935
    %v8060 = vpop.f32.mrf.mxu0
    %v8061 = vadd.f32 %v7915, %v8060
    %v8062 = vpop.f32.mrf.mxu0
    %8063 = vmatprep.mubr.f32.mxu0 0.0
    %8064 = vmatmul.mubr.f32.gmra.mxu0 %v7938
    %v8065 = vpop.f32.mrf.mxu0
    %v8066 = vadd.f32 %v7915, %v8065
    %v8067 = vpop.f32.mrf.mxu0
    %8068 = vmatprep.mubr.f32.mxu0 0.0
    %8069 = vmatmul.mubr.f32.gmra.mxu0 %v7941
    %v8070 = vpop.f32.mrf.mxu0
    %v8071 = vadd.f32 %v7915, %v8070
    %v8072 = vpop.f32.mrf.mxu0
    %8073 = vmatprep.mubr.f32.mxu0 0.0
    %8074 = vmatmul.mubr.f32.gmra.mxu0 %v7944
    %v8075 = vpop.f32.mrf.mxu0
    %v8076 = vadd.f32 %v7915, %v8075
    %v8077 = vpop.f32.mrf.mxu0
    %8078 = vmatprep.mubr.f32.mxu0 0.0
    %8079 = vmatmul.mubr.f32.gmra.mxu0 %v7947
    %v8080 = vpop.f32.mrf.mxu0
    %v8081 = vadd.f32 %v7915, %v8080
    %v8082 = vpop.f32.mrf.mxu0
    %8083 = vmatprep.mubr.f32.mxu0 0.0
    %8084 = vmatmul.mubr.f32.gmra.mxu0 %v7950
    %v8085 = vpop.f32.mrf.mxu0
    %v8086 = vadd.f32 %v7915, %v8085
    %v8087 = vpop.f32.mrf.mxu0
    %8088 = vmatprep.mubr.f32.mxu0 0.0
    %8089 = vmatmul.mubr.f32.gmra.mxu0 %v7953
    %v8090 = vpop.f32.mrf.mxu0
    %v8091 = vadd.f32 %v7915, %v8090
    %v8092 = vpop.f32.mrf.mxu0
    %8093 = vmatprep.mubr.f32.mxu0 0.0
    %8094 = vmatmul.mubr.f32.gmra.mxu0 %v7956
    %v8095 = vpop.f32.mrf.mxu0
    %v8096 = vadd.f32 %v7915, %v8095
    %v8097 = vpop.f32.mrf.mxu0
    %8098 = vmatprep.mubr.f32.mxu0 0.0
    %8099 = vmatmul.mubr.f32.gmra.mxu0 %v7959
    %v8100 = vpop.f32.mrf.mxu0
    %v8101 = vadd.f32 %v7915, %v8100
    %v8102 = vpop.f32.mrf.mxu0
    %8103 = vmatprep.mubr.f32.mxu0 0.0
    %8104 = vmatmul.mubr.f32.gmra.mxu0 %v7962
    %v8105 = vpop.f32.mrf.mxu0
    %v8106 = vadd.f32 %v7915, %v8105
    %v8107 = vpop.f32.mrf.mxu0
    %8108 = vdwg.mxu0
    %v8109 = vmax.f32 %v8031, 0.0
    %v8110 = vmax.f32 %v8036, 0.0
    %v8111 = vmax.f32 %v8041, 0.0
    %v8112 = vmax.f32 %v8046, 0.0
    %v8113 = vmax.f32 %v8051, 0.0
    %v8114 = vmax.f32 %v8056, 0.0
    %v8115 = vmax.f32 %v8061, 0.0
    %v8116 = vmax.f32 %v8066, 0.0
    %v8117 = vmax.f32 %v8071, 0.0
    %v8118 = vmax.f32 %v8076, 0.0
    %v8119 = vmax.f32 %v8081, 0.0
    %v8120 = vmax.f32 %v8086, 0.0
    %v8121 = vmax.f32 %v8091, 0.0
    %v8122 = vmax.f32 %v8096, 0.0
    %v8123 = vmax.f32 %v8101, 0.0
    %v8124 = vmax.f32 %v8106, 0.0
    %v8125 = vlaneseq
    %v8126 = vshrl.u32 %v8125, 7
    %v8127 = vsub.s32 5, %v8126
    %v8128 = vrot.slane %v4802, %v8127
    %v8130 = vsel %vm4313, %v8109, 0
    %v8133 = vsel %vm4313, %v8110, 0
    %v8136 = vsel %vm4313, %v8111, 0
    %v8139 = vsel %vm4313, %v8112, 0
    %v8142 = vsel %vm4313, %v8113, 0
    %v8145 = vsel %vm4313, %v8114, 0
    %v8148 = vsel %vm4313, %v8115, 0
    %v8151 = vsel %vm4313, %v8116, 0
    %v8154 = vsel %vm4313, %v8117, 0
    %v8157 = vsel %vm4313, %v8118, 0
    %v8160 = vsel %vm4313, %v8119, 0
    %v8163 = vsel %vm4313, %v8120, 0
    %v8166 = vsel %vm4313, %v8121, 0
    %v8169 = vsel %vm4313, %v8122, 0
    %v8172 = vsel %vm4313, %v8123, 0
    %v8175 = vsel %vm4313, %v8124, 0
    %8177 = vmatprep.subr.mxu0 0.0
    %8178 = vmatpush1.msra.mxu0 0.0
    %8179 = vmatprep.subr.mxu0 0.0
    %8180 = vmatpush1.msra.mxu0 0.0
    %8181 = vmatprep.subr.mxu0 0.0
    %8182 = vmatpush1.msra.mxu0 0.0
    %8183 = vmatprep.subr.mxu0 0.0
    %8184 = vmatpush1.msra.mxu0 0.0
    %8185 = vmatprep.subr.mxu0 0.0
    %8186 = vmatpush1.msra.mxu0 0.0
    %8187 = vmatprep.subr.mxu0 0.0
    %8188 = vmatpush1.msra.mxu0 0.0
    %8189 = vmatprep.subr.mxu0 0.0
    %8190 = vmatpush1.msra.mxu0 0.0
    %8191 = vmatprep.subr.mxu0 0.0
    %8192 = vmatpush1.msra.mxu0 0.0
    %8193 = vmatprep.subr.mxu0 0.0
    %8194 = vmatpush1.msra.mxu0 %v4800
    %8195 = vmatprep.subr.mxu0 0.0
    %8196 = vmatpush1.msra.mxu0 %v4799
    %8197 = vmatprep.subr.mxu0 0.0
    %8198 = vmatpush1.msra.mxu0 %v4798
    %8199 = vmatprep.subr.mxu0 0.0
    %8200 = vmatpush1.msra.mxu0 %v4797
    %8201 = vmatprep.subr.mxu0 0.0
    %8202 = vmatpush1.msra.mxu0 %v4796
    %8203 = vmatprep.subr.mxu0 0.0
    %8204 = vmatpush1.msra.mxu0 %v4795
    %8205 = vmatprep.subr.mxu0 0.0
    %8206 = vmatpush1.msra.mxu0 %v4794
    %8207 = vmatprep.subr.mxu0 0.0
    %8208 = vmatpush1.msra.mxu0 %v4793
    %8209 = vmatprep.subr.mxu0 0.0
    %8210 = vmatpush2.msra.mxu0 0.0
    %8211 = vmatprep.subr.mxu0 0.0
    %8212 = vmatpush2.msra.mxu0 0.0
    %8213 = vmatprep.subr.mxu0 0.0
    %8214 = vmatpush2.msra.mxu0 0.0
    %8215 = vmatprep.subr.mxu0 0.0
    %8216 = vmatpush2.msra.mxu0 0.0
    %8217 = vmatprep.subr.mxu0 0.0
    %8218 = vmatpush2.msra.mxu0 0.0
    %8219 = vmatprep.subr.mxu0 0.0
    %8220 = vmatpush2.msra.mxu0 0.0
    %8221 = vmatprep.subr.mxu0 0.0
    %8222 = vmatpush2.msra.mxu0 0.0
    %8223 = vmatprep.subr.mxu0 0.0
    %8224 = vmatpush2.msra.mxu0 0.0
    %8225 = vmatprep.subr.mxu0 0.0
    %8226 = vmatpush2.msra.mxu0 0.0
    %8227 = vmatprep.subr.mxu0 0.0
    %8228 = vmatpush2.msra.mxu0 0.0
    %8229 = vmatprep.subr.mxu0 0.0
    %8230 = vmatpush2.msra.mxu0 0.0
    %8231 = vmatprep.subr.mxu0 0.0
    %8232 = vmatpush2.msra.mxu0 0.0
    %8233 = vmatprep.subr.mxu0 0.0
    %8234 = vmatpush2.msra.mxu0 0.0
    %8235 = vmatprep.subr.mxu0 0.0
    %8236 = vmatpush2.msra.mxu0 0.0
    %8237 = vmatprep.subr.mxu0 0.0
    %8238 = vmatpush2.msra.mxu0 0.0
    %8239 = vmatprep.subr.mxu0 0.0
    %8240 = vmatpush2.msra.mxu0 0.0
    %8241 = vmatprep.mubr.f32.mxu0 0.0
    %8242 = vmatmul.mubr.f32.gmra.mxu0 %v8130
    %v8243 = vpop.f32.mrf.mxu0
    %v8244 = vadd.f32 %v8128, %v8243
    %v8245 = vpop.f32.mrf.mxu0
    %8246 = vmatprep.mubr.f32.mxu0 0.0
    %8247 = vmatmul.mubr.f32.gmra.mxu0 %v8133
    %v8248 = vpop.f32.mrf.mxu0
    %v8249 = vadd.f32 %v8128, %v8248
    %v8250 = vpop.f32.mrf.mxu0
    %8251 = vmatprep.mubr.f32.mxu0 0.0
    %8252 = vmatmul.mubr.f32.gmra.mxu0 %v8136
    %v8253 = vpop.f32.mrf.mxu0
    %v8254 = vadd.f32 %v8128, %v8253
    %v8255 = vpop.f32.mrf.mxu0
    %8256 = vmatprep.mubr.f32.mxu0 0.0
    %8257 = vmatmul.mubr.f32.gmra.mxu0 %v8139
    %v8258 = vpop.f32.mrf.mxu0
    %v8259 = vadd.f32 %v8128, %v8258
    %v8260 = vpop.f32.mrf.mxu0
    %8261 = vmatprep.mubr.f32.mxu0 0.0
    %8262 = vmatmul.mubr.f32.gmra.mxu0 %v8142
    %v8263 = vpop.f32.mrf.mxu0
    %v8264 = vadd.f32 %v8128, %v8263
    %v8265 = vpop.f32.mrf.mxu0
    %8266 = vmatprep.mubr.f32.mxu0 0.0
    %8267 = vmatmul.mubr.f32.gmra.mxu0 %v8145
    %v8268 = vpop.f32.mrf.mxu0
    %v8269 = vadd.f32 %v8128, %v8268
    %v8270 = vpop.f32.mrf.mxu0
    %8271 = vmatprep.mubr.f32.mxu0 0.0
    %8272 = vmatmul.mubr.f32.gmra.mxu0 %v8148
    %v8273 = vpop.f32.mrf.mxu0
    %v8274 = vadd.f32 %v8128, %v8273
    %v8275 = vpop.f32.mrf.mxu0
    %8276 = vmatprep.mubr.f32.mxu0 0.0
    %8277 = vmatmul.mubr.f32.gmra.mxu0 %v8151
    %v8278 = vpop.f32.mrf.mxu0
    %v8279 = vadd.f32 %v8128, %v8278
    %v8280 = vpop.f32.mrf.mxu0
    %8281 = vmatprep.mubr.f32.mxu0 0.0
    %8282 = vmatmul.mubr.f32.gmra.mxu0 %v8154
    %v8283 = vpop.f32.mrf.mxu0
    %v8284 = vadd.f32 %v8128, %v8283
    %v8285 = vpop.f32.mrf.mxu0
    %8286 = vmatprep.mubr.f32.mxu0 0.0
    %8287 = vmatmul.mubr.f32.gmra.mxu0 %v8157
    %v8288 = vpop.f32.mrf.mxu0
    %v8289 = vadd.f32 %v8128, %v8288
    %v8290 = vpop.f32.mrf.mxu0
    %8291 = vmatprep.mubr.f32.mxu0 0.0
    %8292 = vmatmul.mubr.f32.gmra.mxu0 %v8160
    %v8293 = vpop.f32.mrf.mxu0
    %v8294 = vadd.f32 %v8128, %v8293
    %v8295 = vpop.f32.mrf.mxu0
    %8296 = vmatprep.mubr.f32.mxu0 0.0
    %8297 = vmatmul.mubr.f32.gmra.mxu0 %v8163
    %v8298 = vpop.f32.mrf.mxu0
    %v8299 = vadd.f32 %v8128, %v8298
    %v8300 = vpop.f32.mrf.mxu0
    %8301 = vmatprep.mubr.f32.mxu0 0.0
    %8302 = vmatmul.mubr.f32.gmra.mxu0 %v8166
    %v8303 = vpop.f32.mrf.mxu0
    %v8304 = vadd.f32 %v8128, %v8303
    %v8305 = vpop.f32.mrf.mxu0
    %8306 = vmatprep.mubr.f32.mxu0 0.0
    %8307 = vmatmul.mubr.f32.gmra.mxu0 %v8169
    %v8308 = vpop.f32.mrf.mxu0
    %v8309 = vadd.f32 %v8128, %v8308
    %v8310 = vpop.f32.mrf.mxu0
    %8311 = vmatprep.mubr.f32.mxu0 0.0
    %8312 = vmatmul.mubr.f32.gmra.mxu0 %v8172
    %v8313 = vpop.f32.mrf.mxu0
    %v8314 = vadd.f32 %v8128, %v8313
    %v8315 = vpop.f32.mrf.mxu0
    %8316 = vmatprep.mubr.f32.mxu0 0.0
    %8317 = vmatmul.mubr.f32.gmra.mxu0 %v8175
    %v8318 = vpop.f32.mrf.mxu0
    %v8319 = vadd.f32 %v8128, %v8318
    %v8320 = vpop.f32.mrf.mxu0
    %8321 = vdwg.mxu0
    %v8322 = vadd.f32 %v7896, %v8244
    %v8323 = vadd.f32 %v7897, %v8249
    %v8324 = vadd.f32 %v7898, %v8254
    %v8325 = vadd.f32 %v7899, %v8259
    %v8326 = vadd.f32 %v7900, %v8264
    %v8327 = vadd.f32 %v7901, %v8269
    %v8328 = vadd.f32 %v7902, %v8274
    %v8329 = vadd.f32 %v7903, %v8279
    %v8330 = vadd.f32 %v7904, %v8284
    %v8331 = vadd.f32 %v7905, %v8289
    %v8332 = vadd.f32 %v7906, %v8294
    %v8333 = vadd.f32 %v7907, %v8299
    %v8334 = vadd.f32 %v7908, %v8304
    %v8335 = vadd.f32 %v7909, %v8309
    %v8336 = vadd.f32 %v7910, %v8314
    %v8337 = vadd.f32 %v7911, %v8319
    %v8338 = vsel %vm970, %v8322, 0.0
    %8339 = vadd.xlane.f32.xlu0 %v8338
    %v8340 = vpop.xlane.xlu0 %8339
    %v8341 = vsel %vm970, %v8323, 0.0
    %8342 = vadd.xlane.f32.xlu0 %v8341
    %v8343 = vpop.xlane.xlu0 %8342
    %v8344 = vsel %vm970, %v8324, 0.0
    %8345 = vadd.xlane.f32.xlu0 %v8344
    %v8346 = vpop.xlane.xlu0 %8345
    %v8347 = vsel %vm970, %v8325, 0.0
    %8348 = vadd.xlane.f32.xlu0 %v8347
    %v8349 = vpop.xlane.xlu0 %8348
    %v8350 = vsel %vm970, %v8326, 0.0
    %8351 = vadd.xlane.f32.xlu0 %v8350
    %v8352 = vpop.xlane.xlu0 %8351
    %v8353 = vsel %vm970, %v8327, 0.0
    %8354 = vadd.xlane.f32.xlu0 %v8353
    %v8355 = vpop.xlane.xlu0 %8354
    %v8356 = vsel %vm970, %v8328, 0.0
    %8357 = vadd.xlane.f32.xlu0 %v8356
    %v8358 = vpop.xlane.xlu0 %8357
    %v8359 = vsel %vm970, %v8329, 0.0
    %8360 = vadd.xlane.f32.xlu0 %v8359
    %v8361 = vpop.xlane.xlu0 %8360
    %v8362 = vsel %vm970, %v8330, 0.0
    %8363 = vadd.xlane.f32.xlu0 %v8362
    %v8364 = vpop.xlane.xlu0 %8363
    %v8365 = vsel %vm970, %v8331, 0.0
    %8366 = vadd.xlane.f32.xlu0 %v8365
    %v8367 = vpop.xlane.xlu0 %8366
    %v8368 = vsel %vm970, %v8332, 0.0
    %8369 = vadd.xlane.f32.xlu0 %v8368
    %v8370 = vpop.xlane.xlu0 %8369
    %v8371 = vsel %vm970, %v8333, 0.0
    %8372 = vadd.xlane.f32.xlu0 %v8371
    %v8373 = vpop.xlane.xlu0 %8372
    %v8374 = vsel %vm970, %v8334, 0.0
    %8375 = vadd.xlane.f32.xlu0 %v8374
    %v8376 = vpop.xlane.xlu0 %8375
    %v8377 = vsel %vm970, %v8335, 0.0
    %8378 = vadd.xlane.f32.xlu0 %v8377
    %v8379 = vpop.xlane.xlu0 %8378
    %v8380 = vsel %vm970, %v8336, 0.0
    %8381 = vadd.xlane.f32.xlu0 %v8380
    %v8382 = vpop.xlane.xlu0 %8381
    %v8383 = vsel %vm970, %v8337, 0.0
    %8384 = vadd.xlane.f32.xlu0 %v8383
    %v8385 = vpop.xlane.xlu0 %8384
    %v8386 = vmul.f32 %v8340, %v3895
    %v8387 = vmul.f32 %v8343, %v3895
    %v8388 = vmul.f32 %v8346, %v3895
    %v8389 = vmul.f32 %v8349, %v3895
    %v8390 = vmul.f32 %v8352, %v3895
    %v8391 = vmul.f32 %v8355, %v3895
    %v8392 = vmul.f32 %v8358, %v3895
    %v8393 = vmul.f32 %v8361, %v3895
    %v8394 = vmul.f32 %v8364, %v3895
    %v8395 = vmul.f32 %v8367, %v3895
    %v8396 = vmul.f32 %v8370, %v3895
    %v8397 = vmul.f32 %v8373, %v3895
    %v8398 = vmul.f32 %v8376, %v3895
    %v8399 = vmul.f32 %v8379, %v3895
    %v8400 = vmul.f32 %v8382, %v3895
    %v8401 = vmul.f32 %v8385, %v3895
    %v8402 = vsub.f32 %v8322, %v8386
    %v8403 = vsub.f32 %v8323, %v8387
    %v8404 = vsub.f32 %v8324, %v8388
    %v8405 = vsub.f32 %v8325, %v8389
    %v8406 = vsub.f32 %v8326, %v8390
    %v8407 = vsub.f32 %v8327, %v8391
    %v8408 = vsub.f32 %v8328, %v8392
    %v8409 = vsub.f32 %v8329, %v8393
    %v8410 = vsub.f32 %v8330, %v8394
    %v8411 = vsub.f32 %v8331, %v8395
    %v8412 = vsub.f32 %v8332, %v8396
    %v8413 = vsub.f32 %v8333, %v8397
    %v8414 = vsub.f32 %v8334, %v8398
    %v8415 = vsub.f32 %v8335, %v8399
    %v8416 = vsub.f32 %v8336, %v8400
    %v8417 = vsub.f32 %v8337, %v8401
    %v8418 = vmul.f32 %v8402, %v8402
    %v8419 = vmul.f32 %v8403, %v8403
    %v8420 = vmul.f32 %v8404, %v8404
    %v8421 = vmul.f32 %v8405, %v8405
    %v8422 = vmul.f32 %v8406, %v8406
    %v8423 = vmul.f32 %v8407, %v8407
    %v8424 = vmul.f32 %v8408, %v8408
    %v8425 = vmul.f32 %v8409, %v8409
    %v8426 = vmul.f32 %v8410, %v8410
    %v8427 = vmul.f32 %v8411, %v8411
    %v8428 = vmul.f32 %v8412, %v8412
    %v8429 = vmul.f32 %v8413, %v8413
    %v8430 = vmul.f32 %v8414, %v8414
    %v8431 = vmul.f32 %v8415, %v8415
    %v8432 = vmul.f32 %v8416, %v8416
    %v8433 = vmul.f32 %v8417, %v8417
    %v8434 = vsel %vm970, %v8418, 0.0
    %8435 = vadd.xlane.f32.xlu0 %v8434
    %v8436 = vpop.xlane.xlu0 %8435
    %v8437 = vsel %vm970, %v8419, 0.0
    %8438 = vadd.xlane.f32.xlu0 %v8437
    %v8439 = vpop.xlane.xlu0 %8438
    %v8440 = vsel %vm970, %v8420, 0.0
    %8441 = vadd.xlane.f32.xlu0 %v8440
    %v8442 = vpop.xlane.xlu0 %8441
    %v8443 = vsel %vm970, %v8421, 0.0
    %8444 = vadd.xlane.f32.xlu0 %v8443
    %v8445 = vpop.xlane.xlu0 %8444
    %v8446 = vsel %vm970, %v8422, 0.0
    %8447 = vadd.xlane.f32.xlu0 %v8446
    %v8448 = vpop.xlane.xlu0 %8447
    %v8449 = vsel %vm970, %v8423, 0.0
    %8450 = vadd.xlane.f32.xlu0 %v8449
    %v8451 = vpop.xlane.xlu0 %8450
    %v8452 = vsel %vm970, %v8424, 0.0
    %8453 = vadd.xlane.f32.xlu0 %v8452
    %v8454 = vpop.xlane.xlu0 %8453
    %v8455 = vsel %vm970, %v8425, 0.0
    %8456 = vadd.xlane.f32.xlu0 %v8455
    %v8457 = vpop.xlane.xlu0 %8456
    %v8458 = vsel %vm970, %v8426, 0.0
    %8459 = vadd.xlane.f32.xlu0 %v8458
    %v8460 = vpop.xlane.xlu0 %8459
    %v8461 = vsel %vm970, %v8427, 0.0
    %8462 = vadd.xlane.f32.xlu0 %v8461
    %v8463 = vpop.xlane.xlu0 %8462
    %v8464 = vsel %vm970, %v8428, 0.0
    %8465 = vadd.xlane.f32.xlu0 %v8464
    %v8466 = vpop.xlane.xlu0 %8465
    %v8467 = vsel %vm970, %v8429, 0.0
    %8468 = vadd.xlane.f32.xlu0 %v8467
    %v8469 = vpop.xlane.xlu0 %8468
    %v8470 = vsel %vm970, %v8430, 0.0
    %8471 = vadd.xlane.f32.xlu0 %v8470
    %v8472 = vpop.xlane.xlu0 %8471
    %v8473 = vsel %vm970, %v8431, 0.0
    %8474 = vadd.xlane.f32.xlu0 %v8473
    %v8475 = vpop.xlane.xlu0 %8474
    %v8476 = vsel %vm970, %v8432, 0.0
    %8477 = vadd.xlane.f32.xlu0 %v8476
    %v8478 = vpop.xlane.xlu0 %8477
    %v8479 = vsel %vm970, %v8433, 0.0
    %8480 = vadd.xlane.f32.xlu0 %v8479
    %v8481 = vpop.xlane.xlu0 %8480
    %v8482 = vmul.f32 %v8436, %v3895
    %v8483 = vmul.f32 %v8439, %v3895
    %v8484 = vmul.f32 %v8442, %v3895
    %v8485 = vmul.f32 %v8445, %v3895
    %v8486 = vmul.f32 %v8448, %v3895
    %v8487 = vmul.f32 %v8451, %v3895
    %v8488 = vmul.f32 %v8454, %v3895
    %v8489 = vmul.f32 %v8457, %v3895
    %v8490 = vmul.f32 %v8460, %v3895
    %v8491 = vmul.f32 %v8463, %v3895
    %v8492 = vmul.f32 %v8466, %v3895
    %v8493 = vmul.f32 %v8469, %v3895
    %v8494 = vmul.f32 %v8472, %v3895
    %v8495 = vmul.f32 %v8475, %v3895
    %v8496 = vmul.f32 %v8478, %v3895
    %v8497 = vmul.f32 %v8481, %v3895
    %v8498 = vadd.f32 %v8482, 1e-05
    %v8499 = vadd.f32 %v8483, 1e-05
    %v8500 = vadd.f32 %v8484, 1e-05
    %v8501 = vadd.f32 %v8485, 1e-05
    %v8502 = vadd.f32 %v8486, 1e-05
    %v8503 = vadd.f32 %v8487, 1e-05
    %v8504 = vadd.f32 %v8488, 1e-05
    %v8505 = vadd.f32 %v8489, 1e-05
    %v8506 = vadd.f32 %v8490, 1e-05
    %v8507 = vadd.f32 %v8491, 1e-05
    %v8508 = vadd.f32 %v8492, 1e-05
    %v8509 = vadd.f32 %v8493, 1e-05
    %v8510 = vadd.f32 %v8494, 1e-05
    %v8511 = vadd.f32 %v8495, 1e-05
    %v8512 = vadd.f32 %v8496, 1e-05
    %v8513 = vadd.f32 %v8497, 1e-05
    %v8514 = vrsqrt.pop %v8498
    %v8515 = vrsqrt.pop %v8499
    %v8516 = vrsqrt.pop %v8500
    %v8517 = vrsqrt.pop %v8501
    %v8518 = vrsqrt.pop %v8502
    %v8519 = vrsqrt.pop %v8503
    %v8520 = vrsqrt.pop %v8504
    %v8521 = vrsqrt.pop %v8505
    %v8522 = vrsqrt.pop %v8506
    %v8523 = vrsqrt.pop %v8507
    %v8524 = vrsqrt.pop %v8508
    %v8525 = vrsqrt.pop %v8509
    %v8526 = vrsqrt.pop %v8510
    %v8527 = vrsqrt.pop %v8511
    %v8528 = vrsqrt.pop %v8512
    %v8529 = vrsqrt.pop %v8513
    %v8530 = vmul.f32 %v8402, %v8514
    %v8531 = vmul.f32 %v8403, %v8515
    %v8532 = vmul.f32 %v8404, %v8516
    %v8533 = vmul.f32 %v8405, %v8517
    %v8534 = vmul.f32 %v8406, %v8518
    %v8535 = vmul.f32 %v8407, %v8519
    %v8536 = vmul.f32 %v8408, %v8520
    %v8537 = vmul.f32 %v8409, %v8521
    %v8538 = vmul.f32 %v8410, %v8522
    %v8539 = vmul.f32 %v8411, %v8523
    %v8540 = vmul.f32 %v8412, %v8524
    %v8541 = vmul.f32 %v8413, %v8525
    %v8542 = vmul.f32 %v8414, %v8526
    %v8543 = vmul.f32 %v8415, %v8527
    %v8544 = vmul.f32 %v8416, %v8528
    %v8545 = vmul.f32 %v8417, %v8529
    %v8546 = vlaneseq
    %v8547 = vshrl.u32 %v8546, 7
    %v8548 = vsub.s32 0, %v8547
    %v8549 = vrot.slane %v4803, %v8548
    %v8550 = vmul.f32 %v8530, %v8549
    %v8551 = vmul.f32 %v8531, %v8549
    %v8552 = vmul.f32 %v8532, %v8549
    %v8553 = vmul.f32 %v8533, %v8549
    %v8554 = vmul.f32 %v8534, %v8549
    %v8555 = vmul.f32 %v8535, %v8549
    %v8556 = vmul.f32 %v8536, %v8549
    %v8557 = vmul.f32 %v8537, %v8549
    %v8558 = vmul.f32 %v8538, %v8549
    %v8559 = vmul.f32 %v8539, %v8549
    %v8560 = vmul.f32 %v8540, %v8549
    %v8561 = vmul.f32 %v8541, %v8549
    %v8562 = vmul.f32 %v8542, %v8549
    %v8563 = vmul.f32 %v8543, %v8549
    %v8564 = vmul.f32 %v8544, %v8549
    %v8565 = vmul.f32 %v8545, %v8549
    %v8566 = vlaneseq
    %v8567 = vshrl.u32 %v8566, 7
    %v8568 = vsub.s32 1, %v8567
    %v8569 = vrot.slane %v4803, %v8568
    %v8570 = vadd.f32 %v8550, %v8569
    %v8571 = vadd.f32 %v8551, %v8569
    %v8572 = vadd.f32 %v8552, %v8569
    %v8573 = vadd.f32 %v8553, %v8569
    %v8574 = vadd.f32 %v8554, %v8569
    %v8575 = vadd.f32 %v8555, %v8569
    %v8576 = vadd.f32 %v8556, %v8569
    %v8577 = vadd.f32 %v8557, %v8569
    %v8578 = vadd.f32 %v8558, %v8569
    %v8579 = vadd.f32 %v8559, %v8569
    %v8580 = vadd.f32 %v8560, %v8569
    %v8581 = vadd.f32 %v8561, %v8569
    %v8582 = vadd.f32 %v8562, %v8569
    %v8583 = vadd.f32 %v8563, %v8569
    %v8584 = vadd.f32 %v8564, %v8569
    %v8585 = vadd.f32 %v8565, %v8569
    %8586 = vst.msk [vmem:[#allocation2] sm:$0xff] %vm970, %v8570
    %8587 = vst.msk [vmem:[#allocation2 + $0x8] sm:$0xff] %vm970, %v8571
    %8588 = vst.msk [vmem:[#allocation2 + $0x10] sm:$0xff] %vm970, %v8572
    %8589 = vst.msk [vmem:[#allocation2 + $0x18] sm:$0xff] %vm970, %v8573
    %8590 = vst.msk [vmem:[#allocation2 + $0x20] sm:$0xff] %vm970, %v8574
    %8591 = vst.msk [vmem:[#allocation2 + $0x28] sm:$0xff] %vm970, %v8575
    %8592 = vst.msk [vmem:[#allocation2 + $0x30] sm:$0xff] %vm970, %v8576
    %8593 = vst.msk [vmem:[#allocation2 + $0x38] sm:$0xff] %vm970, %v8577
    %8594 = vst.msk [vmem:[#allocation2 + $0x40] sm:$0xff] %vm970, %v8578
    %8595 = vst.msk [vmem:[#allocation2 + $0x48] sm:$0xff] %vm970, %v8579
    %8596 = vst.msk [vmem:[#allocation2 + $0x50] sm:$0xff] %vm970, %v8580
    %8597 = vst.msk [vmem:[#allocation2 + $0x58] sm:$0xff] %vm970, %v8581
    %8598 = vst.msk [vmem:[#allocation2 + $0x60] sm:$0xff] %vm970, %v8582
    %8599 = vst.msk [vmem:[#allocation2 + $0x68] sm:$0xff] %vm970, %v8583
    %8600 = vst.msk [vmem:[#allocation2 + $0x70] sm:$0xff] %vm970, %v8584
    %8601 = vst.msk [vmem:[#allocation2 + $0x78] sm:$0xff] %vm970, %v8585
    // Predicated region
    $region22: #{transformer_encoder_forward.1} parent=1 // pred_check
      _
    $region23: #{transformer_encoder_forward.1} parent=1 // pred_check_branch
      %8603 = sbr.rel (0) target = $region25
    $region24: #{transformer_encoder_forward.1} parent=1 // pred_region
      %s8605 = ssub.s32 2048, 2048
      %8606 = vsyncadd [#allocation3], %s8605
      %s8607 = sshll.u32 [#allocation2], 4
      %s8608 = int_to_ptr.vmem [resolvable:$true] %s8607
      %8613 = dma.vmem_to_hbm [thread:$0]  %s8608, 2048, %s5, [#allocation3], 128, 128, 8
    $region25: #{transformer_encoder_forward.1} parent=1 // pred_fallthru
      _
    // Predicated region
    $region26: #{transformer_encoder_forward.1} parent=1 // pred_check
      _
    $region27: #{transformer_encoder_forward.1} parent=1 // pred_check_branch
      %8615 = sbr.rel (0) target = $region29
    $region28: #{transformer_encoder_forward.1} parent=1 // pred_region
      %8616 = dma.done [#allocation3], 2048
    $region29: #{transformer_encoder_forward.1} parent=1 // pred_fallthru
      _
    %8617 = vsyncpa [#allocation3], 1

</llo_original>
